<compile_context>
chip_gen: v7x
topology: tpu7x:2x2x1
jax: 0.10.0
libtpu: 0.0.40
codegen_flags: <defaults>
</compile_context>

<pallas_src>
import jax
import jax.numpy as jnp
import numpy as np
from jax import lax
from jax.experimental import pallas as pl
from jax.experimental.pallas import tpu as pltpu

BN_EPS = 1e-5
LEAKY_SLOPE = 0.01
VMEM_LIMIT_BYTES = 32 * 1024 * 1024


# ---------------------------------------------------------------------------
# In-kernel helpers
# ---------------------------------------------------------------------------
def _im2col_slab(xp, h, w, c):
    """xp: (H+2, W+2, C) value whose border ring is zero ('same' padding).

    Returns the (H*W, 9*C) bf16 im2col slab whose column order matches conv
    weights reshaped from HWIO (3, 3, C, C_out) to (9*C, C_out), so the whole
    3x3 conv is ONE MXU matmul with K = 9*C instead of 9 tiny K=C matmuls
    plus 8 full-size vector adds.
    """
    taps = []
    for dy in range(3):
        for dx in range(3):
            taps.append(xp[dy:dy + h, dx:dx + w, :].reshape(h * w, c))
    return jnp.concatenate(taps, axis=-1).astype(jnp.bfloat16)


def _leaky(a):
    return jnp.where(a > 0, a, LEAKY_SLOPE * a)


# ---------------------------------------------------------------------------
# Stage 1: conv1 (+bias) + per-channel sum / sumsq accumulation (for BN1)
# ---------------------------------------------------------------------------
def _conv_stats_kernel(xp_ref, w_ref, b_ref, y_ref, s1_ref, s2_ref):
    hp, wp, c_in = xp_ref.shape[1], xp_ref.shape[2], xp_ref.shape[3]
    h, w = hp - 2, wp - 2
    c_out = s1_ref.shape[-1]

    slab = _im2col_slab(xp_ref[0], h, w, c_in)                # (H*W, 9*Cin) bf16
    y = jnp.dot(slab, w_ref[...],
                preferred_element_type=jnp.float32) + b_ref[...]

    # Global-BN statistics: resident accumulator across the batch grid axis.
    @pl.when(pl.program_id(0) == 0)
    def _init():
        s1_ref[...] = jnp.zeros_like(s1_ref)
        s2_ref[...] = jnp.zeros_like(s2_ref)

    s1_ref[...] += jnp.sum(y, axis=0, keepdims=True)
    s2_ref[...] += jnp.sum(y * y, axis=0, keepdims=True)

    y_ref[0] = y.reshape(h, w, c_out)


# ---------------------------------------------------------------------------
# Stage 2: BN1 (folded scale/shift) + LeakyReLU + conv2 (+bias) + BN2 stats
# ---------------------------------------------------------------------------
def _bn_act_conv_stats_kernel(yp_ref, sc_ref, sh_ref, mask_ref, w_ref, b_ref,
                              y_ref, s1_ref, s2_ref):
    hp, wp, c = yp_ref.shape[1], yp_ref.shape[2], yp_ref.shape[3]
    h, w = hp - 2, wp - 2

    # Folded BN1 + LeakyReLU, then zero the 1-pixel ring (= conv2 'same'
    # padding) with a precomputed {0,1} mask — the padded intermediate stays in
    # value land (no zero-filled scratch + offset store + reload round trip).
    a = yp_ref[0].reshape(hp * wp, c)
    a = _leaky(a * sc_ref[...] + sh_ref[...])
    a = a.reshape(hp, wp, c) * mask_ref[...]

    slab = _im2col_slab(a, h, w, c)                           # (H*W, 9*C) bf16
    y = jnp.dot(slab, w_ref[...],
                preferred_element_type=jnp.float32) + b_ref[...]

    @pl.when(pl.program_id(0) == 0)
    def _init():
        s1_ref[...] = jnp.zeros_like(s1_ref)
        s2_ref[...] = jnp.zeros_like(s2_ref)

    s1_ref[...] += jnp.sum(y, axis=0, keepdims=True)
    s2_ref[...] += jnp.sum(y * y, axis=0, keepdims=True)

    y_ref[0] = y.reshape(h, w, c)


# ---------------------------------------------------------------------------
# Stage 3: BN2 (folded scale/shift) + LeakyReLU on a lane-dense (N, H, W*C) view
# ---------------------------------------------------------------------------
def _bn_act_kernel(y_ref, sc_ref, sh_ref, o_ref):
    o_ref[0] = _leaky(y_ref[0] * sc_ref[...] + sh_ref[...])


# ---------------------------------------------------------------------------
# Wrapper
# ---------------------------------------------------------------------------
def _fold_bn(s, sq, gamma, beta, count):
    """Fold training-mode BatchNorm into a per-channel scale / shift."""
    mean = s / count
    var = jnp.maximum(sq / count - mean * mean, 0.0)          # biased variance
    scale = gamma * lax.rsqrt(var + BN_EPS)
    shift = beta - mean * scale
    return scale, shift


def conv_block_forward(x_nchw, params):
    """params = (w1, b1, g1, be1, w2, b2, g2, be2); conv weights in HWIO."""
    w1, b1, g1, be1, w2, b2, g2, be2 = params
    x = jnp.transpose(x_nchw, (0, 2, 3, 1)).astype(jnp.float32)   # NCHW -> NHWC
    n, h, w, c_in = x.shape
    c_out = w1.shape[-1]
    hp, wp = h + 2, w + 2
    count = jnp.float32(n * h * w)

    # TODO(synk): fold the NCHW<->NHWC transposes and the zero padding into the
    # kernels' BlockSpecs to save the extra XLA HBM passes at large scale.
    x_pad = jnp.pad(x, ((0, 0), (1, 1), (1, 1), (0, 0)))
    w1_k = w1.reshape(9 * c_in, c_out).astype(jnp.bfloat16)       # im2col weights
    w2_k = w2.reshape(9 * c_out, c_out).astype(jnp.bfloat16)
    row = lambda v: jnp.asarray(v, jnp.float32).reshape(1, c_out)
    interior = jnp.pad(jnp.ones((h, w, 1), jnp.float32), ((1, 1), (1, 1), (0, 0)))

    acc_params = pltpu.CompilerParams(
        dimension_semantics=("arbitrary",),      # stats accumulate over batch
        vmem_limit_bytes=VMEM_LIMIT_BYTES)
    par_params = pltpu.CompilerParams(
        dimension_semantics=("parallel",),
        vmem_limit_bytes=VMEM_LIMIT_BYTES)

    # ---- stage 1: conv1 + BN1 statistics ------------------------------------
    y1, s1, q1 = pl.pallas_call(
        _conv_stats_kernel,
        grid=(n,),
        in_specs=[
            pl.BlockSpec((1, hp, wp, c_in), lambda i: (i, 0, 0, 0)),
            pl.BlockSpec((9 * c_in, c_out), lambda i: (0, 0)),
            pl.BlockSpec((1, c_out), lambda i: (0, 0)),
        ],
        out_specs=[
            pl.BlockSpec((1, h, w, c_out), lambda i: (i, 0, 0, 0)),
            pl.BlockSpec((1, c_out), lambda i: (0, 0)),
            pl.BlockSpec((1, c_out), lambda i: (0, 0)),
        ],
        out_shape=[
            jax.ShapeDtypeStruct((n, h, w, c_out), jnp.float32),
            jax.ShapeDtypeStruct((1, c_out), jnp.float32),
            jax.ShapeDtypeStruct((1, c_out), jnp.float32),
        ],
        compiler_params=acc_params,
    )(x_pad, w1_k, row(b1))

    sc1, sh1 = _fold_bn(s1[0], q1[0], g1, be1, count)
    y1p = jnp.pad(y1, ((0, 0), (1, 1), (1, 1), (0, 0)))

    # ---- stage 2: BN1 + LeakyReLU + conv2 + BN2 statistics ------------------
    y2, s2, q2 = pl.pallas_call(
        _bn_act_conv_stats_kernel,
        grid=(n,),
        in_specs=[
            pl.BlockSpec((1, hp, wp, c_out), lambda i: (i, 0, 0, 0)),
            pl.BlockSpec((1, c_out), lambda i: (0, 0)),
            pl.BlockSpec((1, c_out), lambda i: (0, 0)),
            pl.BlockSpec((hp, wp, 1), lambda i: (0, 0, 0)),
            pl.BlockSpec((9 * c_out, c_out), lambda i: (0, 0)),
            pl.BlockSpec((1, c_out), lambda i: (0, 0)),
        ],
        out_specs=[
            pl.BlockSpec((1, h, w, c_out), lambda i: (i, 0, 0, 0)),
            pl.BlockSpec((1, c_out), lambda i: (0, 0)),
            pl.BlockSpec((1, c_out), lambda i: (0, 0)),
        ],
        out_shape=[
            jax.ShapeDtypeStruct((n, h, w, c_out), jnp.float32),
            jax.ShapeDtypeStruct((1, c_out), jnp.float32),
            jax.ShapeDtypeStruct((1, c_out), jnp.float32),
        ],
        compiler_params=acc_params,
    )(y1p, sc1.reshape(1, c_out), sh1.reshape(1, c_out), interior,
      w2_k, row(b2))

    sc2, sh2 = _fold_bn(s2[0], q2[0], g2, be2, count)

    # ---- stage 3: BN2 + LeakyReLU on a lane-dense layout --------------------
    y2_ld = y2.reshape(n, h, w * c_out)          # free row-major re-view
    out = pl.pallas_call(
        _bn_act_kernel,
        grid=(n,),
        in_specs=[
            pl.BlockSpec((1, h, w * c_out), lambda i: (i, 0, 0)),
            pl.BlockSpec((1, w * c_out), lambda i: (0, 0)),
            pl.BlockSpec((1, w * c_out), lambda i: (0, 0)),
        ],
        out_specs=pl.BlockSpec((1, h, w * c_out), lambda i: (i, 0, 0)),
        out_shape=jax.ShapeDtypeStruct((n, h, w * c_out), jnp.float32),
        compiler_params=par_params,
    )(y2_ld, jnp.tile(sc2, w).reshape(1, w * c_out),
      jnp.tile(sh2, w).reshape(1, w * c_out))

    out = out.reshape(n, h, w, c_out)
    return jnp.transpose(out, (0, 3, 1, 2))                   # NHWC -> NCHW


# ----------------------------- pure-JAX reference ---------------------------
def ref_forward(x_nchw, params):
    w1, b1, g1, be1, w2, b2, g2, be2 = params
    x = jnp.transpose(x_nchw, (0, 2, 3, 1)).astype(jnp.float32)

    def conv(x, w, b):
        y = jax.lax.conv_general_dilated(
            x, w, window_strides=(1, 1), padding=((1, 1), (1, 1)),
            dimension_numbers=('NHWC', 'HWIO', 'NHWC'))
        return y + b

    def bn_leaky(y, g, be):
        mean = y.mean(axis=(0, 1, 2), keepdims=True)
        var = ((y - mean) ** 2).mean(axis=(0, 1, 2), keepdims=True)
        h = (y - mean) * jax.lax.rsqrt(var + BN_EPS) * g + be
        return jnp.where(h > 0, h, LEAKY_SLOPE * h)

    h = bn_leaky(conv(x, w1, b1), g1, be1)
    h = bn_leaky(conv(h, w2, b2), g2, be2)
    return jnp.transpose(h, (0, 3, 1, 2))


def init_params(key, c_in, c_out):
    """Deterministic synthetic init (shapes match nn.Conv2d / nn.BatchNorm2d)."""
    k1, k2, k3, k4 = jax.random.split(key, 4)
    fan1 = c_in * 9
    fan2 = c_out * 9
    w1 = jax.random.uniform(k1, (3, 3, c_in, c_out), jnp.float32,
                            -1.0 / np.sqrt(fan1), 1.0 / np.sqrt(fan1))
    b1 = jax.random.uniform(k2, (c_out,), jnp.float32,
                            -1.0 / np.sqrt(fan1), 1.0 / np.sqrt(fan1))
    w2 = jax.random.uniform(k3, (3, 3, c_out, c_out), jnp.float32,
                            -1.0 / np.sqrt(fan2), 1.0 / np.sqrt(fan2))
    b2 = jax.random.uniform(k4, (c_out,), jnp.float32,
                            -1.0 / np.sqrt(fan2), 1.0 / np.sqrt(fan2))
    g1 = jnp.ones((c_out,), jnp.float32)    # BatchNorm weight init
    be1 = jnp.zeros((c_out,), jnp.float32)  # BatchNorm bias init
    g2 = jnp.ones((c_out,), jnp.float32)
    be2 = jnp.zeros((c_out,), jnp.float32)
    return (w1, b1, g1, be1, w2, b2, g2, be2)


if __name__ == "__main__":
    key = jax.random.PRNGKey(0)
    kx, kp = jax.random.split(key)

    N, C_IN, C_OUT, H, W = 2, 4, 8, 16, 16
    x = jax.random.normal(kx, (N, C_IN, H, W), jnp.float32)   # NCHW like PyTorch
    params = init_params(kp, C_IN, C_OUT)

    out = jax.block_until_ready(jax.jit(conv_block_forward)(x, params))
    assert out.shape == (N, C_OUT, H, W), out.shape

    ref = jax.block_until_ready(ref_forward(x, params))
    np.testing.assert_allclose(np.asarray(out), np.asarray(ref),
                               rtol=3e-2, atol=3e-2)

    print("KERNEL_OK")
</pallas_src>

<mosaic_0001>
module attributes {stable_mosaic.version = 11 : i64} {
  func.func @_conv_stats_kernel(%arg0: i32, %arg1: memref<1x18x18x4xf32, #tpu.memory_space<vmem>>, %arg2: memref<36x8xbf16, #tpu.memory_space<vmem>>, %arg3: memref<1x8xf32, #tpu.memory_space<vmem>>, %arg4: memref<1x16x16x8xf32, #tpu.memory_space<vmem>>, %arg5: memref<1x8xf32, #tpu.memory_space<vmem>>, %arg6: memref<1x8xf32, #tpu.memory_space<vmem>>) attributes {dimension_semantics = [#tpu.dimension_semantics<arbitrary>], iteration_bounds = array<i64: 2>, scalar_prefetch = 0 : i64, scratch_operands = 0 : i64, tpu.core_type = #tpu.core_type<tc>, window_params = [{transform_indices = @transform_0, window_bounds = array<i64: 1, 18, 18, 4>}, {pipeline_mode = #tpu.pipeline_mode<synchronous>, transform_indices = @transform_1, window_bounds = array<i64: 36, 8>}, {pipeline_mode = #tpu.pipeline_mode<synchronous>, transform_indices = @transform_2, window_bounds = array<i64: 1, 8>}, {transform_indices = @transform_3, window_bounds = array<i64: 1, 16, 16, 8>}, {pipeline_mode = #tpu.pipeline_mode<synchronous>, transform_indices = @transform_4, window_bounds = array<i64: 1, 8>}, {pipeline_mode = #tpu.pipeline_mode<synchronous>, transform_indices = @transform_5, window_bounds = array<i64: 1, 8>}]} {
    %c0 = arith.constant 0 : index
    %c0_0 = arith.constant 0 : index
    %c0_1 = arith.constant 0 : index
    %c0_2 = arith.constant 0 : index
    %0 = vector.load %arg1[%c0, %c0_0, %c0_1, %c0_2] : memref<1x18x18x4xf32, #tpu.memory_space<vmem>>, vector<1x18x18x4xf32>
    %1 = vector.shape_cast %0 : vector<1x18x18x4xf32> to vector<18x18x4xf32>
    %2 = vector.extract_strided_slice %1 {offsets = [0, 0, 0], sizes = [16, 16, 4], strides = [1, 1, 1]} : vector<18x18x4xf32> to vector<16x16x4xf32>
    %3 = vector.shape_cast %2 : vector<16x16x4xf32> to vector<256x4xf32>
    %4 = vector.extract_strided_slice %1 {offsets = [0, 1, 0], sizes = [16, 16, 4], strides = [1, 1, 1]} : vector<18x18x4xf32> to vector<16x16x4xf32>
    %5 = vector.shape_cast %4 : vector<16x16x4xf32> to vector<256x4xf32>
    %6 = vector.extract_strided_slice %1 {offsets = [0, 2, 0], sizes = [16, 16, 4], strides = [1, 1, 1]} : vector<18x18x4xf32> to vector<16x16x4xf32>
    %7 = vector.shape_cast %6 : vector<16x16x4xf32> to vector<256x4xf32>
    %8 = vector.extract_strided_slice %1 {offsets = [1, 0, 0], sizes = [16, 16, 4], strides = [1, 1, 1]} : vector<18x18x4xf32> to vector<16x16x4xf32>
    %9 = vector.shape_cast %8 : vector<16x16x4xf32> to vector<256x4xf32>
    %10 = vector.extract_strided_slice %1 {offsets = [1, 1, 0], sizes = [16, 16, 4], strides = [1, 1, 1]} : vector<18x18x4xf32> to vector<16x16x4xf32>
    %11 = vector.shape_cast %10 : vector<16x16x4xf32> to vector<256x4xf32>
    %12 = vector.extract_strided_slice %1 {offsets = [1, 2, 0], sizes = [16, 16, 4], strides = [1, 1, 1]} : vector<18x18x4xf32> to vector<16x16x4xf32>
    %13 = vector.shape_cast %12 : vector<16x16x4xf32> to vector<256x4xf32>
    %14 = vector.extract_strided_slice %1 {offsets = [2, 0, 0], sizes = [16, 16, 4], strides = [1, 1, 1]} : vector<18x18x4xf32> to vector<16x16x4xf32>
    %15 = vector.shape_cast %14 : vector<16x16x4xf32> to vector<256x4xf32>
    %16 = vector.extract_strided_slice %1 {offsets = [2, 1, 0], sizes = [16, 16, 4], strides = [1, 1, 1]} : vector<18x18x4xf32> to vector<16x16x4xf32>
    %17 = vector.shape_cast %16 : vector<16x16x4xf32> to vector<256x4xf32>
    %18 = vector.extract_strided_slice %1 {offsets = [2, 2, 0], sizes = [16, 16, 4], strides = [1, 1, 1]} : vector<18x18x4xf32> to vector<16x16x4xf32>
    %19 = vector.shape_cast %18 : vector<16x16x4xf32> to vector<256x4xf32>
    %20 = tpu.concatenate %3, %5, %7, %9, %11, %13, %15, %17, %19 in 1 : vector<256x4xf32>, vector<256x4xf32>, vector<256x4xf32>, vector<256x4xf32>, vector<256x4xf32>, vector<256x4xf32>, vector<256x4xf32>, vector<256x4xf32>, vector<256x4xf32> -> vector<256x36xf32>
    %21 = arith.truncf %20 : vector<256x36xf32> to vector<256x36xbf16>
    %c0_3 = arith.constant 0 : index
    %c0_4 = arith.constant 0 : index
    %22 = vector.load %arg2[%c0_3, %c0_4] : memref<36x8xbf16, #tpu.memory_space<vmem>>, vector<36x8xbf16>
    %cst = arith.constant dense<0.000000e+00> : vector<256x8xf32>
    %23 = tpu.matmul %21, %22, %cst {dimension_numbers = #tpu.dot_dimension_numbers<[1], [0], [0], [1], [0, 0, 1, 1], [], []>} : vector<256x36xbf16>, vector<36x8xbf16>, vector<256x8xf32> -> vector<256x8xf32>
    %c0_5 = arith.constant 0 : index
    %c0_6 = arith.constant 0 : index
    %24 = vector.load %arg3[%c0_5, %c0_6] : memref<1x8xf32, #tpu.memory_space<vmem>>, vector<1x8xf32>
    %25 = vector.broadcast %24 : vector<1x8xf32> to vector<256x8xf32>
    %26 = arith.addf %23, %25 : vector<256x8xf32>
    %c0_i32 = arith.constant 0 : i32
    %27 = arith.cmpi eq, %arg0, %c0_i32 : i32
    %28 = arith.extui %27 : i1 to i32
    %c0_i32_7 = arith.constant 0 : i32
    %29 = arith.cmpi ne, %28, %c0_i32_7 : i32
    scf.if %29 {
      %cst_22 = arith.constant 0.000000e+00 : f32
      %45 = vector.broadcast %cst_22 : f32 to vector<1x8xf32>
      %c0_23 = arith.constant 0 : index
      %c0_24 = arith.constant 0 : index
      %46 = vector.load %arg5[%c0_23, %c0_24] : memref<1x8xf32, #tpu.memory_space<vmem>>, vector<1x8xf32>
      tpu.vector_store %arg5[%c0_23, %c0_24], %45 {strides = array<i32>} : memref<1x8xf32, #tpu.memory_space<vmem>>, vector<1x8xf32>,
      %cst_25 = arith.constant 0.000000e+00 : f32
      %47 = vector.broadcast %cst_25 : f32 to vector<1x8xf32>
      %c0_26 = arith.constant 0 : index
      %c0_27 = arith.constant 0 : index
      %48 = vector.load %arg6[%c0_26, %c0_27] : memref<1x8xf32, #tpu.memory_space<vmem>>, vector<1x8xf32>
      tpu.vector_store %arg6[%c0_26, %c0_27], %47 {strides = array<i32>} : memref<1x8xf32, #tpu.memory_space<vmem>>, vector<1x8xf32>,
    } else {
    }
    %c0_8 = arith.constant 0 : index
    %c0_9 = arith.constant 0 : index
    %30 = vector.load %arg5[%c0_8, %c0_9] : memref<1x8xf32, #tpu.memory_space<vmem>>, vector<1x8xf32>
    %cst_10 = arith.constant dense<0.000000e+00> : vector<8xf32>
    %31 = vector.multi_reduction <add>, %26, %cst_10 [0] : vector<256x8xf32> to vector<8xf32>
    %32 = vector.shape_cast %31 : vector<8xf32> to vector<1x8xf32>
    %33 = arith.addf %30, %32 : vector<1x8xf32>
    %c0_11 = arith.constant 0 : index
    %c0_12 = arith.constant 0 : index
    %34 = vector.load %arg5[%c0_11, %c0_12] : memref<1x8xf32, #tpu.memory_space<vmem>>, vector<1x8xf32>
    tpu.vector_store %arg5[%c0_11, %c0_12], %33 {strides = array<i32>} : memref<1x8xf32, #tpu.memory_space<vmem>>, vector<1x8xf32>,
    %c0_13 = arith.constant 0 : index
    %c0_14 = arith.constant 0 : index
    %35 = vector.load %arg6[%c0_13, %c0_14] : memref<1x8xf32, #tpu.memory_space<vmem>>, vector<1x8xf32>
    %36 = arith.mulf %26, %26 : vector<256x8xf32>
    %cst_15 = arith.constant dense<0.000000e+00> : vector<8xf32>
    %37 = vector.multi_reduction <add>, %36, %cst_15 [0] : vector<256x8xf32> to vector<8xf32>
    %38 = vector.shape_cast %37 : vector<8xf32> to vector<1x8xf32>
    %39 = arith.addf %35, %38 : vector<1x8xf32>
    %c0_16 = arith.constant 0 : index
    %c0_17 = arith.constant 0 : index
    %40 = vector.load %arg6[%c0_16, %c0_17] : memref<1x8xf32, #tpu.memory_space<vmem>>, vector<1x8xf32>
    tpu.vector_store %arg6[%c0_16, %c0_17], %39 {strides = array<i32>} : memref<1x8xf32, #tpu.memory_space<vmem>>, vector<1x8xf32>,
    %41 = vector.shape_cast %26 : vector<256x8xf32> to vector<16x16x8xf32>
    %c0_18 = arith.constant 0 : index
    %c0_19 = arith.constant 0 : index
    %c0_20 = arith.constant 0 : index
    %c0_21 = arith.constant 0 : index
    %42 = vector.load %arg4[%c0_18, %c0_19, %c0_20, %c0_21] : memref<1x16x16x8xf32, #tpu.memory_space<vmem>>, vector<1x16x16x8xf32>
    %43 = vector.shape_cast %42 : vector<1x16x16x8xf32> to vector<16x16x8xf32>
    %44 = vector.shape_cast %41 : vector<16x16x8xf32> to vector<1x16x16x8xf32>
    tpu.vector_store %arg4[%c0_18, %c0_19, %c0_20, %c0_21], %44 {strides = array<i32>} : memref<1x16x16x8xf32, #tpu.memory_space<vmem>>, vector<1x16x16x8xf32>,
    return
  }
  func.func @transform_0(%arg0: i32) -> (i32, i32, i32, i32) {
    %c0_i32 = arith.constant 0 : i32
    %c0_i32_0 = arith.constant 0 : i32
    %c0_i32_1 = arith.constant 0 : i32
    %c0_i32_2 = arith.constant 0 : i32
    return %arg0, %c0_i32, %c0_i32_0, %c0_i32_1 : i32, i32, i32, i32
  }
  func.func @transform_1(%arg0: i32) -> (i32, i32) {
    %c0_i32 = arith.constant 0 : i32
    %c0_i32_0 = arith.constant 0 : i32
    %c0_i32_1 = arith.constant 0 : i32
    return %c0_i32, %c0_i32_0 : i32, i32
  }
  func.func @transform_2(%arg0: i32) -> (i32, i32) {
    %c0_i32 = arith.constant 0 : i32
    %c0_i32_0 = arith.constant 0 : i32
    %c0_i32_1 = arith.constant 0 : i32
    return %c0_i32, %c0_i32_0 : i32, i32
  }
  func.func @transform_3(%arg0: i32) -> (i32, i32, i32, i32) {
    %c0_i32 = arith.constant 0 : i32
    %c0_i32_0 = arith.constant 0 : i32
    %c0_i32_1 = arith.constant 0 : i32
    %c0_i32_2 = arith.constant 0 : i32
    return %arg0, %c0_i32, %c0_i32_0, %c0_i32_1 : i32, i32, i32, i32
  }
  func.func @transform_4(%arg0: i32) -> (i32, i32) {
    %c0_i32 = arith.constant 0 : i32
    %c0_i32_0 = arith.constant 0 : i32
    %c0_i32_1 = arith.constant 0 : i32
    return %c0_i32, %c0_i32_0 : i32, i32
  }
  func.func @transform_5(%arg0: i32) -> (i32, i32) {
    %c0_i32 = arith.constant 0 : i32
    %c0_i32_0 = arith.constant 0 : i32
    %c0_i32_1 = arith.constant 0 : i32
    return %c0_i32, %c0_i32_0 : i32, i32
  }
}

module attributes {stable_mosaic.version = 11 : i64} {
  func.func @_bn_act_conv_stats_kernel(%arg0: i32, %arg1: memref<1x18x18x8xf32, #tpu.memory_space<vmem>>, %arg2: memref<1x8xf32, #tpu.memory_space<vmem>>, %arg3: memref<1x8xf32, #tpu.memory_space<vmem>>, %arg4: memref<18x18x1xf32, #tpu.memory_space<vmem>>, %arg5: memref<72x8xbf16, #tpu.memory_space<vmem>>, %arg6: memref<1x8xf32, #tpu.memory_space<vmem>>, %arg7: memref<1x16x16x8xf32, #tpu.memory_space<vmem>>, %arg8: memref<1x8xf32, #tpu.memory_space<vmem>>, %arg9: memref<1x8xf32, #tpu.memory_space<vmem>>) attributes {dimension_semantics = [#tpu.dimension_semantics<arbitrary>], iteration_bounds = array<i64: 2>, scalar_prefetch = 0 : i64, scratch_operands = 0 : i64, tpu.core_type = #tpu.core_type<tc>, window_params = [{transform_indices = @transform_0, window_bounds = array<i64: 1, 18, 18, 8>}, {pipeline_mode = #tpu.pipeline_mode<synchronous>, transform_indices = @transform_1, window_bounds = array<i64: 1, 8>}, {pipeline_mode = #tpu.pipeline_mode<synchronous>, transform_indices = @transform_2, window_bounds = array<i64: 1, 8>}, {pipeline_mode = #tpu.pipeline_mode<synchronous>, transform_indices = @transform_3, window_bounds = array<i64: 18, 18, 1>}, {pipeline_mode = #tpu.pipeline_mode<synchronous>, transform_indices = @transform_4, window_bounds = array<i64: 72, 8>}, {pipeline_mode = #tpu.pipeline_mode<synchronous>, transform_indices = @transform_5, window_bounds = array<i64: 1, 8>}, {transform_indices = @transform_6, window_bounds = array<i64: 1, 16, 16, 8>}, {pipeline_mode = #tpu.pipeline_mode<synchronous>, transform_indices = @transform_7, window_bounds = array<i64: 1, 8>}, {pipeline_mode = #tpu.pipeline_mode<synchronous>, transform_indices = @transform_8, window_bounds = array<i64: 1, 8>}]} {
    %c0 = arith.constant 0 : index
    %c0_0 = arith.constant 0 : index
    %c0_1 = arith.constant 0 : index
    %c0_2 = arith.constant 0 : index
    %0 = vector.load %arg1[%c0, %c0_0, %c0_1, %c0_2] : memref<1x18x18x8xf32, #tpu.memory_space<vmem>>, vector<1x18x18x8xf32>
    %1 = vector.shape_cast %0 : vector<1x18x18x8xf32> to vector<18x18x8xf32>
    %2 = vector.shape_cast %1 : vector<18x18x8xf32> to vector<324x8xf32>
    %c0_3 = arith.constant 0 : index
    %c0_4 = arith.constant 0 : index
    %3 = vector.load %arg2[%c0_3, %c0_4] : memref<1x8xf32, #tpu.memory_space<vmem>>, vector<1x8xf32>
    %4 = vector.broadcast %3 : vector<1x8xf32> to vector<324x8xf32>
    %5 = arith.mulf %2, %4 : vector<324x8xf32>
    %c0_5 = arith.constant 0 : index
    %c0_6 = arith.constant 0 : index
    %6 = vector.load %arg3[%c0_5, %c0_6] : memref<1x8xf32, #tpu.memory_space<vmem>>, vector<1x8xf32>
    %7 = vector.broadcast %6 : vector<1x8xf32> to vector<324x8xf32>
    %8 = arith.addf %5, %7 : vector<324x8xf32>
    %cst = arith.constant 0.000000e+00 : f32
    %9 = vector.broadcast %cst : f32 to vector<324x8xf32>
    %10 = arith.cmpf ogt, %8, %9 : vector<324x8xf32>
    %cst_7 = arith.constant 0.00999999977 : f32
    %11 = vector.broadcast %cst_7 : f32 to vector<324x8xf32>
    %12 = arith.mulf %11, %8 : vector<324x8xf32>
    %13 = arith.select %10, %8, %12 : vector<324x8xi1>, vector<324x8xf32>
    %14 = vector.shape_cast %13 : vector<324x8xf32> to vector<18x18x8xf32>
    %c0_8 = arith.constant 0 : index
    %c0_9 = arith.constant 0 : index
    %c0_10 = arith.constant 0 : index
    %15 = vector.load %arg4[%c0_8, %c0_9, %c0_10] : memref<18x18x1xf32, #tpu.memory_space<vmem>>, vector<18x18x1xf32>
    %16 = vector.broadcast %15 : vector<18x18x1xf32> to vector<18x18x8xf32>
    %17 = arith.mulf %14, %16 : vector<18x18x8xf32>
    %18 = vector.extract_strided_slice %17 {offsets = [0, 0, 0], sizes = [16, 16, 8], strides = [1, 1, 1]} : vector<18x18x8xf32> to vector<16x16x8xf32>
    %19 = vector.shape_cast %18 : vector<16x16x8xf32> to vector<256x8xf32>
    %20 = vector.extract_strided_slice %17 {offsets = [0, 1, 0], sizes = [16, 16, 8], strides = [1, 1, 1]} : vector<18x18x8xf32> to vector<16x16x8xf32>
    %21 = vector.shape_cast %20 : vector<16x16x8xf32> to vector<256x8xf32>
    %22 = vector.extract_strided_slice %17 {offsets = [0, 2, 0], sizes = [16, 16, 8], strides = [1, 1, 1]} : vector<18x18x8xf32> to vector<16x16x8xf32>
    %23 = vector.shape_cast %22 : vector<16x16x8xf32> to vector<256x8xf32>
    %24 = vector.extract_strided_slice %17 {offsets = [1, 0, 0], sizes = [16, 16, 8], strides = [1, 1, 1]} : vector<18x18x8xf32> to vector<16x16x8xf32>
    %25 = vector.shape_cast %24 : vector<16x16x8xf32> to vector<256x8xf32>
    %26 = vector.extract_strided_slice %17 {offsets = [1, 1, 0], sizes = [16, 16, 8], strides = [1, 1, 1]} : vector<18x18x8xf32> to vector<16x16x8xf32>
    %27 = vector.shape_cast %26 : vector<16x16x8xf32> to vector<256x8xf32>
    %28 = vector.extract_strided_slice %17 {offsets = [1, 2, 0], sizes = [16, 16, 8], strides = [1, 1, 1]} : vector<18x18x8xf32> to vector<16x16x8xf32>
    %29 = vector.shape_cast %28 : vector<16x16x8xf32> to vector<256x8xf32>
    %30 = vector.extract_strided_slice %17 {offsets = [2, 0, 0], sizes = [16, 16, 8], strides = [1, 1, 1]} : vector<18x18x8xf32> to vector<16x16x8xf32>
    %31 = vector.shape_cast %30 : vector<16x16x8xf32> to vector<256x8xf32>
    %32 = vector.extract_strided_slice %17 {offsets = [2, 1, 0], sizes = [16, 16, 8], strides = [1, 1, 1]} : vector<18x18x8xf32> to vector<16x16x8xf32>
    %33 = vector.shape_cast %32 : vector<16x16x8xf32> to vector<256x8xf32>
    %34 = vector.extract_strided_slice %17 {offsets = [2, 2, 0], sizes = [16, 16, 8], strides = [1, 1, 1]} : vector<18x18x8xf32> to vector<16x16x8xf32>
    %35 = vector.shape_cast %34 : vector<16x16x8xf32> to vector<256x8xf32>
    %36 = tpu.concatenate %19, %21, %23, %25, %27, %29, %31, %33, %35 in 1 : vector<256x8xf32>, vector<256x8xf32>, vector<256x8xf32>, vector<256x8xf32>, vector<256x8xf32>, vector<256x8xf32>, vector<256x8xf32>, vector<256x8xf32>, vector<256x8xf32> -> vector<256x72xf32>
    %37 = arith.truncf %36 : vector<256x72xf32> to vector<256x72xbf16>
    %c0_11 = arith.constant 0 : index
    %c0_12 = arith.constant 0 : index
    %38 = vector.load %arg5[%c0_11, %c0_12] : memref<72x8xbf16, #tpu.memory_space<vmem>>, vector<72x8xbf16>
    %cst_13 = arith.constant dense<0.000000e+00> : vector<256x8xf32>
    %39 = tpu.matmul %37, %38, %cst_13 {dimension_numbers = #tpu.dot_dimension_numbers<[1], [0], [0], [1], [0, 0, 1, 1], [], []>} : vector<256x72xbf16>, vector<72x8xbf16>, vector<256x8xf32> -> vector<256x8xf32>
    %c0_14 = arith.constant 0 : index
    %c0_15 = arith.constant 0 : index
    %40 = vector.load %arg6[%c0_14, %c0_15] : memref<1x8xf32, #tpu.memory_space<vmem>>, vector<1x8xf32>
    %41 = vector.broadcast %40 : vector<1x8xf32> to vector<256x8xf32>
    %42 = arith.addf %39, %41 : vector<256x8xf32>
    %c0_i32 = arith.constant 0 : i32
    %43 = arith.cmpi eq, %arg0, %c0_i32 : i32
    %44 = arith.extui %43 : i1 to i32
    %c0_i32_16 = arith.constant 0 : i32
    %45 = arith.cmpi ne, %44, %c0_i32_16 : i32
    scf.if %45 {
      %cst_31 = arith.constant 0.000000e+00 : f32
      %61 = vector.broadcast %cst_31 : f32 to vector<1x8xf32>
      %c0_32 = arith.constant 0 : index
      %c0_33 = arith.constant 0 : index
      %62 = vector.load %arg8[%c0_32, %c0_33] : memref<1x8xf32, #tpu.memory_space<vmem>>, vector<1x8xf32>
      tpu.vector_store %arg8[%c0_32, %c0_33], %61 {strides = array<i32>} : memref<1x8xf32, #tpu.memory_space<vmem>>, vector<1x8xf32>,
      %cst_34 = arith.constant 0.000000e+00 : f32
      %63 = vector.broadcast %cst_34 : f32 to vector<1x8xf32>
      %c0_35 = arith.constant 0 : index
      %c0_36 = arith.constant 0 : index
      %64 = vector.load %arg9[%c0_35, %c0_36] : memref<1x8xf32, #tpu.memory_space<vmem>>, vector<1x8xf32>
      tpu.vector_store %arg9[%c0_35, %c0_36], %63 {strides = array<i32>} : memref<1x8xf32, #tpu.memory_space<vmem>>, vector<1x8xf32>,
    } else {
    }
    %c0_17 = arith.constant 0 : index
    %c0_18 = arith.constant 0 : index
    %46 = vector.load %arg8[%c0_17, %c0_18] : memref<1x8xf32, #tpu.memory_space<vmem>>, vector<1x8xf32>
    %cst_19 = arith.constant dense<0.000000e+00> : vector<8xf32>
    %47 = vector.multi_reduction <add>, %42, %cst_19 [0] : vector<256x8xf32> to vector<8xf32>
    %48 = vector.shape_cast %47 : vector<8xf32> to vector<1x8xf32>
    %49 = arith.addf %46, %48 : vector<1x8xf32>
    %c0_20 = arith.constant 0 : index
    %c0_21 = arith.constant 0 : index
    %50 = vector.load %arg8[%c0_20, %c0_21] : memref<1x8xf32, #tpu.memory_space<vmem>>, vector<1x8xf32>
    tpu.vector_store %arg8[%c0_20, %c0_21], %49 {strides = array<i32>} : memref<1x8xf32, #tpu.memory_space<vmem>>, vector<1x8xf32>,
    %c0_22 = arith.constant 0 : index
    %c0_23 = arith.constant 0 : index
    %51 = vector.load %arg9[%c0_22, %c0_23] : memref<1x8xf32, #tpu.memory_space<vmem>>, vector<1x8xf32>
    %52 = arith.mulf %42, %42 : vector<256x8xf32>
    %cst_24 = arith.constant dense<0.000000e+00> : vector<8xf32>
    %53 = vector.multi_reduction <add>, %52, %cst_24 [0] : vector<256x8xf32> to vector<8xf32>
    %54 = vector.shape_cast %53 : vector<8xf32> to vector<1x8xf32>
    %55 = arith.addf %51, %54 : vector<1x8xf32>
    %c0_25 = arith.constant 0 : index
    %c0_26 = arith.constant 0 : index
    %56 = vector.load %arg9[%c0_25, %c0_26] : memref<1x8xf32, #tpu.memory_space<vmem>>, vector<1x8xf32>
    tpu.vector_store %arg9[%c0_25, %c0_26], %55 {strides = array<i32>} : memref<1x8xf32, #tpu.memory_space<vmem>>, vector<1x8xf32>,
    %57 = vector.shape_cast %42 : vector<256x8xf32> to vector<16x16x8xf32>
    %c0_27 = arith.constant 0 : index
    %c0_28 = arith.constant 0 : index
    %c0_29 = arith.constant 0 : index
    %c0_30 = arith.constant 0 : index
    %58 = vector.load %arg7[%c0_27, %c0_28, %c0_29, %c0_30] : memref<1x16x16x8xf32, #tpu.memory_space<vmem>>, vector<1x16x16x8xf32>
    %59 = vector.shape_cast %58 : vector<1x16x16x8xf32> to vector<16x16x8xf32>
    %60 = vector.shape_cast %57 : vector<16x16x8xf32> to vector<1x16x16x8xf32>
    tpu.vector_store %arg7[%c0_27, %c0_28, %c0_29, %c0_30], %60 {strides = array<i32>} : memref<1x16x16x8xf32, #tpu.memory_space<vmem>>, vector<1x16x16x8xf32>,
    return
  }
  func.func @transform_0(%arg0: i32) -> (i32, i32, i32, i32) {
    %c0_i32 = arith.constant 0 : i32
    %c0_i32_0 = arith.constant 0 : i32
    %c0_i32_1 = arith.constant 0 : i32
    %c0_i32_2 = arith.constant 0 : i32
    return %arg0, %c0_i32, %c0_i32_0, %c0_i32_1 : i32, i32, i32, i32
  }
  func.func @transform_1(%arg0: i32) -> (i32, i32) {
    %c0_i32 = arith.constant 0 : i32
    %c0_i32_0 = arith.constant 0 : i32
    %c0_i32_1 = arith.constant 0 : i32
    return %c0_i32, %c0_i32_0 : i32, i32
  }
  func.func @transform_2(%arg0: i32) -> (i32, i32) {
    %c0_i32 = arith.constant 0 : i32
    %c0_i32_0 = arith.constant 0 : i32
    %c0_i32_1 = arith.constant 0 : i32
    return %c0_i32, %c0_i32_0 : i32, i32
  }
  func.func @transform_3(%arg0: i32) -> (i32, i32, i32) {
    %c0_i32 = arith.constant 0 : i32
    %c0_i32_0 = arith.constant 0 : i32
    %c0_i32_1 = arith.constant 0 : i32
    %c0_i32_2 = arith.constant 0 : i32
    return %c0_i32, %c0_i32_0, %c0_i32_1 : i32, i32, i32
  }
  func.func @transform_4(%arg0: i32) -> (i32, i32) {
    %c0_i32 = arith.constant 0 : i32
    %c0_i32_0 = arith.constant 0 : i32
    %c0_i32_1 = arith.constant 0 : i32
    return %c0_i32, %c0_i32_0 : i32, i32
  }
  func.func @transform_5(%arg0: i32) -> (i32, i32) {
    %c0_i32 = arith.constant 0 : i32
    %c0_i32_0 = arith.constant 0 : i32
    %c0_i32_1 = arith.constant 0 : i32
    return %c0_i32, %c0_i32_0 : i32, i32
  }
  func.func @transform_6(%arg0: i32) -> (i32, i32, i32, i32) {
    %c0_i32 = arith.constant 0 : i32
    %c0_i32_0 = arith.constant 0 : i32
    %c0_i32_1 = arith.constant 0 : i32
    %c0_i32_2 = arith.constant 0 : i32
    return %arg0, %c0_i32, %c0_i32_0, %c0_i32_1 : i32, i32, i32, i32
  }
  func.func @transform_7(%arg0: i32) -> (i32, i32) {
    %c0_i32 = arith.constant 0 : i32
    %c0_i32_0 = arith.constant 0 : i32
    %c0_i32_1 = arith.constant 0 : i32
    return %c0_i32, %c0_i32_0 : i32, i32
  }
  func.func @transform_8(%arg0: i32) -> (i32, i32) {
    %c0_i32 = arith.constant 0 : i32
    %c0_i32_0 = arith.constant 0 : i32
    %c0_i32_1 = arith.constant 0 : i32
    return %c0_i32, %c0_i32_0 : i32, i32
  }
}

module attributes {stable_mosaic.version = 11 : i64} {
  func.func @_bn_act_kernel(%arg0: i32, %arg1: memref<1x16x128xf32, #tpu.memory_space<vmem>>, %arg2: memref<1x128xf32, #tpu.memory_space<vmem>>, %arg3: memref<1x128xf32, #tpu.memory_space<vmem>>, %arg4: memref<1x16x128xf32, #tpu.memory_space<vmem>>) attributes {dimension_semantics = [#tpu.dimension_semantics<parallel>], iteration_bounds = array<i64: 2>, scalar_prefetch = 0 : i64, scratch_operands = 0 : i64, tpu.core_type = #tpu.core_type<tc>, window_params = [{transform_indices = @transform_0, window_bounds = array<i64: 1, 16, 128>}, {pipeline_mode = #tpu.pipeline_mode<synchronous>, transform_indices = @transform_1, window_bounds = array<i64: 1, 128>}, {pipeline_mode = #tpu.pipeline_mode<synchronous>, transform_indices = @transform_2, window_bounds = array<i64: 1, 128>}, {transform_indices = @transform_3, window_bounds = array<i64: 1, 16, 128>}]} {
    %c0 = arith.constant 0 : index
    %c0_0 = arith.constant 0 : index
    %c0_1 = arith.constant 0 : index
    %0 = vector.load %arg1[%c0, %c0_0, %c0_1] : memref<1x16x128xf32, #tpu.memory_space<vmem>>, vector<1x16x128xf32>
    %1 = vector.shape_cast %0 : vector<1x16x128xf32> to vector<16x128xf32>
    %c0_2 = arith.constant 0 : index
    %c0_3 = arith.constant 0 : index
    %2 = vector.load %arg2[%c0_2, %c0_3] : memref<1x128xf32, #tpu.memory_space<vmem>>, vector<1x128xf32>
    %3 = vector.broadcast %2 : vector<1x128xf32> to vector<16x128xf32>
    %4 = arith.mulf %1, %3 : vector<16x128xf32>
    %c0_4 = arith.constant 0 : index
    %c0_5 = arith.constant 0 : index
    %5 = vector.load %arg3[%c0_4, %c0_5] : memref<1x128xf32, #tpu.memory_space<vmem>>, vector<1x128xf32>
    %6 = vector.broadcast %5 : vector<1x128xf32> to vector<16x128xf32>
    %7 = arith.addf %4, %6 : vector<16x128xf32>
    %cst = arith.constant 0.000000e+00 : f32
    %8 = vector.broadcast %cst : f32 to vector<16x128xf32>
    %9 = arith.cmpf ogt, %7, %8 : vector<16x128xf32>
    %cst_6 = arith.constant 0.00999999977 : f32
    %10 = vector.broadcast %cst_6 : f32 to vector<16x128xf32>
    %11 = arith.mulf %10, %7 : vector<16x128xf32>
    %12 = arith.select %9, %7, %11 : vector<16x128xi1>, vector<16x128xf32>
    %c0_7 = arith.constant 0 : index
    %c0_8 = arith.constant 0 : index
    %c0_9 = arith.constant 0 : index
    %13 = vector.load %arg4[%c0_7, %c0_8, %c0_9] : memref<1x16x128xf32, #tpu.memory_space<vmem>>, vector<1x16x128xf32>
    %14 = vector.shape_cast %13 : vector<1x16x128xf32> to vector<16x128xf32>
    %15 = vector.shape_cast %12 : vector<16x128xf32> to vector<1x16x128xf32>
    tpu.vector_store %arg4[%c0_7, %c0_8, %c0_9], %15 {strides = array<i32>} : memref<1x16x128xf32, #tpu.memory_space<vmem>>, vector<1x16x128xf32>,
    return
  }
  func.func @transform_0(%arg0: i32) -> (i32, i32, i32) {
    %c0_i32 = arith.constant 0 : i32
    %c0_i32_0 = arith.constant 0 : i32
    %c0_i32_1 = arith.constant 0 : i32
    return %arg0, %c0_i32, %c0_i32_0 : i32, i32, i32
  }
  func.func @transform_1(%arg0: i32) -> (i32, i32) {
    %c0_i32 = arith.constant 0 : i32
    %c0_i32_0 = arith.constant 0 : i32
    %c0_i32_1 = arith.constant 0 : i32
    return %c0_i32, %c0_i32_0 : i32, i32
  }
  func.func @transform_2(%arg0: i32) -> (i32, i32) {
    %c0_i32 = arith.constant 0 : i32
    %c0_i32_0 = arith.constant 0 : i32
    %c0_i32_1 = arith.constant 0 : i32
    return %c0_i32, %c0_i32_0 : i32, i32
  }
  func.func @transform_3(%arg0: i32) -> (i32, i32, i32) {
    %c0_i32 = arith.constant 0 : i32
    %c0_i32_0 = arith.constant 0 : i32
    %c0_i32_1 = arith.constant 0 : i32
    return %arg0, %c0_i32, %c0_i32_0 : i32, i32, i32
  }
}

</mosaic_0001>

<llo_original>
// kernel: tile.13
$region0: #{tile.13}
  #allocation0 [shape = 's32[1]{0}', space=sflag, size = 0x4, scoped, tag = 'scoped memory for tile.13']
  %s0 = inlined_call_operand.vmem [shape: f32[8], index: 0, kind: input, shape index: {}]
  %s1 = inlined_call_operand.vmem [shape: f32[16,8], index: 1, kind: output, shape index: {}]
  // Predicated region
  $region2: #{tile.13} parent=0 // pred_check
    _
  $region3: #{tile.13} parent=0 // pred_check_branch
    %3 = sbr.rel (0) target = $region5
  $region4: #{tile.13} parent=0 // pred_region
    _
  $region5: #{tile.13} parent=0 // pred_fallthru
    _
  %v4 = vld [vmem:[%s0] ss:$0 sm:$0xff]
  %5 = vst [vmem:[%s1] sm:$0xff] %v4
  %s6 = scalar_lea.vmem %s1, 8
  %7 = vst [vmem:[%s6] sm:$0xff] %v4

// kernel: tile.14
$region0: #{tile.14}
  %s0 = inlined_call_operand.vmem [shape: f32[16,8], index: 0, kind: input, shape index: {}]
  %s1 = inlined_call_operand.vmem [shape: f32[1,128], index: 1, kind: output, shape index: {}]
  $region1: #{tile.14} parent=0
    #allocation0 [shape = 'u8[4096]{0}', space=vmem, size = 0x1000, scoped, tag = 'scoped mem for output reshape']
    %v2 = vld [vmem:[%s0] sm:$0x1]
    %vm3 = vcmask 64512
    %4 = vst.msk [vmem:[#allocation0] sm:$0x1] %vm3, %v2
    %s5 = scalar_lea.vmem %s0, 15
    %v6 = vld [vmem:[%s5] sm:$0x1]
    %7 = vrot.lane.b32.xlu0 %v6, 120
    %v8 = vpop.permute.xlu0 %7
    %vm9 = vcmask 1048512
    %10 = vst.msk [vmem:[#allocation0] sm:$0x1] %vm9, %v8
    %s11 = scalar_lea.vmem %s0, 14
    %v12 = vld [vmem:[%s11] sm:$0x1]
    %13 = vrot.lane.b32.xlu0 %v12, 112
    %v14 = vpop.permute.xlu0 %13
    %vm15 = vcmask 982912
    %16 = vst.msk [vmem:[#allocation0] sm:$0x1] %vm15, %v14
    %s17 = scalar_lea.vmem %s0, 13
    %v18 = vld [vmem:[%s17] sm:$0x1]
    %19 = vrot.lane.b32.xlu0 %v18, 104
    %v20 = vpop.permute.xlu0 %19
    %vm21 = vcmask 917312
    %22 = vst.msk [vmem:[#allocation0] sm:$0x1] %vm21, %v20
    %s23 = scalar_lea.vmem %s0, 12
    %v24 = vld [vmem:[%s23] sm:$0x1]
    %25 = vrot.lane.b32.xlu0 %v24, 96
    %v26 = vpop.permute.xlu0 %25
    %vm27 = vcmask 851712
    %28 = vst.msk [vmem:[#allocation0] sm:$0x1] %vm27, %v26
    %s29 = scalar_lea.vmem %s0, 11
    %v30 = vld [vmem:[%s29] sm:$0x1]
    %31 = vrot.lane.b32.xlu0 %v30, 88
    %v32 = vpop.permute.xlu0 %31
    %vm33 = vcmask 786112
    %34 = vst.msk [vmem:[#allocation0] sm:$0x1] %vm33, %v32
    %s35 = scalar_lea.vmem %s0, 10
    %v36 = vld [vmem:[%s35] sm:$0x1]
    %37 = vrot.lane.b32.xlu0 %v36, 80
    %v38 = vpop.permute.xlu0 %37
    %vm39 = vcmask 720512
    %40 = vst.msk [vmem:[#allocation0] sm:$0x1] %vm39, %v38
    %s41 = scalar_lea.vmem %s0, 9
    %v42 = vld [vmem:[%s41] sm:$0x1]
    %43 = vrot.lane.b32.xlu0 %v42, 72
    %v44 = vpop.permute.xlu0 %43
    %vm45 = vcmask 654912
    %46 = vst.msk [vmem:[#allocation0] sm:$0x1] %vm45, %v44
    %s47 = scalar_lea.vmem %s0, 8
    %v48 = vld [vmem:[%s47] sm:$0x1]
    %49 = vrot.lane.b32.xlu0 %v48, 64
    %v50 = vpop.permute.xlu0 %49
    %vm51 = vcmask 589312
    %52 = vst.msk [vmem:[#allocation0] sm:$0x1] %vm51, %v50
    %s53 = scalar_lea.vmem %s0, 7
    %v54 = vld [vmem:[%s53] sm:$0x1]
    %55 = vrot.lane.b32.xlu0 %v54, 56
    %v56 = vpop.permute.xlu0 %55
    %vm57 = vcmask 523712
    %58 = vst.msk [vmem:[#allocation0] sm:$0x1] %vm57, %v56
    %s59 = scalar_lea.vmem %s0, 6
    %v60 = vld [vmem:[%s59] sm:$0x1]
    %61 = vrot.lane.b32.xlu0 %v60, 48
    %v62 = vpop.permute.xlu0 %61
    %vm63 = vcmask 458112
    %64 = vst.msk [vmem:[#allocation0] sm:$0x1] %vm63, %v62
    %s65 = scalar_lea.vmem %s0, 5
    %v66 = vld [vmem:[%s65] sm:$0x1]
    %67 = vrot.lane.b32.xlu0 %v66, 40
    %v68 = vpop.permute.xlu0 %67
    %vm69 = vcmask 392512
    %70 = vst.msk [vmem:[#allocation0] sm:$0x1] %vm69, %v68
    %s71 = scalar_lea.vmem %s0, 4
    %v72 = vld [vmem:[%s71] sm:$0x1]
    %73 = vrot.lane.b32.xlu0 %v72, 32
    %v74 = vpop.permute.xlu0 %73
    %vm75 = vcmask 326912
    %76 = vst.msk [vmem:[#allocation0] sm:$0x1] %vm75, %v74
    %s77 = scalar_lea.vmem %s0, 3
    %v78 = vld [vmem:[%s77] sm:$0x1]
    %79 = vrot.lane.b32.xlu0 %v78, 24
    %v80 = vpop.permute.xlu0 %79
    %vm81 = vcmask 261312
    %82 = vst.msk [vmem:[#allocation0] sm:$0x1] %vm81, %v80
    %s83 = scalar_lea.vmem %s0, 2
    %v84 = vld [vmem:[%s83] sm:$0x1]
    %85 = vrot.lane.b32.xlu0 %v84, 16
    %v86 = vpop.permute.xlu0 %85
    %vm87 = vcmask 195712
    %88 = vst.msk [vmem:[#allocation0] sm:$0x1] %vm87, %v86
    %s89 = scalar_lea.vmem %s0, 1
    %v90 = vld [vmem:[%s89] sm:$0x1]
    %91 = vrot.lane.b32.xlu0 %v90, 8
    %v92 = vpop.permute.xlu0 %91
    %vm93 = vcmask 130112
    %94 = vst.msk [vmem:[#allocation0] sm:$0x1] %vm93, %v92
    %s96 = sshllo.u32 0, 1
    %v98 = vld [vmem:[#allocation0] sm:%s96]
    %s99 = sshllo.u32 0, 1
    %100 = vst [vmem:[%s1] sm:%s99] %v98

// kernel: conv_block_forward.5
$region0: #{conv_block_forward.5}
  #allocation0 [shape = 'u32[]', space=smem, size = 0x4, offset = 0x4, fixed_abs, tag = 'smem constant byte address 0x4 - core index']
  #allocation1 [shape = 'u32[144,128]{1,0:T(1,128)}', space=vmem, size = 0x12000, scoped, tag = 'internal scratch']
  %s0 = inlined_call_operand.vmem [shape: f32[2,16,128], index: 0, kind: input, shape index: {}]
  %s1 = inlined_call_operand.vmem [shape: f32[1,128], index: 1, kind: input, shape index: {}]
  %s2 = inlined_call_operand.vmem [shape: f32[1,128], index: 2, kind: input, shape index: {}]
  %s3 = inlined_call_operand.vmem [shape: f32[2,16,128], index: 3, kind: output, shape index: {}]
  %s4 = sld [smem:[#allocation0]]
  $region45: #{conv_block_forward.5} parent=0
    _
  %s6 = ssub.s32 1, %s4
  %s7 = scalar_select 0, %s6, %s4
  loop: start=0, step=1, limit=4
  $region2: #{conv_block_forward.5} parent=0 // loop_pre_header
    _
  $region3: #{conv_block_forward.5} parent=0 // loop_header
    %s9 = sphi 0, %s13
    %p10 = scmp.ge.s32.totalorder %s9, 4
    %s19 = sphi 0, %s21
    %s22 = sphi 0, %s19
    %s23 = sphi 0, %s22
    %s39 = sphi 0, %s23
    %s43 = sphi 0, %s43
    %s45 = sphi 0, %s43
    %s46 = sphi 0, %s45
    %s60 = sphi 0, %s46
    %s64 = sphi 0, %s64
    %s66 = sphi 0, %s64
    %s67 = sphi 0, %s66
    %s81 = sphi 0, %s67
    %s87 = sphi 0, %s89
    %s90 = sphi 0, %s87
    %s91 = sphi 0, %s90
    %s107 = sphi 0, %s91
  $region4: #{conv_block_forward.5} parent=0 // loop_header_branch
    %12 = sbr.rel (%p10) target = $region8
  $region5: #{conv_block_forward.5} parent=0 // loop_body
    %s14 = ssub.s32 %s9, 1
    %s15 = ssub.s32 %s9, 2
    %s16 = sadd.s32 %s9, 1
    %s17 = ssub.s32 %s9, %s16
    %p18 = scmp.eq.s32.totalorder %s17, 0
    %s20 = sadd.s32 %s19, 1
    %s21 = scalar_select %p18, %s19, %s20
    %p24 = pneg %p18
    %p25 = scmp.eq.s32.totalorder %s9, 1
    %p26 = por %p24, %p25
    %p27 = scmp.ne.s32.totalorder %s19, %s22
    %p28 = scmp.eq.s32.totalorder %s9, 0
    %p29 = por %p27, %p28
    %p30 = scmp.ne.s32.totalorder %s19, %s22
    %p31 = scmp.eq.s32.totalorder %s14, 1
    %p32 = por %p30, %p31
    %p33 = scmp.ne.s32.totalorder %s22, %s23
    %p34 = scmp.eq.s32.totalorder %s14, 0
    %p35 = por %p33, %p34
    %p36 = scmp.ne.s32.totalorder %s22, %s23
    %p37 = scmp.eq.s32.totalorder %s15, 1
    %p38 = por %p36, %p37
    %p40 = scmp.ne.s32.totalorder %s23, %s39
    %p41 = scmp.eq.s32.totalorder %s15, 0
    %p42 = por %p40, %p41
    %s44 = sadd.s32 %s43, 1
    %p47 = scmp.eq.s32.totalorder %s9, 1
    %p48 = scmp.ne.s32.totalorder %s43, %s45
    %p49 = scmp.eq.s32.totalorder %s9, 0
    %p50 = por %p48, %p49
    %p51 = scmp.ne.s32.totalorder %s43, %s45
    %p52 = scmp.eq.s32.totalorder %s14, 1
    %p53 = por %p51, %p52
    %p54 = scmp.ne.s32.totalorder %s45, %s46
    %p55 = scmp.eq.s32.totalorder %s14, 0
    %p56 = por %p54, %p55
    %p57 = scmp.ne.s32.totalorder %s45, %s46
    %p58 = scmp.eq.s32.totalorder %s15, 1
    %p59 = por %p57, %p58
    %p61 = scmp.ne.s32.totalorder %s46, %s60
    %p62 = scmp.eq.s32.totalorder %s15, 0
    %p63 = por %p61, %p62
    %s65 = sadd.s32 %s64, 1
    %p68 = scmp.eq.s32.totalorder %s9, 1
    %p69 = scmp.ne.s32.totalorder %s64, %s66
    %p70 = scmp.eq.s32.totalorder %s9, 0
    %p71 = por %p69, %p70
    %p72 = scmp.ne.s32.totalorder %s64, %s66
    %p73 = scmp.eq.s32.totalorder %s14, 1
    %p74 = por %p72, %p73
    %p75 = scmp.ne.s32.totalorder %s66, %s67
    %p76 = scmp.eq.s32.totalorder %s14, 0
    %p77 = por %p75, %p76
    %p78 = scmp.ne.s32.totalorder %s66, %s67
    %p79 = scmp.eq.s32.totalorder %s15, 1
    %p80 = por %p78, %p79
    %p82 = scmp.ne.s32.totalorder %s67, %s81
    %p83 = scmp.eq.s32.totalorder %s15, 0
    %p84 = por %p82, %p83
    %s85 = ssub.s32 %s9, %s16
    %p86 = scmp.eq.s32.totalorder %s85, 0
    %s88 = sadd.s32 %s87, 1
    %s89 = scalar_select %p86, %s87, %s88
    %p92 = pneg %p86
    %p93 = scmp.eq.s32.totalorder %s9, 1
    %p94 = por %p92, %p93
    %p95 = scmp.ne.s32.totalorder %s87, %s90
    %p96 = scmp.eq.s32.totalorder %s9, 0
    %p97 = por %p95, %p96
    %p98 = scmp.ne.s32.totalorder %s87, %s90
    %p99 = scmp.eq.s32.totalorder %s14, 1
    %p100 = por %p98, %p99
    %p101 = scmp.ne.s32.totalorder %s90, %s91
    %p102 = scmp.eq.s32.totalorder %s14, 0
    %p103 = por %p101, %p102
    %p104 = scmp.ne.s32.totalorder %s90, %s91
    %p105 = scmp.eq.s32.totalorder %s15, 1
    %p106 = por %p104, %p105
    %p108 = scmp.ne.s32.totalorder %s91, %s107
    %p109 = scmp.eq.s32.totalorder %s15, 0
    %p110 = por %p108, %p109
    %p111 = scmp.le.s32.totalorder 1, %s9
    %p112 = scmp.lt.s32.totalorder %s9, 3
    %p113 = pnand %p111, %p112
    %p114 = pneg %p113
    // Predicated region
    $region9: #{conv_block_forward.5} parent=5 // pred_check
      _
    $region10: #{conv_block_forward.5} parent=5 // pred_check_branch
      %116 = sbr.rel (%p113) target = $region12
    $region11: #{conv_block_forward.5} parent=5 // pred_region
      %s117 = ssub.s32 %s9, 1
      // Predicated region
      $region13: #{conv_block_forward.5} parent=11 // pred_check
        %p118 = pneg %p56
      $region14: #{conv_block_forward.5} parent=11 // pred_check_branch
        %120 = sbr.rel (%p118) target = $region16
      $region15: #{conv_block_forward.5} parent=11 // pred_region
        _
      $region16: #{conv_block_forward.5} parent=11 // pred_fallthru
        _
      // Predicated region
      $region17: #{conv_block_forward.5} parent=11 // pred_check
        %p121 = pneg %p77
      $region18: #{conv_block_forward.5} parent=11 // pred_check_branch
        %123 = sbr.rel (%p121) target = $region20
      $region19: #{conv_block_forward.5} parent=11 // pred_region
        _
      $region20: #{conv_block_forward.5} parent=11 // pred_fallthru
        _
    $region12: #{conv_block_forward.5} parent=5 // pred_fallthru
      _
    %p124 = scmp.lt.s32.totalorder %s9, 2
    // Predicated region
    $region21: #{conv_block_forward.5} parent=5 // pred_check
      %p125 = pneg %p124
    $region22: #{conv_block_forward.5} parent=5 // pred_check_branch
      %127 = sbr.rel (%p125) target = $region24
    $region23: #{conv_block_forward.5} parent=5 // pred_region
      // Predicated region
      $region25: #{conv_block_forward.5} parent=23 // pred_check
        %p128 = pneg %p29
      $region26: #{conv_block_forward.5} parent=23 // pred_check_branch
        %130 = sbr.rel (%p128) target = $region28
      $region27: #{conv_block_forward.5} parent=23 // pred_region
        %p131 = scmp.lt.s32.totalorder %s9, 1
        %s132 = scalar_select %p131, %s9, 1
        %s133 = smul.addr %s132, 2
        %s134 = smul.addr %s133, 8
        %s135 = scalar_lea.vmem %s0, %s134
      $region28: #{conv_block_forward.5} parent=23 // pred_fallthru
        _
    $region24: #{conv_block_forward.5} parent=5 // pred_fallthru
      _
    %p136 = scmp.le.s32.totalorder 1, %s9
    %p137 = scmp.lt.s32.totalorder %s9, 3
    %p138 = pnand %p136, %p137
    %p139 = pneg %p138
    // Predicated region
    $region29: #{conv_block_forward.5} parent=5 // pred_check
      _
    $region30: #{conv_block_forward.5} parent=5 // pred_check_branch
      %141 = sbr.rel (%p138) target = $region32
    $region31: #{conv_block_forward.5} parent=5 // pred_region
      %s142 = ssub.s32 %s9, 1
      %p143 = scmp.lt.s32.totalorder %s14, 1
      %s144 = scalar_select %p143, %s14, 1
      %s145 = smul.addr %s144, 2
      %s146 = smul.addr %s145, 8
      %s147 = scalar_lea.vmem %s0, %s146
      %p148 = pneg %p35
      %p149 = pneg %p32
      %p150 = pneg %p56
      %p151 = pneg %p53
      %p152 = pneg %p77
      %p153 = pneg %p74
      %p154 = pneg %p103
      %p155 = pneg %p100
      %p156 = scmp.lt.s32.totalorder %s14, 1
      %s157 = scalar_select %p156, %s14, 1
      %s158 = smul.addr %s157, 2
      %s159 = smul.addr %s158, 8
      %s160 = scalar_lea.vmem %s3, %s159
      %p161 = scmp.lt.s32.totalorder %s14, 1
      %s162 = scalar_select %p161, %s14, 1
      %s163 = smul.addr %s162, 2
      %s164 = smul.addr %s163, 8
      %s165 = scalar_lea.vmem %s0, %s164
      %p166 = scmp.lt.s32.totalorder %s14, 1
      %s167 = scalar_select %p166, %s14, 1
      %s168 = smul.addr %s167, 2
      %s169 = smul.addr %s168, 8
      %s170 = scalar_lea.vmem %s3, %s169
      %v171 = vld [vmem:[%s165] sm:$0xff]
      %v172 = vld [vmem:[%s165 + $0x8] sm:$0xff]
      %v173 = vld [vmem:[%s1] sm:$0x1]
      %v175 = vlaneseq
      %v176 = vshrl.u32 %v175, 7
      %v177 = vsub.s32 0, %v176
      %v178 = vrot.slane %v173, %v177
      %v180 = vmul.f32 %v171, %v178
      %v181 = vmul.f32 %v172, %v178
      %v182 = vld [vmem:[%s2] sm:$0x1]
      %v184 = vlaneseq
      %v185 = vshrl.u32 %v184, 7
      %v186 = vsub.s32 0, %v185
      %v187 = vrot.slane %v182, %v186
      %v189 = vadd.f32 %v180, %v187
      %v190 = vadd.f32 %v181, %v187
      %vm191 = vcmp.gt.f32.partialorder %v189, 0.0
      %vm192 = vcmp.gt.f32.partialorder %v190, 0.0
      %v193 = vmul.f32 %v189, 0.01
      %v194 = vmul.f32 %v190, 0.01
      %v195 = vsel %vm191, %v189, %v193
      %v196 = vsel %vm192, %v190, %v194
      %197 = vst [vmem:[%s170] sm:$0xff] %v195
      %198 = vst [vmem:[%s170 + $0x8] sm:$0xff] %v196
      %p199 = scmp.lt.s32.totalorder %s14, 1
      %s200 = scalar_select %p199, %s14, 1
      %s201 = smul.addr %s200, 2
      %s202 = smul.addr %s201, 8
      %s203 = scalar_lea.vmem %s3, %s202
      // Predicated region
      $region33: #{conv_block_forward.5} parent=31 // pred_check
        %p204 = pneg %p100
      $region34: #{conv_block_forward.5} parent=31 // pred_check_branch
        %206 = sbr.rel (%p204) target = $region36
      $region35: #{conv_block_forward.5} parent=31 // pred_region
        _
      $region36: #{conv_block_forward.5} parent=31 // pred_fallthru
        _
    $region32: #{conv_block_forward.5} parent=5 // pred_fallthru
      _
    %p207 = scmp.le.s32.totalorder 2, %s9
    // Predicated region
    $region37: #{conv_block_forward.5} parent=5 // pred_check
      %p208 = pneg %p207
    $region38: #{conv_block_forward.5} parent=5 // pred_check_branch
      %210 = sbr.rel (%p208) target = $region40
    $region39: #{conv_block_forward.5} parent=5 // pred_region
      %s211 = ssub.s32 %s9, 2
      // Predicated region
      $region41: #{conv_block_forward.5} parent=39 // pred_check
        %p212 = pneg %p106
      $region42: #{conv_block_forward.5} parent=39 // pred_check_branch
        %214 = sbr.rel (%p212) target = $region44
      $region43: #{conv_block_forward.5} parent=39 // pred_region
        %p215 = scmp.lt.s32.totalorder %s15, 1
        %s216 = scalar_select %p215, %s15, 1
        %s217 = smul.addr %s216, 2
        %s218 = smul.addr %s217, 8
        %s219 = scalar_lea.vmem %s3, %s218
      $region44: #{conv_block_forward.5} parent=39 // pred_fallthru
        _
    $region40: #{conv_block_forward.5} parent=5 // pred_fallthru
      _
  $region6: #{conv_block_forward.5} parent=0 // loop_footer
    %s13 = sadd.s32 1, %s9
  $region7: #{conv_block_forward.5} parent=0 // loop_footer_branch
    %8 = sbr.rel target = $region3
  $region8: #{conv_block_forward.5} parent=0 // loop_exit
    _

// kernel: conv_block_forward.3
$region0: #{conv_block_forward.3}
  #allocation0 [shape = 'u32[]', space=smem, size = 0x4, offset = 0x4, fixed_abs, tag = 'smem constant byte address 0x4 - core index']
  #allocation1 [shape = 'u32[144,128]{1,0:T(1,128)}', space=vmem, size = 0x12000, scoped, tag = 'internal scratch']
  %s0 = inlined_call_operand.vmem [shape: f32[2,18,18,4], index: 0, kind: input, shape index: {}]
  %s1 = inlined_call_operand.vmem [shape: bf16[36,8], index: 1, kind: input, shape index: {}]
  %s2 = inlined_call_operand.vmem [shape: f32[1,8], index: 2, kind: input, shape index: {}]
  %s3 = inlined_call_operand.vmem [shape: f32[2,16,16,8], index: 3, kind: output, shape index: {0}]
  %s4 = inlined_call_operand.vmem [shape: f32[1,8], index: 4, kind: output, shape index: {1}]
  %s5 = inlined_call_operand.vmem [shape: f32[1,8], index: 5, kind: output, shape index: {2}]
  %6 = xla_tuple %s3, %s4, %s5
  %s7 = sld [smem:[#allocation0]]
  $region65: #{conv_block_forward.3} parent=0
    _
  %s9 = ssub.s32 1, %s7
  %s10 = scalar_select 0, %s9, %s7
  loop: start=0, step=1, limit=4
  $region2: #{conv_block_forward.3} parent=0 // loop_pre_header
    _
  $region3: #{conv_block_forward.3} parent=0 // loop_header
    %s12 = sphi 0, %s16
    %p13 = scmp.ge.s32.totalorder %s12, 4
    %s22 = sphi 0, %s24
    %s25 = sphi 0, %s22
    %s26 = sphi 0, %s25
    %s42 = sphi 0, %s26
    %s46 = sphi 0, %s46
    %s48 = sphi 0, %s46
    %s49 = sphi 0, %s48
    %s63 = sphi 0, %s49
    %s67 = sphi 0, %s67
    %s69 = sphi 0, %s67
    %s70 = sphi 0, %s69
    %s84 = sphi 0, %s70
    %s90 = sphi 0, %s92
    %s93 = sphi 0, %s90
    %s94 = sphi 0, %s93
    %s110 = sphi 0, %s94
    %s114 = sphi 0, %s114
    %s116 = sphi 0, %s114
    %s117 = sphi 0, %s116
    %s131 = sphi 0, %s117
    %s135 = sphi 0, %s135
    %s137 = sphi 0, %s135
    %s138 = sphi 0, %s137
    %s152 = sphi 0, %s138
  $region4: #{conv_block_forward.3} parent=0 // loop_header_branch
    %15 = sbr.rel (%p13) target = $region8
  $region5: #{conv_block_forward.3} parent=0 // loop_body
    %s17 = ssub.s32 %s12, 1
    %s18 = ssub.s32 %s12, 2
    %s19 = sadd.s32 %s12, 1
    %s20 = ssub.s32 %s12, %s19
    %p21 = scmp.eq.s32.totalorder %s20, 0
    %s23 = sadd.s32 %s22, 1
    %s24 = scalar_select %p21, %s22, %s23
    %p27 = pneg %p21
    %p28 = scmp.eq.s32.totalorder %s12, 1
    %p29 = por %p27, %p28
    %p30 = scmp.ne.s32.totalorder %s22, %s25
    %p31 = scmp.eq.s32.totalorder %s12, 0
    %p32 = por %p30, %p31
    %p33 = scmp.ne.s32.totalorder %s22, %s25
    %p34 = scmp.eq.s32.totalorder %s17, 1
    %p35 = por %p33, %p34
    %p36 = scmp.ne.s32.totalorder %s25, %s26
    %p37 = scmp.eq.s32.totalorder %s17, 0
    %p38 = por %p36, %p37
    %p39 = scmp.ne.s32.totalorder %s25, %s26
    %p40 = scmp.eq.s32.totalorder %s18, 1
    %p41 = por %p39, %p40
    %p43 = scmp.ne.s32.totalorder %s26, %s42
    %p44 = scmp.eq.s32.totalorder %s18, 0
    %p45 = por %p43, %p44
    %s47 = sadd.s32 %s46, 1
    %p50 = scmp.eq.s32.totalorder %s12, 1
    %p51 = scmp.ne.s32.totalorder %s46, %s48
    %p52 = scmp.eq.s32.totalorder %s12, 0
    %p53 = por %p51, %p52
    %p54 = scmp.ne.s32.totalorder %s46, %s48
    %p55 = scmp.eq.s32.totalorder %s17, 1
    %p56 = por %p54, %p55
    %p57 = scmp.ne.s32.totalorder %s48, %s49
    %p58 = scmp.eq.s32.totalorder %s17, 0
    %p59 = por %p57, %p58
    %p60 = scmp.ne.s32.totalorder %s48, %s49
    %p61 = scmp.eq.s32.totalorder %s18, 1
    %p62 = por %p60, %p61
    %p64 = scmp.ne.s32.totalorder %s49, %s63
    %p65 = scmp.eq.s32.totalorder %s18, 0
    %p66 = por %p64, %p65
    %s68 = sadd.s32 %s67, 1
    %p71 = scmp.eq.s32.totalorder %s12, 1
    %p72 = scmp.ne.s32.totalorder %s67, %s69
    %p73 = scmp.eq.s32.totalorder %s12, 0
    %p74 = por %p72, %p73
    %p75 = scmp.ne.s32.totalorder %s67, %s69
    %p76 = scmp.eq.s32.totalorder %s17, 1
    %p77 = por %p75, %p76
    %p78 = scmp.ne.s32.totalorder %s69, %s70
    %p79 = scmp.eq.s32.totalorder %s17, 0
    %p80 = por %p78, %p79
    %p81 = scmp.ne.s32.totalorder %s69, %s70
    %p82 = scmp.eq.s32.totalorder %s18, 1
    %p83 = por %p81, %p82
    %p85 = scmp.ne.s32.totalorder %s70, %s84
    %p86 = scmp.eq.s32.totalorder %s18, 0
    %p87 = por %p85, %p86
    %s88 = ssub.s32 %s12, %s19
    %p89 = scmp.eq.s32.totalorder %s88, 0
    %s91 = sadd.s32 %s90, 1
    %s92 = scalar_select %p89, %s90, %s91
    %p95 = pneg %p89
    %p96 = scmp.eq.s32.totalorder %s12, 1
    %p97 = por %p95, %p96
    %p98 = scmp.ne.s32.totalorder %s90, %s93
    %p99 = scmp.eq.s32.totalorder %s12, 0
    %p100 = por %p98, %p99
    %p101 = scmp.ne.s32.totalorder %s90, %s93
    %p102 = scmp.eq.s32.totalorder %s17, 1
    %p103 = por %p101, %p102
    %p104 = scmp.ne.s32.totalorder %s93, %s94
    %p105 = scmp.eq.s32.totalorder %s17, 0
    %p106 = por %p104, %p105
    %p107 = scmp.ne.s32.totalorder %s93, %s94
    %p108 = scmp.eq.s32.totalorder %s18, 1
    %p109 = por %p107, %p108
    %p111 = scmp.ne.s32.totalorder %s94, %s110
    %p112 = scmp.eq.s32.totalorder %s18, 0
    %p113 = por %p111, %p112
    %s115 = sadd.s32 %s114, 1
    %p118 = scmp.eq.s32.totalorder %s12, 1
    %p119 = scmp.ne.s32.totalorder %s114, %s116
    %p120 = scmp.eq.s32.totalorder %s12, 0
    %p121 = por %p119, %p120
    %p122 = scmp.ne.s32.totalorder %s114, %s116
    %p123 = scmp.eq.s32.totalorder %s17, 1
    %p124 = por %p122, %p123
    %p125 = scmp.ne.s32.totalorder %s116, %s117
    %p126 = scmp.eq.s32.totalorder %s17, 0
    %p127 = por %p125, %p126
    %p128 = scmp.ne.s32.totalorder %s116, %s117
    %p129 = scmp.eq.s32.totalorder %s18, 1
    %p130 = por %p128, %p129
    %p132 = scmp.ne.s32.totalorder %s117, %s131
    %p133 = scmp.eq.s32.totalorder %s18, 0
    %p134 = por %p132, %p133
    %s136 = sadd.s32 %s135, 1
    %p139 = scmp.eq.s32.totalorder %s12, 1
    %p140 = scmp.ne.s32.totalorder %s135, %s137
    %p141 = scmp.eq.s32.totalorder %s12, 0
    %p142 = por %p140, %p141
    %p143 = scmp.ne.s32.totalorder %s135, %s137
    %p144 = scmp.eq.s32.totalorder %s17, 1
    %p145 = por %p143, %p144
    %p146 = scmp.ne.s32.totalorder %s137, %s138
    %p147 = scmp.eq.s32.totalorder %s17, 0
    %p148 = por %p146, %p147
    %p149 = scmp.ne.s32.totalorder %s137, %s138
    %p150 = scmp.eq.s32.totalorder %s18, 1
    %p151 = por %p149, %p150
    %p153 = scmp.ne.s32.totalorder %s138, %s152
    %p154 = scmp.eq.s32.totalorder %s18, 0
    %p155 = por %p153, %p154
    %p156 = scmp.le.s32.totalorder 1, %s12
    %p157 = scmp.lt.s32.totalorder %s12, 3
    %p158 = pnand %p156, %p157
    %p159 = pneg %p158
    // Predicated region
    $region9: #{conv_block_forward.3} parent=5 // pred_check
      _
    $region10: #{conv_block_forward.3} parent=5 // pred_check_branch
      %161 = sbr.rel (%p158) target = $region12
    $region11: #{conv_block_forward.3} parent=5 // pred_region
      %s162 = ssub.s32 %s12, 1
      // Predicated region
      $region13: #{conv_block_forward.3} parent=11 // pred_check
        %p163 = pneg %p59
      $region14: #{conv_block_forward.3} parent=11 // pred_check_branch
        %165 = sbr.rel (%p163) target = $region16
      $region15: #{conv_block_forward.3} parent=11 // pred_region
        _
      $region16: #{conv_block_forward.3} parent=11 // pred_fallthru
        _
      // Predicated region
      $region17: #{conv_block_forward.3} parent=11 // pred_check
        %p166 = pneg %p80
      $region18: #{conv_block_forward.3} parent=11 // pred_check_branch
        %168 = sbr.rel (%p166) target = $region20
      $region19: #{conv_block_forward.3} parent=11 // pred_region
        _
      $region20: #{conv_block_forward.3} parent=11 // pred_fallthru
        _
    $region12: #{conv_block_forward.3} parent=5 // pred_fallthru
      _
    %p169 = scmp.lt.s32.totalorder %s12, 2
    // Predicated region
    $region21: #{conv_block_forward.3} parent=5 // pred_check
      %p170 = pneg %p169
    $region22: #{conv_block_forward.3} parent=5 // pred_check_branch
      %172 = sbr.rel (%p170) target = $region24
    $region23: #{conv_block_forward.3} parent=5 // pred_region
      // Predicated region
      $region25: #{conv_block_forward.3} parent=23 // pred_check
        %p173 = pneg %p32
      $region26: #{conv_block_forward.3} parent=23 // pred_check_branch
        %175 = sbr.rel (%p173) target = $region28
      $region27: #{conv_block_forward.3} parent=23 // pred_region
        %p176 = scmp.lt.s32.totalorder %s12, 1
        %s177 = scalar_select %p176, %s12, 1
        %s178 = smul.addr %s177, 54
        %s179 = smul.addr %s178, 8
        %s180 = scalar_lea.vmem %s0, %s179
      $region28: #{conv_block_forward.3} parent=23 // pred_fallthru
        _
    $region24: #{conv_block_forward.3} parent=5 // pred_fallthru
      _
    %p181 = scmp.le.s32.totalorder 1, %s12
    %p182 = scmp.lt.s32.totalorder %s12, 3
    %p183 = pnand %p181, %p182
    %p184 = pneg %p183
    // Predicated region
    $region29: #{conv_block_forward.3} parent=5 // pred_check
      _
    $region30: #{conv_block_forward.3} parent=5 // pred_check_branch
      %186 = sbr.rel (%p183) target = $region32
    $region31: #{conv_block_forward.3} parent=5 // pred_region
      %s187 = ssub.s32 %s12, 1
      %p188 = scmp.lt.s32.totalorder %s17, 1
      %s189 = scalar_select %p188, %s17, 1
      %s190 = smul.addr %s189, 54
      %s191 = smul.addr %s190, 8
      %s192 = scalar_lea.vmem %s0, %s191
      %p193 = pneg %p38
      %p194 = pneg %p35
      %p195 = pneg %p59
      %p196 = pneg %p56
      %p197 = pneg %p80
      %p198 = pneg %p77
      %p199 = pneg %p106
      %p200 = pneg %p103
      %p201 = scmp.lt.s32.totalorder %s17, 1
      %s202 = scalar_select %p201, %s17, 1
      %s203 = smul.addr %s202, 32
      %s204 = smul.addr %s203, 8
      %s205 = scalar_lea.vmem %s3, %s204
      %p206 = pneg %p127
      %p207 = pneg %p124
      %p208 = pneg %p148
      %p209 = pneg %p145
      %p210 = scmp.lt.s32.totalorder %s17, 1
      %s211 = scalar_select %p210, %s17, 1
      %s212 = smul.addr %s211, 54
      %s213 = smul.addr %s212, 8
      %s214 = scalar_lea.vmem %s0, %s213
      %p215 = scmp.lt.s32.totalorder %s17, 1
      %s216 = scalar_select %p215, %s17, 1
      %s217 = smul.addr %s216, 32
      %s218 = smul.addr %s217, 8
      %s219 = scalar_lea.vmem %s3, %s218
      %v221 = vld [vmem:[%s214] sm:$0xff]
      %v222 = vld [vmem:[%s214 + $0x8] sm:$0xff]
      %v223 = vld [vmem:[%s214 + $0x10] sm:$0x3]
      %v224 = vld [vmem:[%s214 + $0x18] sm:$0xff]
      %v225 = vld [vmem:[%s214 + $0x20] sm:$0xff]
      %v226 = vld [vmem:[%s214 + $0x28] sm:$0x3]
      %v227 = vld [vmem:[%s214 + $0x30] sm:$0xff]
      %v228 = vld [vmem:[%s214 + $0x38] sm:$0xff]
      %v229 = vld [vmem:[%s214 + $0x40] sm:$0x3]
      %v230 = vld [vmem:[%s214 + $0x48] sm:$0xff]
      %v231 = vld [vmem:[%s214 + $0x50] sm:$0xff]
      %v232 = vld [vmem:[%s214 + $0x58] sm:$0x3]
      %v233 = vld [vmem:[%s214 + $0x60] sm:$0xff]
      %v234 = vld [vmem:[%s214 + $0x68] sm:$0xff]
      %v235 = vld [vmem:[%s214 + $0x70] sm:$0x3]
      %v236 = vld [vmem:[%s214 + $0x78] sm:$0xff]
      %v237 = vld [vmem:[%s214 + $0x80] sm:$0xff]
      %v238 = vld [vmem:[%s214 + $0x88] sm:$0x3]
      %v239 = vld [vmem:[%s214 + $0x90] sm:$0xff]
      %v240 = vld [vmem:[%s214 + $0x98] sm:$0xff]
      %v241 = vld [vmem:[%s214 + $0xa0] sm:$0x3]
      %v242 = vld [vmem:[%s214 + $0xa8] sm:$0xff]
      %v243 = vld [vmem:[%s214 + $0xb0] sm:$0xff]
      %v244 = vld [vmem:[%s214 + $0xb8] sm:$0x3]
      %v245 = vld [vmem:[%s214 + $0xc0] sm:$0xff]
      %v246 = vld [vmem:[%s214 + $0xc8] sm:$0xff]
      %v247 = vld [vmem:[%s214 + $0xd0] sm:$0x3]
      %v248 = vld [vmem:[%s214 + $0xd8] sm:$0xff]
      %v249 = vld [vmem:[%s214 + $0xe0] sm:$0xff]
      %v250 = vld [vmem:[%s214 + $0xe8] sm:$0x3]
      %v251 = vld [vmem:[%s214 + $0xf0] sm:$0xff]
      %v252 = vld [vmem:[%s214 + $0xf8] sm:$0xff]
      %v253 = vld [vmem:[%s214 + $0x100] sm:$0x3]
      %v254 = vld [vmem:[%s214 + $0x108] sm:$0xff]
      %v255 = vld [vmem:[%s214 + $0x110] sm:$0xff]
      %v256 = vld [vmem:[%s214 + $0x118] sm:$0x3]
      %v257 = vld [vmem:[%s214 + $0x120] sm:$0xff]
      %v258 = vld [vmem:[%s214 + $0x128] sm:$0xff]
      %v259 = vld [vmem:[%s214 + $0x130] sm:$0x3]
      %v260 = vld [vmem:[%s214 + $0x138] sm:$0xff]
      %v261 = vld [vmem:[%s214 + $0x140] sm:$0xff]
      %v262 = vld [vmem:[%s214 + $0x148] sm:$0x3]
      %v263 = vld [vmem:[%s214 + $0x150] sm:$0xff]
      %v264 = vld [vmem:[%s214 + $0x158] sm:$0xff]
      %v265 = vld [vmem:[%s214 + $0x160] sm:$0x3]
      %v266 = vld [vmem:[%s214 + $0x168] sm:$0xff]
      %v267 = vld [vmem:[%s214 + $0x170] sm:$0xff]
      %v268 = vld [vmem:[%s214 + $0x178] sm:$0x3]
      %v269 = vld [vmem:[%s214 + $0x180] sm:$0xff]
      %v270 = vld [vmem:[%s214 + $0x188] sm:$0xff]
      %v271 = vld [vmem:[%s214 + $0x190] sm:$0x3]
      %v272 = vld [vmem:[%s214 + $0x198] sm:$0xff]
      %v273 = vld [vmem:[%s214 + $0x1a0] sm:$0xff]
      %v274 = vld [vmem:[%s214 + $0x1a8] sm:$0x3]
      %vm323 = vcmask 1046528
      %v324 = vrot.slane %v221, 1
      %v325 = vrot.slane %v222, 1
      %v326 = vsel %vm323, %v324, %v325
      %v327 = vrot.slane %v223, 1
      %v328 = vsel %vm323, %v325, %v327
      %v329 = vrot.slane %v224, 1
      %v330 = vrot.slane %v225, 1
      %v331 = vsel %vm323, %v329, %v330
      %v332 = vrot.slane %v226, 1
      %v333 = vsel %vm323, %v330, %v332
      %v334 = vrot.slane %v227, 1
      %v335 = vrot.slane %v228, 1
      %v336 = vsel %vm323, %v334, %v335
      %v337 = vrot.slane %v229, 1
      %v338 = vsel %vm323, %v335, %v337
      %v339 = vrot.slane %v230, 1
      %v340 = vrot.slane %v231, 1
      %v341 = vsel %vm323, %v339, %v340
      %v342 = vrot.slane %v232, 1
      %v343 = vsel %vm323, %v340, %v342
      %v344 = vrot.slane %v233, 1
      %v345 = vrot.slane %v234, 1
      %v346 = vsel %vm323, %v344, %v345
      %v347 = vrot.slane %v235, 1
      %v348 = vsel %vm323, %v345, %v347
      %v349 = vrot.slane %v236, 1
      %v350 = vrot.slane %v237, 1
      %v351 = vsel %vm323, %v349, %v350
      %v352 = vrot.slane %v238, 1
      %v353 = vsel %vm323, %v350, %v352
      %v354 = vrot.slane %v239, 1
      %v355 = vrot.slane %v240, 1
      %v356 = vsel %vm323, %v354, %v355
      %v357 = vrot.slane %v241, 1
      %v358 = vsel %vm323, %v355, %v357
      %v359 = vrot.slane %v242, 1
      %v360 = vrot.slane %v243, 1
      %v361 = vsel %vm323, %v359, %v360
      %v362 = vrot.slane %v244, 1
      %v363 = vsel %vm323, %v360, %v362
      %v364 = vrot.slane %v245, 1
      %v365 = vrot.slane %v246, 1
      %v366 = vsel %vm323, %v364, %v365
      %v367 = vrot.slane %v247, 1
      %v368 = vsel %vm323, %v365, %v367
      %v369 = vrot.slane %v248, 1
      %v370 = vrot.slane %v249, 1
      %v371 = vsel %vm323, %v369, %v370
      %v372 = vrot.slane %v250, 1
      %v373 = vsel %vm323, %v370, %v372
      %v374 = vrot.slane %v251, 1
      %v375 = vrot.slane %v252, 1
      %v376 = vsel %vm323, %v374, %v375
      %v377 = vrot.slane %v253, 1
      %v378 = vsel %vm323, %v375, %v377
      %v379 = vrot.slane %v254, 1
      %v380 = vrot.slane %v255, 1
      %v381 = vsel %vm323, %v379, %v380
      %v382 = vrot.slane %v256, 1
      %v383 = vsel %vm323, %v380, %v382
      %v384 = vrot.slane %v257, 1
      %v385 = vrot.slane %v258, 1
      %v386 = vsel %vm323, %v384, %v385
      %v387 = vrot.slane %v259, 1
      %v388 = vsel %vm323, %v385, %v387
      %v389 = vrot.slane %v260, 1
      %v390 = vrot.slane %v261, 1
      %v391 = vsel %vm323, %v389, %v390
      %v392 = vrot.slane %v262, 1
      %v393 = vsel %vm323, %v390, %v392
      %v394 = vrot.slane %v263, 1
      %v395 = vrot.slane %v264, 1
      %v396 = vsel %vm323, %v394, %v395
      %v397 = vrot.slane %v265, 1
      %v398 = vsel %vm323, %v395, %v397
      %v399 = vrot.slane %v266, 1
      %v400 = vrot.slane %v267, 1
      %v401 = vsel %vm323, %v399, %v400
      %v402 = vrot.slane %v268, 1
      %v403 = vsel %vm323, %v400, %v402
      %vm404 = vcmask 1045504
      %v405 = vrot.slane %v221, 2
      %v406 = vrot.slane %v222, 2
      %v407 = vsel %vm404, %v405, %v406
      %v408 = vrot.slane %v223, 2
      %v409 = vsel %vm404, %v406, %v408
      %v410 = vrot.slane %v224, 2
      %v411 = vrot.slane %v225, 2
      %v412 = vsel %vm404, %v410, %v411
      %v413 = vrot.slane %v226, 2
      %v414 = vsel %vm404, %v411, %v413
      %v415 = vrot.slane %v227, 2
      %v416 = vrot.slane %v228, 2
      %v417 = vsel %vm404, %v415, %v416
      %v418 = vrot.slane %v229, 2
      %v419 = vsel %vm404, %v416, %v418
      %v420 = vrot.slane %v230, 2
      %v421 = vrot.slane %v231, 2
      %v422 = vsel %vm404, %v420, %v421
      %v423 = vrot.slane %v232, 2
      %v424 = vsel %vm404, %v421, %v423
      %v425 = vrot.slane %v233, 2
      %v426 = vrot.slane %v234, 2
      %v427 = vsel %vm404, %v425, %v426
      %v428 = vrot.slane %v235, 2
      %v429 = vsel %vm404, %v426, %v428
      %v430 = vrot.slane %v236, 2
      %v431 = vrot.slane %v237, 2
      %v432 = vsel %vm404, %v430, %v431
      %v433 = vrot.slane %v238, 2
      %v434 = vsel %vm404, %v431, %v433
      %v435 = vrot.slane %v239, 2
      %v436 = vrot.slane %v240, 2
      %v437 = vsel %vm404, %v435, %v436
      %v438 = vrot.slane %v241, 2
      %v439 = vsel %vm404, %v436, %v438
      %v440 = vrot.slane %v242, 2
      %v441 = vrot.slane %v243, 2
      %v442 = vsel %vm404, %v440, %v441
      %v443 = vrot.slane %v244, 2
      %v444 = vsel %vm404, %v441, %v443
      %v445 = vrot.slane %v245, 2
      %v446 = vrot.slane %v246, 2
      %v447 = vsel %vm404, %v445, %v446
      %v448 = vrot.slane %v247, 2
      %v449 = vsel %vm404, %v446, %v448
      %v450 = vrot.slane %v248, 2
      %v451 = vrot.slane %v249, 2
      %v452 = vsel %vm404, %v450, %v451
      %v453 = vrot.slane %v250, 2
      %v454 = vsel %vm404, %v451, %v453
      %v455 = vrot.slane %v251, 2
      %v456 = vrot.slane %v252, 2
      %v457 = vsel %vm404, %v455, %v456
      %v458 = vrot.slane %v253, 2
      %v459 = vsel %vm404, %v456, %v458
      %v460 = vrot.slane %v254, 2
      %v461 = vrot.slane %v255, 2
      %v462 = vsel %vm404, %v460, %v461
      %v463 = vrot.slane %v256, 2
      %v464 = vsel %vm404, %v461, %v463
      %v465 = vrot.slane %v257, 2
      %v466 = vrot.slane %v258, 2
      %v467 = vsel %vm404, %v465, %v466
      %v468 = vrot.slane %v259, 2
      %v469 = vsel %vm404, %v466, %v468
      %v470 = vrot.slane %v260, 2
      %v471 = vrot.slane %v261, 2
      %v472 = vsel %vm404, %v470, %v471
      %v473 = vrot.slane %v262, 2
      %v474 = vsel %vm404, %v471, %v473
      %v475 = vrot.slane %v263, 2
      %v476 = vrot.slane %v264, 2
      %v477 = vsel %vm404, %v475, %v476
      %v478 = vrot.slane %v265, 2
      %v479 = vsel %vm404, %v476, %v478
      %v480 = vrot.slane %v266, 2
      %v481 = vrot.slane %v267, 2
      %v482 = vsel %vm404, %v480, %v481
      %v483 = vrot.slane %v268, 2
      %v484 = vsel %vm404, %v481, %v483
      %v488 = vrot.slane %v269, 1
      %v489 = vrot.slane %v270, 1
      %v490 = vsel %vm323, %v488, %v489
      %v491 = vrot.slane %v271, 1
      %v492 = vsel %vm323, %v489, %v491
      %v493 = vrot.slane %v269, 2
      %v494 = vrot.slane %v270, 2
      %v495 = vsel %vm404, %v493, %v494
      %v496 = vrot.slane %v271, 2
      %v497 = vsel %vm404, %v494, %v496
      %v501 = vrot.slane %v272, 1
      %v502 = vrot.slane %v273, 1
      %v503 = vsel %vm323, %v501, %v502
      %v504 = vrot.slane %v274, 1
      %v505 = vsel %vm323, %v502, %v504
      %v506 = vrot.slane %v272, 2
      %v507 = vrot.slane %v273, 2
      %v508 = vsel %vm404, %v506, %v507
      %v509 = vrot.slane %v274, 2
      %v510 = vsel %vm404, %v507, %v509
      %511 = vrot.lane.b32.xlu0 %v326, 4
      %v512 = vpop.permute.xlu0 %511
      %513 = vrot.lane.b32.xlu0 %v328, 4
      %v514 = vpop.permute.xlu0 %513
      %515 = vrot.lane.b32.xlu0 %v331, 4
      %v516 = vpop.permute.xlu0 %515
      %517 = vrot.lane.b32.xlu0 %v333, 4
      %v518 = vpop.permute.xlu0 %517
      %519 = vrot.lane.b32.xlu0 %v336, 4
      %v520 = vpop.permute.xlu0 %519
      %521 = vrot.lane.b32.xlu0 %v338, 4
      %v522 = vpop.permute.xlu0 %521
      %523 = vrot.lane.b32.xlu0 %v341, 4
      %v524 = vpop.permute.xlu0 %523
      %525 = vrot.lane.b32.xlu0 %v343, 4
      %v526 = vpop.permute.xlu0 %525
      %527 = vrot.lane.b32.xlu0 %v346, 4
      %v528 = vpop.permute.xlu0 %527
      %529 = vrot.lane.b32.xlu0 %v348, 4
      %v530 = vpop.permute.xlu0 %529
      %531 = vrot.lane.b32.xlu0 %v351, 4
      %v532 = vpop.permute.xlu0 %531
      %533 = vrot.lane.b32.xlu0 %v353, 4
      %v534 = vpop.permute.xlu0 %533
      %535 = vrot.lane.b32.xlu0 %v356, 4
      %v536 = vpop.permute.xlu0 %535
      %537 = vrot.lane.b32.xlu0 %v358, 4
      %v538 = vpop.permute.xlu0 %537
      %539 = vrot.lane.b32.xlu0 %v361, 4
      %v540 = vpop.permute.xlu0 %539
      %541 = vrot.lane.b32.xlu0 %v363, 4
      %v542 = vpop.permute.xlu0 %541
      %543 = vrot.lane.b32.xlu0 %v366, 4
      %v544 = vpop.permute.xlu0 %543
      %545 = vrot.lane.b32.xlu0 %v368, 4
      %v546 = vpop.permute.xlu0 %545
      %547 = vrot.lane.b32.xlu0 %v371, 4
      %v548 = vpop.permute.xlu0 %547
      %549 = vrot.lane.b32.xlu0 %v373, 4
      %v550 = vpop.permute.xlu0 %549
      %551 = vrot.lane.b32.xlu0 %v376, 4
      %v552 = vpop.permute.xlu0 %551
      %553 = vrot.lane.b32.xlu0 %v378, 4
      %v554 = vpop.permute.xlu0 %553
      %555 = vrot.lane.b32.xlu0 %v381, 4
      %v556 = vpop.permute.xlu0 %555
      %557 = vrot.lane.b32.xlu0 %v383, 4
      %v558 = vpop.permute.xlu0 %557
      %559 = vrot.lane.b32.xlu0 %v386, 4
      %v560 = vpop.permute.xlu0 %559
      %561 = vrot.lane.b32.xlu0 %v388, 4
      %v562 = vpop.permute.xlu0 %561
      %563 = vrot.lane.b32.xlu0 %v391, 4
      %v564 = vpop.permute.xlu0 %563
      %565 = vrot.lane.b32.xlu0 %v393, 4
      %v566 = vpop.permute.xlu0 %565
      %567 = vrot.lane.b32.xlu0 %v396, 4
      %v568 = vpop.permute.xlu0 %567
      %569 = vrot.lane.b32.xlu0 %v398, 4
      %v570 = vpop.permute.xlu0 %569
      %571 = vrot.lane.b32.xlu0 %v401, 4
      %v572 = vpop.permute.xlu0 %571
      %573 = vrot.lane.b32.xlu0 %v403, 4
      %v574 = vpop.permute.xlu0 %573
      %607 = vrot.lane.b32.xlu0 %v407, 8
      %v608 = vpop.permute.xlu0 %607
      %609 = vrot.lane.b32.xlu0 %v409, 8
      %v610 = vpop.permute.xlu0 %609
      %611 = vrot.lane.b32.xlu0 %v412, 8
      %v612 = vpop.permute.xlu0 %611
      %613 = vrot.lane.b32.xlu0 %v414, 8
      %v614 = vpop.permute.xlu0 %613
      %615 = vrot.lane.b32.xlu0 %v417, 8
      %v616 = vpop.permute.xlu0 %615
      %617 = vrot.lane.b32.xlu0 %v419, 8
      %v618 = vpop.permute.xlu0 %617
      %619 = vrot.lane.b32.xlu0 %v422, 8
      %v620 = vpop.permute.xlu0 %619
      %621 = vrot.lane.b32.xlu0 %v424, 8
      %v622 = vpop.permute.xlu0 %621
      %623 = vrot.lane.b32.xlu0 %v427, 8
      %v624 = vpop.permute.xlu0 %623
      %625 = vrot.lane.b32.xlu0 %v429, 8
      %v626 = vpop.permute.xlu0 %625
      %627 = vrot.lane.b32.xlu0 %v432, 8
      %v628 = vpop.permute.xlu0 %627
      %629 = vrot.lane.b32.xlu0 %v434, 8
      %v630 = vpop.permute.xlu0 %629
      %631 = vrot.lane.b32.xlu0 %v437, 8
      %v632 = vpop.permute.xlu0 %631
      %633 = vrot.lane.b32.xlu0 %v439, 8
      %v634 = vpop.permute.xlu0 %633
      %635 = vrot.lane.b32.xlu0 %v442, 8
      %v636 = vpop.permute.xlu0 %635
      %637 = vrot.lane.b32.xlu0 %v444, 8
      %v638 = vpop.permute.xlu0 %637
      %639 = vrot.lane.b32.xlu0 %v447, 8
      %v640 = vpop.permute.xlu0 %639
      %641 = vrot.lane.b32.xlu0 %v449, 8
      %v642 = vpop.permute.xlu0 %641
      %643 = vrot.lane.b32.xlu0 %v452, 8
      %v644 = vpop.permute.xlu0 %643
      %645 = vrot.lane.b32.xlu0 %v454, 8
      %v646 = vpop.permute.xlu0 %645
      %647 = vrot.lane.b32.xlu0 %v457, 8
      %v648 = vpop.permute.xlu0 %647
      %649 = vrot.lane.b32.xlu0 %v459, 8
      %v650 = vpop.permute.xlu0 %649
      %651 = vrot.lane.b32.xlu0 %v462, 8
      %v652 = vpop.permute.xlu0 %651
      %653 = vrot.lane.b32.xlu0 %v464, 8
      %v654 = vpop.permute.xlu0 %653
      %655 = vrot.lane.b32.xlu0 %v467, 8
      %v656 = vpop.permute.xlu0 %655
      %657 = vrot.lane.b32.xlu0 %v469, 8
      %v658 = vpop.permute.xlu0 %657
      %659 = vrot.lane.b32.xlu0 %v472, 8
      %v660 = vpop.permute.xlu0 %659
      %661 = vrot.lane.b32.xlu0 %v474, 8
      %v662 = vpop.permute.xlu0 %661
      %663 = vrot.lane.b32.xlu0 %v477, 8
      %v664 = vpop.permute.xlu0 %663
      %665 = vrot.lane.b32.xlu0 %v479, 8
      %v666 = vpop.permute.xlu0 %665
      %667 = vrot.lane.b32.xlu0 %v482, 8
      %v668 = vpop.permute.xlu0 %667
      %669 = vrot.lane.b32.xlu0 %v484, 8
      %v670 = vpop.permute.xlu0 %669
      %703 = vrot.lane.b32.xlu0 %v224, 12
      %v704 = vpop.permute.xlu0 %703
      %705 = vrot.lane.b32.xlu0 %v225, 12
      %v706 = vpop.permute.xlu0 %705
      %707 = vrot.lane.b32.xlu0 %v227, 12
      %v708 = vpop.permute.xlu0 %707
      %709 = vrot.lane.b32.xlu0 %v228, 12
      %v710 = vpop.permute.xlu0 %709
      %711 = vrot.lane.b32.xlu0 %v230, 12
      %v712 = vpop.permute.xlu0 %711
      %713 = vrot.lane.b32.xlu0 %v231, 12
      %v714 = vpop.permute.xlu0 %713
      %715 = vrot.lane.b32.xlu0 %v233, 12
      %v716 = vpop.permute.xlu0 %715
      %717 = vrot.lane.b32.xlu0 %v234, 12
      %v718 = vpop.permute.xlu0 %717
      %719 = vrot.lane.b32.xlu0 %v236, 12
      %v720 = vpop.permute.xlu0 %719
      %721 = vrot.lane.b32.xlu0 %v237, 12
      %v722 = vpop.permute.xlu0 %721
      %723 = vrot.lane.b32.xlu0 %v239, 12
      %v724 = vpop.permute.xlu0 %723
      %725 = vrot.lane.b32.xlu0 %v240, 12
      %v726 = vpop.permute.xlu0 %725
      %727 = vrot.lane.b32.xlu0 %v242, 12
      %v728 = vpop.permute.xlu0 %727
      %729 = vrot.lane.b32.xlu0 %v243, 12
      %v730 = vpop.permute.xlu0 %729
      %731 = vrot.lane.b32.xlu0 %v245, 12
      %v732 = vpop.permute.xlu0 %731
      %733 = vrot.lane.b32.xlu0 %v246, 12
      %v734 = vpop.permute.xlu0 %733
      %735 = vrot.lane.b32.xlu0 %v248, 12
      %v736 = vpop.permute.xlu0 %735
      %737 = vrot.lane.b32.xlu0 %v249, 12
      %v738 = vpop.permute.xlu0 %737
      %739 = vrot.lane.b32.xlu0 %v251, 12
      %v740 = vpop.permute.xlu0 %739
      %741 = vrot.lane.b32.xlu0 %v252, 12
      %v742 = vpop.permute.xlu0 %741
      %743 = vrot.lane.b32.xlu0 %v254, 12
      %v744 = vpop.permute.xlu0 %743
      %745 = vrot.lane.b32.xlu0 %v255, 12
      %v746 = vpop.permute.xlu0 %745
      %747 = vrot.lane.b32.xlu0 %v257, 12
      %v748 = vpop.permute.xlu0 %747
      %749 = vrot.lane.b32.xlu0 %v258, 12
      %v750 = vpop.permute.xlu0 %749
      %751 = vrot.lane.b32.xlu0 %v260, 12
      %v752 = vpop.permute.xlu0 %751
      %753 = vrot.lane.b32.xlu0 %v261, 12
      %v754 = vpop.permute.xlu0 %753
      %755 = vrot.lane.b32.xlu0 %v263, 12
      %v756 = vpop.permute.xlu0 %755
      %757 = vrot.lane.b32.xlu0 %v264, 12
      %v758 = vpop.permute.xlu0 %757
      %759 = vrot.lane.b32.xlu0 %v266, 12
      %v760 = vpop.permute.xlu0 %759
      %761 = vrot.lane.b32.xlu0 %v267, 12
      %v762 = vpop.permute.xlu0 %761
      %763 = vrot.lane.b32.xlu0 %v269, 12
      %v764 = vpop.permute.xlu0 %763
      %765 = vrot.lane.b32.xlu0 %v270, 12
      %v766 = vpop.permute.xlu0 %765
      %799 = vrot.lane.b32.xlu0 %v331, 16
      %v800 = vpop.permute.xlu0 %799
      %801 = vrot.lane.b32.xlu0 %v333, 16
      %v802 = vpop.permute.xlu0 %801
      %803 = vrot.lane.b32.xlu0 %v336, 16
      %v804 = vpop.permute.xlu0 %803
      %805 = vrot.lane.b32.xlu0 %v338, 16
      %v806 = vpop.permute.xlu0 %805
      %807 = vrot.lane.b32.xlu0 %v341, 16
      %v808 = vpop.permute.xlu0 %807
      %809 = vrot.lane.b32.xlu0 %v343, 16
      %v810 = vpop.permute.xlu0 %809
      %811 = vrot.lane.b32.xlu0 %v346, 16
      %v812 = vpop.permute.xlu0 %811
      %813 = vrot.lane.b32.xlu0 %v348, 16
      %v814 = vpop.permute.xlu0 %813
      %815 = vrot.lane.b32.xlu0 %v351, 16
      %v816 = vpop.permute.xlu0 %815
      %817 = vrot.lane.b32.xlu0 %v353, 16
      %v818 = vpop.permute.xlu0 %817
      %819 = vrot.lane.b32.xlu0 %v356, 16
      %v820 = vpop.permute.xlu0 %819
      %821 = vrot.lane.b32.xlu0 %v358, 16
      %v822 = vpop.permute.xlu0 %821
      %823 = vrot.lane.b32.xlu0 %v361, 16
      %v824 = vpop.permute.xlu0 %823
      %825 = vrot.lane.b32.xlu0 %v363, 16
      %v826 = vpop.permute.xlu0 %825
      %827 = vrot.lane.b32.xlu0 %v366, 16
      %v828 = vpop.permute.xlu0 %827
      %829 = vrot.lane.b32.xlu0 %v368, 16
      %v830 = vpop.permute.xlu0 %829
      %831 = vrot.lane.b32.xlu0 %v371, 16
      %v832 = vpop.permute.xlu0 %831
      %833 = vrot.lane.b32.xlu0 %v373, 16
      %v834 = vpop.permute.xlu0 %833
      %835 = vrot.lane.b32.xlu0 %v376, 16
      %v836 = vpop.permute.xlu0 %835
      %837 = vrot.lane.b32.xlu0 %v378, 16
      %v838 = vpop.permute.xlu0 %837
      %839 = vrot.lane.b32.xlu0 %v381, 16
      %v840 = vpop.permute.xlu0 %839
      %841 = vrot.lane.b32.xlu0 %v383, 16
      %v842 = vpop.permute.xlu0 %841
      %843 = vrot.lane.b32.xlu0 %v386, 16
      %v844 = vpop.permute.xlu0 %843
      %845 = vrot.lane.b32.xlu0 %v388, 16
      %v846 = vpop.permute.xlu0 %845
      %847 = vrot.lane.b32.xlu0 %v391, 16
      %v848 = vpop.permute.xlu0 %847
      %849 = vrot.lane.b32.xlu0 %v393, 16
      %v850 = vpop.permute.xlu0 %849
      %851 = vrot.lane.b32.xlu0 %v396, 16
      %v852 = vpop.permute.xlu0 %851
      %853 = vrot.lane.b32.xlu0 %v398, 16
      %v854 = vpop.permute.xlu0 %853
      %855 = vrot.lane.b32.xlu0 %v401, 16
      %v856 = vpop.permute.xlu0 %855
      %857 = vrot.lane.b32.xlu0 %v403, 16
      %v858 = vpop.permute.xlu0 %857
      %859 = vrot.lane.b32.xlu0 %v490, 16
      %v860 = vpop.permute.xlu0 %859
      %861 = vrot.lane.b32.xlu0 %v492, 16
      %v862 = vpop.permute.xlu0 %861
      %895 = vrot.lane.b32.xlu0 %v412, 20
      %v896 = vpop.permute.xlu0 %895
      %897 = vrot.lane.b32.xlu0 %v414, 20
      %v898 = vpop.permute.xlu0 %897
      %899 = vrot.lane.b32.xlu0 %v417, 20
      %v900 = vpop.permute.xlu0 %899
      %901 = vrot.lane.b32.xlu0 %v419, 20
      %v902 = vpop.permute.xlu0 %901
      %903 = vrot.lane.b32.xlu0 %v422, 20
      %v904 = vpop.permute.xlu0 %903
      %905 = vrot.lane.b32.xlu0 %v424, 20
      %v906 = vpop.permute.xlu0 %905
      %907 = vrot.lane.b32.xlu0 %v427, 20
      %v908 = vpop.permute.xlu0 %907
      %909 = vrot.lane.b32.xlu0 %v429, 20
      %v910 = vpop.permute.xlu0 %909
      %911 = vrot.lane.b32.xlu0 %v432, 20
      %v912 = vpop.permute.xlu0 %911
      %913 = vrot.lane.b32.xlu0 %v434, 20
      %v914 = vpop.permute.xlu0 %913
      %915 = vrot.lane.b32.xlu0 %v437, 20
      %v916 = vpop.permute.xlu0 %915
      %917 = vrot.lane.b32.xlu0 %v439, 20
      %v918 = vpop.permute.xlu0 %917
      %919 = vrot.lane.b32.xlu0 %v442, 20
      %v920 = vpop.permute.xlu0 %919
      %921 = vrot.lane.b32.xlu0 %v444, 20
      %v922 = vpop.permute.xlu0 %921
      %923 = vrot.lane.b32.xlu0 %v447, 20
      %v924 = vpop.permute.xlu0 %923
      %925 = vrot.lane.b32.xlu0 %v449, 20
      %v926 = vpop.permute.xlu0 %925
      %927 = vrot.lane.b32.xlu0 %v452, 20
      %v928 = vpop.permute.xlu0 %927
      %929 = vrot.lane.b32.xlu0 %v454, 20
      %v930 = vpop.permute.xlu0 %929
      %931 = vrot.lane.b32.xlu0 %v457, 20
      %v932 = vpop.permute.xlu0 %931
      %933 = vrot.lane.b32.xlu0 %v459, 20
      %v934 = vpop.permute.xlu0 %933
      %935 = vrot.lane.b32.xlu0 %v462, 20
      %v936 = vpop.permute.xlu0 %935
      %937 = vrot.lane.b32.xlu0 %v464, 20
      %v938 = vpop.permute.xlu0 %937
      %939 = vrot.lane.b32.xlu0 %v467, 20
      %v940 = vpop.permute.xlu0 %939
      %941 = vrot.lane.b32.xlu0 %v469, 20
      %v942 = vpop.permute.xlu0 %941
      %943 = vrot.lane.b32.xlu0 %v472, 20
      %v944 = vpop.permute.xlu0 %943
      %945 = vrot.lane.b32.xlu0 %v474, 20
      %v946 = vpop.permute.xlu0 %945
      %947 = vrot.lane.b32.xlu0 %v477, 20
      %v948 = vpop.permute.xlu0 %947
      %949 = vrot.lane.b32.xlu0 %v479, 20
      %v950 = vpop.permute.xlu0 %949
      %951 = vrot.lane.b32.xlu0 %v482, 20
      %v952 = vpop.permute.xlu0 %951
      %953 = vrot.lane.b32.xlu0 %v484, 20
      %v954 = vpop.permute.xlu0 %953
      %955 = vrot.lane.b32.xlu0 %v495, 20
      %v956 = vpop.permute.xlu0 %955
      %957 = vrot.lane.b32.xlu0 %v497, 20
      %v958 = vpop.permute.xlu0 %957
      %991 = vrot.lane.b32.xlu0 %v227, 24
      %v992 = vpop.permute.xlu0 %991
      %993 = vrot.lane.b32.xlu0 %v228, 24
      %v994 = vpop.permute.xlu0 %993
      %995 = vrot.lane.b32.xlu0 %v230, 24
      %v996 = vpop.permute.xlu0 %995
      %997 = vrot.lane.b32.xlu0 %v231, 24
      %v998 = vpop.permute.xlu0 %997
      %999 = vrot.lane.b32.xlu0 %v233, 24
      %v1000 = vpop.permute.xlu0 %999
      %1001 = vrot.lane.b32.xlu0 %v234, 24
      %v1002 = vpop.permute.xlu0 %1001
      %1003 = vrot.lane.b32.xlu0 %v236, 24
      %v1004 = vpop.permute.xlu0 %1003
      %1005 = vrot.lane.b32.xlu0 %v237, 24
      %v1006 = vpop.permute.xlu0 %1005
      %1007 = vrot.lane.b32.xlu0 %v239, 24
      %v1008 = vpop.permute.xlu0 %1007
      %1009 = vrot.lane.b32.xlu0 %v240, 24
      %v1010 = vpop.permute.xlu0 %1009
      %1011 = vrot.lane.b32.xlu0 %v242, 24
      %v1012 = vpop.permute.xlu0 %1011
      %1013 = vrot.lane.b32.xlu0 %v243, 24
      %v1014 = vpop.permute.xlu0 %1013
      %1015 = vrot.lane.b32.xlu0 %v245, 24
      %v1016 = vpop.permute.xlu0 %1015
      %1017 = vrot.lane.b32.xlu0 %v246, 24
      %v1018 = vpop.permute.xlu0 %1017
      %1019 = vrot.lane.b32.xlu0 %v248, 24
      %v1020 = vpop.permute.xlu0 %1019
      %1021 = vrot.lane.b32.xlu0 %v249, 24
      %v1022 = vpop.permute.xlu0 %1021
      %1023 = vrot.lane.b32.xlu0 %v251, 24
      %v1024 = vpop.permute.xlu0 %1023
      %1025 = vrot.lane.b32.xlu0 %v252, 24
      %v1026 = vpop.permute.xlu0 %1025
      %1027 = vrot.lane.b32.xlu0 %v254, 24
      %v1028 = vpop.permute.xlu0 %1027
      %1029 = vrot.lane.b32.xlu0 %v255, 24
      %v1030 = vpop.permute.xlu0 %1029
      %1031 = vrot.lane.b32.xlu0 %v257, 24
      %v1032 = vpop.permute.xlu0 %1031
      %1033 = vrot.lane.b32.xlu0 %v258, 24
      %v1034 = vpop.permute.xlu0 %1033
      %1035 = vrot.lane.b32.xlu0 %v260, 24
      %v1036 = vpop.permute.xlu0 %1035
      %1037 = vrot.lane.b32.xlu0 %v261, 24
      %v1038 = vpop.permute.xlu0 %1037
      %1039 = vrot.lane.b32.xlu0 %v263, 24
      %v1040 = vpop.permute.xlu0 %1039
      %1041 = vrot.lane.b32.xlu0 %v264, 24
      %v1042 = vpop.permute.xlu0 %1041
      %1043 = vrot.lane.b32.xlu0 %v266, 24
      %v1044 = vpop.permute.xlu0 %1043
      %1045 = vrot.lane.b32.xlu0 %v267, 24
      %v1046 = vpop.permute.xlu0 %1045
      %1047 = vrot.lane.b32.xlu0 %v269, 24
      %v1048 = vpop.permute.xlu0 %1047
      %1049 = vrot.lane.b32.xlu0 %v270, 24
      %v1050 = vpop.permute.xlu0 %1049
      %1051 = vrot.lane.b32.xlu0 %v272, 24
      %v1052 = vpop.permute.xlu0 %1051
      %1053 = vrot.lane.b32.xlu0 %v273, 24
      %v1054 = vpop.permute.xlu0 %1053
      %1087 = vrot.lane.b32.xlu0 %v336, 28
      %v1088 = vpop.permute.xlu0 %1087
      %1089 = vrot.lane.b32.xlu0 %v338, 28
      %v1090 = vpop.permute.xlu0 %1089
      %1091 = vrot.lane.b32.xlu0 %v341, 28
      %v1092 = vpop.permute.xlu0 %1091
      %1093 = vrot.lane.b32.xlu0 %v343, 28
      %v1094 = vpop.permute.xlu0 %1093
      %1095 = vrot.lane.b32.xlu0 %v346, 28
      %v1096 = vpop.permute.xlu0 %1095
      %1097 = vrot.lane.b32.xlu0 %v348, 28
      %v1098 = vpop.permute.xlu0 %1097
      %1099 = vrot.lane.b32.xlu0 %v351, 28
      %v1100 = vpop.permute.xlu0 %1099
      %1101 = vrot.lane.b32.xlu0 %v353, 28
      %v1102 = vpop.permute.xlu0 %1101
      %1103 = vrot.lane.b32.xlu0 %v356, 28
      %v1104 = vpop.permute.xlu0 %1103
      %1105 = vrot.lane.b32.xlu0 %v358, 28
      %v1106 = vpop.permute.xlu0 %1105
      %1107 = vrot.lane.b32.xlu0 %v361, 28
      %v1108 = vpop.permute.xlu0 %1107
      %1109 = vrot.lane.b32.xlu0 %v363, 28
      %v1110 = vpop.permute.xlu0 %1109
      %1111 = vrot.lane.b32.xlu0 %v366, 28
      %v1112 = vpop.permute.xlu0 %1111
      %1113 = vrot.lane.b32.xlu0 %v368, 28
      %v1114 = vpop.permute.xlu0 %1113
      %1115 = vrot.lane.b32.xlu0 %v371, 28
      %v1116 = vpop.permute.xlu0 %1115
      %1117 = vrot.lane.b32.xlu0 %v373, 28
      %v1118 = vpop.permute.xlu0 %1117
      %1119 = vrot.lane.b32.xlu0 %v376, 28
      %v1120 = vpop.permute.xlu0 %1119
      %1121 = vrot.lane.b32.xlu0 %v378, 28
      %v1122 = vpop.permute.xlu0 %1121
      %1123 = vrot.lane.b32.xlu0 %v381, 28
      %v1124 = vpop.permute.xlu0 %1123
      %1125 = vrot.lane.b32.xlu0 %v383, 28
      %v1126 = vpop.permute.xlu0 %1125
      %1127 = vrot.lane.b32.xlu0 %v386, 28
      %v1128 = vpop.permute.xlu0 %1127
      %1129 = vrot.lane.b32.xlu0 %v388, 28
      %v1130 = vpop.permute.xlu0 %1129
      %1131 = vrot.lane.b32.xlu0 %v391, 28
      %v1132 = vpop.permute.xlu0 %1131
      %1133 = vrot.lane.b32.xlu0 %v393, 28
      %v1134 = vpop.permute.xlu0 %1133
      %1135 = vrot.lane.b32.xlu0 %v396, 28
      %v1136 = vpop.permute.xlu0 %1135
      %1137 = vrot.lane.b32.xlu0 %v398, 28
      %v1138 = vpop.permute.xlu0 %1137
      %1139 = vrot.lane.b32.xlu0 %v401, 28
      %v1140 = vpop.permute.xlu0 %1139
      %1141 = vrot.lane.b32.xlu0 %v403, 28
      %v1142 = vpop.permute.xlu0 %1141
      %1143 = vrot.lane.b32.xlu0 %v490, 28
      %v1144 = vpop.permute.xlu0 %1143
      %1145 = vrot.lane.b32.xlu0 %v492, 28
      %v1146 = vpop.permute.xlu0 %1145
      %1147 = vrot.lane.b32.xlu0 %v503, 28
      %v1148 = vpop.permute.xlu0 %1147
      %1149 = vrot.lane.b32.xlu0 %v505, 28
      %v1150 = vpop.permute.xlu0 %1149
      %1183 = vrot.lane.b32.xlu0 %v417, 32
      %v1184 = vpop.permute.xlu0 %1183
      %1185 = vrot.lane.b32.xlu0 %v419, 32
      %v1186 = vpop.permute.xlu0 %1185
      %1187 = vrot.lane.b32.xlu0 %v422, 32
      %v1188 = vpop.permute.xlu0 %1187
      %1189 = vrot.lane.b32.xlu0 %v424, 32
      %v1190 = vpop.permute.xlu0 %1189
      %1191 = vrot.lane.b32.xlu0 %v427, 32
      %v1192 = vpop.permute.xlu0 %1191
      %1193 = vrot.lane.b32.xlu0 %v429, 32
      %v1194 = vpop.permute.xlu0 %1193
      %1195 = vrot.lane.b32.xlu0 %v432, 32
      %v1196 = vpop.permute.xlu0 %1195
      %1197 = vrot.lane.b32.xlu0 %v434, 32
      %v1198 = vpop.permute.xlu0 %1197
      %1199 = vrot.lane.b32.xlu0 %v437, 32
      %v1200 = vpop.permute.xlu0 %1199
      %1201 = vrot.lane.b32.xlu0 %v439, 32
      %v1202 = vpop.permute.xlu0 %1201
      %1203 = vrot.lane.b32.xlu0 %v442, 32
      %v1204 = vpop.permute.xlu0 %1203
      %1205 = vrot.lane.b32.xlu0 %v444, 32
      %v1206 = vpop.permute.xlu0 %1205
      %1207 = vrot.lane.b32.xlu0 %v447, 32
      %v1208 = vpop.permute.xlu0 %1207
      %1209 = vrot.lane.b32.xlu0 %v449, 32
      %v1210 = vpop.permute.xlu0 %1209
      %1211 = vrot.lane.b32.xlu0 %v452, 32
      %v1212 = vpop.permute.xlu0 %1211
      %1213 = vrot.lane.b32.xlu0 %v454, 32
      %v1214 = vpop.permute.xlu0 %1213
      %1215 = vrot.lane.b32.xlu0 %v457, 32
      %v1216 = vpop.permute.xlu0 %1215
      %1217 = vrot.lane.b32.xlu0 %v459, 32
      %v1218 = vpop.permute.xlu0 %1217
      %1219 = vrot.lane.b32.xlu0 %v462, 32
      %v1220 = vpop.permute.xlu0 %1219
      %1221 = vrot.lane.b32.xlu0 %v464, 32
      %v1222 = vpop.permute.xlu0 %1221
      %1223 = vrot.lane.b32.xlu0 %v467, 32
      %v1224 = vpop.permute.xlu0 %1223
      %1225 = vrot.lane.b32.xlu0 %v469, 32
      %v1226 = vpop.permute.xlu0 %1225
      %1227 = vrot.lane.b32.xlu0 %v472, 32
      %v1228 = vpop.permute.xlu0 %1227
      %1229 = vrot.lane.b32.xlu0 %v474, 32
      %v1230 = vpop.permute.xlu0 %1229
      %1231 = vrot.lane.b32.xlu0 %v477, 32
      %v1232 = vpop.permute.xlu0 %1231
      %1233 = vrot.lane.b32.xlu0 %v479, 32
      %v1234 = vpop.permute.xlu0 %1233
      %1235 = vrot.lane.b32.xlu0 %v482, 32
      %v1236 = vpop.permute.xlu0 %1235
      %1237 = vrot.lane.b32.xlu0 %v484, 32
      %v1238 = vpop.permute.xlu0 %1237
      %1239 = vrot.lane.b32.xlu0 %v495, 32
      %v1240 = vpop.permute.xlu0 %1239
      %1241 = vrot.lane.b32.xlu0 %v497, 32
      %v1242 = vpop.permute.xlu0 %1241
      %1243 = vrot.lane.b32.xlu0 %v508, 32
      %v1244 = vpop.permute.xlu0 %1243
      %1245 = vrot.lane.b32.xlu0 %v510, 32
      %v1246 = vpop.permute.xlu0 %1245
      %vm1279 = vcmask 31744
      %v1280 = vsel %vm1279, %v221, %v512
      %v1281 = vsel %vm1279, %v222, %v514
      %v1282 = vsel %vm1279, %v224, %v516
      %v1283 = vsel %vm1279, %v225, %v518
      %v1284 = vsel %vm1279, %v227, %v520
      %v1285 = vsel %vm1279, %v228, %v522
      %v1286 = vsel %vm1279, %v230, %v524
      %v1287 = vsel %vm1279, %v231, %v526
      %v1288 = vsel %vm1279, %v233, %v528
      %v1289 = vsel %vm1279, %v234, %v530
      %v1290 = vsel %vm1279, %v236, %v532
      %v1291 = vsel %vm1279, %v237, %v534
      %v1292 = vsel %vm1279, %v239, %v536
      %v1293 = vsel %vm1279, %v240, %v538
      %v1294 = vsel %vm1279, %v242, %v540
      %v1295 = vsel %vm1279, %v243, %v542
      %v1296 = vsel %vm1279, %v245, %v544
      %v1297 = vsel %vm1279, %v246, %v546
      %v1298 = vsel %vm1279, %v248, %v548
      %v1299 = vsel %vm1279, %v249, %v550
      %v1300 = vsel %vm1279, %v251, %v552
      %v1301 = vsel %vm1279, %v252, %v554
      %v1302 = vsel %vm1279, %v254, %v556
      %v1303 = vsel %vm1279, %v255, %v558
      %v1304 = vsel %vm1279, %v257, %v560
      %v1305 = vsel %vm1279, %v258, %v562
      %v1306 = vsel %vm1279, %v260, %v564
      %v1307 = vsel %vm1279, %v261, %v566
      %v1308 = vsel %vm1279, %v263, %v568
      %v1309 = vsel %vm1279, %v264, %v570
      %v1310 = vsel %vm1279, %v266, %v572
      %v1311 = vsel %vm1279, %v267, %v574
      %vm1312 = vcmask 64512
      %v1313 = vsel %vm1312, %v1280, %v608
      %v1314 = vsel %vm1312, %v1281, %v610
      %v1315 = vsel %vm1312, %v1282, %v612
      %v1316 = vsel %vm1312, %v1283, %v614
      %v1317 = vsel %vm1312, %v1284, %v616
      %v1318 = vsel %vm1312, %v1285, %v618
      %v1319 = vsel %vm1312, %v1286, %v620
      %v1320 = vsel %vm1312, %v1287, %v622
      %v1321 = vsel %vm1312, %v1288, %v624
      %v1322 = vsel %vm1312, %v1289, %v626
      %v1323 = vsel %vm1312, %v1290, %v628
      %v1324 = vsel %vm1312, %v1291, %v630
      %v1325 = vsel %vm1312, %v1292, %v632
      %v1326 = vsel %vm1312, %v1293, %v634
      %v1327 = vsel %vm1312, %v1294, %v636
      %v1328 = vsel %vm1312, %v1295, %v638
      %v1329 = vsel %vm1312, %v1296, %v640
      %v1330 = vsel %vm1312, %v1297, %v642
      %v1331 = vsel %vm1312, %v1298, %v644
      %v1332 = vsel %vm1312, %v1299, %v646
      %v1333 = vsel %vm1312, %v1300, %v648
      %v1334 = vsel %vm1312, %v1301, %v650
      %v1335 = vsel %vm1312, %v1302, %v652
      %v1336 = vsel %vm1312, %v1303, %v654
      %v1337 = vsel %vm1312, %v1304, %v656
      %v1338 = vsel %vm1312, %v1305, %v658
      %v1339 = vsel %vm1312, %v1306, %v660
      %v1340 = vsel %vm1312, %v1307, %v662
      %v1341 = vsel %vm1312, %v1308, %v664
      %v1342 = vsel %vm1312, %v1309, %v666
      %v1343 = vsel %vm1312, %v1310, %v668
      %v1344 = vsel %vm1312, %v1311, %v670
      %vm1345 = vcmask 97280
      %v1346 = vsel %vm1345, %v1313, %v704
      %v1347 = vsel %vm1345, %v1314, %v706
      %v1348 = vsel %vm1345, %v1315, %v708
      %v1349 = vsel %vm1345, %v1316, %v710
      %v1350 = vsel %vm1345, %v1317, %v712
      %v1351 = vsel %vm1345, %v1318, %v714
      %v1352 = vsel %vm1345, %v1319, %v716
      %v1353 = vsel %vm1345, %v1320, %v718
      %v1354 = vsel %vm1345, %v1321, %v720
      %v1355 = vsel %vm1345, %v1322, %v722
      %v1356 = vsel %vm1345, %v1323, %v724
      %v1357 = vsel %vm1345, %v1324, %v726
      %v1358 = vsel %vm1345, %v1325, %v728
      %v1359 = vsel %vm1345, %v1326, %v730
      %v1360 = vsel %vm1345, %v1327, %v732
      %v1361 = vsel %vm1345, %v1328, %v734
      %v1362 = vsel %vm1345, %v1329, %v736
      %v1363 = vsel %vm1345, %v1330, %v738
      %v1364 = vsel %vm1345, %v1331, %v740
      %v1365 = vsel %vm1345, %v1332, %v742
      %v1366 = vsel %vm1345, %v1333, %v744
      %v1367 = vsel %vm1345, %v1334, %v746
      %v1368 = vsel %vm1345, %v1335, %v748
      %v1369 = vsel %vm1345, %v1336, %v750
      %v1370 = vsel %vm1345, %v1337, %v752
      %v1371 = vsel %vm1345, %v1338, %v754
      %v1372 = vsel %vm1345, %v1339, %v756
      %v1373 = vsel %vm1345, %v1340, %v758
      %v1374 = vsel %vm1345, %v1341, %v760
      %v1375 = vsel %vm1345, %v1342, %v762
      %v1376 = vsel %vm1345, %v1343, %v764
      %v1377 = vsel %vm1345, %v1344, %v766
      %vm1378 = vcmask 130048
      %v1379 = vsel %vm1378, %v1346, %v800
      %v1380 = vsel %vm1378, %v1347, %v802
      %v1381 = vsel %vm1378, %v1348, %v804
      %v1382 = vsel %vm1378, %v1349, %v806
      %v1383 = vsel %vm1378, %v1350, %v808
      %v1384 = vsel %vm1378, %v1351, %v810
      %v1385 = vsel %vm1378, %v1352, %v812
      %v1386 = vsel %vm1378, %v1353, %v814
      %v1387 = vsel %vm1378, %v1354, %v816
      %v1388 = vsel %vm1378, %v1355, %v818
      %v1389 = vsel %vm1378, %v1356, %v820
      %v1390 = vsel %vm1378, %v1357, %v822
      %v1391 = vsel %vm1378, %v1358, %v824
      %v1392 = vsel %vm1378, %v1359, %v826
      %v1393 = vsel %vm1378, %v1360, %v828
      %v1394 = vsel %vm1378, %v1361, %v830
      %v1395 = vsel %vm1378, %v1362, %v832
      %v1396 = vsel %vm1378, %v1363, %v834
      %v1397 = vsel %vm1378, %v1364, %v836
      %v1398 = vsel %vm1378, %v1365, %v838
      %v1399 = vsel %vm1378, %v1366, %v840
      %v1400 = vsel %vm1378, %v1367, %v842
      %v1401 = vsel %vm1378, %v1368, %v844
      %v1402 = vsel %vm1378, %v1369, %v846
      %v1403 = vsel %vm1378, %v1370, %v848
      %v1404 = vsel %vm1378, %v1371, %v850
      %v1405 = vsel %vm1378, %v1372, %v852
      %v1406 = vsel %vm1378, %v1373, %v854
      %v1407 = vsel %vm1378, %v1374, %v856
      %v1408 = vsel %vm1378, %v1375, %v858
      %v1409 = vsel %vm1378, %v1376, %v860
      %v1410 = vsel %vm1378, %v1377, %v862
      %vm1411 = vcmask 162816
      %v1412 = vsel %vm1411, %v1379, %v896
      %v1413 = vsel %vm1411, %v1380, %v898
      %v1414 = vsel %vm1411, %v1381, %v900
      %v1415 = vsel %vm1411, %v1382, %v902
      %v1416 = vsel %vm1411, %v1383, %v904
      %v1417 = vsel %vm1411, %v1384, %v906
      %v1418 = vsel %vm1411, %v1385, %v908
      %v1419 = vsel %vm1411, %v1386, %v910
      %v1420 = vsel %vm1411, %v1387, %v912
      %v1421 = vsel %vm1411, %v1388, %v914
      %v1422 = vsel %vm1411, %v1389, %v916
      %v1423 = vsel %vm1411, %v1390, %v918
      %v1424 = vsel %vm1411, %v1391, %v920
      %v1425 = vsel %vm1411, %v1392, %v922
      %v1426 = vsel %vm1411, %v1393, %v924
      %v1427 = vsel %vm1411, %v1394, %v926
      %v1428 = vsel %vm1411, %v1395, %v928
      %v1429 = vsel %vm1411, %v1396, %v930
      %v1430 = vsel %vm1411, %v1397, %v932
      %v1431 = vsel %vm1411, %v1398, %v934
      %v1432 = vsel %vm1411, %v1399, %v936
      %v1433 = vsel %vm1411, %v1400, %v938
      %v1434 = vsel %vm1411, %v1401, %v940
      %v1435 = vsel %vm1411, %v1402, %v942
      %v1436 = vsel %vm1411, %v1403, %v944
      %v1437 = vsel %vm1411, %v1404, %v946
      %v1438 = vsel %vm1411, %v1405, %v948
      %v1439 = vsel %vm1411, %v1406, %v950
      %v1440 = vsel %vm1411, %v1407, %v952
      %v1441 = vsel %vm1411, %v1408, %v954
      %v1442 = vsel %vm1411, %v1409, %v956
      %v1443 = vsel %vm1411, %v1410, %v958
      %vm1444 = vcmask 195584
      %v1445 = vsel %vm1444, %v1412, %v992
      %v1446 = vsel %vm1444, %v1413, %v994
      %v1447 = vsel %vm1444, %v1414, %v996
      %v1448 = vsel %vm1444, %v1415, %v998
      %v1449 = vsel %vm1444, %v1416, %v1000
      %v1450 = vsel %vm1444, %v1417, %v1002
      %v1451 = vsel %vm1444, %v1418, %v1004
      %v1452 = vsel %vm1444, %v1419, %v1006
      %v1453 = vsel %vm1444, %v1420, %v1008
      %v1454 = vsel %vm1444, %v1421, %v1010
      %v1455 = vsel %vm1444, %v1422, %v1012
      %v1456 = vsel %vm1444, %v1423, %v1014
      %v1457 = vsel %vm1444, %v1424, %v1016
      %v1458 = vsel %vm1444, %v1425, %v1018
      %v1459 = vsel %vm1444, %v1426, %v1020
      %v1460 = vsel %vm1444, %v1427, %v1022
      %v1461 = vsel %vm1444, %v1428, %v1024
      %v1462 = vsel %vm1444, %v1429, %v1026
      %v1463 = vsel %vm1444, %v1430, %v1028
      %v1464 = vsel %vm1444, %v1431, %v1030
      %v1465 = vsel %vm1444, %v1432, %v1032
      %v1466 = vsel %vm1444, %v1433, %v1034
      %v1467 = vsel %vm1444, %v1434, %v1036
      %v1468 = vsel %vm1444, %v1435, %v1038
      %v1469 = vsel %vm1444, %v1436, %v1040
      %v1470 = vsel %vm1444, %v1437, %v1042
      %v1471 = vsel %vm1444, %v1438, %v1044
      %v1472 = vsel %vm1444, %v1439, %v1046
      %v1473 = vsel %vm1444, %v1440, %v1048
      %v1474 = vsel %vm1444, %v1441, %v1050
      %v1475 = vsel %vm1444, %v1442, %v1052
      %v1476 = vsel %vm1444, %v1443, %v1054
      %vm1477 = vcmask 228352
      %v1478 = vsel %vm1477, %v1445, %v1088
      %v1479 = vsel %vm1477, %v1446, %v1090
      %v1480 = vsel %vm1477, %v1447, %v1092
      %v1481 = vsel %vm1477, %v1448, %v1094
      %v1482 = vsel %vm1477, %v1449, %v1096
      %v1483 = vsel %vm1477, %v1450, %v1098
      %v1484 = vsel %vm1477, %v1451, %v1100
      %v1485 = vsel %vm1477, %v1452, %v1102
      %v1486 = vsel %vm1477, %v1453, %v1104
      %v1487 = vsel %vm1477, %v1454, %v1106
      %v1488 = vsel %vm1477, %v1455, %v1108
      %v1489 = vsel %vm1477, %v1456, %v1110
      %v1490 = vsel %vm1477, %v1457, %v1112
      %v1491 = vsel %vm1477, %v1458, %v1114
      %v1492 = vsel %vm1477, %v1459, %v1116
      %v1493 = vsel %vm1477, %v1460, %v1118
      %v1494 = vsel %vm1477, %v1461, %v1120
      %v1495 = vsel %vm1477, %v1462, %v1122
      %v1496 = vsel %vm1477, %v1463, %v1124
      %v1497 = vsel %vm1477, %v1464, %v1126
      %v1498 = vsel %vm1477, %v1465, %v1128
      %v1499 = vsel %vm1477, %v1466, %v1130
      %v1500 = vsel %vm1477, %v1467, %v1132
      %v1501 = vsel %vm1477, %v1468, %v1134
      %v1502 = vsel %vm1477, %v1469, %v1136
      %v1503 = vsel %vm1477, %v1470, %v1138
      %v1504 = vsel %vm1477, %v1471, %v1140
      %v1505 = vsel %vm1477, %v1472, %v1142
      %v1506 = vsel %vm1477, %v1473, %v1144
      %v1507 = vsel %vm1477, %v1474, %v1146
      %v1508 = vsel %vm1477, %v1475, %v1148
      %v1509 = vsel %vm1477, %v1476, %v1150
      %vm1510 = vcmask 261120
      %v1511 = vsel %vm1510, %v1478, %v1184
      %v1512 = vsel %vm1510, %v1479, %v1186
      %v1513 = vsel %vm1510, %v1480, %v1188
      %v1514 = vsel %vm1510, %v1481, %v1190
      %v1515 = vsel %vm1510, %v1482, %v1192
      %v1516 = vsel %vm1510, %v1483, %v1194
      %v1517 = vsel %vm1510, %v1484, %v1196
      %v1518 = vsel %vm1510, %v1485, %v1198
      %v1519 = vsel %vm1510, %v1486, %v1200
      %v1520 = vsel %vm1510, %v1487, %v1202
      %v1521 = vsel %vm1510, %v1488, %v1204
      %v1522 = vsel %vm1510, %v1489, %v1206
      %v1523 = vsel %vm1510, %v1490, %v1208
      %v1524 = vsel %vm1510, %v1491, %v1210
      %v1525 = vsel %vm1510, %v1492, %v1212
      %v1526 = vsel %vm1510, %v1493, %v1214
      %v1527 = vsel %vm1510, %v1494, %v1216
      %v1528 = vsel %vm1510, %v1495, %v1218
      %v1529 = vsel %vm1510, %v1496, %v1220
      %v1530 = vsel %vm1510, %v1497, %v1222
      %v1531 = vsel %vm1510, %v1498, %v1224
      %v1532 = vsel %vm1510, %v1499, %v1226
      %v1533 = vsel %vm1510, %v1500, %v1228
      %v1534 = vsel %vm1510, %v1501, %v1230
      %v1535 = vsel %vm1510, %v1502, %v1232
      %v1536 = vsel %vm1510, %v1503, %v1234
      %v1537 = vsel %vm1510, %v1504, %v1236
      %v1538 = vsel %vm1510, %v1505, %v1238
      %v1539 = vsel %vm1510, %v1506, %v1240
      %v1540 = vsel %vm1510, %v1507, %v1242
      %v1541 = vsel %vm1510, %v1508, %v1244
      %v1542 = vsel %vm1510, %v1509, %v1246
      %v1543 = vpack.c.bf16 %v1512, %v1511
      %v1544 = vpack.c.bf16 %v1514, %v1513
      %v1545 = vpack.c.bf16 %v1516, %v1515
      %v1546 = vpack.c.bf16 %v1518, %v1517
      %v1547 = vpack.c.bf16 %v1520, %v1519
      %v1548 = vpack.c.bf16 %v1522, %v1521
      %v1549 = vpack.c.bf16 %v1524, %v1523
      %v1550 = vpack.c.bf16 %v1526, %v1525
      %v1551 = vpack.c.bf16 %v1528, %v1527
      %v1552 = vpack.c.bf16 %v1530, %v1529
      %v1553 = vpack.c.bf16 %v1532, %v1531
      %v1554 = vpack.c.bf16 %v1534, %v1533
      %v1555 = vpack.c.bf16 %v1536, %v1535
      %v1556 = vpack.c.bf16 %v1538, %v1537
      %v1557 = vpack.c.bf16 %v1540, %v1539
      %v1558 = vpack.c.bf16 %v1542, %v1541
      %v1559 = vld [vmem:[%s1] sm:$0xf]
      %v1560 = vld [vmem:[%s1 + $0x4] sm:$0xf]
      %v1561 = vld [vmem:[%s1 + $0x8] sm:$0xf]
      %v1562 = vld [vmem:[%s1 + $0xc] sm:$0xf]
      %v1563 = vld [vmem:[%s1 + $0x10] sm:$0x3]
      %v1564 = vld [vmem:[%s2] sm:$0x1]
      %v1566 = vlaneseq
      %v1567 = vshrl.u32 %v1566, 7
      %v1568 = vsub.s32 0, %v1567
      %v1569 = vrot.slane %v1564, %v1568
      %v1576 = vunpack.c.l.b16 %v1559
      %v1577 = vunpack.c.l.b16 %v1560
      %v1578 = vunpack.c.l.b16 %v1561
      %v1579 = vunpack.c.l.b16 %v1562
      %v1580 = vunpack.c.l.b16 %v1563
      %v1581 = vpack.c.b16 %v1577, %v1576
      %v1582 = vpack.c.b16 %v1579, %v1578
      %v1583 = vpack.c.b16 %v1580, %v1580
      %vm1586 = vcmask 293888
      %v1588 = vsel %vm1586, %v1543, 0
      %v1591 = vsel %vm1586, %v1544, 0
      %v1594 = vsel %vm1586, %v1545, 0
      %v1597 = vsel %vm1586, %v1546, 0
      %v1600 = vsel %vm1586, %v1547, 0
      %v1603 = vsel %vm1586, %v1548, 0
      %v1606 = vsel %vm1586, %v1549, 0
      %v1609 = vsel %vm1586, %v1550, 0
      %v1612 = vsel %vm1586, %v1551, 0
      %v1615 = vsel %vm1586, %v1552, 0
      %v1618 = vsel %vm1586, %v1553, 0
      %v1621 = vsel %vm1586, %v1554, 0
      %v1624 = vsel %vm1586, %v1555, 0
      %v1627 = vsel %vm1586, %v1556, 0
      %v1630 = vsel %vm1586, %v1557, 0
      %v1633 = vsel %vm1586, %v1558, 0
      %vm1635 = vcmask 1041408
      %v1637 = vsel %vm1635, %v1583, 0
      %1639 = vmatprep.subr.bf16.mxu0 0
      %1640 = vmatpush1.bf16.msra.mxu0 %v1581
      %1641 = vmatprep.subr.bf16.mxu0 0
      %1642 = vmatpush1.bf16.msra.mxu0 %v1582
      %1643 = vmatprep.subr.bf16.mxu0 0
      %1644 = vmatpush1.bf16.msra.mxu0 %v1637
      %1645 = vmatprep.subr.bf16.mxu0 0
      %1646 = vmatpush1.bf16.msra.mxu0 0
      %1647 = vmatprep.subr.bf16.mxu0 0
      %1648 = vmatpush1.bf16.msra.mxu0 0
      %1649 = vmatprep.subr.bf16.mxu0 0
      %1650 = vmatpush1.bf16.msra.mxu0 0
      %1651 = vmatprep.subr.bf16.mxu0 0
      %1652 = vmatpush1.bf16.msra.mxu0 0
      %1653 = vmatprep.subr.bf16.mxu0 0
      %1654 = vmatpush1.bf16.msra.mxu0 0
      %1655 = vmatprep.subr.bf16.mxu0 0
      %1656 = vmatpush1.bf16.msra.mxu0 0
      %1657 = vmatprep.subr.bf16.mxu0 0
      %1658 = vmatpush1.bf16.msra.mxu0 0
      %1659 = vmatprep.subr.bf16.mxu0 0
      %1660 = vmatpush1.bf16.msra.mxu0 0
      %1661 = vmatprep.subr.bf16.mxu0 0
      %1662 = vmatpush1.bf16.msra.mxu0 0
      %1663 = vmatprep.subr.bf16.mxu0 0
      %1664 = vmatpush1.bf16.msra.mxu0 0
      %1665 = vmatprep.subr.bf16.mxu0 0
      %1666 = vmatpush1.bf16.msra.mxu0 0
      %1667 = vmatprep.subr.bf16.mxu0 0
      %1668 = vmatpush1.bf16.msra.mxu0 0
      %1669 = vmatprep.subr.bf16.mxu0 0
      %1670 = vmatpush1.bf16.msra.mxu0 0
      %1671 = vmatprep.mubr.bf16.mxu0 0
      %1672 = vmatmul.mubr.bf16.gmra.mrb[0].mxu0 %v1588
      %v1673 = vpop.f32.mrb[0].mxu0
      %v1674 = vadd.f32 %v1569, %v1673
      %v1675 = vpop.f32.mrb[0].mxu0
      %v1676 = vpop.f32.mrb[0].mxu0
      %v1677 = vadd.f32 %v1569, %v1676
      %v1678 = vpop.f32.mrb[0].mxu0
      %1679 = vmatprep.mubr.bf16.mxu0 0
      %1680 = vmatmul.mubr.bf16.gmra.mrb[0].mxu0 %v1591
      %v1681 = vpop.f32.mrb[0].mxu0
      %v1682 = vadd.f32 %v1569, %v1681
      %v1683 = vpop.f32.mrb[0].mxu0
      %v1684 = vpop.f32.mrb[0].mxu0
      %v1685 = vadd.f32 %v1569, %v1684
      %v1686 = vpop.f32.mrb[0].mxu0
      %1687 = vmatprep.mubr.bf16.mxu0 0
      %1688 = vmatmul.mubr.bf16.gmra.mrb[0].mxu0 %v1594
      %v1689 = vpop.f32.mrb[0].mxu0
      %v1690 = vadd.f32 %v1569, %v1689
      %v1691 = vpop.f32.mrb[0].mxu0
      %v1692 = vpop.f32.mrb[0].mxu0
      %v1693 = vadd.f32 %v1569, %v1692
      %v1694 = vpop.f32.mrb[0].mxu0
      %1695 = vmatprep.mubr.bf16.mxu0 0
      %1696 = vmatmul.mubr.bf16.gmra.mrb[0].mxu0 %v1597
      %v1697 = vpop.f32.mrb[0].mxu0
      %v1698 = vadd.f32 %v1569, %v1697
      %v1699 = vpop.f32.mrb[0].mxu0
      %v1700 = vpop.f32.mrb[0].mxu0
      %v1701 = vadd.f32 %v1569, %v1700
      %v1702 = vpop.f32.mrb[0].mxu0
      %1703 = vmatprep.mubr.bf16.mxu0 0
      %1704 = vmatmul.mubr.bf16.gmra.mrb[0].mxu0 %v1600
      %v1705 = vpop.f32.mrb[0].mxu0
      %v1706 = vadd.f32 %v1569, %v1705
      %v1707 = vpop.f32.mrb[0].mxu0
      %v1708 = vpop.f32.mrb[0].mxu0
      %v1709 = vadd.f32 %v1569, %v1708
      %v1710 = vpop.f32.mrb[0].mxu0
      %1711 = vmatprep.mubr.bf16.mxu0 0
      %1712 = vmatmul.mubr.bf16.gmra.mrb[0].mxu0 %v1603
      %v1713 = vpop.f32.mrb[0].mxu0
      %v1714 = vadd.f32 %v1569, %v1713
      %v1715 = vpop.f32.mrb[0].mxu0
      %v1716 = vpop.f32.mrb[0].mxu0
      %v1717 = vadd.f32 %v1569, %v1716
      %v1718 = vpop.f32.mrb[0].mxu0
      %1719 = vmatprep.mubr.bf16.mxu0 0
      %1720 = vmatmul.mubr.bf16.gmra.mrb[0].mxu0 %v1606
      %v1721 = vpop.f32.mrb[0].mxu0
      %v1722 = vadd.f32 %v1569, %v1721
      %v1723 = vpop.f32.mrb[0].mxu0
      %v1724 = vpop.f32.mrb[0].mxu0
      %v1725 = vadd.f32 %v1569, %v1724
      %v1726 = vpop.f32.mrb[0].mxu0
      %1727 = vmatprep.mubr.bf16.mxu0 0
      %1728 = vmatmul.mubr.bf16.gmra.mrb[0].mxu0 %v1609
      %v1729 = vpop.f32.mrb[0].mxu0
      %v1730 = vadd.f32 %v1569, %v1729
      %v1731 = vpop.f32.mrb[0].mxu0
      %v1732 = vpop.f32.mrb[0].mxu0
      %v1733 = vadd.f32 %v1569, %v1732
      %v1734 = vpop.f32.mrb[0].mxu0
      %1735 = vmatprep.mubr.bf16.mxu0 0
      %1736 = vmatmul.mubr.bf16.gmra.mrb[0].mxu0 %v1612
      %v1737 = vpop.f32.mrb[0].mxu0
      %v1738 = vadd.f32 %v1569, %v1737
      %v1739 = vpop.f32.mrb[0].mxu0
      %v1740 = vpop.f32.mrb[0].mxu0
      %v1741 = vadd.f32 %v1569, %v1740
      %v1742 = vpop.f32.mrb[0].mxu0
      %1743 = vmatprep.mubr.bf16.mxu0 0
      %1744 = vmatmul.mubr.bf16.gmra.mrb[0].mxu0 %v1615
      %v1745 = vpop.f32.mrb[0].mxu0
      %v1746 = vadd.f32 %v1569, %v1745
      %v1747 = vpop.f32.mrb[0].mxu0
      %v1748 = vpop.f32.mrb[0].mxu0
      %v1749 = vadd.f32 %v1569, %v1748
      %v1750 = vpop.f32.mrb[0].mxu0
      %1751 = vmatprep.mubr.bf16.mxu0 0
      %1752 = vmatmul.mubr.bf16.gmra.mrb[0].mxu0 %v1618
      %v1753 = vpop.f32.mrb[0].mxu0
      %v1754 = vadd.f32 %v1569, %v1753
      %v1755 = vpop.f32.mrb[0].mxu0
      %v1756 = vpop.f32.mrb[0].mxu0
      %v1757 = vadd.f32 %v1569, %v1756
      %v1758 = vpop.f32.mrb[0].mxu0
      %1759 = vmatprep.mubr.bf16.mxu0 0
      %1760 = vmatmul.mubr.bf16.gmra.mrb[0].mxu0 %v1621
      %v1761 = vpop.f32.mrb[0].mxu0
      %v1762 = vadd.f32 %v1569, %v1761
      %v1763 = vpop.f32.mrb[0].mxu0
      %v1764 = vpop.f32.mrb[0].mxu0
      %v1765 = vadd.f32 %v1569, %v1764
      %v1766 = vpop.f32.mrb[0].mxu0
      %1767 = vmatprep.mubr.bf16.mxu0 0
      %1768 = vmatmul.mubr.bf16.gmra.mrb[0].mxu0 %v1624
      %v1769 = vpop.f32.mrb[0].mxu0
      %v1770 = vadd.f32 %v1569, %v1769
      %v1771 = vpop.f32.mrb[0].mxu0
      %v1772 = vpop.f32.mrb[0].mxu0
      %v1773 = vadd.f32 %v1569, %v1772
      %v1774 = vpop.f32.mrb[0].mxu0
      %1775 = vmatprep.mubr.bf16.mxu0 0
      %1776 = vmatmul.mubr.bf16.gmra.mrb[0].mxu0 %v1627
      %v1777 = vpop.f32.mrb[0].mxu0
      %v1778 = vadd.f32 %v1569, %v1777
      %v1779 = vpop.f32.mrb[0].mxu0
      %v1780 = vpop.f32.mrb[0].mxu0
      %v1781 = vadd.f32 %v1569, %v1780
      %v1782 = vpop.f32.mrb[0].mxu0
      %1783 = vmatprep.mubr.bf16.mxu0 0
      %1784 = vmatmul.mubr.bf16.gmra.mrb[0].mxu0 %v1630
      %v1785 = vpop.f32.mrb[0].mxu0
      %v1786 = vadd.f32 %v1569, %v1785
      %v1787 = vpop.f32.mrb[0].mxu0
      %v1788 = vpop.f32.mrb[0].mxu0
      %v1789 = vadd.f32 %v1569, %v1788
      %v1790 = vpop.f32.mrb[0].mxu0
      %1791 = vmatprep.mubr.bf16.mxu0 0
      %1792 = vmatmul.mubr.bf16.gmra.mrb[0].mxu0 %v1633
      %v1793 = vpop.f32.mrb[0].mxu0
      %v1794 = vadd.f32 %v1569, %v1793
      %v1795 = vpop.f32.mrb[0].mxu0
      %v1796 = vpop.f32.mrb[0].mxu0
      %v1797 = vadd.f32 %v1569, %v1796
      %v1798 = vpop.f32.mrb[0].mxu0
      %1799 = vdwg.mxu0
      %p1800 = scmp.eq.s32.totalorder %s17, 0
      // Predicated region
      $region33: #{conv_block_forward.3} parent=31 // pred_check
        %p1801 = pneg %p1800
      $region34: #{conv_block_forward.3} parent=31 // pred_check_branch
        %1803 = sbr.rel (%p1801) target = $region36
      $region35: #{conv_block_forward.3} parent=31 // pred_region
        %vm1804 = vcmask 57344
        %1805 = vst.msk [vmem:[%s4] sm:$0x1] %vm1804, 0.0
        %1806 = vst.msk [vmem:[%s5] sm:$0x1] %vm1804, 0.0
      $region36: #{conv_block_forward.3} parent=31 // pred_fallthru
        _
      %v1807 = vld [vmem:[%s4] sm:$0x1]
      %v1808 = vsel %vm1312, %v1674, 0.0
      %v1809 = vsel %vm1312, %v1677, 0.0
      %v1810 = vadd.f32 %v1808, %v1809
      %v1811 = vsel %vm1312, %v1682, 0.0
      %v1812 = vadd.f32 %v1810, %v1811
      %v1813 = vsel %vm1312, %v1685, 0.0
      %v1814 = vadd.f32 %v1812, %v1813
      %v1815 = vsel %vm1312, %v1690, 0.0
      %v1816 = vadd.f32 %v1814, %v1815
      %v1817 = vsel %vm1312, %v1693, 0.0
      %v1818 = vadd.f32 %v1816, %v1817
      %v1819 = vsel %vm1312, %v1698, 0.0
      %v1820 = vadd.f32 %v1818, %v1819
      %v1821 = vsel %vm1312, %v1701, 0.0
      %v1822 = vadd.f32 %v1820, %v1821
      %v1823 = vsel %vm1312, %v1706, 0.0
      %v1824 = vadd.f32 %v1822, %v1823
      %v1825 = vsel %vm1312, %v1709, 0.0
      %v1826 = vadd.f32 %v1824, %v1825
      %v1827 = vsel %vm1312, %v1714, 0.0
      %v1828 = vadd.f32 %v1826, %v1827
      %v1829 = vsel %vm1312, %v1717, 0.0
      %v1830 = vadd.f32 %v1828, %v1829
      %v1831 = vsel %vm1312, %v1722, 0.0
      %v1832 = vadd.f32 %v1830, %v1831
      %v1833 = vsel %vm1312, %v1725, 0.0
      %v1834 = vadd.f32 %v1832, %v1833
      %v1835 = vsel %vm1312, %v1730, 0.0
      %v1836 = vadd.f32 %v1834, %v1835
      %v1837 = vsel %vm1312, %v1733, 0.0
      %v1838 = vadd.f32 %v1836, %v1837
      %v1839 = vsel %vm1312, %v1738, 0.0
      %v1840 = vadd.f32 %v1838, %v1839
      %v1841 = vsel %vm1312, %v1741, 0.0
      %v1842 = vadd.f32 %v1840, %v1841
      %v1843 = vsel %vm1312, %v1746, 0.0
      %v1844 = vadd.f32 %v1842, %v1843
      %v1845 = vsel %vm1312, %v1749, 0.0
      %v1846 = vadd.f32 %v1844, %v1845
      %v1847 = vsel %vm1312, %v1754, 0.0
      %v1848 = vadd.f32 %v1846, %v1847
      %v1849 = vsel %vm1312, %v1757, 0.0
      %v1850 = vadd.f32 %v1848, %v1849
      %v1851 = vsel %vm1312, %v1762, 0.0
      %v1852 = vadd.f32 %v1850, %v1851
      %v1853 = vsel %vm1312, %v1765, 0.0
      %v1854 = vadd.f32 %v1852, %v1853
      %v1855 = vsel %vm1312, %v1770, 0.0
      %v1856 = vadd.f32 %v1854, %v1855
      %v1857 = vsel %vm1312, %v1773, 0.0
      %v1858 = vadd.f32 %v1856, %v1857
      %v1859 = vsel %vm1312, %v1778, 0.0
      %v1860 = vadd.f32 %v1858, %v1859
      %v1861 = vsel %vm1312, %v1781, 0.0
      %v1862 = vadd.f32 %v1860, %v1861
      %v1863 = vsel %vm1312, %v1786, 0.0
      %v1864 = vadd.f32 %v1862, %v1863
      %v1865 = vsel %vm1312, %v1789, 0.0
      %v1866 = vadd.f32 %v1864, %v1865
      %v1867 = vsel %vm1312, %v1794, 0.0
      %v1868 = vadd.f32 %v1866, %v1867
      %v1869 = vsel %vm1312, %v1797, 0.0
      %v1870 = vadd.f32 %v1868, %v1869
      %v1871 = vrot.slane %v1870, 4
      %v1872 = vadd.f32 %v1870, %v1871
      %v1873 = vrot.slane %v1872, 2
      %v1874 = vadd.f32 %v1872, %v1873
      %v1875 = vrot.slane %v1874, 1
      %v1876 = vadd.f32 %v1874, %v1875
      %v1877 = vadd.f32 %v1807, %v1876
      %vm1878 = vcmask 57344
      %1879 = vst.msk [vmem:[%s4] sm:$0x1] %vm1878, %v1877
      %v1880 = vld [vmem:[%s5] sm:$0x1]
      %v1881 = vmul.f32 %v1674, %v1674
      %v1882 = vmul.f32 %v1677, %v1677
      %v1883 = vmul.f32 %v1682, %v1682
      %v1884 = vmul.f32 %v1685, %v1685
      %v1885 = vmul.f32 %v1690, %v1690
      %v1886 = vmul.f32 %v1693, %v1693
      %v1887 = vmul.f32 %v1698, %v1698
      %v1888 = vmul.f32 %v1701, %v1701
      %v1889 = vmul.f32 %v1706, %v1706
      %v1890 = vmul.f32 %v1709, %v1709
      %v1891 = vmul.f32 %v1714, %v1714
      %v1892 = vmul.f32 %v1717, %v1717
      %v1893 = vmul.f32 %v1722, %v1722
      %v1894 = vmul.f32 %v1725, %v1725
      %v1895 = vmul.f32 %v1730, %v1730
      %v1896 = vmul.f32 %v1733, %v1733
      %v1897 = vmul.f32 %v1738, %v1738
      %v1898 = vmul.f32 %v1741, %v1741
      %v1899 = vmul.f32 %v1746, %v1746
      %v1900 = vmul.f32 %v1749, %v1749
      %v1901 = vmul.f32 %v1754, %v1754
      %v1902 = vmul.f32 %v1757, %v1757
      %v1903 = vmul.f32 %v1762, %v1762
      %v1904 = vmul.f32 %v1765, %v1765
      %v1905 = vmul.f32 %v1770, %v1770
      %v1906 = vmul.f32 %v1773, %v1773
      %v1907 = vmul.f32 %v1778, %v1778
      %v1908 = vmul.f32 %v1781, %v1781
      %v1909 = vmul.f32 %v1786, %v1786
      %v1910 = vmul.f32 %v1789, %v1789
      %v1911 = vmul.f32 %v1794, %v1794
      %v1912 = vmul.f32 %v1797, %v1797
      %v1913 = vsel %vm1312, %v1881, 0.0
      %v1914 = vsel %vm1312, %v1882, 0.0
      %v1915 = vadd.f32 %v1913, %v1914
      %v1916 = vsel %vm1312, %v1883, 0.0
      %v1917 = vadd.f32 %v1915, %v1916
      %v1918 = vsel %vm1312, %v1884, 0.0
      %v1919 = vadd.f32 %v1917, %v1918
      %v1920 = vsel %vm1312, %v1885, 0.0
      %v1921 = vadd.f32 %v1919, %v1920
      %v1922 = vsel %vm1312, %v1886, 0.0
      %v1923 = vadd.f32 %v1921, %v1922
      %v1924 = vsel %vm1312, %v1887, 0.0
      %v1925 = vadd.f32 %v1923, %v1924
      %v1926 = vsel %vm1312, %v1888, 0.0
      %v1927 = vadd.f32 %v1925, %v1926
      %v1928 = vsel %vm1312, %v1889, 0.0
      %v1929 = vadd.f32 %v1927, %v1928
      %v1930 = vsel %vm1312, %v1890, 0.0
      %v1931 = vadd.f32 %v1929, %v1930
      %v1932 = vsel %vm1312, %v1891, 0.0
      %v1933 = vadd.f32 %v1931, %v1932
      %v1934 = vsel %vm1312, %v1892, 0.0
      %v1935 = vadd.f32 %v1933, %v1934
      %v1936 = vsel %vm1312, %v1893, 0.0
      %v1937 = vadd.f32 %v1935, %v1936
      %v1938 = vsel %vm1312, %v1894, 0.0
      %v1939 = vadd.f32 %v1937, %v1938
      %v1940 = vsel %vm1312, %v1895, 0.0
      %v1941 = vadd.f32 %v1939, %v1940
      %v1942 = vsel %vm1312, %v1896, 0.0
      %v1943 = vadd.f32 %v1941, %v1942
      %v1944 = vsel %vm1312, %v1897, 0.0
      %v1945 = vadd.f32 %v1943, %v1944
      %v1946 = vsel %vm1312, %v1898, 0.0
      %v1947 = vadd.f32 %v1945, %v1946
      %v1948 = vsel %vm1312, %v1899, 0.0
      %v1949 = vadd.f32 %v1947, %v1948
      %v1950 = vsel %vm1312, %v1900, 0.0
      %v1951 = vadd.f32 %v1949, %v1950
      %v1952 = vsel %vm1312, %v1901, 0.0
      %v1953 = vadd.f32 %v1951, %v1952
      %v1954 = vsel %vm1312, %v1902, 0.0
      %v1955 = vadd.f32 %v1953, %v1954
      %v1956 = vsel %vm1312, %v1903, 0.0
      %v1957 = vadd.f32 %v1955, %v1956
      %v1958 = vsel %vm1312, %v1904, 0.0
      %v1959 = vadd.f32 %v1957, %v1958
      %v1960 = vsel %vm1312, %v1905, 0.0
      %v1961 = vadd.f32 %v1959, %v1960
      %v1962 = vsel %vm1312, %v1906, 0.0
      %v1963 = vadd.f32 %v1961, %v1962
      %v1964 = vsel %vm1312, %v1907, 0.0
      %v1965 = vadd.f32 %v1963, %v1964
      %v1966 = vsel %vm1312, %v1908, 0.0
      %v1967 = vadd.f32 %v1965, %v1966
      %v1968 = vsel %vm1312, %v1909, 0.0
      %v1969 = vadd.f32 %v1967, %v1968
      %v1970 = vsel %vm1312, %v1910, 0.0
      %v1971 = vadd.f32 %v1969, %v1970
      %v1972 = vsel %vm1312, %v1911, 0.0
      %v1973 = vadd.f32 %v1971, %v1972
      %v1974 = vsel %vm1312, %v1912, 0.0
      %v1975 = vadd.f32 %v1973, %v1974
      %v1976 = vrot.slane %v1975, 4
      %v1977 = vadd.f32 %v1975, %v1976
      %v1978 = vrot.slane %v1977, 2
      %v1979 = vadd.f32 %v1977, %v1978
      %v1980 = vrot.slane %v1979, 1
      %v1981 = vadd.f32 %v1979, %v1980
      %v1982 = vadd.f32 %v1880, %v1981
      %1983 = vst.msk [vmem:[%s5] sm:$0x1] %vm1878, %v1982
      %1984 = vst.msk [vmem:[%s219] sm:$0xff] %vm1312, %v1674
      %1985 = vst.msk [vmem:[%s219 + $0x8] sm:$0xff] %vm1312, %v1677
      %1986 = vst.msk [vmem:[%s219 + $0x10] sm:$0xff] %vm1312, %v1682
      %1987 = vst.msk [vmem:[%s219 + $0x18] sm:$0xff] %vm1312, %v1685
      %1988 = vst.msk [vmem:[%s219 + $0x20] sm:$0xff] %vm1312, %v1690
      %1989 = vst.msk [vmem:[%s219 + $0x28] sm:$0xff] %vm1312, %v1693
      %1990 = vst.msk [vmem:[%s219 + $0x30] sm:$0xff] %vm1312, %v1698
      %1991 = vst.msk [vmem:[%s219 + $0x38] sm:$0xff] %vm1312, %v1701
      %1992 = vst.msk [vmem:[%s219 + $0x40] sm:$0xff] %vm1312, %v1706
      %1993 = vst.msk [vmem:[%s219 + $0x48] sm:$0xff] %vm1312, %v1709
      %1994 = vst.msk [vmem:[%s219 + $0x50] sm:$0xff] %vm1312, %v1714
      %1995 = vst.msk [vmem:[%s219 + $0x58] sm:$0xff] %vm1312, %v1717
      %1996 = vst.msk [vmem:[%s219 + $0x60] sm:$0xff] %vm1312, %v1722
      %1997 = vst.msk [vmem:[%s219 + $0x68] sm:$0xff] %vm1312, %v1725
      %1998 = vst.msk [vmem:[%s219 + $0x70] sm:$0xff] %vm1312, %v1730
      %1999 = vst.msk [vmem:[%s219 + $0x78] sm:$0xff] %vm1312, %v1733
      %2000 = vst.msk [vmem:[%s219 + $0x80] sm:$0xff] %vm1312, %v1738
      %2001 = vst.msk [vmem:[%s219 + $0x88] sm:$0xff] %vm1312, %v1741
      %2002 = vst.msk [vmem:[%s219 + $0x90] sm:$0xff] %vm1312, %v1746
      %2003 = vst.msk [vmem:[%s219 + $0x98] sm:$0xff] %vm1312, %v1749
      %2004 = vst.msk [vmem:[%s219 + $0xa0] sm:$0xff] %vm1312, %v1754
      %2005 = vst.msk [vmem:[%s219 + $0xa8] sm:$0xff] %vm1312, %v1757
      %2006 = vst.msk [vmem:[%s219 + $0xb0] sm:$0xff] %vm1312, %v1762
      %2007 = vst.msk [vmem:[%s219 + $0xb8] sm:$0xff] %vm1312, %v1765
      %2008 = vst.msk [vmem:[%s219 + $0xc0] sm:$0xff] %vm1312, %v1770
      %2009 = vst.msk [vmem:[%s219 + $0xc8] sm:$0xff] %vm1312, %v1773
      %2010 = vst.msk [vmem:[%s219 + $0xd0] sm:$0xff] %vm1312, %v1778
      %2011 = vst.msk [vmem:[%s219 + $0xd8] sm:$0xff] %vm1312, %v1781
      %2012 = vst.msk [vmem:[%s219 + $0xe0] sm:$0xff] %vm1312, %v1786
      %2013 = vst.msk [vmem:[%s219 + $0xe8] sm:$0xff] %vm1312, %v1789
      %2014 = vst.msk [vmem:[%s219 + $0xf0] sm:$0xff] %vm1312, %v1794
      %2015 = vst.msk [vmem:[%s219 + $0xf8] sm:$0xff] %vm1312, %v1797
      %p2016 = scmp.lt.s32.totalorder %s17, 1
      %s2017 = scalar_select %p2016, %s17, 1
      %s2018 = smul.addr %s2017, 32
      %s2019 = smul.addr %s2018, 8
      %s2020 = scalar_lea.vmem %s3, %s2019
      // Predicated region
      $region37: #{conv_block_forward.3} parent=31 // pred_check
        %p2021 = pneg %p103
      $region38: #{conv_block_forward.3} parent=31 // pred_check_branch
        %2023 = sbr.rel (%p2021) target = $region40
      $region39: #{conv_block_forward.3} parent=31 // pred_region
        _
      $region40: #{conv_block_forward.3} parent=31 // pred_fallthru
        _
      // Predicated region
      $region41: #{conv_block_forward.3} parent=31 // pred_check
        %p2024 = pneg %p124
      $region42: #{conv_block_forward.3} parent=31 // pred_check_branch
        %2026 = sbr.rel (%p2024) target = $region44
      $region43: #{conv_block_forward.3} parent=31 // pred_region
        _
      $region44: #{conv_block_forward.3} parent=31 // pred_fallthru
        _
      // Predicated region
      $region45: #{conv_block_forward.3} parent=31 // pred_check
        %p2027 = pneg %p145
      $region46: #{conv_block_forward.3} parent=31 // pred_check_branch
        %2029 = sbr.rel (%p2027) target = $region48
      $region47: #{conv_block_forward.3} parent=31 // pred_region
        _
      $region48: #{conv_block_forward.3} parent=31 // pred_fallthru
        _
      // Predicated region
      $region49: #{conv_block_forward.3} parent=31 // pred_check
        %p2030 = pneg %p124
      $region50: #{conv_block_forward.3} parent=31 // pred_check_branch
        %2032 = sbr.rel (%p2030) target = $region52
      $region51: #{conv_block_forward.3} parent=31 // pred_region
        _
      $region52: #{conv_block_forward.3} parent=31 // pred_fallthru
        _
      // Predicated region
      $region53: #{conv_block_forward.3} parent=31 // pred_check
        %p2033 = pneg %p145
      $region54: #{conv_block_forward.3} parent=31 // pred_check_branch
        %2035 = sbr.rel (%p2033) target = $region56
      $region55: #{conv_block_forward.3} parent=31 // pred_region
        _
      $region56: #{conv_block_forward.3} parent=31 // pred_fallthru
        _
    $region32: #{conv_block_forward.3} parent=5 // pred_fallthru
      _
    %p2036 = scmp.le.s32.totalorder 2, %s12
    // Predicated region
    $region57: #{conv_block_forward.3} parent=5 // pred_check
      %p2037 = pneg %p2036
    $region58: #{conv_block_forward.3} parent=5 // pred_check_branch
      %2039 = sbr.rel (%p2037) target = $region60
    $region59: #{conv_block_forward.3} parent=5 // pred_region
      %s2040 = ssub.s32 %s12, 2
      // Predicated region
      $region61: #{conv_block_forward.3} parent=59 // pred_check
        %p2041 = pneg %p109
      $region62: #{conv_block_forward.3} parent=59 // pred_check_branch
        %2043 = sbr.rel (%p2041) target = $region64
      $region63: #{conv_block_forward.3} parent=59 // pred_region
        %p2044 = scmp.lt.s32.totalorder %s18, 1
        %s2045 = scalar_select %p2044, %s18, 1
        %s2046 = smul.addr %s2045, 32
        %s2047 = smul.addr %s2046, 8
        %s2048 = scalar_lea.vmem %s3, %s2047
      $region64: #{conv_block_forward.3} parent=59 // pred_fallthru
        _
    $region60: #{conv_block_forward.3} parent=5 // pred_fallthru
      _
  $region6: #{conv_block_forward.3} parent=0 // loop_footer
    %s16 = sadd.s32 1, %s12
  $region7: #{conv_block_forward.3} parent=0 // loop_footer_branch
    %11 = sbr.rel target = $region3
  $region8: #{conv_block_forward.3} parent=0 // loop_exit
    _

// kernel: conv_block_forward.4
$region0: #{conv_block_forward.4}
  #allocation0 [shape = 'u32[]', space=smem, size = 0x4, offset = 0x4, fixed_abs, tag = 'smem constant byte address 0x4 - core index']
  #allocation1 [shape = 'u32[144,128]{1,0:T(1,128)}', space=vmem, size = 0x12000, scoped, tag = 'internal scratch']
  %s0 = inlined_call_operand.vmem [shape: f32[2,18,18,8], index: 0, kind: input, shape index: {}]
  %s1 = inlined_call_operand.vmem [shape: f32[1,8], index: 1, kind: input, shape index: {}]
  %s2 = inlined_call_operand.vmem [shape: f32[1,8], index: 2, kind: input, shape index: {}]
  %s3 = inlined_call_operand.vmem [shape: f32[18,18,1], index: 3, kind: input, shape index: {}]
  %s4 = inlined_call_operand.vmem [shape: bf16[72,8], index: 4, kind: input, shape index: {}]
  %s5 = inlined_call_operand.vmem [shape: f32[1,8], index: 5, kind: input, shape index: {}]
  %s6 = inlined_call_operand.vmem [shape: f32[2,16,16,8], index: 6, kind: output, shape index: {0}]
  %s7 = inlined_call_operand.vmem [shape: f32[1,8], index: 7, kind: output, shape index: {1}]
  %s8 = inlined_call_operand.vmem [shape: f32[1,8], index: 8, kind: output, shape index: {2}]
  %9 = xla_tuple %s6, %s7, %s8
  %s10 = sld [smem:[#allocation0]]
  $region77: #{conv_block_forward.4} parent=0
    _
  %s12 = ssub.s32 1, %s10
  %s13 = scalar_select 0, %s12, %s10
  loop: start=0, step=1, limit=4
  $region2: #{conv_block_forward.4} parent=0 // loop_pre_header
    _
  $region3: #{conv_block_forward.4} parent=0 // loop_header
    %s15 = sphi 0, %s19
    %p16 = scmp.ge.s32.totalorder %s15, 4
    %s25 = sphi 0, %s27
    %s28 = sphi 0, %s25
    %s29 = sphi 0, %s28
    %s45 = sphi 0, %s29
    %s49 = sphi 0, %s49
    %s51 = sphi 0, %s49
    %s52 = sphi 0, %s51
    %s66 = sphi 0, %s52
    %s70 = sphi 0, %s70
    %s72 = sphi 0, %s70
    %s73 = sphi 0, %s72
    %s87 = sphi 0, %s73
    %s91 = sphi 0, %s91
    %s93 = sphi 0, %s91
    %s94 = sphi 0, %s93
    %s108 = sphi 0, %s94
    %s112 = sphi 0, %s112
    %s114 = sphi 0, %s112
    %s115 = sphi 0, %s114
    %s129 = sphi 0, %s115
    %s133 = sphi 0, %s133
    %s135 = sphi 0, %s133
    %s136 = sphi 0, %s135
    %s150 = sphi 0, %s136
    %s156 = sphi 0, %s158
    %s159 = sphi 0, %s156
    %s160 = sphi 0, %s159
    %s176 = sphi 0, %s160
    %s180 = sphi 0, %s180
    %s182 = sphi 0, %s180
    %s183 = sphi 0, %s182
    %s197 = sphi 0, %s183
    %s201 = sphi 0, %s201
    %s203 = sphi 0, %s201
    %s204 = sphi 0, %s203
    %s218 = sphi 0, %s204
  $region4: #{conv_block_forward.4} parent=0 // loop_header_branch
    %18 = sbr.rel (%p16) target = $region8
  $region5: #{conv_block_forward.4} parent=0 // loop_body
    %s20 = ssub.s32 %s15, 1
    %s21 = ssub.s32 %s15, 2
    %s22 = sadd.s32 %s15, 1
    %s23 = ssub.s32 %s15, %s22
    %p24 = scmp.eq.s32.totalorder %s23, 0
    %s26 = sadd.s32 %s25, 1
    %s27 = scalar_select %p24, %s25, %s26
    %p30 = pneg %p24
    %p31 = scmp.eq.s32.totalorder %s15, 1
    %p32 = por %p30, %p31
    %p33 = scmp.ne.s32.totalorder %s25, %s28
    %p34 = scmp.eq.s32.totalorder %s15, 0
    %p35 = por %p33, %p34
    %p36 = scmp.ne.s32.totalorder %s25, %s28
    %p37 = scmp.eq.s32.totalorder %s20, 1
    %p38 = por %p36, %p37
    %p39 = scmp.ne.s32.totalorder %s28, %s29
    %p40 = scmp.eq.s32.totalorder %s20, 0
    %p41 = por %p39, %p40
    %p42 = scmp.ne.s32.totalorder %s28, %s29
    %p43 = scmp.eq.s32.totalorder %s21, 1
    %p44 = por %p42, %p43
    %p46 = scmp.ne.s32.totalorder %s29, %s45
    %p47 = scmp.eq.s32.totalorder %s21, 0
    %p48 = por %p46, %p47
    %s50 = sadd.s32 %s49, 1
    %p53 = scmp.eq.s32.totalorder %s15, 1
    %p54 = scmp.ne.s32.totalorder %s49, %s51
    %p55 = scmp.eq.s32.totalorder %s15, 0
    %p56 = por %p54, %p55
    %p57 = scmp.ne.s32.totalorder %s49, %s51
    %p58 = scmp.eq.s32.totalorder %s20, 1
    %p59 = por %p57, %p58
    %p60 = scmp.ne.s32.totalorder %s51, %s52
    %p61 = scmp.eq.s32.totalorder %s20, 0
    %p62 = por %p60, %p61
    %p63 = scmp.ne.s32.totalorder %s51, %s52
    %p64 = scmp.eq.s32.totalorder %s21, 1
    %p65 = por %p63, %p64
    %p67 = scmp.ne.s32.totalorder %s52, %s66
    %p68 = scmp.eq.s32.totalorder %s21, 0
    %p69 = por %p67, %p68
    %s71 = sadd.s32 %s70, 1
    %p74 = scmp.eq.s32.totalorder %s15, 1
    %p75 = scmp.ne.s32.totalorder %s70, %s72
    %p76 = scmp.eq.s32.totalorder %s15, 0
    %p77 = por %p75, %p76
    %p78 = scmp.ne.s32.totalorder %s70, %s72
    %p79 = scmp.eq.s32.totalorder %s20, 1
    %p80 = por %p78, %p79
    %p81 = scmp.ne.s32.totalorder %s72, %s73
    %p82 = scmp.eq.s32.totalorder %s20, 0
    %p83 = por %p81, %p82
    %p84 = scmp.ne.s32.totalorder %s72, %s73
    %p85 = scmp.eq.s32.totalorder %s21, 1
    %p86 = por %p84, %p85
    %p88 = scmp.ne.s32.totalorder %s73, %s87
    %p89 = scmp.eq.s32.totalorder %s21, 0
    %p90 = por %p88, %p89
    %s92 = sadd.s32 %s91, 1
    %p95 = scmp.eq.s32.totalorder %s15, 1
    %p96 = scmp.ne.s32.totalorder %s91, %s93
    %p97 = scmp.eq.s32.totalorder %s15, 0
    %p98 = por %p96, %p97
    %p99 = scmp.ne.s32.totalorder %s91, %s93
    %p100 = scmp.eq.s32.totalorder %s20, 1
    %p101 = por %p99, %p100
    %p102 = scmp.ne.s32.totalorder %s93, %s94
    %p103 = scmp.eq.s32.totalorder %s20, 0
    %p104 = por %p102, %p103
    %p105 = scmp.ne.s32.totalorder %s93, %s94
    %p106 = scmp.eq.s32.totalorder %s21, 1
    %p107 = por %p105, %p106
    %p109 = scmp.ne.s32.totalorder %s94, %s108
    %p110 = scmp.eq.s32.totalorder %s21, 0
    %p111 = por %p109, %p110
    %s113 = sadd.s32 %s112, 1
    %p116 = scmp.eq.s32.totalorder %s15, 1
    %p117 = scmp.ne.s32.totalorder %s112, %s114
    %p118 = scmp.eq.s32.totalorder %s15, 0
    %p119 = por %p117, %p118
    %p120 = scmp.ne.s32.totalorder %s112, %s114
    %p121 = scmp.eq.s32.totalorder %s20, 1
    %p122 = por %p120, %p121
    %p123 = scmp.ne.s32.totalorder %s114, %s115
    %p124 = scmp.eq.s32.totalorder %s20, 0
    %p125 = por %p123, %p124
    %p126 = scmp.ne.s32.totalorder %s114, %s115
    %p127 = scmp.eq.s32.totalorder %s21, 1
    %p128 = por %p126, %p127
    %p130 = scmp.ne.s32.totalorder %s115, %s129
    %p131 = scmp.eq.s32.totalorder %s21, 0
    %p132 = por %p130, %p131
    %s134 = sadd.s32 %s133, 1
    %p137 = scmp.eq.s32.totalorder %s15, 1
    %p138 = scmp.ne.s32.totalorder %s133, %s135
    %p139 = scmp.eq.s32.totalorder %s15, 0
    %p140 = por %p138, %p139
    %p141 = scmp.ne.s32.totalorder %s133, %s135
    %p142 = scmp.eq.s32.totalorder %s20, 1
    %p143 = por %p141, %p142
    %p144 = scmp.ne.s32.totalorder %s135, %s136
    %p145 = scmp.eq.s32.totalorder %s20, 0
    %p146 = por %p144, %p145
    %p147 = scmp.ne.s32.totalorder %s135, %s136
    %p148 = scmp.eq.s32.totalorder %s21, 1
    %p149 = por %p147, %p148
    %p151 = scmp.ne.s32.totalorder %s136, %s150
    %p152 = scmp.eq.s32.totalorder %s21, 0
    %p153 = por %p151, %p152
    %s154 = ssub.s32 %s15, %s22
    %p155 = scmp.eq.s32.totalorder %s154, 0
    %s157 = sadd.s32 %s156, 1
    %s158 = scalar_select %p155, %s156, %s157
    %p161 = pneg %p155
    %p162 = scmp.eq.s32.totalorder %s15, 1
    %p163 = por %p161, %p162
    %p164 = scmp.ne.s32.totalorder %s156, %s159
    %p165 = scmp.eq.s32.totalorder %s15, 0
    %p166 = por %p164, %p165
    %p167 = scmp.ne.s32.totalorder %s156, %s159
    %p168 = scmp.eq.s32.totalorder %s20, 1
    %p169 = por %p167, %p168
    %p170 = scmp.ne.s32.totalorder %s159, %s160
    %p171 = scmp.eq.s32.totalorder %s20, 0
    %p172 = por %p170, %p171
    %p173 = scmp.ne.s32.totalorder %s159, %s160
    %p174 = scmp.eq.s32.totalorder %s21, 1
    %p175 = por %p173, %p174
    %p177 = scmp.ne.s32.totalorder %s160, %s176
    %p178 = scmp.eq.s32.totalorder %s21, 0
    %p179 = por %p177, %p178
    %s181 = sadd.s32 %s180, 1
    %p184 = scmp.eq.s32.totalorder %s15, 1
    %p185 = scmp.ne.s32.totalorder %s180, %s182
    %p186 = scmp.eq.s32.totalorder %s15, 0
    %p187 = por %p185, %p186
    %p188 = scmp.ne.s32.totalorder %s180, %s182
    %p189 = scmp.eq.s32.totalorder %s20, 1
    %p190 = por %p188, %p189
    %p191 = scmp.ne.s32.totalorder %s182, %s183
    %p192 = scmp.eq.s32.totalorder %s20, 0
    %p193 = por %p191, %p192
    %p194 = scmp.ne.s32.totalorder %s182, %s183
    %p195 = scmp.eq.s32.totalorder %s21, 1
    %p196 = por %p194, %p195
    %p198 = scmp.ne.s32.totalorder %s183, %s197
    %p199 = scmp.eq.s32.totalorder %s21, 0
    %p200 = por %p198, %p199
    %s202 = sadd.s32 %s201, 1
    %p205 = scmp.eq.s32.totalorder %s15, 1
    %p206 = scmp.ne.s32.totalorder %s201, %s203
    %p207 = scmp.eq.s32.totalorder %s15, 0
    %p208 = por %p206, %p207
    %p209 = scmp.ne.s32.totalorder %s201, %s203
    %p210 = scmp.eq.s32.totalorder %s20, 1
    %p211 = por %p209, %p210
    %p212 = scmp.ne.s32.totalorder %s203, %s204
    %p213 = scmp.eq.s32.totalorder %s20, 0
    %p214 = por %p212, %p213
    %p215 = scmp.ne.s32.totalorder %s203, %s204
    %p216 = scmp.eq.s32.totalorder %s21, 1
    %p217 = por %p215, %p216
    %p219 = scmp.ne.s32.totalorder %s204, %s218
    %p220 = scmp.eq.s32.totalorder %s21, 0
    %p221 = por %p219, %p220
    %p222 = scmp.le.s32.totalorder 1, %s15
    %p223 = scmp.lt.s32.totalorder %s15, 3
    %p224 = pnand %p222, %p223
    %p225 = pneg %p224
    // Predicated region
    $region9: #{conv_block_forward.4} parent=5 // pred_check
      _
    $region10: #{conv_block_forward.4} parent=5 // pred_check_branch
      %227 = sbr.rel (%p224) target = $region12
    $region11: #{conv_block_forward.4} parent=5 // pred_region
      %s228 = ssub.s32 %s15, 1
      // Predicated region
      $region13: #{conv_block_forward.4} parent=11 // pred_check
        %p229 = pneg %p62
      $region14: #{conv_block_forward.4} parent=11 // pred_check_branch
        %231 = sbr.rel (%p229) target = $region16
      $region15: #{conv_block_forward.4} parent=11 // pred_region
        _
      $region16: #{conv_block_forward.4} parent=11 // pred_fallthru
        _
      // Predicated region
      $region17: #{conv_block_forward.4} parent=11 // pred_check
        %p232 = pneg %p83
      $region18: #{conv_block_forward.4} parent=11 // pred_check_branch
        %234 = sbr.rel (%p232) target = $region20
      $region19: #{conv_block_forward.4} parent=11 // pred_region
        _
      $region20: #{conv_block_forward.4} parent=11 // pred_fallthru
        _
      // Predicated region
      $region21: #{conv_block_forward.4} parent=11 // pred_check
        %p235 = pneg %p104
      $region22: #{conv_block_forward.4} parent=11 // pred_check_branch
        %237 = sbr.rel (%p235) target = $region24
      $region23: #{conv_block_forward.4} parent=11 // pred_region
        _
      $region24: #{conv_block_forward.4} parent=11 // pred_fallthru
        _
      // Predicated region
      $region25: #{conv_block_forward.4} parent=11 // pred_check
        %p238 = pneg %p125
      $region26: #{conv_block_forward.4} parent=11 // pred_check_branch
        %240 = sbr.rel (%p238) target = $region28
      $region27: #{conv_block_forward.4} parent=11 // pred_region
        _
      $region28: #{conv_block_forward.4} parent=11 // pred_fallthru
        _
      // Predicated region
      $region29: #{conv_block_forward.4} parent=11 // pred_check
        %p241 = pneg %p146
      $region30: #{conv_block_forward.4} parent=11 // pred_check_branch
        %243 = sbr.rel (%p241) target = $region32
      $region31: #{conv_block_forward.4} parent=11 // pred_region
        _
      $region32: #{conv_block_forward.4} parent=11 // pred_fallthru
        _
    $region12: #{conv_block_forward.4} parent=5 // pred_fallthru
      _
    %p244 = scmp.lt.s32.totalorder %s15, 2
    // Predicated region
    $region33: #{conv_block_forward.4} parent=5 // pred_check
      %p245 = pneg %p244
    $region34: #{conv_block_forward.4} parent=5 // pred_check_branch
      %247 = sbr.rel (%p245) target = $region36
    $region35: #{conv_block_forward.4} parent=5 // pred_region
      // Predicated region
      $region37: #{conv_block_forward.4} parent=35 // pred_check
        %p248 = pneg %p35
      $region38: #{conv_block_forward.4} parent=35 // pred_check_branch
        %250 = sbr.rel (%p248) target = $region40
      $region39: #{conv_block_forward.4} parent=35 // pred_region
        %p251 = scmp.lt.s32.totalorder %s15, 1
        %s252 = scalar_select %p251, %s15, 1
        %s253 = smul.addr %s252, 54
        %s254 = smul.addr %s253, 8
        %s255 = scalar_lea.vmem %s0, %s254
      $region40: #{conv_block_forward.4} parent=35 // pred_fallthru
        _
    $region36: #{conv_block_forward.4} parent=5 // pred_fallthru
      _
    %p256 = scmp.le.s32.totalorder 1, %s15
    %p257 = scmp.lt.s32.totalorder %s15, 3
    %p258 = pnand %p256, %p257
    %p259 = pneg %p258
    // Predicated region
    $region41: #{conv_block_forward.4} parent=5 // pred_check
      _
    $region42: #{conv_block_forward.4} parent=5 // pred_check_branch
      %261 = sbr.rel (%p258) target = $region44
    $region43: #{conv_block_forward.4} parent=5 // pred_region
      %s262 = ssub.s32 %s15, 1
      %p263 = scmp.lt.s32.totalorder %s20, 1
      %s264 = scalar_select %p263, %s20, 1
      %s265 = smul.addr %s264, 54
      %s266 = smul.addr %s265, 8
      %s267 = scalar_lea.vmem %s0, %s266
      %p268 = pneg %p41
      %p269 = pneg %p38
      %p270 = pneg %p62
      %p271 = pneg %p59
      %p272 = pneg %p83
      %p273 = pneg %p80
      %p274 = pneg %p104
      %p275 = pneg %p101
      %p276 = pneg %p125
      %p277 = pneg %p122
      %p278 = pneg %p146
      %p279 = pneg %p143
      %p280 = pneg %p172
      %p281 = pneg %p169
      %p282 = scmp.lt.s32.totalorder %s20, 1
      %s283 = scalar_select %p282, %s20, 1
      %s284 = smul.addr %s283, 32
      %s285 = smul.addr %s284, 8
      %s286 = scalar_lea.vmem %s6, %s285
      %p287 = pneg %p193
      %p288 = pneg %p190
      %p289 = pneg %p214
      %p290 = pneg %p211
      %p291 = scmp.lt.s32.totalorder %s20, 1
      %s292 = scalar_select %p291, %s20, 1
      %s293 = smul.addr %s292, 54
      %s294 = smul.addr %s293, 8
      %s295 = scalar_lea.vmem %s0, %s294
      %p296 = scmp.lt.s32.totalorder %s20, 1
      %s297 = scalar_select %p296, %s20, 1
      %s298 = smul.addr %s297, 32
      %s299 = smul.addr %s298, 8
      %s300 = scalar_lea.vmem %s6, %s299
      %v302 = vld [vmem:[%s295] sm:$0xff]
      %v303 = vld [vmem:[%s295 + $0x8] sm:$0xff]
      %v304 = vld [vmem:[%s295 + $0x10] sm:$0x3]
      %v305 = vld [vmem:[%s295 + $0x18] sm:$0xff]
      %v306 = vld [vmem:[%s295 + $0x20] sm:$0xff]
      %v307 = vld [vmem:[%s295 + $0x28] sm:$0x3]
      %v308 = vld [vmem:[%s295 + $0x30] sm:$0xff]
      %v309 = vld [vmem:[%s295 + $0x38] sm:$0xff]
      %v310 = vld [vmem:[%s295 + $0x40] sm:$0x3]
      %v311 = vld [vmem:[%s295 + $0x48] sm:$0xff]
      %v312 = vld [vmem:[%s295 + $0x50] sm:$0xff]
      %v313 = vld [vmem:[%s295 + $0x58] sm:$0x3]
      %v314 = vld [vmem:[%s295 + $0x60] sm:$0xff]
      %v315 = vld [vmem:[%s295 + $0x68] sm:$0xff]
      %v316 = vld [vmem:[%s295 + $0x70] sm:$0x3]
      %v317 = vld [vmem:[%s295 + $0x78] sm:$0xff]
      %v318 = vld [vmem:[%s295 + $0x80] sm:$0xff]
      %v319 = vld [vmem:[%s295 + $0x88] sm:$0x3]
      %v320 = vld [vmem:[%s295 + $0x90] sm:$0xff]
      %v321 = vld [vmem:[%s295 + $0x98] sm:$0xff]
      %v322 = vld [vmem:[%s295 + $0xa0] sm:$0x3]
      %v323 = vld [vmem:[%s295 + $0xa8] sm:$0xff]
      %v324 = vld [vmem:[%s295 + $0xb0] sm:$0xff]
      %v325 = vld [vmem:[%s295 + $0xb8] sm:$0x3]
      %v326 = vld [vmem:[%s295 + $0xc0] sm:$0xff]
      %v327 = vld [vmem:[%s295 + $0xc8] sm:$0xff]
      %v328 = vld [vmem:[%s295 + $0xd0] sm:$0x3]
      %v329 = vld [vmem:[%s295 + $0xd8] sm:$0xff]
      %v330 = vld [vmem:[%s295 + $0xe0] sm:$0xff]
      %v331 = vld [vmem:[%s295 + $0xe8] sm:$0x3]
      %v332 = vld [vmem:[%s295 + $0xf0] sm:$0xff]
      %v333 = vld [vmem:[%s295 + $0xf8] sm:$0xff]
      %v334 = vld [vmem:[%s295 + $0x100] sm:$0x3]
      %v335 = vld [vmem:[%s295 + $0x108] sm:$0xff]
      %v336 = vld [vmem:[%s295 + $0x110] sm:$0xff]
      %v337 = vld [vmem:[%s295 + $0x118] sm:$0x3]
      %v338 = vld [vmem:[%s295 + $0x120] sm:$0xff]
      %v339 = vld [vmem:[%s295 + $0x128] sm:$0xff]
      %v340 = vld [vmem:[%s295 + $0x130] sm:$0x3]
      %v341 = vld [vmem:[%s295 + $0x138] sm:$0xff]
      %v342 = vld [vmem:[%s295 + $0x140] sm:$0xff]
      %v343 = vld [vmem:[%s295 + $0x148] sm:$0x3]
      %v344 = vld [vmem:[%s295 + $0x150] sm:$0xff]
      %v345 = vld [vmem:[%s295 + $0x158] sm:$0xff]
      %v346 = vld [vmem:[%s295 + $0x160] sm:$0x3]
      %v347 = vld [vmem:[%s295 + $0x168] sm:$0xff]
      %v348 = vld [vmem:[%s295 + $0x170] sm:$0xff]
      %v349 = vld [vmem:[%s295 + $0x178] sm:$0x3]
      %v350 = vld [vmem:[%s295 + $0x180] sm:$0xff]
      %v351 = vld [vmem:[%s295 + $0x188] sm:$0xff]
      %v352 = vld [vmem:[%s295 + $0x190] sm:$0x3]
      %v353 = vld [vmem:[%s295 + $0x198] sm:$0xff]
      %v354 = vld [vmem:[%s295 + $0x1a0] sm:$0xff]
      %v355 = vld [vmem:[%s295 + $0x1a8] sm:$0x3]
      %v410 = vcombine.high %v302, %v302
      %v412 = vunpack.c.l.s4 1983009808
      %v413 = vunpack.c.0.s8 %v412
      %v414 = vlaneseq
      %v415 = vshrl.u32 %v414, 7
      %v416 = vsub.s32 %v413, %v415
      %v417 = vrot.slane %v302, %v416
      %v419 = vunpack.c.l.s4 1983009808
      %v420 = vunpack.c.0.s8 %v419
      %v421 = vlaneseq
      %v422 = vshrl.u32 %v421, 7
      %v423 = vsub.s32 %v420, %v422
      %v424 = vrot.slane %v410, %v423
      %v425 = vcombine.high %v417, %v417
      %v426 = vcombine.high %v424, %v424
      %v427 = vcombine.high %v303, %v303
      %v429 = vunpack.c.l.s4 1983009808
      %v430 = vunpack.c.0.s8 %v429
      %v431 = vlaneseq
      %v432 = vshrl.u32 %v431, 7
      %v433 = vsub.s32 %v430, %v432
      %v434 = vrot.slane %v303, %v433
      %v436 = vunpack.c.l.s4 1983009808
      %v437 = vunpack.c.0.s8 %v436
      %v438 = vlaneseq
      %v439 = vshrl.u32 %v438, 7
      %v440 = vsub.s32 %v437, %v439
      %v441 = vrot.slane %v427, %v440
      %v442 = vcombine.high %v434, %v434
      %v443 = vcombine.high %v441, %v441
      %v445 = vunpack.c.l.s4 1983009808
      %v446 = vunpack.c.0.s8 %v445
      %v447 = vlaneseq
      %v448 = vshrl.u32 %v447, 7
      %v449 = vsub.s32 %v446, %v448
      %v450 = vrot.slane %v304, %v449
      %v451 = vcombine.high %v305, %v305
      %v453 = vunpack.c.l.s4 1983009808
      %v454 = vunpack.c.0.s8 %v453
      %v455 = vlaneseq
      %v456 = vshrl.u32 %v455, 7
      %v457 = vsub.s32 %v454, %v456
      %v458 = vrot.slane %v305, %v457
      %v460 = vunpack.c.l.s4 1983009808
      %v461 = vunpack.c.0.s8 %v460
      %v462 = vlaneseq
      %v463 = vshrl.u32 %v462, 7
      %v464 = vsub.s32 %v461, %v463
      %v465 = vrot.slane %v451, %v464
      %v466 = vcombine.high %v458, %v458
      %v467 = vcombine.high %v465, %v465
      %v468 = vcombine.high %v306, %v306
      %v470 = vunpack.c.l.s4 1983009808
      %v471 = vunpack.c.0.s8 %v470
      %v472 = vlaneseq
      %v473 = vshrl.u32 %v472, 7
      %v474 = vsub.s32 %v471, %v473
      %v475 = vrot.slane %v306, %v474
      %v477 = vunpack.c.l.s4 1983009808
      %v478 = vunpack.c.0.s8 %v477
      %v479 = vlaneseq
      %v480 = vshrl.u32 %v479, 7
      %v481 = vsub.s32 %v478, %v480
      %v482 = vrot.slane %v468, %v481
      %v483 = vcombine.high %v475, %v475
      %v484 = vcombine.high %v482, %v482
      %v486 = vunpack.c.l.s4 1983009808
      %v487 = vunpack.c.0.s8 %v486
      %v488 = vlaneseq
      %v489 = vshrl.u32 %v488, 7
      %v490 = vsub.s32 %v487, %v489
      %v491 = vrot.slane %v307, %v490
      %v492 = vcombine.high %v308, %v308
      %v494 = vunpack.c.l.s4 1983009808
      %v495 = vunpack.c.0.s8 %v494
      %v496 = vlaneseq
      %v497 = vshrl.u32 %v496, 7
      %v498 = vsub.s32 %v495, %v497
      %v499 = vrot.slane %v308, %v498
      %v501 = vunpack.c.l.s4 1983009808
      %v502 = vunpack.c.0.s8 %v501
      %v503 = vlaneseq
      %v504 = vshrl.u32 %v503, 7
      %v505 = vsub.s32 %v502, %v504
      %v506 = vrot.slane %v492, %v505
      %v507 = vcombine.high %v499, %v499
      %v508 = vcombine.high %v506, %v506
      %v509 = vcombine.high %v309, %v309
      %v511 = vunpack.c.l.s4 1983009808
      %v512 = vunpack.c.0.s8 %v511
      %v513 = vlaneseq
      %v514 = vshrl.u32 %v513, 7
      %v515 = vsub.s32 %v512, %v514
      %v516 = vrot.slane %v309, %v515
      %v518 = vunpack.c.l.s4 1983009808
      %v519 = vunpack.c.0.s8 %v518
      %v520 = vlaneseq
      %v521 = vshrl.u32 %v520, 7
      %v522 = vsub.s32 %v519, %v521
      %v523 = vrot.slane %v509, %v522
      %v524 = vcombine.high %v516, %v516
      %v525 = vcombine.high %v523, %v523
      %v527 = vunpack.c.l.s4 1983009808
      %v528 = vunpack.c.0.s8 %v527
      %v529 = vlaneseq
      %v530 = vshrl.u32 %v529, 7
      %v531 = vsub.s32 %v528, %v530
      %v532 = vrot.slane %v310, %v531
      %v533 = vcombine.high %v311, %v311
      %v535 = vunpack.c.l.s4 1983009808
      %v536 = vunpack.c.0.s8 %v535
      %v537 = vlaneseq
      %v538 = vshrl.u32 %v537, 7
      %v539 = vsub.s32 %v536, %v538
      %v540 = vrot.slane %v311, %v539
      %v542 = vunpack.c.l.s4 1983009808
      %v543 = vunpack.c.0.s8 %v542
      %v544 = vlaneseq
      %v545 = vshrl.u32 %v544, 7
      %v546 = vsub.s32 %v543, %v545
      %v547 = vrot.slane %v533, %v546
      %v548 = vcombine.high %v540, %v540
      %v549 = vcombine.high %v547, %v547
      %v550 = vcombine.high %v312, %v312
      %v552 = vunpack.c.l.s4 1983009808
      %v553 = vunpack.c.0.s8 %v552
      %v554 = vlaneseq
      %v555 = vshrl.u32 %v554, 7
      %v556 = vsub.s32 %v553, %v555
      %v557 = vrot.slane %v312, %v556
      %v559 = vunpack.c.l.s4 1983009808
      %v560 = vunpack.c.0.s8 %v559
      %v561 = vlaneseq
      %v562 = vshrl.u32 %v561, 7
      %v563 = vsub.s32 %v560, %v562
      %v564 = vrot.slane %v550, %v563
      %v565 = vcombine.high %v557, %v557
      %v566 = vcombine.high %v564, %v564
      %v568 = vunpack.c.l.s4 1983009808
      %v569 = vunpack.c.0.s8 %v568
      %v570 = vlaneseq
      %v571 = vshrl.u32 %v570, 7
      %v572 = vsub.s32 %v569, %v571
      %v573 = vrot.slane %v313, %v572
      %v574 = vcombine.high %v314, %v314
      %v576 = vunpack.c.l.s4 1983009808
      %v577 = vunpack.c.0.s8 %v576
      %v578 = vlaneseq
      %v579 = vshrl.u32 %v578, 7
      %v580 = vsub.s32 %v577, %v579
      %v581 = vrot.slane %v314, %v580
      %v583 = vunpack.c.l.s4 1983009808
      %v584 = vunpack.c.0.s8 %v583
      %v585 = vlaneseq
      %v586 = vshrl.u32 %v585, 7
      %v587 = vsub.s32 %v584, %v586
      %v588 = vrot.slane %v574, %v587
      %v589 = vcombine.high %v581, %v581
      %v590 = vcombine.high %v588, %v588
      %v591 = vcombine.high %v315, %v315
      %v593 = vunpack.c.l.s4 1983009808
      %v594 = vunpack.c.0.s8 %v593
      %v595 = vlaneseq
      %v596 = vshrl.u32 %v595, 7
      %v597 = vsub.s32 %v594, %v596
      %v598 = vrot.slane %v315, %v597
      %v600 = vunpack.c.l.s4 1983009808
      %v601 = vunpack.c.0.s8 %v600
      %v602 = vlaneseq
      %v603 = vshrl.u32 %v602, 7
      %v604 = vsub.s32 %v601, %v603
      %v605 = vrot.slane %v591, %v604
      %v606 = vcombine.high %v598, %v598
      %v607 = vcombine.high %v605, %v605
      %v609 = vunpack.c.l.s4 1983009808
      %v610 = vunpack.c.0.s8 %v609
      %v611 = vlaneseq
      %v612 = vshrl.u32 %v611, 7
      %v613 = vsub.s32 %v610, %v612
      %v614 = vrot.slane %v316, %v613
      %v615 = vcombine.high %v317, %v317
      %v617 = vunpack.c.l.s4 1983009808
      %v618 = vunpack.c.0.s8 %v617
      %v619 = vlaneseq
      %v620 = vshrl.u32 %v619, 7
      %v621 = vsub.s32 %v618, %v620
      %v622 = vrot.slane %v317, %v621
      %v624 = vunpack.c.l.s4 1983009808
      %v625 = vunpack.c.0.s8 %v624
      %v626 = vlaneseq
      %v627 = vshrl.u32 %v626, 7
      %v628 = vsub.s32 %v625, %v627
      %v629 = vrot.slane %v615, %v628
      %v630 = vcombine.high %v622, %v622
      %v631 = vcombine.high %v629, %v629
      %v632 = vcombine.high %v318, %v318
      %v634 = vunpack.c.l.s4 1983009808
      %v635 = vunpack.c.0.s8 %v634
      %v636 = vlaneseq
      %v637 = vshrl.u32 %v636, 7
      %v638 = vsub.s32 %v635, %v637
      %v639 = vrot.slane %v318, %v638
      %v641 = vunpack.c.l.s4 1983009808
      %v642 = vunpack.c.0.s8 %v641
      %v643 = vlaneseq
      %v644 = vshrl.u32 %v643, 7
      %v645 = vsub.s32 %v642, %v644
      %v646 = vrot.slane %v632, %v645
      %v647 = vcombine.high %v639, %v639
      %v648 = vcombine.high %v646, %v646
      %v650 = vunpack.c.l.s4 1983009808
      %v651 = vunpack.c.0.s8 %v650
      %v652 = vlaneseq
      %v653 = vshrl.u32 %v652, 7
      %v654 = vsub.s32 %v651, %v653
      %v655 = vrot.slane %v319, %v654
      %v656 = vcombine.high %v320, %v320
      %v658 = vunpack.c.l.s4 1983009808
      %v659 = vunpack.c.0.s8 %v658
      %v660 = vlaneseq
      %v661 = vshrl.u32 %v660, 7
      %v662 = vsub.s32 %v659, %v661
      %v663 = vrot.slane %v320, %v662
      %v665 = vunpack.c.l.s4 1983009808
      %v666 = vunpack.c.0.s8 %v665
      %v667 = vlaneseq
      %v668 = vshrl.u32 %v667, 7
      %v669 = vsub.s32 %v666, %v668
      %v670 = vrot.slane %v656, %v669
      %v671 = vcombine.high %v663, %v663
      %v672 = vcombine.high %v670, %v670
      %v673 = vcombine.high %v321, %v321
      %v675 = vunpack.c.l.s4 1983009808
      %v676 = vunpack.c.0.s8 %v675
      %v677 = vlaneseq
      %v678 = vshrl.u32 %v677, 7
      %v679 = vsub.s32 %v676, %v678
      %v680 = vrot.slane %v321, %v679
      %v682 = vunpack.c.l.s4 1983009808
      %v683 = vunpack.c.0.s8 %v682
      %v684 = vlaneseq
      %v685 = vshrl.u32 %v684, 7
      %v686 = vsub.s32 %v683, %v685
      %v687 = vrot.slane %v673, %v686
      %v688 = vcombine.high %v680, %v680
      %v689 = vcombine.high %v687, %v687
      %v691 = vunpack.c.l.s4 1983009808
      %v692 = vunpack.c.0.s8 %v691
      %v693 = vlaneseq
      %v694 = vshrl.u32 %v693, 7
      %v695 = vsub.s32 %v692, %v694
      %v696 = vrot.slane %v322, %v695
      %v697 = vcombine.high %v323, %v323
      %v699 = vunpack.c.l.s4 1983009808
      %v700 = vunpack.c.0.s8 %v699
      %v701 = vlaneseq
      %v702 = vshrl.u32 %v701, 7
      %v703 = vsub.s32 %v700, %v702
      %v704 = vrot.slane %v323, %v703
      %v706 = vunpack.c.l.s4 1983009808
      %v707 = vunpack.c.0.s8 %v706
      %v708 = vlaneseq
      %v709 = vshrl.u32 %v708, 7
      %v710 = vsub.s32 %v707, %v709
      %v711 = vrot.slane %v697, %v710
      %v712 = vcombine.high %v704, %v704
      %v713 = vcombine.high %v711, %v711
      %v714 = vcombine.high %v324, %v324
      %v716 = vunpack.c.l.s4 1983009808
      %v717 = vunpack.c.0.s8 %v716
      %v718 = vlaneseq
      %v719 = vshrl.u32 %v718, 7
      %v720 = vsub.s32 %v717, %v719
      %v721 = vrot.slane %v324, %v720
      %v723 = vunpack.c.l.s4 1983009808
      %v724 = vunpack.c.0.s8 %v723
      %v725 = vlaneseq
      %v726 = vshrl.u32 %v725, 7
      %v727 = vsub.s32 %v724, %v726
      %v728 = vrot.slane %v714, %v727
      %v729 = vcombine.high %v721, %v721
      %v730 = vcombine.high %v728, %v728
      %v732 = vunpack.c.l.s4 1983009808
      %v733 = vunpack.c.0.s8 %v732
      %v734 = vlaneseq
      %v735 = vshrl.u32 %v734, 7
      %v736 = vsub.s32 %v733, %v735
      %v737 = vrot.slane %v325, %v736
      %v738 = vcombine.high %v326, %v326
      %v740 = vunpack.c.l.s4 1983009808
      %v741 = vunpack.c.0.s8 %v740
      %v742 = vlaneseq
      %v743 = vshrl.u32 %v742, 7
      %v744 = vsub.s32 %v741, %v743
      %v745 = vrot.slane %v326, %v744
      %v747 = vunpack.c.l.s4 1983009808
      %v748 = vunpack.c.0.s8 %v747
      %v749 = vlaneseq
      %v750 = vshrl.u32 %v749, 7
      %v751 = vsub.s32 %v748, %v750
      %v752 = vrot.slane %v738, %v751
      %v753 = vcombine.high %v745, %v745
      %v754 = vcombine.high %v752, %v752
      %v755 = vcombine.high %v327, %v327
      %v757 = vunpack.c.l.s4 1983009808
      %v758 = vunpack.c.0.s8 %v757
      %v759 = vlaneseq
      %v760 = vshrl.u32 %v759, 7
      %v761 = vsub.s32 %v758, %v760
      %v762 = vrot.slane %v327, %v761
      %v764 = vunpack.c.l.s4 1983009808
      %v765 = vunpack.c.0.s8 %v764
      %v766 = vlaneseq
      %v767 = vshrl.u32 %v766, 7
      %v768 = vsub.s32 %v765, %v767
      %v769 = vrot.slane %v755, %v768
      %v770 = vcombine.high %v762, %v762
      %v771 = vcombine.high %v769, %v769
      %v773 = vunpack.c.l.s4 1983009808
      %v774 = vunpack.c.0.s8 %v773
      %v775 = vlaneseq
      %v776 = vshrl.u32 %v775, 7
      %v777 = vsub.s32 %v774, %v776
      %v778 = vrot.slane %v328, %v777
      %v779 = vcombine.high %v329, %v329
      %v781 = vunpack.c.l.s4 1983009808
      %v782 = vunpack.c.0.s8 %v781
      %v783 = vlaneseq
      %v784 = vshrl.u32 %v783, 7
      %v785 = vsub.s32 %v782, %v784
      %v786 = vrot.slane %v329, %v785
      %v788 = vunpack.c.l.s4 1983009808
      %v789 = vunpack.c.0.s8 %v788
      %v790 = vlaneseq
      %v791 = vshrl.u32 %v790, 7
      %v792 = vsub.s32 %v789, %v791
      %v793 = vrot.slane %v779, %v792
      %v794 = vcombine.high %v786, %v786
      %v795 = vcombine.high %v793, %v793
      %v796 = vcombine.high %v330, %v330
      %v798 = vunpack.c.l.s4 1983009808
      %v799 = vunpack.c.0.s8 %v798
      %v800 = vlaneseq
      %v801 = vshrl.u32 %v800, 7
      %v802 = vsub.s32 %v799, %v801
      %v803 = vrot.slane %v330, %v802
      %v805 = vunpack.c.l.s4 1983009808
      %v806 = vunpack.c.0.s8 %v805
      %v807 = vlaneseq
      %v808 = vshrl.u32 %v807, 7
      %v809 = vsub.s32 %v806, %v808
      %v810 = vrot.slane %v796, %v809
      %v811 = vcombine.high %v803, %v803
      %v812 = vcombine.high %v810, %v810
      %v814 = vunpack.c.l.s4 1983009808
      %v815 = vunpack.c.0.s8 %v814
      %v816 = vlaneseq
      %v817 = vshrl.u32 %v816, 7
      %v818 = vsub.s32 %v815, %v817
      %v819 = vrot.slane %v331, %v818
      %v820 = vcombine.high %v332, %v332
      %v822 = vunpack.c.l.s4 1983009808
      %v823 = vunpack.c.0.s8 %v822
      %v824 = vlaneseq
      %v825 = vshrl.u32 %v824, 7
      %v826 = vsub.s32 %v823, %v825
      %v827 = vrot.slane %v332, %v826
      %v829 = vunpack.c.l.s4 1983009808
      %v830 = vunpack.c.0.s8 %v829
      %v831 = vlaneseq
      %v832 = vshrl.u32 %v831, 7
      %v833 = vsub.s32 %v830, %v832
      %v834 = vrot.slane %v820, %v833
      %v835 = vcombine.high %v827, %v827
      %v836 = vcombine.high %v834, %v834
      %v837 = vcombine.high %v333, %v333
      %v839 = vunpack.c.l.s4 1983009808
      %v840 = vunpack.c.0.s8 %v839
      %v841 = vlaneseq
      %v842 = vshrl.u32 %v841, 7
      %v843 = vsub.s32 %v840, %v842
      %v844 = vrot.slane %v333, %v843
      %v846 = vunpack.c.l.s4 1983009808
      %v847 = vunpack.c.0.s8 %v846
      %v848 = vlaneseq
      %v849 = vshrl.u32 %v848, 7
      %v850 = vsub.s32 %v847, %v849
      %v851 = vrot.slane %v837, %v850
      %v852 = vcombine.high %v844, %v844
      %v853 = vcombine.high %v851, %v851
      %v855 = vunpack.c.l.s4 1983009808
      %v856 = vunpack.c.0.s8 %v855
      %v857 = vlaneseq
      %v858 = vshrl.u32 %v857, 7
      %v859 = vsub.s32 %v856, %v858
      %v860 = vrot.slane %v334, %v859
      %v861 = vcombine.high %v335, %v335
      %v863 = vunpack.c.l.s4 1983009808
      %v864 = vunpack.c.0.s8 %v863
      %v865 = vlaneseq
      %v866 = vshrl.u32 %v865, 7
      %v867 = vsub.s32 %v864, %v866
      %v868 = vrot.slane %v335, %v867
      %v870 = vunpack.c.l.s4 1983009808
      %v871 = vunpack.c.0.s8 %v870
      %v872 = vlaneseq
      %v873 = vshrl.u32 %v872, 7
      %v874 = vsub.s32 %v871, %v873
      %v875 = vrot.slane %v861, %v874
      %v876 = vcombine.high %v868, %v868
      %v877 = vcombine.high %v875, %v875
      %v878 = vcombine.high %v336, %v336
      %v880 = vunpack.c.l.s4 1983009808
      %v881 = vunpack.c.0.s8 %v880
      %v882 = vlaneseq
      %v883 = vshrl.u32 %v882, 7
      %v884 = vsub.s32 %v881, %v883
      %v885 = vrot.slane %v336, %v884
      %v887 = vunpack.c.l.s4 1983009808
      %v888 = vunpack.c.0.s8 %v887
      %v889 = vlaneseq
      %v890 = vshrl.u32 %v889, 7
      %v891 = vsub.s32 %v888, %v890
      %v892 = vrot.slane %v878, %v891
      %v893 = vcombine.high %v885, %v885
      %v894 = vcombine.high %v892, %v892
      %v896 = vunpack.c.l.s4 1983009808
      %v897 = vunpack.c.0.s8 %v896
      %v898 = vlaneseq
      %v899 = vshrl.u32 %v898, 7
      %v900 = vsub.s32 %v897, %v899
      %v901 = vrot.slane %v337, %v900
      %v902 = vcombine.high %v338, %v338
      %v904 = vunpack.c.l.s4 1983009808
      %v905 = vunpack.c.0.s8 %v904
      %v906 = vlaneseq
      %v907 = vshrl.u32 %v906, 7
      %v908 = vsub.s32 %v905, %v907
      %v909 = vrot.slane %v338, %v908
      %v911 = vunpack.c.l.s4 1983009808
      %v912 = vunpack.c.0.s8 %v911
      %v913 = vlaneseq
      %v914 = vshrl.u32 %v913, 7
      %v915 = vsub.s32 %v912, %v914
      %v916 = vrot.slane %v902, %v915
      %v917 = vcombine.high %v909, %v909
      %v918 = vcombine.high %v916, %v916
      %v919 = vcombine.high %v339, %v339
      %v921 = vunpack.c.l.s4 1983009808
      %v922 = vunpack.c.0.s8 %v921
      %v923 = vlaneseq
      %v924 = vshrl.u32 %v923, 7
      %v925 = vsub.s32 %v922, %v924
      %v926 = vrot.slane %v339, %v925
      %v928 = vunpack.c.l.s4 1983009808
      %v929 = vunpack.c.0.s8 %v928
      %v930 = vlaneseq
      %v931 = vshrl.u32 %v930, 7
      %v932 = vsub.s32 %v929, %v931
      %v933 = vrot.slane %v919, %v932
      %v934 = vcombine.high %v926, %v926
      %v935 = vcombine.high %v933, %v933
      %v937 = vunpack.c.l.s4 1983009808
      %v938 = vunpack.c.0.s8 %v937
      %v939 = vlaneseq
      %v940 = vshrl.u32 %v939, 7
      %v941 = vsub.s32 %v938, %v940
      %v942 = vrot.slane %v340, %v941
      %v943 = vcombine.high %v341, %v341
      %v945 = vunpack.c.l.s4 1983009808
      %v946 = vunpack.c.0.s8 %v945
      %v947 = vlaneseq
      %v948 = vshrl.u32 %v947, 7
      %v949 = vsub.s32 %v946, %v948
      %v950 = vrot.slane %v341, %v949
      %v952 = vunpack.c.l.s4 1983009808
      %v953 = vunpack.c.0.s8 %v952
      %v954 = vlaneseq
      %v955 = vshrl.u32 %v954, 7
      %v956 = vsub.s32 %v953, %v955
      %v957 = vrot.slane %v943, %v956
      %v958 = vcombine.high %v950, %v950
      %v959 = vcombine.high %v957, %v957
      %v960 = vcombine.high %v342, %v342
      %v962 = vunpack.c.l.s4 1983009808
      %v963 = vunpack.c.0.s8 %v962
      %v964 = vlaneseq
      %v965 = vshrl.u32 %v964, 7
      %v966 = vsub.s32 %v963, %v965
      %v967 = vrot.slane %v342, %v966
      %v969 = vunpack.c.l.s4 1983009808
      %v970 = vunpack.c.0.s8 %v969
      %v971 = vlaneseq
      %v972 = vshrl.u32 %v971, 7
      %v973 = vsub.s32 %v970, %v972
      %v974 = vrot.slane %v960, %v973
      %v975 = vcombine.high %v967, %v967
      %v976 = vcombine.high %v974, %v974
      %v978 = vunpack.c.l.s4 1983009808
      %v979 = vunpack.c.0.s8 %v978
      %v980 = vlaneseq
      %v981 = vshrl.u32 %v980, 7
      %v982 = vsub.s32 %v979, %v981
      %v983 = vrot.slane %v343, %v982
      %v984 = vcombine.high %v344, %v344
      %v986 = vunpack.c.l.s4 1983009808
      %v987 = vunpack.c.0.s8 %v986
      %v988 = vlaneseq
      %v989 = vshrl.u32 %v988, 7
      %v990 = vsub.s32 %v987, %v989
      %v991 = vrot.slane %v344, %v990
      %v993 = vunpack.c.l.s4 1983009808
      %v994 = vunpack.c.0.s8 %v993
      %v995 = vlaneseq
      %v996 = vshrl.u32 %v995, 7
      %v997 = vsub.s32 %v994, %v996
      %v998 = vrot.slane %v984, %v997
      %v999 = vcombine.high %v991, %v991
      %v1000 = vcombine.high %v998, %v998
      %v1001 = vcombine.high %v345, %v345
      %v1003 = vunpack.c.l.s4 1983009808
      %v1004 = vunpack.c.0.s8 %v1003
      %v1005 = vlaneseq
      %v1006 = vshrl.u32 %v1005, 7
      %v1007 = vsub.s32 %v1004, %v1006
      %v1008 = vrot.slane %v345, %v1007
      %v1010 = vunpack.c.l.s4 1983009808
      %v1011 = vunpack.c.0.s8 %v1010
      %v1012 = vlaneseq
      %v1013 = vshrl.u32 %v1012, 7
      %v1014 = vsub.s32 %v1011, %v1013
      %v1015 = vrot.slane %v1001, %v1014
      %v1016 = vcombine.high %v1008, %v1008
      %v1017 = vcombine.high %v1015, %v1015
      %v1019 = vunpack.c.l.s4 1983009808
      %v1020 = vunpack.c.0.s8 %v1019
      %v1021 = vlaneseq
      %v1022 = vshrl.u32 %v1021, 7
      %v1023 = vsub.s32 %v1020, %v1022
      %v1024 = vrot.slane %v346, %v1023
      %v1025 = vcombine.high %v347, %v347
      %v1027 = vunpack.c.l.s4 1983009808
      %v1028 = vunpack.c.0.s8 %v1027
      %v1029 = vlaneseq
      %v1030 = vshrl.u32 %v1029, 7
      %v1031 = vsub.s32 %v1028, %v1030
      %v1032 = vrot.slane %v347, %v1031
      %v1034 = vunpack.c.l.s4 1983009808
      %v1035 = vunpack.c.0.s8 %v1034
      %v1036 = vlaneseq
      %v1037 = vshrl.u32 %v1036, 7
      %v1038 = vsub.s32 %v1035, %v1037
      %v1039 = vrot.slane %v1025, %v1038
      %v1040 = vcombine.high %v1032, %v1032
      %v1041 = vcombine.high %v1039, %v1039
      %v1042 = vcombine.high %v348, %v348
      %v1044 = vunpack.c.l.s4 1983009808
      %v1045 = vunpack.c.0.s8 %v1044
      %v1046 = vlaneseq
      %v1047 = vshrl.u32 %v1046, 7
      %v1048 = vsub.s32 %v1045, %v1047
      %v1049 = vrot.slane %v348, %v1048
      %v1051 = vunpack.c.l.s4 1983009808
      %v1052 = vunpack.c.0.s8 %v1051
      %v1053 = vlaneseq
      %v1054 = vshrl.u32 %v1053, 7
      %v1055 = vsub.s32 %v1052, %v1054
      %v1056 = vrot.slane %v1042, %v1055
      %v1057 = vcombine.high %v1049, %v1049
      %v1058 = vcombine.high %v1056, %v1056
      %v1060 = vunpack.c.l.s4 1983009808
      %v1061 = vunpack.c.0.s8 %v1060
      %v1062 = vlaneseq
      %v1063 = vshrl.u32 %v1062, 7
      %v1064 = vsub.s32 %v1061, %v1063
      %v1065 = vrot.slane %v349, %v1064
      %v1066 = vcombine.high %v350, %v350
      %v1068 = vunpack.c.l.s4 1983009808
      %v1069 = vunpack.c.0.s8 %v1068
      %v1070 = vlaneseq
      %v1071 = vshrl.u32 %v1070, 7
      %v1072 = vsub.s32 %v1069, %v1071
      %v1073 = vrot.slane %v350, %v1072
      %v1075 = vunpack.c.l.s4 1983009808
      %v1076 = vunpack.c.0.s8 %v1075
      %v1077 = vlaneseq
      %v1078 = vshrl.u32 %v1077, 7
      %v1079 = vsub.s32 %v1076, %v1078
      %v1080 = vrot.slane %v1066, %v1079
      %v1081 = vcombine.high %v1073, %v1073
      %v1082 = vcombine.high %v1080, %v1080
      %v1083 = vcombine.high %v351, %v351
      %v1085 = vunpack.c.l.s4 1983009808
      %v1086 = vunpack.c.0.s8 %v1085
      %v1087 = vlaneseq
      %v1088 = vshrl.u32 %v1087, 7
      %v1089 = vsub.s32 %v1086, %v1088
      %v1090 = vrot.slane %v351, %v1089
      %v1092 = vunpack.c.l.s4 1983009808
      %v1093 = vunpack.c.0.s8 %v1092
      %v1094 = vlaneseq
      %v1095 = vshrl.u32 %v1094, 7
      %v1096 = vsub.s32 %v1093, %v1095
      %v1097 = vrot.slane %v1083, %v1096
      %v1098 = vcombine.high %v1090, %v1090
      %v1099 = vcombine.high %v1097, %v1097
      %v1101 = vunpack.c.l.s4 1983009808
      %v1102 = vunpack.c.0.s8 %v1101
      %v1103 = vlaneseq
      %v1104 = vshrl.u32 %v1103, 7
      %v1105 = vsub.s32 %v1102, %v1104
      %v1106 = vrot.slane %v352, %v1105
      %v1107 = vcombine.high %v353, %v353
      %v1109 = vunpack.c.l.s4 1983009808
      %v1110 = vunpack.c.0.s8 %v1109
      %v1111 = vlaneseq
      %v1112 = vshrl.u32 %v1111, 7
      %v1113 = vsub.s32 %v1110, %v1112
      %v1114 = vrot.slane %v353, %v1113
      %v1116 = vunpack.c.l.s4 1983009808
      %v1117 = vunpack.c.0.s8 %v1116
      %v1118 = vlaneseq
      %v1119 = vshrl.u32 %v1118, 7
      %v1120 = vsub.s32 %v1117, %v1119
      %v1121 = vrot.slane %v1107, %v1120
      %v1122 = vcombine.high %v1114, %v1114
      %v1123 = vcombine.high %v1121, %v1121
      %v1124 = vcombine.high %v354, %v354
      %v1126 = vunpack.c.l.s4 1983009808
      %v1127 = vunpack.c.0.s8 %v1126
      %v1128 = vlaneseq
      %v1129 = vshrl.u32 %v1128, 7
      %v1130 = vsub.s32 %v1127, %v1129
      %v1131 = vrot.slane %v354, %v1130
      %v1133 = vunpack.c.l.s4 1983009808
      %v1134 = vunpack.c.0.s8 %v1133
      %v1135 = vlaneseq
      %v1136 = vshrl.u32 %v1135, 7
      %v1137 = vsub.s32 %v1134, %v1136
      %v1138 = vrot.slane %v1124, %v1137
      %v1139 = vcombine.high %v1131, %v1131
      %v1140 = vcombine.high %v1138, %v1138
      %v1142 = vunpack.c.l.s4 1983009808
      %v1143 = vunpack.c.0.s8 %v1142
      %v1144 = vlaneseq
      %v1145 = vshrl.u32 %v1144, 7
      %v1146 = vsub.s32 %v1143, %v1145
      %v1147 = vrot.slane %v355, %v1146
      %v1310 = vld [vmem:[%s1] sm:$0x1]
      %v1312 = vlaneseq
      %v1313 = vshrl.u32 %v1312, 7
      %v1314 = vsub.s32 0, %v1313
      %v1315 = vrot.slane %v1310, %v1314
      %v1316 = vcombine.high %v1315, %v1315
      %v1318 = vunpack.c.l.s4 1983009808
      %v1319 = vunpack.c.0.s8 %v1318
      %v1320 = vlaneseq
      %v1321 = vshrl.u32 %v1320, 7
      %v1322 = vsub.s32 %v1319, %v1321
      %v1323 = vrot.slane %v1315, %v1322
      %v1325 = vunpack.c.l.s4 1983009808
      %v1326 = vunpack.c.0.s8 %v1325
      %v1327 = vlaneseq
      %v1328 = vshrl.u32 %v1327, 7
      %v1329 = vsub.s32 %v1326, %v1328
      %v1330 = vrot.slane %v1316, %v1329
      %v1331 = vcombine.high %v1323, %v1323
      %v1332 = vcombine.high %v1330, %v1330
      %v1337 = vmul.f32 %v417, %v1323
      %v1338 = vmul.f32 %v425, %v1331
      %v1339 = vmul.f32 %v424, %v1330
      %v1340 = vmul.f32 %v426, %v1332
      %v1341 = vmul.f32 %v434, %v1323
      %v1342 = vmul.f32 %v442, %v1331
      %v1343 = vmul.f32 %v441, %v1330
      %v1344 = vmul.f32 %v443, %v1332
      %v1345 = vmul.f32 %v450, %v1323
      %v1346 = vmul.f32 %v458, %v1331
      %v1347 = vmul.f32 %v466, %v1330
      %v1348 = vmul.f32 %v465, %v1332
      %v1349 = vmul.f32 %v467, %v1323
      %v1350 = vmul.f32 %v475, %v1331
      %v1351 = vmul.f32 %v483, %v1330
      %v1352 = vmul.f32 %v482, %v1332
      %v1353 = vmul.f32 %v484, %v1323
      %v1354 = vmul.f32 %v491, %v1331
      %v1355 = vmul.f32 %v499, %v1330
      %v1356 = vmul.f32 %v507, %v1332
      %v1357 = vmul.f32 %v506, %v1323
      %v1358 = vmul.f32 %v508, %v1331
      %v1359 = vmul.f32 %v516, %v1330
      %v1360 = vmul.f32 %v524, %v1332
      %v1361 = vmul.f32 %v523, %v1323
      %v1362 = vmul.f32 %v525, %v1331
      %v1363 = vmul.f32 %v532, %v1330
      %v1364 = vmul.f32 %v540, %v1332
      %v1365 = vmul.f32 %v548, %v1323
      %v1366 = vmul.f32 %v547, %v1331
      %v1367 = vmul.f32 %v549, %v1330
      %v1368 = vmul.f32 %v557, %v1332
      %v1369 = vmul.f32 %v565, %v1323
      %v1370 = vmul.f32 %v564, %v1331
      %v1371 = vmul.f32 %v566, %v1330
      %v1372 = vmul.f32 %v573, %v1332
      %v1373 = vmul.f32 %v581, %v1323
      %v1374 = vmul.f32 %v589, %v1331
      %v1375 = vmul.f32 %v588, %v1330
      %v1376 = vmul.f32 %v590, %v1332
      %v1377 = vmul.f32 %v598, %v1323
      %v1378 = vmul.f32 %v606, %v1331
      %v1379 = vmul.f32 %v605, %v1330
      %v1380 = vmul.f32 %v607, %v1332
      %v1381 = vmul.f32 %v614, %v1323
      %v1382 = vmul.f32 %v622, %v1331
      %v1383 = vmul.f32 %v630, %v1330
      %v1384 = vmul.f32 %v629, %v1332
      %v1385 = vmul.f32 %v631, %v1323
      %v1386 = vmul.f32 %v639, %v1331
      %v1387 = vmul.f32 %v647, %v1330
      %v1388 = vmul.f32 %v646, %v1332
      %v1389 = vmul.f32 %v648, %v1323
      %v1390 = vmul.f32 %v655, %v1331
      %v1391 = vmul.f32 %v663, %v1330
      %v1392 = vmul.f32 %v671, %v1332
      %v1393 = vmul.f32 %v670, %v1323
      %v1394 = vmul.f32 %v672, %v1331
      %v1395 = vmul.f32 %v680, %v1330
      %v1396 = vmul.f32 %v688, %v1332
      %v1397 = vmul.f32 %v687, %v1323
      %v1398 = vmul.f32 %v689, %v1331
      %v1399 = vmul.f32 %v696, %v1330
      %v1400 = vmul.f32 %v704, %v1332
      %v1401 = vmul.f32 %v712, %v1323
      %v1402 = vmul.f32 %v711, %v1331
      %v1403 = vmul.f32 %v713, %v1330
      %v1404 = vmul.f32 %v721, %v1332
      %v1405 = vmul.f32 %v729, %v1323
      %v1406 = vmul.f32 %v728, %v1331
      %v1407 = vmul.f32 %v730, %v1330
      %v1408 = vmul.f32 %v737, %v1332
      %v1409 = vmul.f32 %v745, %v1323
      %v1410 = vmul.f32 %v753, %v1331
      %v1411 = vmul.f32 %v752, %v1330
      %v1412 = vmul.f32 %v754, %v1332
      %v1413 = vmul.f32 %v762, %v1323
      %v1414 = vmul.f32 %v770, %v1331
      %v1415 = vmul.f32 %v769, %v1330
      %v1416 = vmul.f32 %v771, %v1332
      %v1417 = vmul.f32 %v778, %v1323
      %v1418 = vmul.f32 %v786, %v1331
      %v1419 = vmul.f32 %v794, %v1330
      %v1420 = vmul.f32 %v793, %v1332
      %v1421 = vmul.f32 %v795, %v1323
      %v1422 = vmul.f32 %v803, %v1331
      %v1423 = vmul.f32 %v811, %v1330
      %v1424 = vmul.f32 %v810, %v1332
      %v1425 = vmul.f32 %v812, %v1323
      %v1426 = vmul.f32 %v819, %v1331
      %v1427 = vmul.f32 %v827, %v1330
      %v1428 = vmul.f32 %v835, %v1332
      %v1429 = vmul.f32 %v834, %v1323
      %v1430 = vmul.f32 %v836, %v1331
      %v1431 = vmul.f32 %v844, %v1330
      %v1432 = vmul.f32 %v852, %v1332
      %v1433 = vmul.f32 %v851, %v1323
      %v1434 = vmul.f32 %v853, %v1331
      %v1435 = vmul.f32 %v860, %v1330
      %v1436 = vmul.f32 %v868, %v1332
      %v1437 = vmul.f32 %v876, %v1323
      %v1438 = vmul.f32 %v875, %v1331
      %v1439 = vmul.f32 %v877, %v1330
      %v1440 = vmul.f32 %v885, %v1332
      %v1441 = vmul.f32 %v893, %v1323
      %v1442 = vmul.f32 %v892, %v1331
      %v1443 = vmul.f32 %v894, %v1330
      %v1444 = vmul.f32 %v901, %v1332
      %v1445 = vmul.f32 %v909, %v1323
      %v1446 = vmul.f32 %v917, %v1331
      %v1447 = vmul.f32 %v916, %v1330
      %v1448 = vmul.f32 %v918, %v1332
      %v1449 = vmul.f32 %v926, %v1323
      %v1450 = vmul.f32 %v934, %v1331
      %v1451 = vmul.f32 %v933, %v1330
      %v1452 = vmul.f32 %v935, %v1332
      %v1453 = vmul.f32 %v942, %v1323
      %v1454 = vmul.f32 %v950, %v1331
      %v1455 = vmul.f32 %v958, %v1330
      %v1456 = vmul.f32 %v957, %v1332
      %v1457 = vmul.f32 %v959, %v1323
      %v1458 = vmul.f32 %v967, %v1331
      %v1459 = vmul.f32 %v975, %v1330
      %v1460 = vmul.f32 %v974, %v1332
      %v1461 = vmul.f32 %v976, %v1323
      %v1462 = vmul.f32 %v983, %v1331
      %v1463 = vmul.f32 %v991, %v1330
      %v1464 = vmul.f32 %v999, %v1332
      %v1465 = vmul.f32 %v998, %v1323
      %v1466 = vmul.f32 %v1000, %v1331
      %v1467 = vmul.f32 %v1008, %v1330
      %v1468 = vmul.f32 %v1016, %v1332
      %v1469 = vmul.f32 %v1015, %v1323
      %v1470 = vmul.f32 %v1017, %v1331
      %v1471 = vmul.f32 %v1024, %v1330
      %v1472 = vmul.f32 %v1032, %v1332
      %v1473 = vmul.f32 %v1040, %v1323
      %v1474 = vmul.f32 %v1039, %v1331
      %v1475 = vmul.f32 %v1041, %v1330
      %v1476 = vmul.f32 %v1049, %v1332
      %v1477 = vmul.f32 %v1057, %v1323
      %v1478 = vmul.f32 %v1056, %v1331
      %v1479 = vmul.f32 %v1058, %v1330
      %v1480 = vmul.f32 %v1065, %v1332
      %v1481 = vmul.f32 %v1073, %v1323
      %v1482 = vmul.f32 %v1081, %v1331
      %v1483 = vmul.f32 %v1080, %v1330
      %v1484 = vmul.f32 %v1082, %v1332
      %v1485 = vmul.f32 %v1090, %v1323
      %v1486 = vmul.f32 %v1098, %v1331
      %v1487 = vmul.f32 %v1097, %v1330
      %v1488 = vmul.f32 %v1099, %v1332
      %v1489 = vmul.f32 %v1106, %v1323
      %v1490 = vmul.f32 %v1114, %v1331
      %v1491 = vmul.f32 %v1122, %v1330
      %v1492 = vmul.f32 %v1121, %v1332
      %v1493 = vmul.f32 %v1123, %v1323
      %v1494 = vmul.f32 %v1131, %v1331
      %v1495 = vmul.f32 %v1139, %v1330
      %v1496 = vmul.f32 %v1138, %v1332
      %v1497 = vmul.f32 %v1140, %v1323
      %v1498 = vmul.f32 %v1147, %v1331
      %v1499 = vld [vmem:[%s2] sm:$0x1]
      %v1501 = vlaneseq
      %v1502 = vshrl.u32 %v1501, 7
      %v1503 = vsub.s32 0, %v1502
      %v1504 = vrot.slane %v1499, %v1503
      %v1505 = vcombine.high %v1504, %v1504
      %v1507 = vunpack.c.l.s4 1983009808
      %v1508 = vunpack.c.0.s8 %v1507
      %v1509 = vlaneseq
      %v1510 = vshrl.u32 %v1509, 7
      %v1511 = vsub.s32 %v1508, %v1510
      %v1512 = vrot.slane %v1504, %v1511
      %v1514 = vunpack.c.l.s4 1983009808
      %v1515 = vunpack.c.0.s8 %v1514
      %v1516 = vlaneseq
      %v1517 = vshrl.u32 %v1516, 7
      %v1518 = vsub.s32 %v1515, %v1517
      %v1519 = vrot.slane %v1505, %v1518
      %v1520 = vcombine.high %v1512, %v1512
      %v1521 = vcombine.high %v1519, %v1519
      %v1526 = vadd.f32 %v1337, %v1512
      %v1527 = vadd.f32 %v1338, %v1520
      %v1528 = vadd.f32 %v1339, %v1519
      %v1529 = vadd.f32 %v1340, %v1521
      %v1530 = vadd.f32 %v1341, %v1512
      %v1531 = vadd.f32 %v1342, %v1520
      %v1532 = vadd.f32 %v1343, %v1519
      %v1533 = vadd.f32 %v1344, %v1521
      %v1534 = vadd.f32 %v1345, %v1512
      %v1535 = vadd.f32 %v1346, %v1520
      %v1536 = vadd.f32 %v1347, %v1519
      %v1537 = vadd.f32 %v1348, %v1521
      %v1538 = vadd.f32 %v1349, %v1512
      %v1539 = vadd.f32 %v1350, %v1520
      %v1540 = vadd.f32 %v1351, %v1519
      %v1541 = vadd.f32 %v1352, %v1521
      %v1542 = vadd.f32 %v1353, %v1512
      %v1543 = vadd.f32 %v1354, %v1520
      %v1544 = vadd.f32 %v1355, %v1519
      %v1545 = vadd.f32 %v1356, %v1521
      %v1546 = vadd.f32 %v1357, %v1512
      %v1547 = vadd.f32 %v1358, %v1520
      %v1548 = vadd.f32 %v1359, %v1519
      %v1549 = vadd.f32 %v1360, %v1521
      %v1550 = vadd.f32 %v1361, %v1512
      %v1551 = vadd.f32 %v1362, %v1520
      %v1552 = vadd.f32 %v1363, %v1519
      %v1553 = vadd.f32 %v1364, %v1521
      %v1554 = vadd.f32 %v1365, %v1512
      %v1555 = vadd.f32 %v1366, %v1520
      %v1556 = vadd.f32 %v1367, %v1519
      %v1557 = vadd.f32 %v1368, %v1521
      %v1558 = vadd.f32 %v1369, %v1512
      %v1559 = vadd.f32 %v1370, %v1520
      %v1560 = vadd.f32 %v1371, %v1519
      %v1561 = vadd.f32 %v1372, %v1521
      %v1562 = vadd.f32 %v1373, %v1512
      %v1563 = vadd.f32 %v1374, %v1520
      %v1564 = vadd.f32 %v1375, %v1519
      %v1565 = vadd.f32 %v1376, %v1521
      %v1566 = vadd.f32 %v1377, %v1512
      %v1567 = vadd.f32 %v1378, %v1520
      %v1568 = vadd.f32 %v1379, %v1519
      %v1569 = vadd.f32 %v1380, %v1521
      %v1570 = vadd.f32 %v1381, %v1512
      %v1571 = vadd.f32 %v1382, %v1520
      %v1572 = vadd.f32 %v1383, %v1519
      %v1573 = vadd.f32 %v1384, %v1521
      %v1574 = vadd.f32 %v1385, %v1512
      %v1575 = vadd.f32 %v1386, %v1520
      %v1576 = vadd.f32 %v1387, %v1519
      %v1577 = vadd.f32 %v1388, %v1521
      %v1578 = vadd.f32 %v1389, %v1512
      %v1579 = vadd.f32 %v1390, %v1520
      %v1580 = vadd.f32 %v1391, %v1519
      %v1581 = vadd.f32 %v1392, %v1521
      %v1582 = vadd.f32 %v1393, %v1512
      %v1583 = vadd.f32 %v1394, %v1520
      %v1584 = vadd.f32 %v1395, %v1519
      %v1585 = vadd.f32 %v1396, %v1521
      %v1586 = vadd.f32 %v1397, %v1512
      %v1587 = vadd.f32 %v1398, %v1520
      %v1588 = vadd.f32 %v1399, %v1519
      %v1589 = vadd.f32 %v1400, %v1521
      %v1590 = vadd.f32 %v1401, %v1512
      %v1591 = vadd.f32 %v1402, %v1520
      %v1592 = vadd.f32 %v1403, %v1519
      %v1593 = vadd.f32 %v1404, %v1521
      %v1594 = vadd.f32 %v1405, %v1512
      %v1595 = vadd.f32 %v1406, %v1520
      %v1596 = vadd.f32 %v1407, %v1519
      %v1597 = vadd.f32 %v1408, %v1521
      %v1598 = vadd.f32 %v1409, %v1512
      %v1599 = vadd.f32 %v1410, %v1520
      %v1600 = vadd.f32 %v1411, %v1519
      %v1601 = vadd.f32 %v1412, %v1521
      %v1602 = vadd.f32 %v1413, %v1512
      %v1603 = vadd.f32 %v1414, %v1520
      %v1604 = vadd.f32 %v1415, %v1519
      %v1605 = vadd.f32 %v1416, %v1521
      %v1606 = vadd.f32 %v1417, %v1512
      %v1607 = vadd.f32 %v1418, %v1520
      %v1608 = vadd.f32 %v1419, %v1519
      %v1609 = vadd.f32 %v1420, %v1521
      %v1610 = vadd.f32 %v1421, %v1512
      %v1611 = vadd.f32 %v1422, %v1520
      %v1612 = vadd.f32 %v1423, %v1519
      %v1613 = vadd.f32 %v1424, %v1521
      %v1614 = vadd.f32 %v1425, %v1512
      %v1615 = vadd.f32 %v1426, %v1520
      %v1616 = vadd.f32 %v1427, %v1519
      %v1617 = vadd.f32 %v1428, %v1521
      %v1618 = vadd.f32 %v1429, %v1512
      %v1619 = vadd.f32 %v1430, %v1520
      %v1620 = vadd.f32 %v1431, %v1519
      %v1621 = vadd.f32 %v1432, %v1521
      %v1622 = vadd.f32 %v1433, %v1512
      %v1623 = vadd.f32 %v1434, %v1520
      %v1624 = vadd.f32 %v1435, %v1519
      %v1625 = vadd.f32 %v1436, %v1521
      %v1626 = vadd.f32 %v1437, %v1512
      %v1627 = vadd.f32 %v1438, %v1520
      %v1628 = vadd.f32 %v1439, %v1519
      %v1629 = vadd.f32 %v1440, %v1521
      %v1630 = vadd.f32 %v1441, %v1512
      %v1631 = vadd.f32 %v1442, %v1520
      %v1632 = vadd.f32 %v1443, %v1519
      %v1633 = vadd.f32 %v1444, %v1521
      %v1634 = vadd.f32 %v1445, %v1512
      %v1635 = vadd.f32 %v1446, %v1520
      %v1636 = vadd.f32 %v1447, %v1519
      %v1637 = vadd.f32 %v1448, %v1521
      %v1638 = vadd.f32 %v1449, %v1512
      %v1639 = vadd.f32 %v1450, %v1520
      %v1640 = vadd.f32 %v1451, %v1519
      %v1641 = vadd.f32 %v1452, %v1521
      %v1642 = vadd.f32 %v1453, %v1512
      %v1643 = vadd.f32 %v1454, %v1520
      %v1644 = vadd.f32 %v1455, %v1519
      %v1645 = vadd.f32 %v1456, %v1521
      %v1646 = vadd.f32 %v1457, %v1512
      %v1647 = vadd.f32 %v1458, %v1520
      %v1648 = vadd.f32 %v1459, %v1519
      %v1649 = vadd.f32 %v1460, %v1521
      %v1650 = vadd.f32 %v1461, %v1512
      %v1651 = vadd.f32 %v1462, %v1520
      %v1652 = vadd.f32 %v1463, %v1519
      %v1653 = vadd.f32 %v1464, %v1521
      %v1654 = vadd.f32 %v1465, %v1512
      %v1655 = vadd.f32 %v1466, %v1520
      %v1656 = vadd.f32 %v1467, %v1519
      %v1657 = vadd.f32 %v1468, %v1521
      %v1658 = vadd.f32 %v1469, %v1512
      %v1659 = vadd.f32 %v1470, %v1520
      %v1660 = vadd.f32 %v1471, %v1519
      %v1661 = vadd.f32 %v1472, %v1521
      %v1662 = vadd.f32 %v1473, %v1512
      %v1663 = vadd.f32 %v1474, %v1520
      %v1664 = vadd.f32 %v1475, %v1519
      %v1665 = vadd.f32 %v1476, %v1521
      %v1666 = vadd.f32 %v1477, %v1512
      %v1667 = vadd.f32 %v1478, %v1520
      %v1668 = vadd.f32 %v1479, %v1519
      %v1669 = vadd.f32 %v1480, %v1521
      %v1670 = vadd.f32 %v1481, %v1512
      %v1671 = vadd.f32 %v1482, %v1520
      %v1672 = vadd.f32 %v1483, %v1519
      %v1673 = vadd.f32 %v1484, %v1521
      %v1674 = vadd.f32 %v1485, %v1512
      %v1675 = vadd.f32 %v1486, %v1520
      %v1676 = vadd.f32 %v1487, %v1519
      %v1677 = vadd.f32 %v1488, %v1521
      %v1678 = vadd.f32 %v1489, %v1512
      %v1679 = vadd.f32 %v1490, %v1520
      %v1680 = vadd.f32 %v1491, %v1519
      %v1681 = vadd.f32 %v1492, %v1521
      %v1682 = vadd.f32 %v1493, %v1512
      %v1683 = vadd.f32 %v1494, %v1520
      %v1684 = vadd.f32 %v1495, %v1519
      %v1685 = vadd.f32 %v1496, %v1521
      %v1686 = vadd.f32 %v1497, %v1512
      %v1687 = vadd.f32 %v1498, %v1520
      %vm1688 = vcmp.gt.f32.partialorder %v1526, 0.0
      %vm1689 = vcmp.gt.f32.partialorder %v1527, 0.0
      %vm1690 = vcmp.gt.f32.partialorder %v1528, 0.0
      %vm1691 = vcmp.gt.f32.partialorder %v1529, 0.0
      %vm1692 = vcmp.gt.f32.partialorder %v1530, 0.0
      %vm1693 = vcmp.gt.f32.partialorder %v1531, 0.0
      %vm1694 = vcmp.gt.f32.partialorder %v1532, 0.0
      %vm1695 = vcmp.gt.f32.partialorder %v1533, 0.0
      %vm1696 = vcmp.gt.f32.partialorder %v1534, 0.0
      %vm1697 = vcmp.gt.f32.partialorder %v1535, 0.0
      %vm1698 = vcmp.gt.f32.partialorder %v1536, 0.0
      %vm1699 = vcmp.gt.f32.partialorder %v1537, 0.0
      %vm1700 = vcmp.gt.f32.partialorder %v1538, 0.0
      %vm1701 = vcmp.gt.f32.partialorder %v1539, 0.0
      %vm1702 = vcmp.gt.f32.partialorder %v1540, 0.0
      %vm1703 = vcmp.gt.f32.partialorder %v1541, 0.0
      %vm1704 = vcmp.gt.f32.partialorder %v1542, 0.0
      %vm1705 = vcmp.gt.f32.partialorder %v1543, 0.0
      %vm1706 = vcmp.gt.f32.partialorder %v1544, 0.0
      %vm1707 = vcmp.gt.f32.partialorder %v1545, 0.0
      %vm1708 = vcmp.gt.f32.partialorder %v1546, 0.0
      %vm1709 = vcmp.gt.f32.partialorder %v1547, 0.0
      %vm1710 = vcmp.gt.f32.partialorder %v1548, 0.0
      %vm1711 = vcmp.gt.f32.partialorder %v1549, 0.0
      %vm1712 = vcmp.gt.f32.partialorder %v1550, 0.0
      %vm1713 = vcmp.gt.f32.partialorder %v1551, 0.0
      %vm1714 = vcmp.gt.f32.partialorder %v1552, 0.0
      %vm1715 = vcmp.gt.f32.partialorder %v1553, 0.0
      %vm1716 = vcmp.gt.f32.partialorder %v1554, 0.0
      %vm1717 = vcmp.gt.f32.partialorder %v1555, 0.0
      %vm1718 = vcmp.gt.f32.partialorder %v1556, 0.0
      %vm1719 = vcmp.gt.f32.partialorder %v1557, 0.0
      %vm1720 = vcmp.gt.f32.partialorder %v1558, 0.0
      %vm1721 = vcmp.gt.f32.partialorder %v1559, 0.0
      %vm1722 = vcmp.gt.f32.partialorder %v1560, 0.0
      %vm1723 = vcmp.gt.f32.partialorder %v1561, 0.0
      %vm1724 = vcmp.gt.f32.partialorder %v1562, 0.0
      %vm1725 = vcmp.gt.f32.partialorder %v1563, 0.0
      %vm1726 = vcmp.gt.f32.partialorder %v1564, 0.0
      %vm1727 = vcmp.gt.f32.partialorder %v1565, 0.0
      %vm1728 = vcmp.gt.f32.partialorder %v1566, 0.0
      %vm1729 = vcmp.gt.f32.partialorder %v1567, 0.0
      %vm1730 = vcmp.gt.f32.partialorder %v1568, 0.0
      %vm1731 = vcmp.gt.f32.partialorder %v1569, 0.0
      %vm1732 = vcmp.gt.f32.partialorder %v1570, 0.0
      %vm1733 = vcmp.gt.f32.partialorder %v1571, 0.0
      %vm1734 = vcmp.gt.f32.partialorder %v1572, 0.0
      %vm1735 = vcmp.gt.f32.partialorder %v1573, 0.0
      %vm1736 = vcmp.gt.f32.partialorder %v1574, 0.0
      %vm1737 = vcmp.gt.f32.partialorder %v1575, 0.0
      %vm1738 = vcmp.gt.f32.partialorder %v1576, 0.0
      %vm1739 = vcmp.gt.f32.partialorder %v1577, 0.0
      %vm1740 = vcmp.gt.f32.partialorder %v1578, 0.0
      %vm1741 = vcmp.gt.f32.partialorder %v1579, 0.0
      %vm1742 = vcmp.gt.f32.partialorder %v1580, 0.0
      %vm1743 = vcmp.gt.f32.partialorder %v1581, 0.0
      %vm1744 = vcmp.gt.f32.partialorder %v1582, 0.0
      %vm1745 = vcmp.gt.f32.partialorder %v1583, 0.0
      %vm1746 = vcmp.gt.f32.partialorder %v1584, 0.0
      %vm1747 = vcmp.gt.f32.partialorder %v1585, 0.0
      %vm1748 = vcmp.gt.f32.partialorder %v1586, 0.0
      %vm1749 = vcmp.gt.f32.partialorder %v1587, 0.0
      %vm1750 = vcmp.gt.f32.partialorder %v1588, 0.0
      %vm1751 = vcmp.gt.f32.partialorder %v1589, 0.0
      %vm1752 = vcmp.gt.f32.partialorder %v1590, 0.0
      %vm1753 = vcmp.gt.f32.partialorder %v1591, 0.0
      %vm1754 = vcmp.gt.f32.partialorder %v1592, 0.0
      %vm1755 = vcmp.gt.f32.partialorder %v1593, 0.0
      %vm1756 = vcmp.gt.f32.partialorder %v1594, 0.0
      %vm1757 = vcmp.gt.f32.partialorder %v1595, 0.0
      %vm1758 = vcmp.gt.f32.partialorder %v1596, 0.0
      %vm1759 = vcmp.gt.f32.partialorder %v1597, 0.0
      %vm1760 = vcmp.gt.f32.partialorder %v1598, 0.0
      %vm1761 = vcmp.gt.f32.partialorder %v1599, 0.0
      %vm1762 = vcmp.gt.f32.partialorder %v1600, 0.0
      %vm1763 = vcmp.gt.f32.partialorder %v1601, 0.0
      %vm1764 = vcmp.gt.f32.partialorder %v1602, 0.0
      %vm1765 = vcmp.gt.f32.partialorder %v1603, 0.0
      %vm1766 = vcmp.gt.f32.partialorder %v1604, 0.0
      %vm1767 = vcmp.gt.f32.partialorder %v1605, 0.0
      %vm1768 = vcmp.gt.f32.partialorder %v1606, 0.0
      %vm1769 = vcmp.gt.f32.partialorder %v1607, 0.0
      %vm1770 = vcmp.gt.f32.partialorder %v1608, 0.0
      %vm1771 = vcmp.gt.f32.partialorder %v1609, 0.0
      %vm1772 = vcmp.gt.f32.partialorder %v1610, 0.0
      %vm1773 = vcmp.gt.f32.partialorder %v1611, 0.0
      %vm1774 = vcmp.gt.f32.partialorder %v1612, 0.0
      %vm1775 = vcmp.gt.f32.partialorder %v1613, 0.0
      %vm1776 = vcmp.gt.f32.partialorder %v1614, 0.0
      %vm1777 = vcmp.gt.f32.partialorder %v1615, 0.0
      %vm1778 = vcmp.gt.f32.partialorder %v1616, 0.0
      %vm1779 = vcmp.gt.f32.partialorder %v1617, 0.0
      %vm1780 = vcmp.gt.f32.partialorder %v1618, 0.0
      %vm1781 = vcmp.gt.f32.partialorder %v1619, 0.0
      %vm1782 = vcmp.gt.f32.partialorder %v1620, 0.0
      %vm1783 = vcmp.gt.f32.partialorder %v1621, 0.0
      %vm1784 = vcmp.gt.f32.partialorder %v1622, 0.0
      %vm1785 = vcmp.gt.f32.partialorder %v1623, 0.0
      %vm1786 = vcmp.gt.f32.partialorder %v1624, 0.0
      %vm1787 = vcmp.gt.f32.partialorder %v1625, 0.0
      %vm1788 = vcmp.gt.f32.partialorder %v1626, 0.0
      %vm1789 = vcmp.gt.f32.partialorder %v1627, 0.0
      %vm1790 = vcmp.gt.f32.partialorder %v1628, 0.0
      %vm1791 = vcmp.gt.f32.partialorder %v1629, 0.0
      %vm1792 = vcmp.gt.f32.partialorder %v1630, 0.0
      %vm1793 = vcmp.gt.f32.partialorder %v1631, 0.0
      %vm1794 = vcmp.gt.f32.partialorder %v1632, 0.0
      %vm1795 = vcmp.gt.f32.partialorder %v1633, 0.0
      %vm1796 = vcmp.gt.f32.partialorder %v1634, 0.0
      %vm1797 = vcmp.gt.f32.partialorder %v1635, 0.0
      %vm1798 = vcmp.gt.f32.partialorder %v1636, 0.0
      %vm1799 = vcmp.gt.f32.partialorder %v1637, 0.0
      %vm1800 = vcmp.gt.f32.partialorder %v1638, 0.0
      %vm1801 = vcmp.gt.f32.partialorder %v1639, 0.0
      %vm1802 = vcmp.gt.f32.partialorder %v1640, 0.0
      %vm1803 = vcmp.gt.f32.partialorder %v1641, 0.0
      %vm1804 = vcmp.gt.f32.partialorder %v1642, 0.0
      %vm1805 = vcmp.gt.f32.partialorder %v1643, 0.0
      %vm1806 = vcmp.gt.f32.partialorder %v1644, 0.0
      %vm1807 = vcmp.gt.f32.partialorder %v1645, 0.0
      %vm1808 = vcmp.gt.f32.partialorder %v1646, 0.0
      %vm1809 = vcmp.gt.f32.partialorder %v1647, 0.0
      %vm1810 = vcmp.gt.f32.partialorder %v1648, 0.0
      %vm1811 = vcmp.gt.f32.partialorder %v1649, 0.0
      %vm1812 = vcmp.gt.f32.partialorder %v1650, 0.0
      %vm1813 = vcmp.gt.f32.partialorder %v1651, 0.0
      %vm1814 = vcmp.gt.f32.partialorder %v1652, 0.0
      %vm1815 = vcmp.gt.f32.partialorder %v1653, 0.0
      %vm1816 = vcmp.gt.f32.partialorder %v1654, 0.0
      %vm1817 = vcmp.gt.f32.partialorder %v1655, 0.0
      %vm1818 = vcmp.gt.f32.partialorder %v1656, 0.0
      %vm1819 = vcmp.gt.f32.partialorder %v1657, 0.0
      %vm1820 = vcmp.gt.f32.partialorder %v1658, 0.0
      %vm1821 = vcmp.gt.f32.partialorder %v1659, 0.0
      %vm1822 = vcmp.gt.f32.partialorder %v1660, 0.0
      %vm1823 = vcmp.gt.f32.partialorder %v1661, 0.0
      %vm1824 = vcmp.gt.f32.partialorder %v1662, 0.0
      %vm1825 = vcmp.gt.f32.partialorder %v1663, 0.0
      %vm1826 = vcmp.gt.f32.partialorder %v1664, 0.0
      %vm1827 = vcmp.gt.f32.partialorder %v1665, 0.0
      %vm1828 = vcmp.gt.f32.partialorder %v1666, 0.0
      %vm1829 = vcmp.gt.f32.partialorder %v1667, 0.0
      %vm1830 = vcmp.gt.f32.partialorder %v1668, 0.0
      %vm1831 = vcmp.gt.f32.partialorder %v1669, 0.0
      %vm1832 = vcmp.gt.f32.partialorder %v1670, 0.0
      %vm1833 = vcmp.gt.f32.partialorder %v1671, 0.0
      %vm1834 = vcmp.gt.f32.partialorder %v1672, 0.0
      %vm1835 = vcmp.gt.f32.partialorder %v1673, 0.0
      %vm1836 = vcmp.gt.f32.partialorder %v1674, 0.0
      %vm1837 = vcmp.gt.f32.partialorder %v1675, 0.0
      %vm1838 = vcmp.gt.f32.partialorder %v1676, 0.0
      %vm1839 = vcmp.gt.f32.partialorder %v1677, 0.0
      %vm1840 = vcmp.gt.f32.partialorder %v1678, 0.0
      %vm1841 = vcmp.gt.f32.partialorder %v1679, 0.0
      %vm1842 = vcmp.gt.f32.partialorder %v1680, 0.0
      %vm1843 = vcmp.gt.f32.partialorder %v1681, 0.0
      %vm1844 = vcmp.gt.f32.partialorder %v1682, 0.0
      %vm1845 = vcmp.gt.f32.partialorder %v1683, 0.0
      %vm1846 = vcmp.gt.f32.partialorder %v1684, 0.0
      %vm1847 = vcmp.gt.f32.partialorder %v1685, 0.0
      %vm1848 = vcmp.gt.f32.partialorder %v1686, 0.0
      %vm1849 = vcmp.gt.f32.partialorder %v1687, 0.0
      %v1850 = vmul.f32 %v1526, 0.01
      %v1851 = vmul.f32 %v1527, 0.01
      %v1852 = vmul.f32 %v1528, 0.01
      %v1853 = vmul.f32 %v1529, 0.01
      %v1854 = vmul.f32 %v1530, 0.01
      %v1855 = vmul.f32 %v1531, 0.01
      %v1856 = vmul.f32 %v1532, 0.01
      %v1857 = vmul.f32 %v1533, 0.01
      %v1858 = vmul.f32 %v1534, 0.01
      %v1859 = vmul.f32 %v1535, 0.01
      %v1860 = vmul.f32 %v1536, 0.01
      %v1861 = vmul.f32 %v1537, 0.01
      %v1862 = vmul.f32 %v1538, 0.01
      %v1863 = vmul.f32 %v1539, 0.01
      %v1864 = vmul.f32 %v1540, 0.01
      %v1865 = vmul.f32 %v1541, 0.01
      %v1866 = vmul.f32 %v1542, 0.01
      %v1867 = vmul.f32 %v1543, 0.01
      %v1868 = vmul.f32 %v1544, 0.01
      %v1869 = vmul.f32 %v1545, 0.01
      %v1870 = vmul.f32 %v1546, 0.01
      %v1871 = vmul.f32 %v1547, 0.01
      %v1872 = vmul.f32 %v1548, 0.01
      %v1873 = vmul.f32 %v1549, 0.01
      %v1874 = vmul.f32 %v1550, 0.01
      %v1875 = vmul.f32 %v1551, 0.01
      %v1876 = vmul.f32 %v1552, 0.01
      %v1877 = vmul.f32 %v1553, 0.01
      %v1878 = vmul.f32 %v1554, 0.01
      %v1879 = vmul.f32 %v1555, 0.01
      %v1880 = vmul.f32 %v1556, 0.01
      %v1881 = vmul.f32 %v1557, 0.01
      %v1882 = vmul.f32 %v1558, 0.01
      %v1883 = vmul.f32 %v1559, 0.01
      %v1884 = vmul.f32 %v1560, 0.01
      %v1885 = vmul.f32 %v1561, 0.01
      %v1886 = vmul.f32 %v1562, 0.01
      %v1887 = vmul.f32 %v1563, 0.01
      %v1888 = vmul.f32 %v1564, 0.01
      %v1889 = vmul.f32 %v1565, 0.01
      %v1890 = vmul.f32 %v1566, 0.01
      %v1891 = vmul.f32 %v1567, 0.01
      %v1892 = vmul.f32 %v1568, 0.01
      %v1893 = vmul.f32 %v1569, 0.01
      %v1894 = vmul.f32 %v1570, 0.01
      %v1895 = vmul.f32 %v1571, 0.01
      %v1896 = vmul.f32 %v1572, 0.01
      %v1897 = vmul.f32 %v1573, 0.01
      %v1898 = vmul.f32 %v1574, 0.01
      %v1899 = vmul.f32 %v1575, 0.01
      %v1900 = vmul.f32 %v1576, 0.01
      %v1901 = vmul.f32 %v1577, 0.01
      %v1902 = vmul.f32 %v1578, 0.01
      %v1903 = vmul.f32 %v1579, 0.01
      %v1904 = vmul.f32 %v1580, 0.01
      %v1905 = vmul.f32 %v1581, 0.01
      %v1906 = vmul.f32 %v1582, 0.01
      %v1907 = vmul.f32 %v1583, 0.01
      %v1908 = vmul.f32 %v1584, 0.01
      %v1909 = vmul.f32 %v1585, 0.01
      %v1910 = vmul.f32 %v1586, 0.01
      %v1911 = vmul.f32 %v1587, 0.01
      %v1912 = vmul.f32 %v1588, 0.01
      %v1913 = vmul.f32 %v1589, 0.01
      %v1914 = vmul.f32 %v1590, 0.01
      %v1915 = vmul.f32 %v1591, 0.01
      %v1916 = vmul.f32 %v1592, 0.01
      %v1917 = vmul.f32 %v1593, 0.01
      %v1918 = vmul.f32 %v1594, 0.01
      %v1919 = vmul.f32 %v1595, 0.01
      %v1920 = vmul.f32 %v1596, 0.01
      %v1921 = vmul.f32 %v1597, 0.01
      %v1922 = vmul.f32 %v1598, 0.01
      %v1923 = vmul.f32 %v1599, 0.01
      %v1924 = vmul.f32 %v1600, 0.01
      %v1925 = vmul.f32 %v1601, 0.01
      %v1926 = vmul.f32 %v1602, 0.01
      %v1927 = vmul.f32 %v1603, 0.01
      %v1928 = vmul.f32 %v1604, 0.01
      %v1929 = vmul.f32 %v1605, 0.01
      %v1930 = vmul.f32 %v1606, 0.01
      %v1931 = vmul.f32 %v1607, 0.01
      %v1932 = vmul.f32 %v1608, 0.01
      %v1933 = vmul.f32 %v1609, 0.01
      %v1934 = vmul.f32 %v1610, 0.01
      %v1935 = vmul.f32 %v1611, 0.01
      %v1936 = vmul.f32 %v1612, 0.01
      %v1937 = vmul.f32 %v1613, 0.01
      %v1938 = vmul.f32 %v1614, 0.01
      %v1939 = vmul.f32 %v1615, 0.01
      %v1940 = vmul.f32 %v1616, 0.01
      %v1941 = vmul.f32 %v1617, 0.01
      %v1942 = vmul.f32 %v1618, 0.01
      %v1943 = vmul.f32 %v1619, 0.01
      %v1944 = vmul.f32 %v1620, 0.01
      %v1945 = vmul.f32 %v1621, 0.01
      %v1946 = vmul.f32 %v1622, 0.01
      %v1947 = vmul.f32 %v1623, 0.01
      %v1948 = vmul.f32 %v1624, 0.01
      %v1949 = vmul.f32 %v1625, 0.01
      %v1950 = vmul.f32 %v1626, 0.01
      %v1951 = vmul.f32 %v1627, 0.01
      %v1952 = vmul.f32 %v1628, 0.01
      %v1953 = vmul.f32 %v1629, 0.01
      %v1954 = vmul.f32 %v1630, 0.01
      %v1955 = vmul.f32 %v1631, 0.01
      %v1956 = vmul.f32 %v1632, 0.01
      %v1957 = vmul.f32 %v1633, 0.01
      %v1958 = vmul.f32 %v1634, 0.01
      %v1959 = vmul.f32 %v1635, 0.01
      %v1960 = vmul.f32 %v1636, 0.01
      %v1961 = vmul.f32 %v1637, 0.01
      %v1962 = vmul.f32 %v1638, 0.01
      %v1963 = vmul.f32 %v1639, 0.01
      %v1964 = vmul.f32 %v1640, 0.01
      %v1965 = vmul.f32 %v1641, 0.01
      %v1966 = vmul.f32 %v1642, 0.01
      %v1967 = vmul.f32 %v1643, 0.01
      %v1968 = vmul.f32 %v1644, 0.01
      %v1969 = vmul.f32 %v1645, 0.01
      %v1970 = vmul.f32 %v1646, 0.01
      %v1971 = vmul.f32 %v1647, 0.01
      %v1972 = vmul.f32 %v1648, 0.01
      %v1973 = vmul.f32 %v1649, 0.01
      %v1974 = vmul.f32 %v1650, 0.01
      %v1975 = vmul.f32 %v1651, 0.01
      %v1976 = vmul.f32 %v1652, 0.01
      %v1977 = vmul.f32 %v1653, 0.01
      %v1978 = vmul.f32 %v1654, 0.01
      %v1979 = vmul.f32 %v1655, 0.01
      %v1980 = vmul.f32 %v1656, 0.01
      %v1981 = vmul.f32 %v1657, 0.01
      %v1982 = vmul.f32 %v1658, 0.01
      %v1983 = vmul.f32 %v1659, 0.01
      %v1984 = vmul.f32 %v1660, 0.01
      %v1985 = vmul.f32 %v1661, 0.01
      %v1986 = vmul.f32 %v1662, 0.01
      %v1987 = vmul.f32 %v1663, 0.01
      %v1988 = vmul.f32 %v1664, 0.01
      %v1989 = vmul.f32 %v1665, 0.01
      %v1990 = vmul.f32 %v1666, 0.01
      %v1991 = vmul.f32 %v1667, 0.01
      %v1992 = vmul.f32 %v1668, 0.01
      %v1993 = vmul.f32 %v1669, 0.01
      %v1994 = vmul.f32 %v1670, 0.01
      %v1995 = vmul.f32 %v1671, 0.01
      %v1996 = vmul.f32 %v1672, 0.01
      %v1997 = vmul.f32 %v1673, 0.01
      %v1998 = vmul.f32 %v1674, 0.01
      %v1999 = vmul.f32 %v1675, 0.01
      %v2000 = vmul.f32 %v1676, 0.01
      %v2001 = vmul.f32 %v1677, 0.01
      %v2002 = vmul.f32 %v1678, 0.01
      %v2003 = vmul.f32 %v1679, 0.01
      %v2004 = vmul.f32 %v1680, 0.01
      %v2005 = vmul.f32 %v1681, 0.01
      %v2006 = vmul.f32 %v1682, 0.01
      %v2007 = vmul.f32 %v1683, 0.01
      %v2008 = vmul.f32 %v1684, 0.01
      %v2009 = vmul.f32 %v1685, 0.01
      %v2010 = vmul.f32 %v1686, 0.01
      %v2011 = vmul.f32 %v1687, 0.01
      %v2012 = vsel %vm1688, %v1526, %v1850
      %v2013 = vsel %vm1689, %v1527, %v1851
      %v2014 = vsel %vm1690, %v1528, %v1852
      %v2015 = vsel %vm1691, %v1529, %v1853
      %v2016 = vsel %vm1692, %v1530, %v1854
      %v2017 = vsel %vm1693, %v1531, %v1855
      %v2018 = vsel %vm1694, %v1532, %v1856
      %v2019 = vsel %vm1695, %v1533, %v1857
      %v2020 = vsel %vm1696, %v1534, %v1858
      %v2021 = vsel %vm1697, %v1535, %v1859
      %v2022 = vsel %vm1698, %v1536, %v1860
      %v2023 = vsel %vm1699, %v1537, %v1861
      %v2024 = vsel %vm1700, %v1538, %v1862
      %v2025 = vsel %vm1701, %v1539, %v1863
      %v2026 = vsel %vm1702, %v1540, %v1864
      %v2027 = vsel %vm1703, %v1541, %v1865
      %v2028 = vsel %vm1704, %v1542, %v1866
      %v2029 = vsel %vm1705, %v1543, %v1867
      %v2030 = vsel %vm1706, %v1544, %v1868
      %v2031 = vsel %vm1707, %v1545, %v1869
      %v2032 = vsel %vm1708, %v1546, %v1870
      %v2033 = vsel %vm1709, %v1547, %v1871
      %v2034 = vsel %vm1710, %v1548, %v1872
      %v2035 = vsel %vm1711, %v1549, %v1873
      %v2036 = vsel %vm1712, %v1550, %v1874
      %v2037 = vsel %vm1713, %v1551, %v1875
      %v2038 = vsel %vm1714, %v1552, %v1876
      %v2039 = vsel %vm1715, %v1553, %v1877
      %v2040 = vsel %vm1716, %v1554, %v1878
      %v2041 = vsel %vm1717, %v1555, %v1879
      %v2042 = vsel %vm1718, %v1556, %v1880
      %v2043 = vsel %vm1719, %v1557, %v1881
      %v2044 = vsel %vm1720, %v1558, %v1882
      %v2045 = vsel %vm1721, %v1559, %v1883
      %v2046 = vsel %vm1722, %v1560, %v1884
      %v2047 = vsel %vm1723, %v1561, %v1885
      %v2048 = vsel %vm1724, %v1562, %v1886
      %v2049 = vsel %vm1725, %v1563, %v1887
      %v2050 = vsel %vm1726, %v1564, %v1888
      %v2051 = vsel %vm1727, %v1565, %v1889
      %v2052 = vsel %vm1728, %v1566, %v1890
      %v2053 = vsel %vm1729, %v1567, %v1891
      %v2054 = vsel %vm1730, %v1568, %v1892
      %v2055 = vsel %vm1731, %v1569, %v1893
      %v2056 = vsel %vm1732, %v1570, %v1894
      %v2057 = vsel %vm1733, %v1571, %v1895
      %v2058 = vsel %vm1734, %v1572, %v1896
      %v2059 = vsel %vm1735, %v1573, %v1897
      %v2060 = vsel %vm1736, %v1574, %v1898
      %v2061 = vsel %vm1737, %v1575, %v1899
      %v2062 = vsel %vm1738, %v1576, %v1900
      %v2063 = vsel %vm1739, %v1577, %v1901
      %v2064 = vsel %vm1740, %v1578, %v1902
      %v2065 = vsel %vm1741, %v1579, %v1903
      %v2066 = vsel %vm1742, %v1580, %v1904
      %v2067 = vsel %vm1743, %v1581, %v1905
      %v2068 = vsel %vm1744, %v1582, %v1906
      %v2069 = vsel %vm1745, %v1583, %v1907
      %v2070 = vsel %vm1746, %v1584, %v1908
      %v2071 = vsel %vm1747, %v1585, %v1909
      %v2072 = vsel %vm1748, %v1586, %v1910
      %v2073 = vsel %vm1749, %v1587, %v1911
      %v2074 = vsel %vm1750, %v1588, %v1912
      %v2075 = vsel %vm1751, %v1589, %v1913
      %v2076 = vsel %vm1752, %v1590, %v1914
      %v2077 = vsel %vm1753, %v1591, %v1915
      %v2078 = vsel %vm1754, %v1592, %v1916
      %v2079 = vsel %vm1755, %v1593, %v1917
      %v2080 = vsel %vm1756, %v1594, %v1918
      %v2081 = vsel %vm1757, %v1595, %v1919
      %v2082 = vsel %vm1758, %v1596, %v1920
      %v2083 = vsel %vm1759, %v1597, %v1921
      %v2084 = vsel %vm1760, %v1598, %v1922
      %v2085 = vsel %vm1761, %v1599, %v1923
      %v2086 = vsel %vm1762, %v1600, %v1924
      %v2087 = vsel %vm1763, %v1601, %v1925
      %v2088 = vsel %vm1764, %v1602, %v1926
      %v2089 = vsel %vm1765, %v1603, %v1927
      %v2090 = vsel %vm1766, %v1604, %v1928
      %v2091 = vsel %vm1767, %v1605, %v1929
      %v2092 = vsel %vm1768, %v1606, %v1930
      %v2093 = vsel %vm1769, %v1607, %v1931
      %v2094 = vsel %vm1770, %v1608, %v1932
      %v2095 = vsel %vm1771, %v1609, %v1933
      %v2096 = vsel %vm1772, %v1610, %v1934
      %v2097 = vsel %vm1773, %v1611, %v1935
      %v2098 = vsel %vm1774, %v1612, %v1936
      %v2099 = vsel %vm1775, %v1613, %v1937
      %v2100 = vsel %vm1776, %v1614, %v1938
      %v2101 = vsel %vm1777, %v1615, %v1939
      %v2102 = vsel %vm1778, %v1616, %v1940
      %v2103 = vsel %vm1779, %v1617, %v1941
      %v2104 = vsel %vm1780, %v1618, %v1942
      %v2105 = vsel %vm1781, %v1619, %v1943
      %v2106 = vsel %vm1782, %v1620, %v1944
      %v2107 = vsel %vm1783, %v1621, %v1945
      %v2108 = vsel %vm1784, %v1622, %v1946
      %v2109 = vsel %vm1785, %v1623, %v1947
      %v2110 = vsel %vm1786, %v1624, %v1948
      %v2111 = vsel %vm1787, %v1625, %v1949
      %v2112 = vsel %vm1788, %v1626, %v1950
      %v2113 = vsel %vm1789, %v1627, %v1951
      %v2114 = vsel %vm1790, %v1628, %v1952
      %v2115 = vsel %vm1791, %v1629, %v1953
      %v2116 = vsel %vm1792, %v1630, %v1954
      %v2117 = vsel %vm1793, %v1631, %v1955
      %v2118 = vsel %vm1794, %v1632, %v1956
      %v2119 = vsel %vm1795, %v1633, %v1957
      %v2120 = vsel %vm1796, %v1634, %v1958
      %v2121 = vsel %vm1797, %v1635, %v1959
      %v2122 = vsel %vm1798, %v1636, %v1960
      %v2123 = vsel %vm1799, %v1637, %v1961
      %v2124 = vsel %vm1800, %v1638, %v1962
      %v2125 = vsel %vm1801, %v1639, %v1963
      %v2126 = vsel %vm1802, %v1640, %v1964
      %v2127 = vsel %vm1803, %v1641, %v1965
      %v2128 = vsel %vm1804, %v1642, %v1966
      %v2129 = vsel %vm1805, %v1643, %v1967
      %v2130 = vsel %vm1806, %v1644, %v1968
      %v2131 = vsel %vm1807, %v1645, %v1969
      %v2132 = vsel %vm1808, %v1646, %v1970
      %v2133 = vsel %vm1809, %v1647, %v1971
      %v2134 = vsel %vm1810, %v1648, %v1972
      %v2135 = vsel %vm1811, %v1649, %v1973
      %v2136 = vsel %vm1812, %v1650, %v1974
      %v2137 = vsel %vm1813, %v1651, %v1975
      %v2138 = vsel %vm1814, %v1652, %v1976
      %v2139 = vsel %vm1815, %v1653, %v1977
      %v2140 = vsel %vm1816, %v1654, %v1978
      %v2141 = vsel %vm1817, %v1655, %v1979
      %v2142 = vsel %vm1818, %v1656, %v1980
      %v2143 = vsel %vm1819, %v1657, %v1981
      %v2144 = vsel %vm1820, %v1658, %v1982
      %v2145 = vsel %vm1821, %v1659, %v1983
      %v2146 = vsel %vm1822, %v1660, %v1984
      %v2147 = vsel %vm1823, %v1661, %v1985
      %v2148 = vsel %vm1824, %v1662, %v1986
      %v2149 = vsel %vm1825, %v1663, %v1987
      %v2150 = vsel %vm1826, %v1664, %v1988
      %v2151 = vsel %vm1827, %v1665, %v1989
      %v2152 = vsel %vm1828, %v1666, %v1990
      %v2153 = vsel %vm1829, %v1667, %v1991
      %v2154 = vsel %vm1830, %v1668, %v1992
      %v2155 = vsel %vm1831, %v1669, %v1993
      %v2156 = vsel %vm1832, %v1670, %v1994
      %v2157 = vsel %vm1833, %v1671, %v1995
      %v2158 = vsel %vm1834, %v1672, %v1996
      %v2159 = vsel %vm1835, %v1673, %v1997
      %v2160 = vsel %vm1836, %v1674, %v1998
      %v2161 = vsel %vm1837, %v1675, %v1999
      %v2162 = vsel %vm1838, %v1676, %v2000
      %v2163 = vsel %vm1839, %v1677, %v2001
      %v2164 = vsel %vm1840, %v1678, %v2002
      %v2165 = vsel %vm1841, %v1679, %v2003
      %v2166 = vsel %vm1842, %v1680, %v2004
      %v2167 = vsel %vm1843, %v1681, %v2005
      %v2168 = vsel %vm1844, %v1682, %v2006
      %v2169 = vsel %vm1845, %v1683, %v2007
      %v2170 = vsel %vm1846, %v1684, %v2008
      %v2171 = vsel %vm1847, %v1685, %v2009
      %v2172 = vsel %vm1848, %v1686, %v2010
      %v2173 = vsel %vm1849, %v1687, %v2011
      %v2174 = vld [vmem:[%s3] sm:$0xff]
      %v2175 = vld [vmem:[%s3 + $0x8] sm:$0xff]
      %v2176 = vld [vmem:[%s3 + $0x10] sm:$0x3]
      %v2177 = vld [vmem:[%s3 + $0x18] sm:$0xff]
      %v2178 = vld [vmem:[%s3 + $0x20] sm:$0xff]
      %v2179 = vld [vmem:[%s3 + $0x28] sm:$0x3]
      %v2180 = vld [vmem:[%s3 + $0x30] sm:$0xff]
      %v2181 = vld [vmem:[%s3 + $0x38] sm:$0xff]
      %v2182 = vld [vmem:[%s3 + $0x40] sm:$0x3]
      %v2183 = vld [vmem:[%s3 + $0x48] sm:$0xff]
      %v2184 = vld [vmem:[%s3 + $0x50] sm:$0xff]
      %v2185 = vld [vmem:[%s3 + $0x58] sm:$0x3]
      %v2186 = vld [vmem:[%s3 + $0x60] sm:$0xff]
      %v2187 = vld [vmem:[%s3 + $0x68] sm:$0xff]
      %v2188 = vld [vmem:[%s3 + $0x70] sm:$0x3]
      %v2189 = vld [vmem:[%s3 + $0x78] sm:$0xff]
      %v2190 = vld [vmem:[%s3 + $0x80] sm:$0xff]
      %v2191 = vld [vmem:[%s3 + $0x88] sm:$0x3]
      %v2192 = vld [vmem:[%s3 + $0x90] sm:$0xff]
      %v2193 = vld [vmem:[%s3 + $0x98] sm:$0xff]
      %v2194 = vld [vmem:[%s3 + $0xa0] sm:$0x3]
      %v2195 = vld [vmem:[%s3 + $0xa8] sm:$0xff]
      %v2196 = vld [vmem:[%s3 + $0xb0] sm:$0xff]
      %v2197 = vld [vmem:[%s3 + $0xb8] sm:$0x3]
      %v2198 = vld [vmem:[%s3 + $0xc0] sm:$0xff]
      %v2199 = vld [vmem:[%s3 + $0xc8] sm:$0xff]
      %v2200 = vld [vmem:[%s3 + $0xd0] sm:$0x3]
      %v2201 = vld [vmem:[%s3 + $0xd8] sm:$0xff]
      %v2202 = vld [vmem:[%s3 + $0xe0] sm:$0xff]
      %v2203 = vld [vmem:[%s3 + $0xe8] sm:$0x3]
      %v2204 = vld [vmem:[%s3 + $0xf0] sm:$0xff]
      %v2205 = vld [vmem:[%s3 + $0xf8] sm:$0xff]
      %v2206 = vld [vmem:[%s3 + $0x100] sm:$0x3]
      %v2207 = vld [vmem:[%s3 + $0x108] sm:$0xff]
      %v2208 = vld [vmem:[%s3 + $0x110] sm:$0xff]
      %v2209 = vld [vmem:[%s3 + $0x118] sm:$0x3]
      %v2210 = vld [vmem:[%s3 + $0x120] sm:$0xff]
      %v2211 = vld [vmem:[%s3 + $0x128] sm:$0xff]
      %v2212 = vld [vmem:[%s3 + $0x130] sm:$0x3]
      %v2213 = vld [vmem:[%s3 + $0x138] sm:$0xff]
      %v2214 = vld [vmem:[%s3 + $0x140] sm:$0xff]
      %v2215 = vld [vmem:[%s3 + $0x148] sm:$0x3]
      %v2216 = vld [vmem:[%s3 + $0x150] sm:$0xff]
      %v2217 = vld [vmem:[%s3 + $0x158] sm:$0xff]
      %v2218 = vld [vmem:[%s3 + $0x160] sm:$0x3]
      %v2219 = vld [vmem:[%s3 + $0x168] sm:$0xff]
      %v2220 = vld [vmem:[%s3 + $0x170] sm:$0xff]
      %v2221 = vld [vmem:[%s3 + $0x178] sm:$0x3]
      %v2222 = vld [vmem:[%s3 + $0x180] sm:$0xff]
      %v2223 = vld [vmem:[%s3 + $0x188] sm:$0xff]
      %v2224 = vld [vmem:[%s3 + $0x190] sm:$0x3]
      %v2225 = vld [vmem:[%s3 + $0x198] sm:$0xff]
      %v2226 = vld [vmem:[%s3 + $0x1a0] sm:$0xff]
      %v2227 = vld [vmem:[%s3 + $0x1a8] sm:$0x3]
      %2229 = vset.pattern.permute.xlu0 0
      %2230 = vperm.xlu0 %2229, %v2174
      %v2231 = vpop.permute.xlu0 %2230
      %2233 = vset.pattern.permute.xlu0 0
      %2234 = vperm.xlu0 %2233, %v2175
      %v2235 = vpop.permute.xlu0 %2234
      %2237 = vset.pattern.permute.xlu0 0
      %2238 = vperm.xlu0 %2237, %v2176
      %v2239 = vpop.permute.xlu0 %2238
      %2241 = vset.pattern.permute.xlu0 0
      %2242 = vperm.xlu0 %2241, %v2177
      %v2243 = vpop.permute.xlu0 %2242
      %2245 = vset.pattern.permute.xlu0 0
      %2246 = vperm.xlu0 %2245, %v2178
      %v2247 = vpop.permute.xlu0 %2246
      %2249 = vset.pattern.permute.xlu0 0
      %2250 = vperm.xlu0 %2249, %v2179
      %v2251 = vpop.permute.xlu0 %2250
      %2253 = vset.pattern.permute.xlu0 0
      %2254 = vperm.xlu0 %2253, %v2180
      %v2255 = vpop.permute.xlu0 %2254
      %2257 = vset.pattern.permute.xlu0 0
      %2258 = vperm.xlu0 %2257, %v2181
      %v2259 = vpop.permute.xlu0 %2258
      %2261 = vset.pattern.permute.xlu0 0
      %2262 = vperm.xlu0 %2261, %v2182
      %v2263 = vpop.permute.xlu0 %2262
      %2265 = vset.pattern.permute.xlu0 0
      %2266 = vperm.xlu0 %2265, %v2183
      %v2267 = vpop.permute.xlu0 %2266
      %2269 = vset.pattern.permute.xlu0 0
      %2270 = vperm.xlu0 %2269, %v2184
      %v2271 = vpop.permute.xlu0 %2270
      %2273 = vset.pattern.permute.xlu0 0
      %2274 = vperm.xlu0 %2273, %v2185
      %v2275 = vpop.permute.xlu0 %2274
      %2277 = vset.pattern.permute.xlu0 0
      %2278 = vperm.xlu0 %2277, %v2186
      %v2279 = vpop.permute.xlu0 %2278
      %2281 = vset.pattern.permute.xlu0 0
      %2282 = vperm.xlu0 %2281, %v2187
      %v2283 = vpop.permute.xlu0 %2282
      %2285 = vset.pattern.permute.xlu0 0
      %2286 = vperm.xlu0 %2285, %v2188
      %v2287 = vpop.permute.xlu0 %2286
      %2289 = vset.pattern.permute.xlu0 0
      %2290 = vperm.xlu0 %2289, %v2189
      %v2291 = vpop.permute.xlu0 %2290
      %2293 = vset.pattern.permute.xlu0 0
      %2294 = vperm.xlu0 %2293, %v2190
      %v2295 = vpop.permute.xlu0 %2294
      %2297 = vset.pattern.permute.xlu0 0
      %2298 = vperm.xlu0 %2297, %v2191
      %v2299 = vpop.permute.xlu0 %2298
      %2301 = vset.pattern.permute.xlu0 0
      %2302 = vperm.xlu0 %2301, %v2192
      %v2303 = vpop.permute.xlu0 %2302
      %2305 = vset.pattern.permute.xlu0 0
      %2306 = vperm.xlu0 %2305, %v2193
      %v2307 = vpop.permute.xlu0 %2306
      %2309 = vset.pattern.permute.xlu0 0
      %2310 = vperm.xlu0 %2309, %v2194
      %v2311 = vpop.permute.xlu0 %2310
      %2313 = vset.pattern.permute.xlu0 0
      %2314 = vperm.xlu0 %2313, %v2195
      %v2315 = vpop.permute.xlu0 %2314
      %2317 = vset.pattern.permute.xlu0 0
      %2318 = vperm.xlu0 %2317, %v2196
      %v2319 = vpop.permute.xlu0 %2318
      %2321 = vset.pattern.permute.xlu0 0
      %2322 = vperm.xlu0 %2321, %v2197
      %v2323 = vpop.permute.xlu0 %2322
      %2325 = vset.pattern.permute.xlu0 0
      %2326 = vperm.xlu0 %2325, %v2198
      %v2327 = vpop.permute.xlu0 %2326
      %2329 = vset.pattern.permute.xlu0 0
      %2330 = vperm.xlu0 %2329, %v2199
      %v2331 = vpop.permute.xlu0 %2330
      %2333 = vset.pattern.permute.xlu0 0
      %2334 = vperm.xlu0 %2333, %v2200
      %v2335 = vpop.permute.xlu0 %2334
      %2337 = vset.pattern.permute.xlu0 0
      %2338 = vperm.xlu0 %2337, %v2201
      %v2339 = vpop.permute.xlu0 %2338
      %2341 = vset.pattern.permute.xlu0 0
      %2342 = vperm.xlu0 %2341, %v2202
      %v2343 = vpop.permute.xlu0 %2342
      %2345 = vset.pattern.permute.xlu0 0
      %2346 = vperm.xlu0 %2345, %v2203
      %v2347 = vpop.permute.xlu0 %2346
      %2349 = vset.pattern.permute.xlu0 0
      %2350 = vperm.xlu0 %2349, %v2204
      %v2351 = vpop.permute.xlu0 %2350
      %2353 = vset.pattern.permute.xlu0 0
      %2354 = vperm.xlu0 %2353, %v2205
      %v2355 = vpop.permute.xlu0 %2354
      %2357 = vset.pattern.permute.xlu0 0
      %2358 = vperm.xlu0 %2357, %v2206
      %v2359 = vpop.permute.xlu0 %2358
      %2361 = vset.pattern.permute.xlu0 0
      %2362 = vperm.xlu0 %2361, %v2207
      %v2363 = vpop.permute.xlu0 %2362
      %2365 = vset.pattern.permute.xlu0 0
      %2366 = vperm.xlu0 %2365, %v2208
      %v2367 = vpop.permute.xlu0 %2366
      %2369 = vset.pattern.permute.xlu0 0
      %2370 = vperm.xlu0 %2369, %v2209
      %v2371 = vpop.permute.xlu0 %2370
      %2373 = vset.pattern.permute.xlu0 0
      %2374 = vperm.xlu0 %2373, %v2210
      %v2375 = vpop.permute.xlu0 %2374
      %2377 = vset.pattern.permute.xlu0 0
      %2378 = vperm.xlu0 %2377, %v2211
      %v2379 = vpop.permute.xlu0 %2378
      %2381 = vset.pattern.permute.xlu0 0
      %2382 = vperm.xlu0 %2381, %v2212
      %v2383 = vpop.permute.xlu0 %2382
      %2385 = vset.pattern.permute.xlu0 0
      %2386 = vperm.xlu0 %2385, %v2213
      %v2387 = vpop.permute.xlu0 %2386
      %2389 = vset.pattern.permute.xlu0 0
      %2390 = vperm.xlu0 %2389, %v2214
      %v2391 = vpop.permute.xlu0 %2390
      %2393 = vset.pattern.permute.xlu0 0
      %2394 = vperm.xlu0 %2393, %v2215
      %v2395 = vpop.permute.xlu0 %2394
      %2397 = vset.pattern.permute.xlu0 0
      %2398 = vperm.xlu0 %2397, %v2216
      %v2399 = vpop.permute.xlu0 %2398
      %2401 = vset.pattern.permute.xlu0 0
      %2402 = vperm.xlu0 %2401, %v2217
      %v2403 = vpop.permute.xlu0 %2402
      %2405 = vset.pattern.permute.xlu0 0
      %2406 = vperm.xlu0 %2405, %v2218
      %v2407 = vpop.permute.xlu0 %2406
      %2409 = vset.pattern.permute.xlu0 0
      %2410 = vperm.xlu0 %2409, %v2219
      %v2411 = vpop.permute.xlu0 %2410
      %2413 = vset.pattern.permute.xlu0 0
      %2414 = vperm.xlu0 %2413, %v2220
      %v2415 = vpop.permute.xlu0 %2414
      %2417 = vset.pattern.permute.xlu0 0
      %2418 = vperm.xlu0 %2417, %v2221
      %v2419 = vpop.permute.xlu0 %2418
      %2421 = vset.pattern.permute.xlu0 0
      %2422 = vperm.xlu0 %2421, %v2222
      %v2423 = vpop.permute.xlu0 %2422
      %2425 = vset.pattern.permute.xlu0 0
      %2426 = vperm.xlu0 %2425, %v2223
      %v2427 = vpop.permute.xlu0 %2426
      %2429 = vset.pattern.permute.xlu0 0
      %2430 = vperm.xlu0 %2429, %v2224
      %v2431 = vpop.permute.xlu0 %2430
      %2433 = vset.pattern.permute.xlu0 0
      %2434 = vperm.xlu0 %2433, %v2225
      %v2435 = vpop.permute.xlu0 %2434
      %2437 = vset.pattern.permute.xlu0 0
      %2438 = vperm.xlu0 %2437, %v2226
      %v2439 = vpop.permute.xlu0 %2438
      %2441 = vset.pattern.permute.xlu0 0
      %2442 = vperm.xlu0 %2441, %v2227
      %v2443 = vpop.permute.xlu0 %2442
      %v2445 = vunpack.c.l.s4 269488144
      %v2446 = vunpack.c.0.s8 %v2445
      %v2447 = vlaneseq
      %v2448 = vshrl.u32 %v2447, 7
      %v2449 = vsub.s32 %v2446, %v2448
      %v2450 = vrot.slane %v2231, %v2449
      %v2452 = vunpack.c.l.s4 842150450
      %v2453 = vunpack.c.0.s8 %v2452
      %v2454 = vlaneseq
      %v2455 = vshrl.u32 %v2454, 7
      %v2456 = vsub.s32 %v2453, %v2455
      %v2457 = vrot.slane %v2231, %v2456
      %v2459 = vunpack.c.l.s4 1414812756
      %v2460 = vunpack.c.0.s8 %v2459
      %v2461 = vlaneseq
      %v2462 = vshrl.u32 %v2461, 7
      %v2463 = vsub.s32 %v2460, %v2462
      %v2464 = vrot.slane %v2231, %v2463
      %v2466 = vunpack.c.l.s4 1987475062
      %v2467 = vunpack.c.0.s8 %v2466
      %v2468 = vlaneseq
      %v2469 = vshrl.u32 %v2468, 7
      %v2470 = vsub.s32 %v2467, %v2469
      %v2471 = vrot.slane %v2231, %v2470
      %v2473 = vunpack.c.l.s4 269488144
      %v2474 = vunpack.c.0.s8 %v2473
      %v2475 = vlaneseq
      %v2476 = vshrl.u32 %v2475, 7
      %v2477 = vsub.s32 %v2474, %v2476
      %v2478 = vrot.slane %v2235, %v2477
      %v2480 = vunpack.c.l.s4 842150450
      %v2481 = vunpack.c.0.s8 %v2480
      %v2482 = vlaneseq
      %v2483 = vshrl.u32 %v2482, 7
      %v2484 = vsub.s32 %v2481, %v2483
      %v2485 = vrot.slane %v2235, %v2484
      %v2487 = vunpack.c.l.s4 1414812756
      %v2488 = vunpack.c.0.s8 %v2487
      %v2489 = vlaneseq
      %v2490 = vshrl.u32 %v2489, 7
      %v2491 = vsub.s32 %v2488, %v2490
      %v2492 = vrot.slane %v2235, %v2491
      %v2494 = vunpack.c.l.s4 1987475062
      %v2495 = vunpack.c.0.s8 %v2494
      %v2496 = vlaneseq
      %v2497 = vshrl.u32 %v2496, 7
      %v2498 = vsub.s32 %v2495, %v2497
      %v2499 = vrot.slane %v2235, %v2498
      %v2501 = vunpack.c.l.s4 269488144
      %v2502 = vunpack.c.0.s8 %v2501
      %v2503 = vlaneseq
      %v2504 = vshrl.u32 %v2503, 7
      %v2505 = vsub.s32 %v2502, %v2504
      %v2506 = vrot.slane %v2239, %v2505
      %v2508 = vunpack.c.l.s4 269488144
      %v2509 = vunpack.c.0.s8 %v2508
      %v2510 = vlaneseq
      %v2511 = vshrl.u32 %v2510, 7
      %v2512 = vsub.s32 %v2509, %v2511
      %v2513 = vrot.slane %v2243, %v2512
      %v2515 = vunpack.c.l.s4 842150450
      %v2516 = vunpack.c.0.s8 %v2515
      %v2517 = vlaneseq
      %v2518 = vshrl.u32 %v2517, 7
      %v2519 = vsub.s32 %v2516, %v2518
      %v2520 = vrot.slane %v2243, %v2519
      %v2522 = vunpack.c.l.s4 1414812756
      %v2523 = vunpack.c.0.s8 %v2522
      %v2524 = vlaneseq
      %v2525 = vshrl.u32 %v2524, 7
      %v2526 = vsub.s32 %v2523, %v2525
      %v2527 = vrot.slane %v2243, %v2526
      %v2529 = vunpack.c.l.s4 1987475062
      %v2530 = vunpack.c.0.s8 %v2529
      %v2531 = vlaneseq
      %v2532 = vshrl.u32 %v2531, 7
      %v2533 = vsub.s32 %v2530, %v2532
      %v2534 = vrot.slane %v2243, %v2533
      %v2536 = vunpack.c.l.s4 269488144
      %v2537 = vunpack.c.0.s8 %v2536
      %v2538 = vlaneseq
      %v2539 = vshrl.u32 %v2538, 7
      %v2540 = vsub.s32 %v2537, %v2539
      %v2541 = vrot.slane %v2247, %v2540
      %v2543 = vunpack.c.l.s4 842150450
      %v2544 = vunpack.c.0.s8 %v2543
      %v2545 = vlaneseq
      %v2546 = vshrl.u32 %v2545, 7
      %v2547 = vsub.s32 %v2544, %v2546
      %v2548 = vrot.slane %v2247, %v2547
      %v2550 = vunpack.c.l.s4 1414812756
      %v2551 = vunpack.c.0.s8 %v2550
      %v2552 = vlaneseq
      %v2553 = vshrl.u32 %v2552, 7
      %v2554 = vsub.s32 %v2551, %v2553
      %v2555 = vrot.slane %v2247, %v2554
      %v2557 = vunpack.c.l.s4 1987475062
      %v2558 = vunpack.c.0.s8 %v2557
      %v2559 = vlaneseq
      %v2560 = vshrl.u32 %v2559, 7
      %v2561 = vsub.s32 %v2558, %v2560
      %v2562 = vrot.slane %v2247, %v2561
      %v2564 = vunpack.c.l.s4 269488144
      %v2565 = vunpack.c.0.s8 %v2564
      %v2566 = vlaneseq
      %v2567 = vshrl.u32 %v2566, 7
      %v2568 = vsub.s32 %v2565, %v2567
      %v2569 = vrot.slane %v2251, %v2568
      %v2571 = vunpack.c.l.s4 269488144
      %v2572 = vunpack.c.0.s8 %v2571
      %v2573 = vlaneseq
      %v2574 = vshrl.u32 %v2573, 7
      %v2575 = vsub.s32 %v2572, %v2574
      %v2576 = vrot.slane %v2255, %v2575
      %v2578 = vunpack.c.l.s4 842150450
      %v2579 = vunpack.c.0.s8 %v2578
      %v2580 = vlaneseq
      %v2581 = vshrl.u32 %v2580, 7
      %v2582 = vsub.s32 %v2579, %v2581
      %v2583 = vrot.slane %v2255, %v2582
      %v2585 = vunpack.c.l.s4 1414812756
      %v2586 = vunpack.c.0.s8 %v2585
      %v2587 = vlaneseq
      %v2588 = vshrl.u32 %v2587, 7
      %v2589 = vsub.s32 %v2586, %v2588
      %v2590 = vrot.slane %v2255, %v2589
      %v2592 = vunpack.c.l.s4 1987475062
      %v2593 = vunpack.c.0.s8 %v2592
      %v2594 = vlaneseq
      %v2595 = vshrl.u32 %v2594, 7
      %v2596 = vsub.s32 %v2593, %v2595
      %v2597 = vrot.slane %v2255, %v2596
      %v2599 = vunpack.c.l.s4 269488144
      %v2600 = vunpack.c.0.s8 %v2599
      %v2601 = vlaneseq
      %v2602 = vshrl.u32 %v2601, 7
      %v2603 = vsub.s32 %v2600, %v2602
      %v2604 = vrot.slane %v2259, %v2603
      %v2606 = vunpack.c.l.s4 842150450
      %v2607 = vunpack.c.0.s8 %v2606
      %v2608 = vlaneseq
      %v2609 = vshrl.u32 %v2608, 7
      %v2610 = vsub.s32 %v2607, %v2609
      %v2611 = vrot.slane %v2259, %v2610
      %v2613 = vunpack.c.l.s4 1414812756
      %v2614 = vunpack.c.0.s8 %v2613
      %v2615 = vlaneseq
      %v2616 = vshrl.u32 %v2615, 7
      %v2617 = vsub.s32 %v2614, %v2616
      %v2618 = vrot.slane %v2259, %v2617
      %v2620 = vunpack.c.l.s4 1987475062
      %v2621 = vunpack.c.0.s8 %v2620
      %v2622 = vlaneseq
      %v2623 = vshrl.u32 %v2622, 7
      %v2624 = vsub.s32 %v2621, %v2623
      %v2625 = vrot.slane %v2259, %v2624
      %v2627 = vunpack.c.l.s4 269488144
      %v2628 = vunpack.c.0.s8 %v2627
      %v2629 = vlaneseq
      %v2630 = vshrl.u32 %v2629, 7
      %v2631 = vsub.s32 %v2628, %v2630
      %v2632 = vrot.slane %v2263, %v2631
      %v2634 = vunpack.c.l.s4 269488144
      %v2635 = vunpack.c.0.s8 %v2634
      %v2636 = vlaneseq
      %v2637 = vshrl.u32 %v2636, 7
      %v2638 = vsub.s32 %v2635, %v2637
      %v2639 = vrot.slane %v2267, %v2638
      %v2641 = vunpack.c.l.s4 842150450
      %v2642 = vunpack.c.0.s8 %v2641
      %v2643 = vlaneseq
      %v2644 = vshrl.u32 %v2643, 7
      %v2645 = vsub.s32 %v2642, %v2644
      %v2646 = vrot.slane %v2267, %v2645
      %v2648 = vunpack.c.l.s4 1414812756
      %v2649 = vunpack.c.0.s8 %v2648
      %v2650 = vlaneseq
      %v2651 = vshrl.u32 %v2650, 7
      %v2652 = vsub.s32 %v2649, %v2651
      %v2653 = vrot.slane %v2267, %v2652
      %v2655 = vunpack.c.l.s4 1987475062
      %v2656 = vunpack.c.0.s8 %v2655
      %v2657 = vlaneseq
      %v2658 = vshrl.u32 %v2657, 7
      %v2659 = vsub.s32 %v2656, %v2658
      %v2660 = vrot.slane %v2267, %v2659
      %v2662 = vunpack.c.l.s4 269488144
      %v2663 = vunpack.c.0.s8 %v2662
      %v2664 = vlaneseq
      %v2665 = vshrl.u32 %v2664, 7
      %v2666 = vsub.s32 %v2663, %v2665
      %v2667 = vrot.slane %v2271, %v2666
      %v2669 = vunpack.c.l.s4 842150450
      %v2670 = vunpack.c.0.s8 %v2669
      %v2671 = vlaneseq
      %v2672 = vshrl.u32 %v2671, 7
      %v2673 = vsub.s32 %v2670, %v2672
      %v2674 = vrot.slane %v2271, %v2673
      %v2676 = vunpack.c.l.s4 1414812756
      %v2677 = vunpack.c.0.s8 %v2676
      %v2678 = vlaneseq
      %v2679 = vshrl.u32 %v2678, 7
      %v2680 = vsub.s32 %v2677, %v2679
      %v2681 = vrot.slane %v2271, %v2680
      %v2683 = vunpack.c.l.s4 1987475062
      %v2684 = vunpack.c.0.s8 %v2683
      %v2685 = vlaneseq
      %v2686 = vshrl.u32 %v2685, 7
      %v2687 = vsub.s32 %v2684, %v2686
      %v2688 = vrot.slane %v2271, %v2687
      %v2690 = vunpack.c.l.s4 269488144
      %v2691 = vunpack.c.0.s8 %v2690
      %v2692 = vlaneseq
      %v2693 = vshrl.u32 %v2692, 7
      %v2694 = vsub.s32 %v2691, %v2693
      %v2695 = vrot.slane %v2275, %v2694
      %v2697 = vunpack.c.l.s4 269488144
      %v2698 = vunpack.c.0.s8 %v2697
      %v2699 = vlaneseq
      %v2700 = vshrl.u32 %v2699, 7
      %v2701 = vsub.s32 %v2698, %v2700
      %v2702 = vrot.slane %v2279, %v2701
      %v2704 = vunpack.c.l.s4 842150450
      %v2705 = vunpack.c.0.s8 %v2704
      %v2706 = vlaneseq
      %v2707 = vshrl.u32 %v2706, 7
      %v2708 = vsub.s32 %v2705, %v2707
      %v2709 = vrot.slane %v2279, %v2708
      %v2711 = vunpack.c.l.s4 1414812756
      %v2712 = vunpack.c.0.s8 %v2711
      %v2713 = vlaneseq
      %v2714 = vshrl.u32 %v2713, 7
      %v2715 = vsub.s32 %v2712, %v2714
      %v2716 = vrot.slane %v2279, %v2715
      %v2718 = vunpack.c.l.s4 1987475062
      %v2719 = vunpack.c.0.s8 %v2718
      %v2720 = vlaneseq
      %v2721 = vshrl.u32 %v2720, 7
      %v2722 = vsub.s32 %v2719, %v2721
      %v2723 = vrot.slane %v2279, %v2722
      %v2725 = vunpack.c.l.s4 269488144
      %v2726 = vunpack.c.0.s8 %v2725
      %v2727 = vlaneseq
      %v2728 = vshrl.u32 %v2727, 7
      %v2729 = vsub.s32 %v2726, %v2728
      %v2730 = vrot.slane %v2283, %v2729
      %v2732 = vunpack.c.l.s4 842150450
      %v2733 = vunpack.c.0.s8 %v2732
      %v2734 = vlaneseq
      %v2735 = vshrl.u32 %v2734, 7
      %v2736 = vsub.s32 %v2733, %v2735
      %v2737 = vrot.slane %v2283, %v2736
      %v2739 = vunpack.c.l.s4 1414812756
      %v2740 = vunpack.c.0.s8 %v2739
      %v2741 = vlaneseq
      %v2742 = vshrl.u32 %v2741, 7
      %v2743 = vsub.s32 %v2740, %v2742
      %v2744 = vrot.slane %v2283, %v2743
      %v2746 = vunpack.c.l.s4 1987475062
      %v2747 = vunpack.c.0.s8 %v2746
      %v2748 = vlaneseq
      %v2749 = vshrl.u32 %v2748, 7
      %v2750 = vsub.s32 %v2747, %v2749
      %v2751 = vrot.slane %v2283, %v2750
      %v2753 = vunpack.c.l.s4 269488144
      %v2754 = vunpack.c.0.s8 %v2753
      %v2755 = vlaneseq
      %v2756 = vshrl.u32 %v2755, 7
      %v2757 = vsub.s32 %v2754, %v2756
      %v2758 = vrot.slane %v2287, %v2757
      %v2760 = vunpack.c.l.s4 269488144
      %v2761 = vunpack.c.0.s8 %v2760
      %v2762 = vlaneseq
      %v2763 = vshrl.u32 %v2762, 7
      %v2764 = vsub.s32 %v2761, %v2763
      %v2765 = vrot.slane %v2291, %v2764
      %v2767 = vunpack.c.l.s4 842150450
      %v2768 = vunpack.c.0.s8 %v2767
      %v2769 = vlaneseq
      %v2770 = vshrl.u32 %v2769, 7
      %v2771 = vsub.s32 %v2768, %v2770
      %v2772 = vrot.slane %v2291, %v2771
      %v2774 = vunpack.c.l.s4 1414812756
      %v2775 = vunpack.c.0.s8 %v2774
      %v2776 = vlaneseq
      %v2777 = vshrl.u32 %v2776, 7
      %v2778 = vsub.s32 %v2775, %v2777
      %v2779 = vrot.slane %v2291, %v2778
      %v2781 = vunpack.c.l.s4 1987475062
      %v2782 = vunpack.c.0.s8 %v2781
      %v2783 = vlaneseq
      %v2784 = vshrl.u32 %v2783, 7
      %v2785 = vsub.s32 %v2782, %v2784
      %v2786 = vrot.slane %v2291, %v2785
      %v2788 = vunpack.c.l.s4 269488144
      %v2789 = vunpack.c.0.s8 %v2788
      %v2790 = vlaneseq
      %v2791 = vshrl.u32 %v2790, 7
      %v2792 = vsub.s32 %v2789, %v2791
      %v2793 = vrot.slane %v2295, %v2792
      %v2795 = vunpack.c.l.s4 842150450
      %v2796 = vunpack.c.0.s8 %v2795
      %v2797 = vlaneseq
      %v2798 = vshrl.u32 %v2797, 7
      %v2799 = vsub.s32 %v2796, %v2798
      %v2800 = vrot.slane %v2295, %v2799
      %v2802 = vunpack.c.l.s4 1414812756
      %v2803 = vunpack.c.0.s8 %v2802
      %v2804 = vlaneseq
      %v2805 = vshrl.u32 %v2804, 7
      %v2806 = vsub.s32 %v2803, %v2805
      %v2807 = vrot.slane %v2295, %v2806
      %v2809 = vunpack.c.l.s4 1987475062
      %v2810 = vunpack.c.0.s8 %v2809
      %v2811 = vlaneseq
      %v2812 = vshrl.u32 %v2811, 7
      %v2813 = vsub.s32 %v2810, %v2812
      %v2814 = vrot.slane %v2295, %v2813
      %v2816 = vunpack.c.l.s4 269488144
      %v2817 = vunpack.c.0.s8 %v2816
      %v2818 = vlaneseq
      %v2819 = vshrl.u32 %v2818, 7
      %v2820 = vsub.s32 %v2817, %v2819
      %v2821 = vrot.slane %v2299, %v2820
      %v2823 = vunpack.c.l.s4 269488144
      %v2824 = vunpack.c.0.s8 %v2823
      %v2825 = vlaneseq
      %v2826 = vshrl.u32 %v2825, 7
      %v2827 = vsub.s32 %v2824, %v2826
      %v2828 = vrot.slane %v2303, %v2827
      %v2830 = vunpack.c.l.s4 842150450
      %v2831 = vunpack.c.0.s8 %v2830
      %v2832 = vlaneseq
      %v2833 = vshrl.u32 %v2832, 7
      %v2834 = vsub.s32 %v2831, %v2833
      %v2835 = vrot.slane %v2303, %v2834
      %v2837 = vunpack.c.l.s4 1414812756
      %v2838 = vunpack.c.0.s8 %v2837
      %v2839 = vlaneseq
      %v2840 = vshrl.u32 %v2839, 7
      %v2841 = vsub.s32 %v2838, %v2840
      %v2842 = vrot.slane %v2303, %v2841
      %v2844 = vunpack.c.l.s4 1987475062
      %v2845 = vunpack.c.0.s8 %v2844
      %v2846 = vlaneseq
      %v2847 = vshrl.u32 %v2846, 7
      %v2848 = vsub.s32 %v2845, %v2847
      %v2849 = vrot.slane %v2303, %v2848
      %v2851 = vunpack.c.l.s4 269488144
      %v2852 = vunpack.c.0.s8 %v2851
      %v2853 = vlaneseq
      %v2854 = vshrl.u32 %v2853, 7
      %v2855 = vsub.s32 %v2852, %v2854
      %v2856 = vrot.slane %v2307, %v2855
      %v2858 = vunpack.c.l.s4 842150450
      %v2859 = vunpack.c.0.s8 %v2858
      %v2860 = vlaneseq
      %v2861 = vshrl.u32 %v2860, 7
      %v2862 = vsub.s32 %v2859, %v2861
      %v2863 = vrot.slane %v2307, %v2862
      %v2865 = vunpack.c.l.s4 1414812756
      %v2866 = vunpack.c.0.s8 %v2865
      %v2867 = vlaneseq
      %v2868 = vshrl.u32 %v2867, 7
      %v2869 = vsub.s32 %v2866, %v2868
      %v2870 = vrot.slane %v2307, %v2869
      %v2872 = vunpack.c.l.s4 1987475062
      %v2873 = vunpack.c.0.s8 %v2872
      %v2874 = vlaneseq
      %v2875 = vshrl.u32 %v2874, 7
      %v2876 = vsub.s32 %v2873, %v2875
      %v2877 = vrot.slane %v2307, %v2876
      %v2879 = vunpack.c.l.s4 269488144
      %v2880 = vunpack.c.0.s8 %v2879
      %v2881 = vlaneseq
      %v2882 = vshrl.u32 %v2881, 7
      %v2883 = vsub.s32 %v2880, %v2882
      %v2884 = vrot.slane %v2311, %v2883
      %v2886 = vunpack.c.l.s4 269488144
      %v2887 = vunpack.c.0.s8 %v2886
      %v2888 = vlaneseq
      %v2889 = vshrl.u32 %v2888, 7
      %v2890 = vsub.s32 %v2887, %v2889
      %v2891 = vrot.slane %v2315, %v2890
      %v2893 = vunpack.c.l.s4 842150450
      %v2894 = vunpack.c.0.s8 %v2893
      %v2895 = vlaneseq
      %v2896 = vshrl.u32 %v2895, 7
      %v2897 = vsub.s32 %v2894, %v2896
      %v2898 = vrot.slane %v2315, %v2897
      %v2900 = vunpack.c.l.s4 1414812756
      %v2901 = vunpack.c.0.s8 %v2900
      %v2902 = vlaneseq
      %v2903 = vshrl.u32 %v2902, 7
      %v2904 = vsub.s32 %v2901, %v2903
      %v2905 = vrot.slane %v2315, %v2904
      %v2907 = vunpack.c.l.s4 1987475062
      %v2908 = vunpack.c.0.s8 %v2907
      %v2909 = vlaneseq
      %v2910 = vshrl.u32 %v2909, 7
      %v2911 = vsub.s32 %v2908, %v2910
      %v2912 = vrot.slane %v2315, %v2911
      %v2914 = vunpack.c.l.s4 269488144
      %v2915 = vunpack.c.0.s8 %v2914
      %v2916 = vlaneseq
      %v2917 = vshrl.u32 %v2916, 7
      %v2918 = vsub.s32 %v2915, %v2917
      %v2919 = vrot.slane %v2319, %v2918
      %v2921 = vunpack.c.l.s4 842150450
      %v2922 = vunpack.c.0.s8 %v2921
      %v2923 = vlaneseq
      %v2924 = vshrl.u32 %v2923, 7
      %v2925 = vsub.s32 %v2922, %v2924
      %v2926 = vrot.slane %v2319, %v2925
      %v2928 = vunpack.c.l.s4 1414812756
      %v2929 = vunpack.c.0.s8 %v2928
      %v2930 = vlaneseq
      %v2931 = vshrl.u32 %v2930, 7
      %v2932 = vsub.s32 %v2929, %v2931
      %v2933 = vrot.slane %v2319, %v2932
      %v2935 = vunpack.c.l.s4 1987475062
      %v2936 = vunpack.c.0.s8 %v2935
      %v2937 = vlaneseq
      %v2938 = vshrl.u32 %v2937, 7
      %v2939 = vsub.s32 %v2936, %v2938
      %v2940 = vrot.slane %v2319, %v2939
      %v2942 = vunpack.c.l.s4 269488144
      %v2943 = vunpack.c.0.s8 %v2942
      %v2944 = vlaneseq
      %v2945 = vshrl.u32 %v2944, 7
      %v2946 = vsub.s32 %v2943, %v2945
      %v2947 = vrot.slane %v2323, %v2946
      %v2949 = vunpack.c.l.s4 269488144
      %v2950 = vunpack.c.0.s8 %v2949
      %v2951 = vlaneseq
      %v2952 = vshrl.u32 %v2951, 7
      %v2953 = vsub.s32 %v2950, %v2952
      %v2954 = vrot.slane %v2327, %v2953
      %v2956 = vunpack.c.l.s4 842150450
      %v2957 = vunpack.c.0.s8 %v2956
      %v2958 = vlaneseq
      %v2959 = vshrl.u32 %v2958, 7
      %v2960 = vsub.s32 %v2957, %v2959
      %v2961 = vrot.slane %v2327, %v2960
      %v2963 = vunpack.c.l.s4 1414812756
      %v2964 = vunpack.c.0.s8 %v2963
      %v2965 = vlaneseq
      %v2966 = vshrl.u32 %v2965, 7
      %v2967 = vsub.s32 %v2964, %v2966
      %v2968 = vrot.slane %v2327, %v2967
      %v2970 = vunpack.c.l.s4 1987475062
      %v2971 = vunpack.c.0.s8 %v2970
      %v2972 = vlaneseq
      %v2973 = vshrl.u32 %v2972, 7
      %v2974 = vsub.s32 %v2971, %v2973
      %v2975 = vrot.slane %v2327, %v2974
      %v2977 = vunpack.c.l.s4 269488144
      %v2978 = vunpack.c.0.s8 %v2977
      %v2979 = vlaneseq
      %v2980 = vshrl.u32 %v2979, 7
      %v2981 = vsub.s32 %v2978, %v2980
      %v2982 = vrot.slane %v2331, %v2981
      %v2984 = vunpack.c.l.s4 842150450
      %v2985 = vunpack.c.0.s8 %v2984
      %v2986 = vlaneseq
      %v2987 = vshrl.u32 %v2986, 7
      %v2988 = vsub.s32 %v2985, %v2987
      %v2989 = vrot.slane %v2331, %v2988
      %v2991 = vunpack.c.l.s4 1414812756
      %v2992 = vunpack.c.0.s8 %v2991
      %v2993 = vlaneseq
      %v2994 = vshrl.u32 %v2993, 7
      %v2995 = vsub.s32 %v2992, %v2994
      %v2996 = vrot.slane %v2331, %v2995
      %v2998 = vunpack.c.l.s4 1987475062
      %v2999 = vunpack.c.0.s8 %v2998
      %v3000 = vlaneseq
      %v3001 = vshrl.u32 %v3000, 7
      %v3002 = vsub.s32 %v2999, %v3001
      %v3003 = vrot.slane %v2331, %v3002
      %v3005 = vunpack.c.l.s4 269488144
      %v3006 = vunpack.c.0.s8 %v3005
      %v3007 = vlaneseq
      %v3008 = vshrl.u32 %v3007, 7
      %v3009 = vsub.s32 %v3006, %v3008
      %v3010 = vrot.slane %v2335, %v3009
      %v3012 = vunpack.c.l.s4 269488144
      %v3013 = vunpack.c.0.s8 %v3012
      %v3014 = vlaneseq
      %v3015 = vshrl.u32 %v3014, 7
      %v3016 = vsub.s32 %v3013, %v3015
      %v3017 = vrot.slane %v2339, %v3016
      %v3019 = vunpack.c.l.s4 842150450
      %v3020 = vunpack.c.0.s8 %v3019
      %v3021 = vlaneseq
      %v3022 = vshrl.u32 %v3021, 7
      %v3023 = vsub.s32 %v3020, %v3022
      %v3024 = vrot.slane %v2339, %v3023
      %v3026 = vunpack.c.l.s4 1414812756
      %v3027 = vunpack.c.0.s8 %v3026
      %v3028 = vlaneseq
      %v3029 = vshrl.u32 %v3028, 7
      %v3030 = vsub.s32 %v3027, %v3029
      %v3031 = vrot.slane %v2339, %v3030
      %v3033 = vunpack.c.l.s4 1987475062
      %v3034 = vunpack.c.0.s8 %v3033
      %v3035 = vlaneseq
      %v3036 = vshrl.u32 %v3035, 7
      %v3037 = vsub.s32 %v3034, %v3036
      %v3038 = vrot.slane %v2339, %v3037
      %v3040 = vunpack.c.l.s4 269488144
      %v3041 = vunpack.c.0.s8 %v3040
      %v3042 = vlaneseq
      %v3043 = vshrl.u32 %v3042, 7
      %v3044 = vsub.s32 %v3041, %v3043
      %v3045 = vrot.slane %v2343, %v3044
      %v3047 = vunpack.c.l.s4 842150450
      %v3048 = vunpack.c.0.s8 %v3047
      %v3049 = vlaneseq
      %v3050 = vshrl.u32 %v3049, 7
      %v3051 = vsub.s32 %v3048, %v3050
      %v3052 = vrot.slane %v2343, %v3051
      %v3054 = vunpack.c.l.s4 1414812756
      %v3055 = vunpack.c.0.s8 %v3054
      %v3056 = vlaneseq
      %v3057 = vshrl.u32 %v3056, 7
      %v3058 = vsub.s32 %v3055, %v3057
      %v3059 = vrot.slane %v2343, %v3058
      %v3061 = vunpack.c.l.s4 1987475062
      %v3062 = vunpack.c.0.s8 %v3061
      %v3063 = vlaneseq
      %v3064 = vshrl.u32 %v3063, 7
      %v3065 = vsub.s32 %v3062, %v3064
      %v3066 = vrot.slane %v2343, %v3065
      %v3068 = vunpack.c.l.s4 269488144
      %v3069 = vunpack.c.0.s8 %v3068
      %v3070 = vlaneseq
      %v3071 = vshrl.u32 %v3070, 7
      %v3072 = vsub.s32 %v3069, %v3071
      %v3073 = vrot.slane %v2347, %v3072
      %v3075 = vunpack.c.l.s4 269488144
      %v3076 = vunpack.c.0.s8 %v3075
      %v3077 = vlaneseq
      %v3078 = vshrl.u32 %v3077, 7
      %v3079 = vsub.s32 %v3076, %v3078
      %v3080 = vrot.slane %v2351, %v3079
      %v3082 = vunpack.c.l.s4 842150450
      %v3083 = vunpack.c.0.s8 %v3082
      %v3084 = vlaneseq
      %v3085 = vshrl.u32 %v3084, 7
      %v3086 = vsub.s32 %v3083, %v3085
      %v3087 = vrot.slane %v2351, %v3086
      %v3089 = vunpack.c.l.s4 1414812756
      %v3090 = vunpack.c.0.s8 %v3089
      %v3091 = vlaneseq
      %v3092 = vshrl.u32 %v3091, 7
      %v3093 = vsub.s32 %v3090, %v3092
      %v3094 = vrot.slane %v2351, %v3093
      %v3096 = vunpack.c.l.s4 1987475062
      %v3097 = vunpack.c.0.s8 %v3096
      %v3098 = vlaneseq
      %v3099 = vshrl.u32 %v3098, 7
      %v3100 = vsub.s32 %v3097, %v3099
      %v3101 = vrot.slane %v2351, %v3100
      %v3103 = vunpack.c.l.s4 269488144
      %v3104 = vunpack.c.0.s8 %v3103
      %v3105 = vlaneseq
      %v3106 = vshrl.u32 %v3105, 7
      %v3107 = vsub.s32 %v3104, %v3106
      %v3108 = vrot.slane %v2355, %v3107
      %v3110 = vunpack.c.l.s4 842150450
      %v3111 = vunpack.c.0.s8 %v3110
      %v3112 = vlaneseq
      %v3113 = vshrl.u32 %v3112, 7
      %v3114 = vsub.s32 %v3111, %v3113
      %v3115 = vrot.slane %v2355, %v3114
      %v3117 = vunpack.c.l.s4 1414812756
      %v3118 = vunpack.c.0.s8 %v3117
      %v3119 = vlaneseq
      %v3120 = vshrl.u32 %v3119, 7
      %v3121 = vsub.s32 %v3118, %v3120
      %v3122 = vrot.slane %v2355, %v3121
      %v3124 = vunpack.c.l.s4 1987475062
      %v3125 = vunpack.c.0.s8 %v3124
      %v3126 = vlaneseq
      %v3127 = vshrl.u32 %v3126, 7
      %v3128 = vsub.s32 %v3125, %v3127
      %v3129 = vrot.slane %v2355, %v3128
      %v3131 = vunpack.c.l.s4 269488144
      %v3132 = vunpack.c.0.s8 %v3131
      %v3133 = vlaneseq
      %v3134 = vshrl.u32 %v3133, 7
      %v3135 = vsub.s32 %v3132, %v3134
      %v3136 = vrot.slane %v2359, %v3135
      %v3138 = vunpack.c.l.s4 269488144
      %v3139 = vunpack.c.0.s8 %v3138
      %v3140 = vlaneseq
      %v3141 = vshrl.u32 %v3140, 7
      %v3142 = vsub.s32 %v3139, %v3141
      %v3143 = vrot.slane %v2363, %v3142
      %v3145 = vunpack.c.l.s4 842150450
      %v3146 = vunpack.c.0.s8 %v3145
      %v3147 = vlaneseq
      %v3148 = vshrl.u32 %v3147, 7
      %v3149 = vsub.s32 %v3146, %v3148
      %v3150 = vrot.slane %v2363, %v3149
      %v3152 = vunpack.c.l.s4 1414812756
      %v3153 = vunpack.c.0.s8 %v3152
      %v3154 = vlaneseq
      %v3155 = vshrl.u32 %v3154, 7
      %v3156 = vsub.s32 %v3153, %v3155
      %v3157 = vrot.slane %v2363, %v3156
      %v3159 = vunpack.c.l.s4 1987475062
      %v3160 = vunpack.c.0.s8 %v3159
      %v3161 = vlaneseq
      %v3162 = vshrl.u32 %v3161, 7
      %v3163 = vsub.s32 %v3160, %v3162
      %v3164 = vrot.slane %v2363, %v3163
      %v3166 = vunpack.c.l.s4 269488144
      %v3167 = vunpack.c.0.s8 %v3166
      %v3168 = vlaneseq
      %v3169 = vshrl.u32 %v3168, 7
      %v3170 = vsub.s32 %v3167, %v3169
      %v3171 = vrot.slane %v2367, %v3170
      %v3173 = vunpack.c.l.s4 842150450
      %v3174 = vunpack.c.0.s8 %v3173
      %v3175 = vlaneseq
      %v3176 = vshrl.u32 %v3175, 7
      %v3177 = vsub.s32 %v3174, %v3176
      %v3178 = vrot.slane %v2367, %v3177
      %v3180 = vunpack.c.l.s4 1414812756
      %v3181 = vunpack.c.0.s8 %v3180
      %v3182 = vlaneseq
      %v3183 = vshrl.u32 %v3182, 7
      %v3184 = vsub.s32 %v3181, %v3183
      %v3185 = vrot.slane %v2367, %v3184
      %v3187 = vunpack.c.l.s4 1987475062
      %v3188 = vunpack.c.0.s8 %v3187
      %v3189 = vlaneseq
      %v3190 = vshrl.u32 %v3189, 7
      %v3191 = vsub.s32 %v3188, %v3190
      %v3192 = vrot.slane %v2367, %v3191
      %v3194 = vunpack.c.l.s4 269488144
      %v3195 = vunpack.c.0.s8 %v3194
      %v3196 = vlaneseq
      %v3197 = vshrl.u32 %v3196, 7
      %v3198 = vsub.s32 %v3195, %v3197
      %v3199 = vrot.slane %v2371, %v3198
      %v3201 = vunpack.c.l.s4 269488144
      %v3202 = vunpack.c.0.s8 %v3201
      %v3203 = vlaneseq
      %v3204 = vshrl.u32 %v3203, 7
      %v3205 = vsub.s32 %v3202, %v3204
      %v3206 = vrot.slane %v2375, %v3205
      %v3208 = vunpack.c.l.s4 842150450
      %v3209 = vunpack.c.0.s8 %v3208
      %v3210 = vlaneseq
      %v3211 = vshrl.u32 %v3210, 7
      %v3212 = vsub.s32 %v3209, %v3211
      %v3213 = vrot.slane %v2375, %v3212
      %v3215 = vunpack.c.l.s4 1414812756
      %v3216 = vunpack.c.0.s8 %v3215
      %v3217 = vlaneseq
      %v3218 = vshrl.u32 %v3217, 7
      %v3219 = vsub.s32 %v3216, %v3218
      %v3220 = vrot.slane %v2375, %v3219
      %v3222 = vunpack.c.l.s4 1987475062
      %v3223 = vunpack.c.0.s8 %v3222
      %v3224 = vlaneseq
      %v3225 = vshrl.u32 %v3224, 7
      %v3226 = vsub.s32 %v3223, %v3225
      %v3227 = vrot.slane %v2375, %v3226
      %v3229 = vunpack.c.l.s4 269488144
      %v3230 = vunpack.c.0.s8 %v3229
      %v3231 = vlaneseq
      %v3232 = vshrl.u32 %v3231, 7
      %v3233 = vsub.s32 %v3230, %v3232
      %v3234 = vrot.slane %v2379, %v3233
      %v3236 = vunpack.c.l.s4 842150450
      %v3237 = vunpack.c.0.s8 %v3236
      %v3238 = vlaneseq
      %v3239 = vshrl.u32 %v3238, 7
      %v3240 = vsub.s32 %v3237, %v3239
      %v3241 = vrot.slane %v2379, %v3240
      %v3243 = vunpack.c.l.s4 1414812756
      %v3244 = vunpack.c.0.s8 %v3243
      %v3245 = vlaneseq
      %v3246 = vshrl.u32 %v3245, 7
      %v3247 = vsub.s32 %v3244, %v3246
      %v3248 = vrot.slane %v2379, %v3247
      %v3250 = vunpack.c.l.s4 1987475062
      %v3251 = vunpack.c.0.s8 %v3250
      %v3252 = vlaneseq
      %v3253 = vshrl.u32 %v3252, 7
      %v3254 = vsub.s32 %v3251, %v3253
      %v3255 = vrot.slane %v2379, %v3254
      %v3257 = vunpack.c.l.s4 269488144
      %v3258 = vunpack.c.0.s8 %v3257
      %v3259 = vlaneseq
      %v3260 = vshrl.u32 %v3259, 7
      %v3261 = vsub.s32 %v3258, %v3260
      %v3262 = vrot.slane %v2383, %v3261
      %v3264 = vunpack.c.l.s4 269488144
      %v3265 = vunpack.c.0.s8 %v3264
      %v3266 = vlaneseq
      %v3267 = vshrl.u32 %v3266, 7
      %v3268 = vsub.s32 %v3265, %v3267
      %v3269 = vrot.slane %v2387, %v3268
      %v3271 = vunpack.c.l.s4 842150450
      %v3272 = vunpack.c.0.s8 %v3271
      %v3273 = vlaneseq
      %v3274 = vshrl.u32 %v3273, 7
      %v3275 = vsub.s32 %v3272, %v3274
      %v3276 = vrot.slane %v2387, %v3275
      %v3278 = vunpack.c.l.s4 1414812756
      %v3279 = vunpack.c.0.s8 %v3278
      %v3280 = vlaneseq
      %v3281 = vshrl.u32 %v3280, 7
      %v3282 = vsub.s32 %v3279, %v3281
      %v3283 = vrot.slane %v2387, %v3282
      %v3285 = vunpack.c.l.s4 1987475062
      %v3286 = vunpack.c.0.s8 %v3285
      %v3287 = vlaneseq
      %v3288 = vshrl.u32 %v3287, 7
      %v3289 = vsub.s32 %v3286, %v3288
      %v3290 = vrot.slane %v2387, %v3289
      %v3292 = vunpack.c.l.s4 269488144
      %v3293 = vunpack.c.0.s8 %v3292
      %v3294 = vlaneseq
      %v3295 = vshrl.u32 %v3294, 7
      %v3296 = vsub.s32 %v3293, %v3295
      %v3297 = vrot.slane %v2391, %v3296
      %v3299 = vunpack.c.l.s4 842150450
      %v3300 = vunpack.c.0.s8 %v3299
      %v3301 = vlaneseq
      %v3302 = vshrl.u32 %v3301, 7
      %v3303 = vsub.s32 %v3300, %v3302
      %v3304 = vrot.slane %v2391, %v3303
      %v3306 = vunpack.c.l.s4 1414812756
      %v3307 = vunpack.c.0.s8 %v3306
      %v3308 = vlaneseq
      %v3309 = vshrl.u32 %v3308, 7
      %v3310 = vsub.s32 %v3307, %v3309
      %v3311 = vrot.slane %v2391, %v3310
      %v3313 = vunpack.c.l.s4 1987475062
      %v3314 = vunpack.c.0.s8 %v3313
      %v3315 = vlaneseq
      %v3316 = vshrl.u32 %v3315, 7
      %v3317 = vsub.s32 %v3314, %v3316
      %v3318 = vrot.slane %v2391, %v3317
      %v3320 = vunpack.c.l.s4 269488144
      %v3321 = vunpack.c.0.s8 %v3320
      %v3322 = vlaneseq
      %v3323 = vshrl.u32 %v3322, 7
      %v3324 = vsub.s32 %v3321, %v3323
      %v3325 = vrot.slane %v2395, %v3324
      %v3327 = vunpack.c.l.s4 269488144
      %v3328 = vunpack.c.0.s8 %v3327
      %v3329 = vlaneseq
      %v3330 = vshrl.u32 %v3329, 7
      %v3331 = vsub.s32 %v3328, %v3330
      %v3332 = vrot.slane %v2399, %v3331
      %v3334 = vunpack.c.l.s4 842150450
      %v3335 = vunpack.c.0.s8 %v3334
      %v3336 = vlaneseq
      %v3337 = vshrl.u32 %v3336, 7
      %v3338 = vsub.s32 %v3335, %v3337
      %v3339 = vrot.slane %v2399, %v3338
      %v3341 = vunpack.c.l.s4 1414812756
      %v3342 = vunpack.c.0.s8 %v3341
      %v3343 = vlaneseq
      %v3344 = vshrl.u32 %v3343, 7
      %v3345 = vsub.s32 %v3342, %v3344
      %v3346 = vrot.slane %v2399, %v3345
      %v3348 = vunpack.c.l.s4 1987475062
      %v3349 = vunpack.c.0.s8 %v3348
      %v3350 = vlaneseq
      %v3351 = vshrl.u32 %v3350, 7
      %v3352 = vsub.s32 %v3349, %v3351
      %v3353 = vrot.slane %v2399, %v3352
      %v3355 = vunpack.c.l.s4 269488144
      %v3356 = vunpack.c.0.s8 %v3355
      %v3357 = vlaneseq
      %v3358 = vshrl.u32 %v3357, 7
      %v3359 = vsub.s32 %v3356, %v3358
      %v3360 = vrot.slane %v2403, %v3359
      %v3362 = vunpack.c.l.s4 842150450
      %v3363 = vunpack.c.0.s8 %v3362
      %v3364 = vlaneseq
      %v3365 = vshrl.u32 %v3364, 7
      %v3366 = vsub.s32 %v3363, %v3365
      %v3367 = vrot.slane %v2403, %v3366
      %v3369 = vunpack.c.l.s4 1414812756
      %v3370 = vunpack.c.0.s8 %v3369
      %v3371 = vlaneseq
      %v3372 = vshrl.u32 %v3371, 7
      %v3373 = vsub.s32 %v3370, %v3372
      %v3374 = vrot.slane %v2403, %v3373
      %v3376 = vunpack.c.l.s4 1987475062
      %v3377 = vunpack.c.0.s8 %v3376
      %v3378 = vlaneseq
      %v3379 = vshrl.u32 %v3378, 7
      %v3380 = vsub.s32 %v3377, %v3379
      %v3381 = vrot.slane %v2403, %v3380
      %v3383 = vunpack.c.l.s4 269488144
      %v3384 = vunpack.c.0.s8 %v3383
      %v3385 = vlaneseq
      %v3386 = vshrl.u32 %v3385, 7
      %v3387 = vsub.s32 %v3384, %v3386
      %v3388 = vrot.slane %v2407, %v3387
      %v3390 = vunpack.c.l.s4 269488144
      %v3391 = vunpack.c.0.s8 %v3390
      %v3392 = vlaneseq
      %v3393 = vshrl.u32 %v3392, 7
      %v3394 = vsub.s32 %v3391, %v3393
      %v3395 = vrot.slane %v2411, %v3394
      %v3397 = vunpack.c.l.s4 842150450
      %v3398 = vunpack.c.0.s8 %v3397
      %v3399 = vlaneseq
      %v3400 = vshrl.u32 %v3399, 7
      %v3401 = vsub.s32 %v3398, %v3400
      %v3402 = vrot.slane %v2411, %v3401
      %v3404 = vunpack.c.l.s4 1414812756
      %v3405 = vunpack.c.0.s8 %v3404
      %v3406 = vlaneseq
      %v3407 = vshrl.u32 %v3406, 7
      %v3408 = vsub.s32 %v3405, %v3407
      %v3409 = vrot.slane %v2411, %v3408
      %v3411 = vunpack.c.l.s4 1987475062
      %v3412 = vunpack.c.0.s8 %v3411
      %v3413 = vlaneseq
      %v3414 = vshrl.u32 %v3413, 7
      %v3415 = vsub.s32 %v3412, %v3414
      %v3416 = vrot.slane %v2411, %v3415
      %v3418 = vunpack.c.l.s4 269488144
      %v3419 = vunpack.c.0.s8 %v3418
      %v3420 = vlaneseq
      %v3421 = vshrl.u32 %v3420, 7
      %v3422 = vsub.s32 %v3419, %v3421
      %v3423 = vrot.slane %v2415, %v3422
      %v3425 = vunpack.c.l.s4 842150450
      %v3426 = vunpack.c.0.s8 %v3425
      %v3427 = vlaneseq
      %v3428 = vshrl.u32 %v3427, 7
      %v3429 = vsub.s32 %v3426, %v3428
      %v3430 = vrot.slane %v2415, %v3429
      %v3432 = vunpack.c.l.s4 1414812756
      %v3433 = vunpack.c.0.s8 %v3432
      %v3434 = vlaneseq
      %v3435 = vshrl.u32 %v3434, 7
      %v3436 = vsub.s32 %v3433, %v3435
      %v3437 = vrot.slane %v2415, %v3436
      %v3439 = vunpack.c.l.s4 1987475062
      %v3440 = vunpack.c.0.s8 %v3439
      %v3441 = vlaneseq
      %v3442 = vshrl.u32 %v3441, 7
      %v3443 = vsub.s32 %v3440, %v3442
      %v3444 = vrot.slane %v2415, %v3443
      %v3446 = vunpack.c.l.s4 269488144
      %v3447 = vunpack.c.0.s8 %v3446
      %v3448 = vlaneseq
      %v3449 = vshrl.u32 %v3448, 7
      %v3450 = vsub.s32 %v3447, %v3449
      %v3451 = vrot.slane %v2419, %v3450
      %v3453 = vunpack.c.l.s4 269488144
      %v3454 = vunpack.c.0.s8 %v3453
      %v3455 = vlaneseq
      %v3456 = vshrl.u32 %v3455, 7
      %v3457 = vsub.s32 %v3454, %v3456
      %v3458 = vrot.slane %v2423, %v3457
      %v3460 = vunpack.c.l.s4 842150450
      %v3461 = vunpack.c.0.s8 %v3460
      %v3462 = vlaneseq
      %v3463 = vshrl.u32 %v3462, 7
      %v3464 = vsub.s32 %v3461, %v3463
      %v3465 = vrot.slane %v2423, %v3464
      %v3467 = vunpack.c.l.s4 1414812756
      %v3468 = vunpack.c.0.s8 %v3467
      %v3469 = vlaneseq
      %v3470 = vshrl.u32 %v3469, 7
      %v3471 = vsub.s32 %v3468, %v3470
      %v3472 = vrot.slane %v2423, %v3471
      %v3474 = vunpack.c.l.s4 1987475062
      %v3475 = vunpack.c.0.s8 %v3474
      %v3476 = vlaneseq
      %v3477 = vshrl.u32 %v3476, 7
      %v3478 = vsub.s32 %v3475, %v3477
      %v3479 = vrot.slane %v2423, %v3478
      %v3481 = vunpack.c.l.s4 269488144
      %v3482 = vunpack.c.0.s8 %v3481
      %v3483 = vlaneseq
      %v3484 = vshrl.u32 %v3483, 7
      %v3485 = vsub.s32 %v3482, %v3484
      %v3486 = vrot.slane %v2427, %v3485
      %v3488 = vunpack.c.l.s4 842150450
      %v3489 = vunpack.c.0.s8 %v3488
      %v3490 = vlaneseq
      %v3491 = vshrl.u32 %v3490, 7
      %v3492 = vsub.s32 %v3489, %v3491
      %v3493 = vrot.slane %v2427, %v3492
      %v3495 = vunpack.c.l.s4 1414812756
      %v3496 = vunpack.c.0.s8 %v3495
      %v3497 = vlaneseq
      %v3498 = vshrl.u32 %v3497, 7
      %v3499 = vsub.s32 %v3496, %v3498
      %v3500 = vrot.slane %v2427, %v3499
      %v3502 = vunpack.c.l.s4 1987475062
      %v3503 = vunpack.c.0.s8 %v3502
      %v3504 = vlaneseq
      %v3505 = vshrl.u32 %v3504, 7
      %v3506 = vsub.s32 %v3503, %v3505
      %v3507 = vrot.slane %v2427, %v3506
      %v3509 = vunpack.c.l.s4 269488144
      %v3510 = vunpack.c.0.s8 %v3509
      %v3511 = vlaneseq
      %v3512 = vshrl.u32 %v3511, 7
      %v3513 = vsub.s32 %v3510, %v3512
      %v3514 = vrot.slane %v2431, %v3513
      %v3516 = vunpack.c.l.s4 269488144
      %v3517 = vunpack.c.0.s8 %v3516
      %v3518 = vlaneseq
      %v3519 = vshrl.u32 %v3518, 7
      %v3520 = vsub.s32 %v3517, %v3519
      %v3521 = vrot.slane %v2435, %v3520
      %v3523 = vunpack.c.l.s4 842150450
      %v3524 = vunpack.c.0.s8 %v3523
      %v3525 = vlaneseq
      %v3526 = vshrl.u32 %v3525, 7
      %v3527 = vsub.s32 %v3524, %v3526
      %v3528 = vrot.slane %v2435, %v3527
      %v3530 = vunpack.c.l.s4 1414812756
      %v3531 = vunpack.c.0.s8 %v3530
      %v3532 = vlaneseq
      %v3533 = vshrl.u32 %v3532, 7
      %v3534 = vsub.s32 %v3531, %v3533
      %v3535 = vrot.slane %v2435, %v3534
      %v3537 = vunpack.c.l.s4 1987475062
      %v3538 = vunpack.c.0.s8 %v3537
      %v3539 = vlaneseq
      %v3540 = vshrl.u32 %v3539, 7
      %v3541 = vsub.s32 %v3538, %v3540
      %v3542 = vrot.slane %v2435, %v3541
      %v3544 = vunpack.c.l.s4 269488144
      %v3545 = vunpack.c.0.s8 %v3544
      %v3546 = vlaneseq
      %v3547 = vshrl.u32 %v3546, 7
      %v3548 = vsub.s32 %v3545, %v3547
      %v3549 = vrot.slane %v2439, %v3548
      %v3551 = vunpack.c.l.s4 842150450
      %v3552 = vunpack.c.0.s8 %v3551
      %v3553 = vlaneseq
      %v3554 = vshrl.u32 %v3553, 7
      %v3555 = vsub.s32 %v3552, %v3554
      %v3556 = vrot.slane %v2439, %v3555
      %v3558 = vunpack.c.l.s4 1414812756
      %v3559 = vunpack.c.0.s8 %v3558
      %v3560 = vlaneseq
      %v3561 = vshrl.u32 %v3560, 7
      %v3562 = vsub.s32 %v3559, %v3561
      %v3563 = vrot.slane %v2439, %v3562
      %v3565 = vunpack.c.l.s4 1987475062
      %v3566 = vunpack.c.0.s8 %v3565
      %v3567 = vlaneseq
      %v3568 = vshrl.u32 %v3567, 7
      %v3569 = vsub.s32 %v3566, %v3568
      %v3570 = vrot.slane %v2439, %v3569
      %v3572 = vunpack.c.l.s4 269488144
      %v3573 = vunpack.c.0.s8 %v3572
      %v3574 = vlaneseq
      %v3575 = vshrl.u32 %v3574, 7
      %v3576 = vsub.s32 %v3573, %v3575
      %v3577 = vrot.slane %v2443, %v3576
      %v3740 = vmul.f32 %v2012, %v2450
      %v3741 = vmul.f32 %v2013, %v2457
      %v3742 = vmul.f32 %v2014, %v2464
      %v3743 = vmul.f32 %v2015, %v2471
      %v3744 = vmul.f32 %v2016, %v2478
      %v3745 = vmul.f32 %v2017, %v2485
      %v3746 = vmul.f32 %v2018, %v2492
      %v3747 = vmul.f32 %v2019, %v2499
      %v3748 = vmul.f32 %v2020, %v2506
      %v3749 = vmul.f32 %v2021, %v2513
      %v3750 = vmul.f32 %v2022, %v2520
      %v3751 = vmul.f32 %v2023, %v2527
      %v3752 = vmul.f32 %v2024, %v2534
      %v3753 = vmul.f32 %v2025, %v2541
      %v3754 = vmul.f32 %v2026, %v2548
      %v3755 = vmul.f32 %v2027, %v2555
      %v3756 = vmul.f32 %v2028, %v2562
      %v3757 = vmul.f32 %v2029, %v2569
      %v3758 = vmul.f32 %v2030, %v2576
      %v3759 = vmul.f32 %v2031, %v2583
      %v3760 = vmul.f32 %v2032, %v2590
      %v3761 = vmul.f32 %v2033, %v2597
      %v3762 = vmul.f32 %v2034, %v2604
      %v3763 = vmul.f32 %v2035, %v2611
      %v3764 = vmul.f32 %v2036, %v2618
      %v3765 = vmul.f32 %v2037, %v2625
      %v3766 = vmul.f32 %v2038, %v2632
      %v3767 = vmul.f32 %v2039, %v2639
      %v3768 = vmul.f32 %v2040, %v2646
      %v3769 = vmul.f32 %v2041, %v2653
      %v3770 = vmul.f32 %v2042, %v2660
      %v3771 = vmul.f32 %v2043, %v2667
      %v3772 = vmul.f32 %v2044, %v2674
      %v3773 = vmul.f32 %v2045, %v2681
      %v3774 = vmul.f32 %v2046, %v2688
      %v3775 = vmul.f32 %v2047, %v2695
      %v3776 = vmul.f32 %v2048, %v2702
      %v3777 = vmul.f32 %v2049, %v2709
      %v3778 = vmul.f32 %v2050, %v2716
      %v3779 = vmul.f32 %v2051, %v2723
      %v3780 = vmul.f32 %v2052, %v2730
      %v3781 = vmul.f32 %v2053, %v2737
      %v3782 = vmul.f32 %v2054, %v2744
      %v3783 = vmul.f32 %v2055, %v2751
      %v3784 = vmul.f32 %v2056, %v2758
      %v3785 = vmul.f32 %v2057, %v2765
      %v3786 = vmul.f32 %v2058, %v2772
      %v3787 = vmul.f32 %v2059, %v2779
      %v3788 = vmul.f32 %v2060, %v2786
      %v3789 = vmul.f32 %v2061, %v2793
      %v3790 = vmul.f32 %v2062, %v2800
      %v3791 = vmul.f32 %v2063, %v2807
      %v3792 = vmul.f32 %v2064, %v2814
      %v3793 = vmul.f32 %v2065, %v2821
      %v3794 = vmul.f32 %v2066, %v2828
      %v3795 = vmul.f32 %v2067, %v2835
      %v3796 = vmul.f32 %v2068, %v2842
      %v3797 = vmul.f32 %v2069, %v2849
      %v3798 = vmul.f32 %v2070, %v2856
      %v3799 = vmul.f32 %v2071, %v2863
      %v3800 = vmul.f32 %v2072, %v2870
      %v3801 = vmul.f32 %v2073, %v2877
      %v3802 = vmul.f32 %v2074, %v2884
      %v3803 = vmul.f32 %v2075, %v2891
      %v3804 = vmul.f32 %v2076, %v2898
      %v3805 = vmul.f32 %v2077, %v2905
      %v3806 = vmul.f32 %v2078, %v2912
      %v3807 = vmul.f32 %v2079, %v2919
      %v3808 = vmul.f32 %v2080, %v2926
      %v3809 = vmul.f32 %v2081, %v2933
      %v3810 = vmul.f32 %v2082, %v2940
      %v3811 = vmul.f32 %v2083, %v2947
      %v3812 = vmul.f32 %v2084, %v2954
      %v3813 = vmul.f32 %v2085, %v2961
      %v3814 = vmul.f32 %v2086, %v2968
      %v3815 = vmul.f32 %v2087, %v2975
      %v3816 = vmul.f32 %v2088, %v2982
      %v3817 = vmul.f32 %v2089, %v2989
      %v3818 = vmul.f32 %v2090, %v2996
      %v3819 = vmul.f32 %v2091, %v3003
      %v3820 = vmul.f32 %v2092, %v3010
      %v3821 = vmul.f32 %v2093, %v3017
      %v3822 = vmul.f32 %v2094, %v3024
      %v3823 = vmul.f32 %v2095, %v3031
      %v3824 = vmul.f32 %v2096, %v3038
      %v3825 = vmul.f32 %v2097, %v3045
      %v3826 = vmul.f32 %v2098, %v3052
      %v3827 = vmul.f32 %v2099, %v3059
      %v3828 = vmul.f32 %v2100, %v3066
      %v3829 = vmul.f32 %v2101, %v3073
      %v3830 = vmul.f32 %v2102, %v3080
      %v3831 = vmul.f32 %v2103, %v3087
      %v3832 = vmul.f32 %v2104, %v3094
      %v3833 = vmul.f32 %v2105, %v3101
      %v3834 = vmul.f32 %v2106, %v3108
      %v3835 = vmul.f32 %v2107, %v3115
      %v3836 = vmul.f32 %v2108, %v3122
      %v3837 = vmul.f32 %v2109, %v3129
      %v3838 = vmul.f32 %v2110, %v3136
      %v3839 = vmul.f32 %v2111, %v3143
      %v3840 = vmul.f32 %v2112, %v3150
      %v3841 = vmul.f32 %v2113, %v3157
      %v3842 = vmul.f32 %v2114, %v3164
      %v3843 = vmul.f32 %v2115, %v3171
      %v3844 = vmul.f32 %v2116, %v3178
      %v3845 = vmul.f32 %v2117, %v3185
      %v3846 = vmul.f32 %v2118, %v3192
      %v3847 = vmul.f32 %v2119, %v3199
      %v3848 = vmul.f32 %v2120, %v3206
      %v3849 = vmul.f32 %v2121, %v3213
      %v3850 = vmul.f32 %v2122, %v3220
      %v3851 = vmul.f32 %v2123, %v3227
      %v3852 = vmul.f32 %v2124, %v3234
      %v3853 = vmul.f32 %v2125, %v3241
      %v3854 = vmul.f32 %v2126, %v3248
      %v3855 = vmul.f32 %v2127, %v3255
      %v3856 = vmul.f32 %v2128, %v3262
      %v3857 = vmul.f32 %v2129, %v3269
      %v3858 = vmul.f32 %v2130, %v3276
      %v3859 = vmul.f32 %v2131, %v3283
      %v3860 = vmul.f32 %v2132, %v3290
      %v3861 = vmul.f32 %v2133, %v3297
      %v3862 = vmul.f32 %v2134, %v3304
      %v3863 = vmul.f32 %v2135, %v3311
      %v3864 = vmul.f32 %v2136, %v3318
      %v3865 = vmul.f32 %v2137, %v3325
      %v3866 = vmul.f32 %v2138, %v3332
      %v3867 = vmul.f32 %v2139, %v3339
      %v3868 = vmul.f32 %v2140, %v3346
      %v3869 = vmul.f32 %v2141, %v3353
      %v3870 = vmul.f32 %v2142, %v3360
      %v3871 = vmul.f32 %v2143, %v3367
      %v3872 = vmul.f32 %v2144, %v3374
      %v3873 = vmul.f32 %v2145, %v3381
      %v3874 = vmul.f32 %v2146, %v3388
      %v3875 = vmul.f32 %v2147, %v3395
      %v3876 = vmul.f32 %v2148, %v3402
      %v3877 = vmul.f32 %v2149, %v3409
      %v3878 = vmul.f32 %v2150, %v3416
      %v3879 = vmul.f32 %v2151, %v3423
      %v3880 = vmul.f32 %v2152, %v3430
      %v3881 = vmul.f32 %v2153, %v3437
      %v3882 = vmul.f32 %v2154, %v3444
      %v3883 = vmul.f32 %v2155, %v3451
      %v3884 = vmul.f32 %v2156, %v3458
      %v3885 = vmul.f32 %v2157, %v3465
      %v3886 = vmul.f32 %v2158, %v3472
      %v3887 = vmul.f32 %v2159, %v3479
      %v3888 = vmul.f32 %v2160, %v3486
      %v3889 = vmul.f32 %v2161, %v3493
      %v3890 = vmul.f32 %v2162, %v3500
      %v3891 = vmul.f32 %v2163, %v3507
      %v3892 = vmul.f32 %v2164, %v3514
      %v3893 = vmul.f32 %v2165, %v3521
      %v3894 = vmul.f32 %v2166, %v3528
      %v3895 = vmul.f32 %v2167, %v3535
      %v3896 = vmul.f32 %v2168, %v3542
      %v3897 = vmul.f32 %v2169, %v3549
      %v3898 = vmul.f32 %v2170, %v3556
      %v3899 = vmul.f32 %v2171, %v3563
      %v3900 = vmul.f32 %v2172, %v3570
      %v3901 = vmul.f32 %v2173, %v3577
      %vm4046 = vcmask 1040384
      %vm4047 = vcmask 1042434
      %vm4048 = vmor %vm4046, %vm4047
      %vm4049 = vcmask 1044484
      %vm4050 = vmor %vm4048, %vm4049
      %vm4051 = vcmask 1046534
      %vm4052 = vmor %vm4050, %vm4051
      %v4053 = vrot.slane %v3740, 7
      %v4054 = vrot.slane %v4053, 2
      %v4055 = vrot.slane %v3741, 7
      %v4056 = vsel %vm4052, %v4054, %v4055
      %v4057 = vrot.slane %v4055, 2
      %v4058 = vrot.slane %v3742, 7
      %v4059 = vsel %vm4052, %v4057, %v4058
      %v4060 = vrot.slane %v4058, 2
      %v4061 = vrot.slane %v3743, 7
      %v4062 = vsel %vm4052, %v4060, %v4061
      %v4063 = vrot.slane %v4061, 2
      %v4064 = vrot.slane %v3744, 7
      %v4065 = vsel %vm4052, %v4063, %v4064
      %v4066 = vrot.slane %v4064, 2
      %v4067 = vrot.slane %v3745, 7
      %v4068 = vsel %vm4052, %v4066, %v4067
      %v4069 = vrot.slane %v4067, 2
      %v4070 = vrot.slane %v3746, 7
      %v4071 = vsel %vm4052, %v4069, %v4070
      %v4072 = vrot.slane %v4070, 2
      %v4073 = vrot.slane %v3747, 7
      %v4074 = vsel %vm4052, %v4072, %v4073
      %v4075 = vrot.slane %v4073, 2
      %v4076 = vrot.slane %v3748, 7
      %v4077 = vsel %vm4052, %v4075, %v4076
      %v4078 = vrot.slane %v3749, 7
      %v4079 = vrot.slane %v4078, 2
      %v4080 = vrot.slane %v3750, 7
      %v4081 = vsel %vm4052, %v4079, %v4080
      %v4082 = vrot.slane %v4080, 2
      %v4083 = vrot.slane %v3751, 7
      %v4084 = vsel %vm4052, %v4082, %v4083
      %v4085 = vrot.slane %v4083, 2
      %v4086 = vrot.slane %v3752, 7
      %v4087 = vsel %vm4052, %v4085, %v4086
      %v4088 = vrot.slane %v4086, 2
      %v4089 = vrot.slane %v3753, 7
      %v4090 = vsel %vm4052, %v4088, %v4089
      %v4091 = vrot.slane %v4089, 2
      %v4092 = vrot.slane %v3754, 7
      %v4093 = vsel %vm4052, %v4091, %v4092
      %v4094 = vrot.slane %v4092, 2
      %v4095 = vrot.slane %v3755, 7
      %v4096 = vsel %vm4052, %v4094, %v4095
      %v4097 = vrot.slane %v4095, 2
      %v4098 = vrot.slane %v3756, 7
      %v4099 = vsel %vm4052, %v4097, %v4098
      %v4100 = vrot.slane %v4098, 2
      %v4101 = vrot.slane %v3757, 7
      %v4102 = vsel %vm4052, %v4100, %v4101
      %v4103 = vrot.slane %v3758, 7
      %v4104 = vrot.slane %v4103, 2
      %v4105 = vrot.slane %v3759, 7
      %v4106 = vsel %vm4052, %v4104, %v4105
      %v4107 = vrot.slane %v4105, 2
      %v4108 = vrot.slane %v3760, 7
      %v4109 = vsel %vm4052, %v4107, %v4108
      %v4110 = vrot.slane %v4108, 2
      %v4111 = vrot.slane %v3761, 7
      %v4112 = vsel %vm4052, %v4110, %v4111
      %v4113 = vrot.slane %v4111, 2
      %v4114 = vrot.slane %v3762, 7
      %v4115 = vsel %vm4052, %v4113, %v4114
      %v4116 = vrot.slane %v4114, 2
      %v4117 = vrot.slane %v3763, 7
      %v4118 = vsel %vm4052, %v4116, %v4117
      %v4119 = vrot.slane %v4117, 2
      %v4120 = vrot.slane %v3764, 7
      %v4121 = vsel %vm4052, %v4119, %v4120
      %v4122 = vrot.slane %v4120, 2
      %v4123 = vrot.slane %v3765, 7
      %v4124 = vsel %vm4052, %v4122, %v4123
      %v4125 = vrot.slane %v4123, 2
      %v4126 = vrot.slane %v3766, 7
      %v4127 = vsel %vm4052, %v4125, %v4126
      %v4128 = vrot.slane %v3767, 7
      %v4129 = vrot.slane %v4128, 2
      %v4130 = vrot.slane %v3768, 7
      %v4131 = vsel %vm4052, %v4129, %v4130
      %v4132 = vrot.slane %v4130, 2
      %v4133 = vrot.slane %v3769, 7
      %v4134 = vsel %vm4052, %v4132, %v4133
      %v4135 = vrot.slane %v4133, 2
      %v4136 = vrot.slane %v3770, 7
      %v4137 = vsel %vm4052, %v4135, %v4136
      %v4138 = vrot.slane %v4136, 2
      %v4139 = vrot.slane %v3771, 7
      %v4140 = vsel %vm4052, %v4138, %v4139
      %v4141 = vrot.slane %v4139, 2
      %v4142 = vrot.slane %v3772, 7
      %v4143 = vsel %vm4052, %v4141, %v4142
      %v4144 = vrot.slane %v4142, 2
      %v4145 = vrot.slane %v3773, 7
      %v4146 = vsel %vm4052, %v4144, %v4145
      %v4147 = vrot.slane %v4145, 2
      %v4148 = vrot.slane %v3774, 7
      %v4149 = vsel %vm4052, %v4147, %v4148
      %v4150 = vrot.slane %v4148, 2
      %v4151 = vrot.slane %v3775, 7
      %v4152 = vsel %vm4052, %v4150, %v4151
      %v4153 = vrot.slane %v3776, 7
      %v4154 = vrot.slane %v4153, 2
      %v4155 = vrot.slane %v3777, 7
      %v4156 = vsel %vm4052, %v4154, %v4155
      %v4157 = vrot.slane %v4155, 2
      %v4158 = vrot.slane %v3778, 7
      %v4159 = vsel %vm4052, %v4157, %v4158
      %v4160 = vrot.slane %v4158, 2
      %v4161 = vrot.slane %v3779, 7
      %v4162 = vsel %vm4052, %v4160, %v4161
      %v4163 = vrot.slane %v4161, 2
      %v4164 = vrot.slane %v3780, 7
      %v4165 = vsel %vm4052, %v4163, %v4164
      %v4166 = vrot.slane %v4164, 2
      %v4167 = vrot.slane %v3781, 7
      %v4168 = vsel %vm4052, %v4166, %v4167
      %v4169 = vrot.slane %v4167, 2
      %v4170 = vrot.slane %v3782, 7
      %v4171 = vsel %vm4052, %v4169, %v4170
      %v4172 = vrot.slane %v4170, 2
      %v4173 = vrot.slane %v3783, 7
      %v4174 = vsel %vm4052, %v4172, %v4173
      %v4175 = vrot.slane %v4173, 2
      %v4176 = vrot.slane %v3784, 7
      %v4177 = vsel %vm4052, %v4175, %v4176
      %v4178 = vrot.slane %v3785, 7
      %v4179 = vrot.slane %v4178, 2
      %v4180 = vrot.slane %v3786, 7
      %v4181 = vsel %vm4052, %v4179, %v4180
      %v4182 = vrot.slane %v4180, 2
      %v4183 = vrot.slane %v3787, 7
      %v4184 = vsel %vm4052, %v4182, %v4183
      %v4185 = vrot.slane %v4183, 2
      %v4186 = vrot.slane %v3788, 7
      %v4187 = vsel %vm4052, %v4185, %v4186
      %v4188 = vrot.slane %v4186, 2
      %v4189 = vrot.slane %v3789, 7
      %v4190 = vsel %vm4052, %v4188, %v4189
      %v4191 = vrot.slane %v4189, 2
      %v4192 = vrot.slane %v3790, 7
      %v4193 = vsel %vm4052, %v4191, %v4192
      %v4194 = vrot.slane %v4192, 2
      %v4195 = vrot.slane %v3791, 7
      %v4196 = vsel %vm4052, %v4194, %v4195
      %v4197 = vrot.slane %v4195, 2
      %v4198 = vrot.slane %v3792, 7
      %v4199 = vsel %vm4052, %v4197, %v4198
      %v4200 = vrot.slane %v4198, 2
      %v4201 = vrot.slane %v3793, 7
      %v4202 = vsel %vm4052, %v4200, %v4201
      %v4203 = vrot.slane %v3794, 7
      %v4204 = vrot.slane %v4203, 2
      %v4205 = vrot.slane %v3795, 7
      %v4206 = vsel %vm4052, %v4204, %v4205
      %v4207 = vrot.slane %v4205, 2
      %v4208 = vrot.slane %v3796, 7
      %v4209 = vsel %vm4052, %v4207, %v4208
      %v4210 = vrot.slane %v4208, 2
      %v4211 = vrot.slane %v3797, 7
      %v4212 = vsel %vm4052, %v4210, %v4211
      %v4213 = vrot.slane %v4211, 2
      %v4214 = vrot.slane %v3798, 7
      %v4215 = vsel %vm4052, %v4213, %v4214
      %v4216 = vrot.slane %v4214, 2
      %v4217 = vrot.slane %v3799, 7
      %v4218 = vsel %vm4052, %v4216, %v4217
      %v4219 = vrot.slane %v4217, 2
      %v4220 = vrot.slane %v3800, 7
      %v4221 = vsel %vm4052, %v4219, %v4220
      %v4222 = vrot.slane %v4220, 2
      %v4223 = vrot.slane %v3801, 7
      %v4224 = vsel %vm4052, %v4222, %v4223
      %v4225 = vrot.slane %v4223, 2
      %v4226 = vrot.slane %v3802, 7
      %v4227 = vsel %vm4052, %v4225, %v4226
      %v4228 = vrot.slane %v3803, 7
      %v4229 = vrot.slane %v4228, 2
      %v4230 = vrot.slane %v3804, 7
      %v4231 = vsel %vm4052, %v4229, %v4230
      %v4232 = vrot.slane %v4230, 2
      %v4233 = vrot.slane %v3805, 7
      %v4234 = vsel %vm4052, %v4232, %v4233
      %v4235 = vrot.slane %v4233, 2
      %v4236 = vrot.slane %v3806, 7
      %v4237 = vsel %vm4052, %v4235, %v4236
      %v4238 = vrot.slane %v4236, 2
      %v4239 = vrot.slane %v3807, 7
      %v4240 = vsel %vm4052, %v4238, %v4239
      %v4241 = vrot.slane %v4239, 2
      %v4242 = vrot.slane %v3808, 7
      %v4243 = vsel %vm4052, %v4241, %v4242
      %v4244 = vrot.slane %v4242, 2
      %v4245 = vrot.slane %v3809, 7
      %v4246 = vsel %vm4052, %v4244, %v4245
      %v4247 = vrot.slane %v4245, 2
      %v4248 = vrot.slane %v3810, 7
      %v4249 = vsel %vm4052, %v4247, %v4248
      %v4250 = vrot.slane %v4248, 2
      %v4251 = vrot.slane %v3811, 7
      %v4252 = vsel %vm4052, %v4250, %v4251
      %v4253 = vrot.slane %v3812, 7
      %v4254 = vrot.slane %v4253, 2
      %v4255 = vrot.slane %v3813, 7
      %v4256 = vsel %vm4052, %v4254, %v4255
      %v4257 = vrot.slane %v4255, 2
      %v4258 = vrot.slane %v3814, 7
      %v4259 = vsel %vm4052, %v4257, %v4258
      %v4260 = vrot.slane %v4258, 2
      %v4261 = vrot.slane %v3815, 7
      %v4262 = vsel %vm4052, %v4260, %v4261
      %v4263 = vrot.slane %v4261, 2
      %v4264 = vrot.slane %v3816, 7
      %v4265 = vsel %vm4052, %v4263, %v4264
      %v4266 = vrot.slane %v4264, 2
      %v4267 = vrot.slane %v3817, 7
      %v4268 = vsel %vm4052, %v4266, %v4267
      %v4269 = vrot.slane %v4267, 2
      %v4270 = vrot.slane %v3818, 7
      %v4271 = vsel %vm4052, %v4269, %v4270
      %v4272 = vrot.slane %v4270, 2
      %v4273 = vrot.slane %v3819, 7
      %v4274 = vsel %vm4052, %v4272, %v4273
      %v4275 = vrot.slane %v4273, 2
      %v4276 = vrot.slane %v3820, 7
      %v4277 = vsel %vm4052, %v4275, %v4276
      %v4278 = vrot.slane %v3821, 7
      %v4279 = vrot.slane %v4278, 2
      %v4280 = vrot.slane %v3822, 7
      %v4281 = vsel %vm4052, %v4279, %v4280
      %v4282 = vrot.slane %v4280, 2
      %v4283 = vrot.slane %v3823, 7
      %v4284 = vsel %vm4052, %v4282, %v4283
      %v4285 = vrot.slane %v4283, 2
      %v4286 = vrot.slane %v3824, 7
      %v4287 = vsel %vm4052, %v4285, %v4286
      %v4288 = vrot.slane %v4286, 2
      %v4289 = vrot.slane %v3825, 7
      %v4290 = vsel %vm4052, %v4288, %v4289
      %v4291 = vrot.slane %v4289, 2
      %v4292 = vrot.slane %v3826, 7
      %v4293 = vsel %vm4052, %v4291, %v4292
      %v4294 = vrot.slane %v4292, 2
      %v4295 = vrot.slane %v3827, 7
      %v4296 = vsel %vm4052, %v4294, %v4295
      %v4297 = vrot.slane %v4295, 2
      %v4298 = vrot.slane %v3828, 7
      %v4299 = vsel %vm4052, %v4297, %v4298
      %v4300 = vrot.slane %v4298, 2
      %v4301 = vrot.slane %v3829, 7
      %v4302 = vsel %vm4052, %v4300, %v4301
      %v4303 = vrot.slane %v3830, 7
      %v4304 = vrot.slane %v4303, 2
      %v4305 = vrot.slane %v3831, 7
      %v4306 = vsel %vm4052, %v4304, %v4305
      %v4307 = vrot.slane %v4305, 2
      %v4308 = vrot.slane %v3832, 7
      %v4309 = vsel %vm4052, %v4307, %v4308
      %v4310 = vrot.slane %v4308, 2
      %v4311 = vrot.slane %v3833, 7
      %v4312 = vsel %vm4052, %v4310, %v4311
      %v4313 = vrot.slane %v4311, 2
      %v4314 = vrot.slane %v3834, 7
      %v4315 = vsel %vm4052, %v4313, %v4314
      %v4316 = vrot.slane %v4314, 2
      %v4317 = vrot.slane %v3835, 7
      %v4318 = vsel %vm4052, %v4316, %v4317
      %v4319 = vrot.slane %v4317, 2
      %v4320 = vrot.slane %v3836, 7
      %v4321 = vsel %vm4052, %v4319, %v4320
      %v4322 = vrot.slane %v4320, 2
      %v4323 = vrot.slane %v3837, 7
      %v4324 = vsel %vm4052, %v4322, %v4323
      %v4325 = vrot.slane %v4323, 2
      %v4326 = vrot.slane %v3838, 7
      %v4327 = vsel %vm4052, %v4325, %v4326
      %v4328 = vrot.slane %v3839, 7
      %v4329 = vrot.slane %v4328, 2
      %v4330 = vrot.slane %v3840, 7
      %v4331 = vsel %vm4052, %v4329, %v4330
      %v4332 = vrot.slane %v4330, 2
      %v4333 = vrot.slane %v3841, 7
      %v4334 = vsel %vm4052, %v4332, %v4333
      %v4335 = vrot.slane %v4333, 2
      %v4336 = vrot.slane %v3842, 7
      %v4337 = vsel %vm4052, %v4335, %v4336
      %v4338 = vrot.slane %v4336, 2
      %v4339 = vrot.slane %v3843, 7
      %v4340 = vsel %vm4052, %v4338, %v4339
      %v4341 = vrot.slane %v4339, 2
      %v4342 = vrot.slane %v3844, 7
      %v4343 = vsel %vm4052, %v4341, %v4342
      %v4344 = vrot.slane %v4342, 2
      %v4345 = vrot.slane %v3845, 7
      %v4346 = vsel %vm4052, %v4344, %v4345
      %v4347 = vrot.slane %v4345, 2
      %v4348 = vrot.slane %v3846, 7
      %v4349 = vsel %vm4052, %v4347, %v4348
      %v4350 = vrot.slane %v4348, 2
      %v4351 = vrot.slane %v3847, 7
      %v4352 = vsel %vm4052, %v4350, %v4351
      %v4353 = vrot.slane %v3848, 7
      %v4354 = vrot.slane %v4353, 2
      %v4355 = vrot.slane %v3849, 7
      %v4356 = vsel %vm4052, %v4354, %v4355
      %v4357 = vrot.slane %v4355, 2
      %v4358 = vrot.slane %v3850, 7
      %v4359 = vsel %vm4052, %v4357, %v4358
      %v4360 = vrot.slane %v4358, 2
      %v4361 = vrot.slane %v3851, 7
      %v4362 = vsel %vm4052, %v4360, %v4361
      %v4363 = vrot.slane %v4361, 2
      %v4364 = vrot.slane %v3852, 7
      %v4365 = vsel %vm4052, %v4363, %v4364
      %v4366 = vrot.slane %v4364, 2
      %v4367 = vrot.slane %v3853, 7
      %v4368 = vsel %vm4052, %v4366, %v4367
      %v4369 = vrot.slane %v4367, 2
      %v4370 = vrot.slane %v3854, 7
      %v4371 = vsel %vm4052, %v4369, %v4370
      %v4372 = vrot.slane %v4370, 2
      %v4373 = vrot.slane %v3855, 7
      %v4374 = vsel %vm4052, %v4372, %v4373
      %v4375 = vrot.slane %v4373, 2
      %v4376 = vrot.slane %v3856, 7
      %v4377 = vsel %vm4052, %v4375, %v4376
      %v4378 = vrot.slane %v3857, 7
      %v4379 = vrot.slane %v4378, 2
      %v4380 = vrot.slane %v3858, 7
      %v4381 = vsel %vm4052, %v4379, %v4380
      %v4382 = vrot.slane %v4380, 2
      %v4383 = vrot.slane %v3859, 7
      %v4384 = vsel %vm4052, %v4382, %v4383
      %v4385 = vrot.slane %v4383, 2
      %v4386 = vrot.slane %v3860, 7
      %v4387 = vsel %vm4052, %v4385, %v4386
      %v4388 = vrot.slane %v4386, 2
      %v4389 = vrot.slane %v3861, 7
      %v4390 = vsel %vm4052, %v4388, %v4389
      %v4391 = vrot.slane %v4389, 2
      %v4392 = vrot.slane %v3862, 7
      %v4393 = vsel %vm4052, %v4391, %v4392
      %v4394 = vrot.slane %v4392, 2
      %v4395 = vrot.slane %v3863, 7
      %v4396 = vsel %vm4052, %v4394, %v4395
      %v4397 = vrot.slane %v4395, 2
      %v4398 = vrot.slane %v3864, 7
      %v4399 = vsel %vm4052, %v4397, %v4398
      %v4400 = vrot.slane %v4398, 2
      %v4401 = vrot.slane %v3865, 7
      %v4402 = vsel %vm4052, %v4400, %v4401
      %v4403 = vrot.slane %v3866, 7
      %v4404 = vrot.slane %v4403, 2
      %v4405 = vrot.slane %v3867, 7
      %v4406 = vsel %vm4052, %v4404, %v4405
      %v4407 = vrot.slane %v4405, 2
      %v4408 = vrot.slane %v3868, 7
      %v4409 = vsel %vm4052, %v4407, %v4408
      %v4410 = vrot.slane %v4408, 2
      %v4411 = vrot.slane %v3869, 7
      %v4412 = vsel %vm4052, %v4410, %v4411
      %v4413 = vrot.slane %v4411, 2
      %v4414 = vrot.slane %v3870, 7
      %v4415 = vsel %vm4052, %v4413, %v4414
      %v4416 = vrot.slane %v4414, 2
      %v4417 = vrot.slane %v3871, 7
      %v4418 = vsel %vm4052, %v4416, %v4417
      %v4419 = vrot.slane %v4417, 2
      %v4420 = vrot.slane %v3872, 7
      %v4421 = vsel %vm4052, %v4419, %v4420
      %v4422 = vrot.slane %v4420, 2
      %v4423 = vrot.slane %v3873, 7
      %v4424 = vsel %vm4052, %v4422, %v4423
      %v4425 = vrot.slane %v4423, 2
      %v4426 = vrot.slane %v3874, 7
      %v4427 = vsel %vm4052, %v4425, %v4426
      %v4428 = vrot.slane %v3875, 7
      %v4429 = vrot.slane %v4428, 2
      %v4430 = vrot.slane %v3876, 7
      %v4431 = vsel %vm4052, %v4429, %v4430
      %v4432 = vrot.slane %v4430, 2
      %v4433 = vrot.slane %v3877, 7
      %v4434 = vsel %vm4052, %v4432, %v4433
      %v4435 = vrot.slane %v4433, 2
      %v4436 = vrot.slane %v3878, 7
      %v4437 = vsel %vm4052, %v4435, %v4436
      %v4438 = vrot.slane %v4436, 2
      %v4439 = vrot.slane %v3879, 7
      %v4440 = vsel %vm4052, %v4438, %v4439
      %v4441 = vrot.slane %v4439, 2
      %v4442 = vrot.slane %v3880, 7
      %v4443 = vsel %vm4052, %v4441, %v4442
      %v4444 = vrot.slane %v4442, 2
      %v4445 = vrot.slane %v3881, 7
      %v4446 = vsel %vm4052, %v4444, %v4445
      %v4447 = vrot.slane %v4445, 2
      %v4448 = vrot.slane %v3882, 7
      %v4449 = vsel %vm4052, %v4447, %v4448
      %v4450 = vrot.slane %v4448, 2
      %v4451 = vrot.slane %v3883, 7
      %v4452 = vsel %vm4052, %v4450, %v4451
      %v4462 = vrot.slane %v3884, 7
      %v4463 = vrot.slane %v4462, 2
      %v4464 = vrot.slane %v3885, 7
      %v4465 = vsel %vm4052, %v4463, %v4464
      %v4466 = vrot.slane %v4464, 2
      %v4467 = vrot.slane %v3886, 7
      %v4468 = vsel %vm4052, %v4466, %v4467
      %v4469 = vrot.slane %v4467, 2
      %v4470 = vrot.slane %v3887, 7
      %v4471 = vsel %vm4052, %v4469, %v4470
      %v4472 = vrot.slane %v4470, 2
      %v4473 = vrot.slane %v3888, 7
      %v4474 = vsel %vm4052, %v4472, %v4473
      %v4475 = vrot.slane %v4473, 2
      %v4476 = vrot.slane %v3889, 7
      %v4477 = vsel %vm4052, %v4475, %v4476
      %v4478 = vrot.slane %v4476, 2
      %v4479 = vrot.slane %v3890, 7
      %v4480 = vsel %vm4052, %v4478, %v4479
      %v4481 = vrot.slane %v4479, 2
      %v4482 = vrot.slane %v3891, 7
      %v4483 = vsel %vm4052, %v4481, %v4482
      %v4484 = vrot.slane %v4482, 2
      %v4485 = vrot.slane %v3892, 7
      %v4486 = vsel %vm4052, %v4484, %v4485
      %v4496 = vrot.slane %v3893, 7
      %v4497 = vrot.slane %v4496, 2
      %v4498 = vrot.slane %v3894, 7
      %v4499 = vsel %vm4052, %v4497, %v4498
      %v4500 = vrot.slane %v4498, 2
      %v4501 = vrot.slane %v3895, 7
      %v4502 = vsel %vm4052, %v4500, %v4501
      %v4503 = vrot.slane %v4501, 2
      %v4504 = vrot.slane %v3896, 7
      %v4505 = vsel %vm4052, %v4503, %v4504
      %v4506 = vrot.slane %v4504, 2
      %v4507 = vrot.slane %v3897, 7
      %v4508 = vsel %vm4052, %v4506, %v4507
      %v4509 = vrot.slane %v4507, 2
      %v4510 = vrot.slane %v3898, 7
      %v4511 = vsel %vm4052, %v4509, %v4510
      %v4512 = vrot.slane %v4510, 2
      %v4513 = vrot.slane %v3899, 7
      %v4514 = vsel %vm4052, %v4512, %v4513
      %v4515 = vrot.slane %v4513, 2
      %v4516 = vrot.slane %v3900, 7
      %v4517 = vsel %vm4052, %v4515, %v4516
      %v4518 = vrot.slane %v4516, 2
      %v4519 = vrot.slane %v3901, 7
      %v4520 = vsel %vm4052, %v4518, %v4519
      %v4521 = vcombine.low %v3740, %v3741
      %v4522 = vcombine.low %v3742, %v3743
      %v4524 = vunpack.c.l.s4 1983009808
      %v4525 = vunpack.c.0.s8 %v4524
      %v4526 = vlaneseq
      %v4527 = vshrl.u32 %v4526, 7
      %v4528 = vsub.s32 %v4525, %v4527
      %v4529 = vrot.slane %v4521, %v4528
      %v4531 = vunpack.c.l.s4 1983009808
      %v4532 = vunpack.c.0.s8 %v4531
      %v4533 = vlaneseq
      %v4534 = vshrl.u32 %v4533, 7
      %v4535 = vsub.s32 %v4532, %v4534
      %v4536 = vrot.slane %v4522, %v4535
      %v4537 = vcombine.low %v4529, %v4536
      %v4538 = vcombine.low %v3744, %v3745
      %v4539 = vcombine.low %v3746, %v3747
      %v4541 = vunpack.c.l.s4 1983009808
      %v4542 = vunpack.c.0.s8 %v4541
      %v4543 = vlaneseq
      %v4544 = vshrl.u32 %v4543, 7
      %v4545 = vsub.s32 %v4542, %v4544
      %v4546 = vrot.slane %v4538, %v4545
      %v4548 = vunpack.c.l.s4 1983009808
      %v4549 = vunpack.c.0.s8 %v4548
      %v4550 = vlaneseq
      %v4551 = vshrl.u32 %v4550, 7
      %v4552 = vsub.s32 %v4549, %v4551
      %v4553 = vrot.slane %v4539, %v4552
      %v4554 = vcombine.low %v4546, %v4553
      %v4555 = vcombine.low %v3749, %v3750
      %v4556 = vcombine.low %v3751, %v3752
      %v4558 = vunpack.c.l.s4 1983009808
      %v4559 = vunpack.c.0.s8 %v4558
      %v4560 = vlaneseq
      %v4561 = vshrl.u32 %v4560, 7
      %v4562 = vsub.s32 %v4559, %v4561
      %v4563 = vrot.slane %v4555, %v4562
      %v4565 = vunpack.c.l.s4 1983009808
      %v4566 = vunpack.c.0.s8 %v4565
      %v4567 = vlaneseq
      %v4568 = vshrl.u32 %v4567, 7
      %v4569 = vsub.s32 %v4566, %v4568
      %v4570 = vrot.slane %v4556, %v4569
      %v4571 = vcombine.low %v4563, %v4570
      %v4572 = vcombine.low %v3753, %v3754
      %v4573 = vcombine.low %v3755, %v3756
      %v4575 = vunpack.c.l.s4 1983009808
      %v4576 = vunpack.c.0.s8 %v4575
      %v4577 = vlaneseq
      %v4578 = vshrl.u32 %v4577, 7
      %v4579 = vsub.s32 %v4576, %v4578
      %v4580 = vrot.slane %v4572, %v4579
      %v4582 = vunpack.c.l.s4 1983009808
      %v4583 = vunpack.c.0.s8 %v4582
      %v4584 = vlaneseq
      %v4585 = vshrl.u32 %v4584, 7
      %v4586 = vsub.s32 %v4583, %v4585
      %v4587 = vrot.slane %v4573, %v4586
      %v4588 = vcombine.low %v4580, %v4587
      %v4589 = vcombine.low %v3758, %v3759
      %v4590 = vcombine.low %v3760, %v3761
      %v4592 = vunpack.c.l.s4 1983009808
      %v4593 = vunpack.c.0.s8 %v4592
      %v4594 = vlaneseq
      %v4595 = vshrl.u32 %v4594, 7
      %v4596 = vsub.s32 %v4593, %v4595
      %v4597 = vrot.slane %v4589, %v4596
      %v4599 = vunpack.c.l.s4 1983009808
      %v4600 = vunpack.c.0.s8 %v4599
      %v4601 = vlaneseq
      %v4602 = vshrl.u32 %v4601, 7
      %v4603 = vsub.s32 %v4600, %v4602
      %v4604 = vrot.slane %v4590, %v4603
      %v4605 = vcombine.low %v4597, %v4604
      %v4606 = vcombine.low %v3762, %v3763
      %v4607 = vcombine.low %v3764, %v3765
      %v4609 = vunpack.c.l.s4 1983009808
      %v4610 = vunpack.c.0.s8 %v4609
      %v4611 = vlaneseq
      %v4612 = vshrl.u32 %v4611, 7
      %v4613 = vsub.s32 %v4610, %v4612
      %v4614 = vrot.slane %v4606, %v4613
      %v4616 = vunpack.c.l.s4 1983009808
      %v4617 = vunpack.c.0.s8 %v4616
      %v4618 = vlaneseq
      %v4619 = vshrl.u32 %v4618, 7
      %v4620 = vsub.s32 %v4617, %v4619
      %v4621 = vrot.slane %v4607, %v4620
      %v4622 = vcombine.low %v4614, %v4621
      %v4623 = vcombine.low %v3767, %v3768
      %v4624 = vcombine.low %v3769, %v3770
      %v4626 = vunpack.c.l.s4 1983009808
      %v4627 = vunpack.c.0.s8 %v4626
      %v4628 = vlaneseq
      %v4629 = vshrl.u32 %v4628, 7
      %v4630 = vsub.s32 %v4627, %v4629
      %v4631 = vrot.slane %v4623, %v4630
      %v4633 = vunpack.c.l.s4 1983009808
      %v4634 = vunpack.c.0.s8 %v4633
      %v4635 = vlaneseq
      %v4636 = vshrl.u32 %v4635, 7
      %v4637 = vsub.s32 %v4634, %v4636
      %v4638 = vrot.slane %v4624, %v4637
      %v4639 = vcombine.low %v4631, %v4638
      %v4640 = vcombine.low %v3771, %v3772
      %v4641 = vcombine.low %v3773, %v3774
      %v4643 = vunpack.c.l.s4 1983009808
      %v4644 = vunpack.c.0.s8 %v4643
      %v4645 = vlaneseq
      %v4646 = vshrl.u32 %v4645, 7
      %v4647 = vsub.s32 %v4644, %v4646
      %v4648 = vrot.slane %v4640, %v4647
      %v4650 = vunpack.c.l.s4 1983009808
      %v4651 = vunpack.c.0.s8 %v4650
      %v4652 = vlaneseq
      %v4653 = vshrl.u32 %v4652, 7
      %v4654 = vsub.s32 %v4651, %v4653
      %v4655 = vrot.slane %v4641, %v4654
      %v4656 = vcombine.low %v4648, %v4655
      %v4657 = vcombine.low %v3776, %v3777
      %v4658 = vcombine.low %v3778, %v3779
      %v4660 = vunpack.c.l.s4 1983009808
      %v4661 = vunpack.c.0.s8 %v4660
      %v4662 = vlaneseq
      %v4663 = vshrl.u32 %v4662, 7
      %v4664 = vsub.s32 %v4661, %v4663
      %v4665 = vrot.slane %v4657, %v4664
      %v4667 = vunpack.c.l.s4 1983009808
      %v4668 = vunpack.c.0.s8 %v4667
      %v4669 = vlaneseq
      %v4670 = vshrl.u32 %v4669, 7
      %v4671 = vsub.s32 %v4668, %v4670
      %v4672 = vrot.slane %v4658, %v4671
      %v4673 = vcombine.low %v4665, %v4672
      %v4674 = vcombine.low %v3780, %v3781
      %v4675 = vcombine.low %v3782, %v3783
      %v4677 = vunpack.c.l.s4 1983009808
      %v4678 = vunpack.c.0.s8 %v4677
      %v4679 = vlaneseq
      %v4680 = vshrl.u32 %v4679, 7
      %v4681 = vsub.s32 %v4678, %v4680
      %v4682 = vrot.slane %v4674, %v4681
      %v4684 = vunpack.c.l.s4 1983009808
      %v4685 = vunpack.c.0.s8 %v4684
      %v4686 = vlaneseq
      %v4687 = vshrl.u32 %v4686, 7
      %v4688 = vsub.s32 %v4685, %v4687
      %v4689 = vrot.slane %v4675, %v4688
      %v4690 = vcombine.low %v4682, %v4689
      %v4691 = vcombine.low %v3785, %v3786
      %v4692 = vcombine.low %v3787, %v3788
      %v4694 = vunpack.c.l.s4 1983009808
      %v4695 = vunpack.c.0.s8 %v4694
      %v4696 = vlaneseq
      %v4697 = vshrl.u32 %v4696, 7
      %v4698 = vsub.s32 %v4695, %v4697
      %v4699 = vrot.slane %v4691, %v4698
      %v4701 = vunpack.c.l.s4 1983009808
      %v4702 = vunpack.c.0.s8 %v4701
      %v4703 = vlaneseq
      %v4704 = vshrl.u32 %v4703, 7
      %v4705 = vsub.s32 %v4702, %v4704
      %v4706 = vrot.slane %v4692, %v4705
      %v4707 = vcombine.low %v4699, %v4706
      %v4708 = vcombine.low %v3789, %v3790
      %v4709 = vcombine.low %v3791, %v3792
      %v4711 = vunpack.c.l.s4 1983009808
      %v4712 = vunpack.c.0.s8 %v4711
      %v4713 = vlaneseq
      %v4714 = vshrl.u32 %v4713, 7
      %v4715 = vsub.s32 %v4712, %v4714
      %v4716 = vrot.slane %v4708, %v4715
      %v4718 = vunpack.c.l.s4 1983009808
      %v4719 = vunpack.c.0.s8 %v4718
      %v4720 = vlaneseq
      %v4721 = vshrl.u32 %v4720, 7
      %v4722 = vsub.s32 %v4719, %v4721
      %v4723 = vrot.slane %v4709, %v4722
      %v4724 = vcombine.low %v4716, %v4723
      %v4725 = vcombine.low %v3794, %v3795
      %v4726 = vcombine.low %v3796, %v3797
      %v4728 = vunpack.c.l.s4 1983009808
      %v4729 = vunpack.c.0.s8 %v4728
      %v4730 = vlaneseq
      %v4731 = vshrl.u32 %v4730, 7
      %v4732 = vsub.s32 %v4729, %v4731
      %v4733 = vrot.slane %v4725, %v4732
      %v4735 = vunpack.c.l.s4 1983009808
      %v4736 = vunpack.c.0.s8 %v4735
      %v4737 = vlaneseq
      %v4738 = vshrl.u32 %v4737, 7
      %v4739 = vsub.s32 %v4736, %v4738
      %v4740 = vrot.slane %v4726, %v4739
      %v4741 = vcombine.low %v4733, %v4740
      %v4742 = vcombine.low %v3798, %v3799
      %v4743 = vcombine.low %v3800, %v3801
      %v4745 = vunpack.c.l.s4 1983009808
      %v4746 = vunpack.c.0.s8 %v4745
      %v4747 = vlaneseq
      %v4748 = vshrl.u32 %v4747, 7
      %v4749 = vsub.s32 %v4746, %v4748
      %v4750 = vrot.slane %v4742, %v4749
      %v4752 = vunpack.c.l.s4 1983009808
      %v4753 = vunpack.c.0.s8 %v4752
      %v4754 = vlaneseq
      %v4755 = vshrl.u32 %v4754, 7
      %v4756 = vsub.s32 %v4753, %v4755
      %v4757 = vrot.slane %v4743, %v4756
      %v4758 = vcombine.low %v4750, %v4757
      %v4759 = vcombine.low %v3803, %v3804
      %v4760 = vcombine.low %v3805, %v3806
      %v4762 = vunpack.c.l.s4 1983009808
      %v4763 = vunpack.c.0.s8 %v4762
      %v4764 = vlaneseq
      %v4765 = vshrl.u32 %v4764, 7
      %v4766 = vsub.s32 %v4763, %v4765
      %v4767 = vrot.slane %v4759, %v4766
      %v4769 = vunpack.c.l.s4 1983009808
      %v4770 = vunpack.c.0.s8 %v4769
      %v4771 = vlaneseq
      %v4772 = vshrl.u32 %v4771, 7
      %v4773 = vsub.s32 %v4770, %v4772
      %v4774 = vrot.slane %v4760, %v4773
      %v4775 = vcombine.low %v4767, %v4774
      %v4776 = vcombine.low %v3807, %v3808
      %v4777 = vcombine.low %v3809, %v3810
      %v4779 = vunpack.c.l.s4 1983009808
      %v4780 = vunpack.c.0.s8 %v4779
      %v4781 = vlaneseq
      %v4782 = vshrl.u32 %v4781, 7
      %v4783 = vsub.s32 %v4780, %v4782
      %v4784 = vrot.slane %v4776, %v4783
      %v4786 = vunpack.c.l.s4 1983009808
      %v4787 = vunpack.c.0.s8 %v4786
      %v4788 = vlaneseq
      %v4789 = vshrl.u32 %v4788, 7
      %v4790 = vsub.s32 %v4787, %v4789
      %v4791 = vrot.slane %v4777, %v4790
      %v4792 = vcombine.low %v4784, %v4791
      %v4793 = vcombine.low %v3812, %v3813
      %v4794 = vcombine.low %v3814, %v3815
      %v4796 = vunpack.c.l.s4 1983009808
      %v4797 = vunpack.c.0.s8 %v4796
      %v4798 = vlaneseq
      %v4799 = vshrl.u32 %v4798, 7
      %v4800 = vsub.s32 %v4797, %v4799
      %v4801 = vrot.slane %v4793, %v4800
      %v4803 = vunpack.c.l.s4 1983009808
      %v4804 = vunpack.c.0.s8 %v4803
      %v4805 = vlaneseq
      %v4806 = vshrl.u32 %v4805, 7
      %v4807 = vsub.s32 %v4804, %v4806
      %v4808 = vrot.slane %v4794, %v4807
      %v4809 = vcombine.low %v4801, %v4808
      %v4810 = vcombine.low %v3816, %v3817
      %v4811 = vcombine.low %v3818, %v3819
      %v4813 = vunpack.c.l.s4 1983009808
      %v4814 = vunpack.c.0.s8 %v4813
      %v4815 = vlaneseq
      %v4816 = vshrl.u32 %v4815, 7
      %v4817 = vsub.s32 %v4814, %v4816
      %v4818 = vrot.slane %v4810, %v4817
      %v4820 = vunpack.c.l.s4 1983009808
      %v4821 = vunpack.c.0.s8 %v4820
      %v4822 = vlaneseq
      %v4823 = vshrl.u32 %v4822, 7
      %v4824 = vsub.s32 %v4821, %v4823
      %v4825 = vrot.slane %v4811, %v4824
      %v4826 = vcombine.low %v4818, %v4825
      %v4827 = vcombine.low %v3821, %v3822
      %v4828 = vcombine.low %v3823, %v3824
      %v4830 = vunpack.c.l.s4 1983009808
      %v4831 = vunpack.c.0.s8 %v4830
      %v4832 = vlaneseq
      %v4833 = vshrl.u32 %v4832, 7
      %v4834 = vsub.s32 %v4831, %v4833
      %v4835 = vrot.slane %v4827, %v4834
      %v4837 = vunpack.c.l.s4 1983009808
      %v4838 = vunpack.c.0.s8 %v4837
      %v4839 = vlaneseq
      %v4840 = vshrl.u32 %v4839, 7
      %v4841 = vsub.s32 %v4838, %v4840
      %v4842 = vrot.slane %v4828, %v4841
      %v4843 = vcombine.low %v4835, %v4842
      %v4844 = vcombine.low %v3825, %v3826
      %v4845 = vcombine.low %v3827, %v3828
      %v4847 = vunpack.c.l.s4 1983009808
      %v4848 = vunpack.c.0.s8 %v4847
      %v4849 = vlaneseq
      %v4850 = vshrl.u32 %v4849, 7
      %v4851 = vsub.s32 %v4848, %v4850
      %v4852 = vrot.slane %v4844, %v4851
      %v4854 = vunpack.c.l.s4 1983009808
      %v4855 = vunpack.c.0.s8 %v4854
      %v4856 = vlaneseq
      %v4857 = vshrl.u32 %v4856, 7
      %v4858 = vsub.s32 %v4855, %v4857
      %v4859 = vrot.slane %v4845, %v4858
      %v4860 = vcombine.low %v4852, %v4859
      %v4861 = vcombine.low %v3830, %v3831
      %v4862 = vcombine.low %v3832, %v3833
      %v4864 = vunpack.c.l.s4 1983009808
      %v4865 = vunpack.c.0.s8 %v4864
      %v4866 = vlaneseq
      %v4867 = vshrl.u32 %v4866, 7
      %v4868 = vsub.s32 %v4865, %v4867
      %v4869 = vrot.slane %v4861, %v4868
      %v4871 = vunpack.c.l.s4 1983009808
      %v4872 = vunpack.c.0.s8 %v4871
      %v4873 = vlaneseq
      %v4874 = vshrl.u32 %v4873, 7
      %v4875 = vsub.s32 %v4872, %v4874
      %v4876 = vrot.slane %v4862, %v4875
      %v4877 = vcombine.low %v4869, %v4876
      %v4878 = vcombine.low %v3834, %v3835
      %v4879 = vcombine.low %v3836, %v3837
      %v4881 = vunpack.c.l.s4 1983009808
      %v4882 = vunpack.c.0.s8 %v4881
      %v4883 = vlaneseq
      %v4884 = vshrl.u32 %v4883, 7
      %v4885 = vsub.s32 %v4882, %v4884
      %v4886 = vrot.slane %v4878, %v4885
      %v4888 = vunpack.c.l.s4 1983009808
      %v4889 = vunpack.c.0.s8 %v4888
      %v4890 = vlaneseq
      %v4891 = vshrl.u32 %v4890, 7
      %v4892 = vsub.s32 %v4889, %v4891
      %v4893 = vrot.slane %v4879, %v4892
      %v4894 = vcombine.low %v4886, %v4893
      %v4895 = vcombine.low %v3839, %v3840
      %v4896 = vcombine.low %v3841, %v3842
      %v4898 = vunpack.c.l.s4 1983009808
      %v4899 = vunpack.c.0.s8 %v4898
      %v4900 = vlaneseq
      %v4901 = vshrl.u32 %v4900, 7
      %v4902 = vsub.s32 %v4899, %v4901
      %v4903 = vrot.slane %v4895, %v4902
      %v4905 = vunpack.c.l.s4 1983009808
      %v4906 = vunpack.c.0.s8 %v4905
      %v4907 = vlaneseq
      %v4908 = vshrl.u32 %v4907, 7
      %v4909 = vsub.s32 %v4906, %v4908
      %v4910 = vrot.slane %v4896, %v4909
      %v4911 = vcombine.low %v4903, %v4910
      %v4912 = vcombine.low %v3843, %v3844
      %v4913 = vcombine.low %v3845, %v3846
      %v4915 = vunpack.c.l.s4 1983009808
      %v4916 = vunpack.c.0.s8 %v4915
      %v4917 = vlaneseq
      %v4918 = vshrl.u32 %v4917, 7
      %v4919 = vsub.s32 %v4916, %v4918
      %v4920 = vrot.slane %v4912, %v4919
      %v4922 = vunpack.c.l.s4 1983009808
      %v4923 = vunpack.c.0.s8 %v4922
      %v4924 = vlaneseq
      %v4925 = vshrl.u32 %v4924, 7
      %v4926 = vsub.s32 %v4923, %v4925
      %v4927 = vrot.slane %v4913, %v4926
      %v4928 = vcombine.low %v4920, %v4927
      %v4929 = vcombine.low %v3848, %v3849
      %v4930 = vcombine.low %v3850, %v3851
      %v4932 = vunpack.c.l.s4 1983009808
      %v4933 = vunpack.c.0.s8 %v4932
      %v4934 = vlaneseq
      %v4935 = vshrl.u32 %v4934, 7
      %v4936 = vsub.s32 %v4933, %v4935
      %v4937 = vrot.slane %v4929, %v4936
      %v4939 = vunpack.c.l.s4 1983009808
      %v4940 = vunpack.c.0.s8 %v4939
      %v4941 = vlaneseq
      %v4942 = vshrl.u32 %v4941, 7
      %v4943 = vsub.s32 %v4940, %v4942
      %v4944 = vrot.slane %v4930, %v4943
      %v4945 = vcombine.low %v4937, %v4944
      %v4946 = vcombine.low %v3852, %v3853
      %v4947 = vcombine.low %v3854, %v3855
      %v4949 = vunpack.c.l.s4 1983009808
      %v4950 = vunpack.c.0.s8 %v4949
      %v4951 = vlaneseq
      %v4952 = vshrl.u32 %v4951, 7
      %v4953 = vsub.s32 %v4950, %v4952
      %v4954 = vrot.slane %v4946, %v4953
      %v4956 = vunpack.c.l.s4 1983009808
      %v4957 = vunpack.c.0.s8 %v4956
      %v4958 = vlaneseq
      %v4959 = vshrl.u32 %v4958, 7
      %v4960 = vsub.s32 %v4957, %v4959
      %v4961 = vrot.slane %v4947, %v4960
      %v4962 = vcombine.low %v4954, %v4961
      %v4963 = vcombine.low %v3857, %v3858
      %v4964 = vcombine.low %v3859, %v3860
      %v4966 = vunpack.c.l.s4 1983009808
      %v4967 = vunpack.c.0.s8 %v4966
      %v4968 = vlaneseq
      %v4969 = vshrl.u32 %v4968, 7
      %v4970 = vsub.s32 %v4967, %v4969
      %v4971 = vrot.slane %v4963, %v4970
      %v4973 = vunpack.c.l.s4 1983009808
      %v4974 = vunpack.c.0.s8 %v4973
      %v4975 = vlaneseq
      %v4976 = vshrl.u32 %v4975, 7
      %v4977 = vsub.s32 %v4974, %v4976
      %v4978 = vrot.slane %v4964, %v4977
      %v4979 = vcombine.low %v4971, %v4978
      %v4980 = vcombine.low %v3861, %v3862
      %v4981 = vcombine.low %v3863, %v3864
      %v4983 = vunpack.c.l.s4 1983009808
      %v4984 = vunpack.c.0.s8 %v4983
      %v4985 = vlaneseq
      %v4986 = vshrl.u32 %v4985, 7
      %v4987 = vsub.s32 %v4984, %v4986
      %v4988 = vrot.slane %v4980, %v4987
      %v4990 = vunpack.c.l.s4 1983009808
      %v4991 = vunpack.c.0.s8 %v4990
      %v4992 = vlaneseq
      %v4993 = vshrl.u32 %v4992, 7
      %v4994 = vsub.s32 %v4991, %v4993
      %v4995 = vrot.slane %v4981, %v4994
      %v4996 = vcombine.low %v4988, %v4995
      %v4997 = vcombine.low %v3866, %v3867
      %v4998 = vcombine.low %v3868, %v3869
      %v5000 = vunpack.c.l.s4 1983009808
      %v5001 = vunpack.c.0.s8 %v5000
      %v5002 = vlaneseq
      %v5003 = vshrl.u32 %v5002, 7
      %v5004 = vsub.s32 %v5001, %v5003
      %v5005 = vrot.slane %v4997, %v5004
      %v5007 = vunpack.c.l.s4 1983009808
      %v5008 = vunpack.c.0.s8 %v5007
      %v5009 = vlaneseq
      %v5010 = vshrl.u32 %v5009, 7
      %v5011 = vsub.s32 %v5008, %v5010
      %v5012 = vrot.slane %v4998, %v5011
      %v5013 = vcombine.low %v5005, %v5012
      %v5014 = vcombine.low %v3870, %v3871
      %v5015 = vcombine.low %v3872, %v3873
      %v5017 = vunpack.c.l.s4 1983009808
      %v5018 = vunpack.c.0.s8 %v5017
      %v5019 = vlaneseq
      %v5020 = vshrl.u32 %v5019, 7
      %v5021 = vsub.s32 %v5018, %v5020
      %v5022 = vrot.slane %v5014, %v5021
      %v5024 = vunpack.c.l.s4 1983009808
      %v5025 = vunpack.c.0.s8 %v5024
      %v5026 = vlaneseq
      %v5027 = vshrl.u32 %v5026, 7
      %v5028 = vsub.s32 %v5025, %v5027
      %v5029 = vrot.slane %v5015, %v5028
      %v5030 = vcombine.low %v5022, %v5029
      %v5031 = vcombine.low %v3875, %v3876
      %v5032 = vcombine.low %v3877, %v3878
      %v5034 = vunpack.c.l.s4 1983009808
      %v5035 = vunpack.c.0.s8 %v5034
      %v5036 = vlaneseq
      %v5037 = vshrl.u32 %v5036, 7
      %v5038 = vsub.s32 %v5035, %v5037
      %v5039 = vrot.slane %v5031, %v5038
      %v5041 = vunpack.c.l.s4 1983009808
      %v5042 = vunpack.c.0.s8 %v5041
      %v5043 = vlaneseq
      %v5044 = vshrl.u32 %v5043, 7
      %v5045 = vsub.s32 %v5042, %v5044
      %v5046 = vrot.slane %v5032, %v5045
      %v5047 = vcombine.low %v5039, %v5046
      %v5048 = vcombine.low %v3879, %v3880
      %v5049 = vcombine.low %v3881, %v3882
      %v5051 = vunpack.c.l.s4 1983009808
      %v5052 = vunpack.c.0.s8 %v5051
      %v5053 = vlaneseq
      %v5054 = vshrl.u32 %v5053, 7
      %v5055 = vsub.s32 %v5052, %v5054
      %v5056 = vrot.slane %v5048, %v5055
      %v5058 = vunpack.c.l.s4 1983009808
      %v5059 = vunpack.c.0.s8 %v5058
      %v5060 = vlaneseq
      %v5061 = vshrl.u32 %v5060, 7
      %v5062 = vsub.s32 %v5059, %v5061
      %v5063 = vrot.slane %v5049, %v5062
      %v5064 = vcombine.low %v5056, %v5063
      %v5097 = vcombine.low %v4056, %v4059
      %v5098 = vcombine.low %v4062, %v4065
      %v5100 = vunpack.c.l.s4 1983009808
      %v5101 = vunpack.c.0.s8 %v5100
      %v5102 = vlaneseq
      %v5103 = vshrl.u32 %v5102, 7
      %v5104 = vsub.s32 %v5101, %v5103
      %v5105 = vrot.slane %v5097, %v5104
      %v5107 = vunpack.c.l.s4 1983009808
      %v5108 = vunpack.c.0.s8 %v5107
      %v5109 = vlaneseq
      %v5110 = vshrl.u32 %v5109, 7
      %v5111 = vsub.s32 %v5108, %v5110
      %v5112 = vrot.slane %v5098, %v5111
      %v5113 = vcombine.low %v5105, %v5112
      %v5114 = vcombine.low %v4068, %v4071
      %v5115 = vcombine.low %v4074, %v4077
      %v5117 = vunpack.c.l.s4 1983009808
      %v5118 = vunpack.c.0.s8 %v5117
      %v5119 = vlaneseq
      %v5120 = vshrl.u32 %v5119, 7
      %v5121 = vsub.s32 %v5118, %v5120
      %v5122 = vrot.slane %v5114, %v5121
      %v5124 = vunpack.c.l.s4 1983009808
      %v5125 = vunpack.c.0.s8 %v5124
      %v5126 = vlaneseq
      %v5127 = vshrl.u32 %v5126, 7
      %v5128 = vsub.s32 %v5125, %v5127
      %v5129 = vrot.slane %v5115, %v5128
      %v5130 = vcombine.low %v5122, %v5129
      %v5131 = vcombine.low %v4081, %v4084
      %v5132 = vcombine.low %v4087, %v4090
      %v5134 = vunpack.c.l.s4 1983009808
      %v5135 = vunpack.c.0.s8 %v5134
      %v5136 = vlaneseq
      %v5137 = vshrl.u32 %v5136, 7
      %v5138 = vsub.s32 %v5135, %v5137
      %v5139 = vrot.slane %v5131, %v5138
      %v5141 = vunpack.c.l.s4 1983009808
      %v5142 = vunpack.c.0.s8 %v5141
      %v5143 = vlaneseq
      %v5144 = vshrl.u32 %v5143, 7
      %v5145 = vsub.s32 %v5142, %v5144
      %v5146 = vrot.slane %v5132, %v5145
      %v5147 = vcombine.low %v5139, %v5146
      %v5148 = vcombine.low %v4093, %v4096
      %v5149 = vcombine.low %v4099, %v4102
      %v5151 = vunpack.c.l.s4 1983009808
      %v5152 = vunpack.c.0.s8 %v5151
      %v5153 = vlaneseq
      %v5154 = vshrl.u32 %v5153, 7
      %v5155 = vsub.s32 %v5152, %v5154
      %v5156 = vrot.slane %v5148, %v5155
      %v5158 = vunpack.c.l.s4 1983009808
      %v5159 = vunpack.c.0.s8 %v5158
      %v5160 = vlaneseq
      %v5161 = vshrl.u32 %v5160, 7
      %v5162 = vsub.s32 %v5159, %v5161
      %v5163 = vrot.slane %v5149, %v5162
      %v5164 = vcombine.low %v5156, %v5163
      %v5165 = vcombine.low %v4106, %v4109
      %v5166 = vcombine.low %v4112, %v4115
      %v5168 = vunpack.c.l.s4 1983009808
      %v5169 = vunpack.c.0.s8 %v5168
      %v5170 = vlaneseq
      %v5171 = vshrl.u32 %v5170, 7
      %v5172 = vsub.s32 %v5169, %v5171
      %v5173 = vrot.slane %v5165, %v5172
      %v5175 = vunpack.c.l.s4 1983009808
      %v5176 = vunpack.c.0.s8 %v5175
      %v5177 = vlaneseq
      %v5178 = vshrl.u32 %v5177, 7
      %v5179 = vsub.s32 %v5176, %v5178
      %v5180 = vrot.slane %v5166, %v5179
      %v5181 = vcombine.low %v5173, %v5180
      %v5182 = vcombine.low %v4118, %v4121
      %v5183 = vcombine.low %v4124, %v4127
      %v5185 = vunpack.c.l.s4 1983009808
      %v5186 = vunpack.c.0.s8 %v5185
      %v5187 = vlaneseq
      %v5188 = vshrl.u32 %v5187, 7
      %v5189 = vsub.s32 %v5186, %v5188
      %v5190 = vrot.slane %v5182, %v5189
      %v5192 = vunpack.c.l.s4 1983009808
      %v5193 = vunpack.c.0.s8 %v5192
      %v5194 = vlaneseq
      %v5195 = vshrl.u32 %v5194, 7
      %v5196 = vsub.s32 %v5193, %v5195
      %v5197 = vrot.slane %v5183, %v5196
      %v5198 = vcombine.low %v5190, %v5197
      %v5199 = vcombine.low %v4131, %v4134
      %v5200 = vcombine.low %v4137, %v4140
      %v5202 = vunpack.c.l.s4 1983009808
      %v5203 = vunpack.c.0.s8 %v5202
      %v5204 = vlaneseq
      %v5205 = vshrl.u32 %v5204, 7
      %v5206 = vsub.s32 %v5203, %v5205
      %v5207 = vrot.slane %v5199, %v5206
      %v5209 = vunpack.c.l.s4 1983009808
      %v5210 = vunpack.c.0.s8 %v5209
      %v5211 = vlaneseq
      %v5212 = vshrl.u32 %v5211, 7
      %v5213 = vsub.s32 %v5210, %v5212
      %v5214 = vrot.slane %v5200, %v5213
      %v5215 = vcombine.low %v5207, %v5214
      %v5216 = vcombine.low %v4143, %v4146
      %v5217 = vcombine.low %v4149, %v4152
      %v5219 = vunpack.c.l.s4 1983009808
      %v5220 = vunpack.c.0.s8 %v5219
      %v5221 = vlaneseq
      %v5222 = vshrl.u32 %v5221, 7
      %v5223 = vsub.s32 %v5220, %v5222
      %v5224 = vrot.slane %v5216, %v5223
      %v5226 = vunpack.c.l.s4 1983009808
      %v5227 = vunpack.c.0.s8 %v5226
      %v5228 = vlaneseq
      %v5229 = vshrl.u32 %v5228, 7
      %v5230 = vsub.s32 %v5227, %v5229
      %v5231 = vrot.slane %v5217, %v5230
      %v5232 = vcombine.low %v5224, %v5231
      %v5233 = vcombine.low %v4156, %v4159
      %v5234 = vcombine.low %v4162, %v4165
      %v5236 = vunpack.c.l.s4 1983009808
      %v5237 = vunpack.c.0.s8 %v5236
      %v5238 = vlaneseq
      %v5239 = vshrl.u32 %v5238, 7
      %v5240 = vsub.s32 %v5237, %v5239
      %v5241 = vrot.slane %v5233, %v5240
      %v5243 = vunpack.c.l.s4 1983009808
      %v5244 = vunpack.c.0.s8 %v5243
      %v5245 = vlaneseq
      %v5246 = vshrl.u32 %v5245, 7
      %v5247 = vsub.s32 %v5244, %v5246
      %v5248 = vrot.slane %v5234, %v5247
      %v5249 = vcombine.low %v5241, %v5248
      %v5250 = vcombine.low %v4168, %v4171
      %v5251 = vcombine.low %v4174, %v4177
      %v5253 = vunpack.c.l.s4 1983009808
      %v5254 = vunpack.c.0.s8 %v5253
      %v5255 = vlaneseq
      %v5256 = vshrl.u32 %v5255, 7
      %v5257 = vsub.s32 %v5254, %v5256
      %v5258 = vrot.slane %v5250, %v5257
      %v5260 = vunpack.c.l.s4 1983009808
      %v5261 = vunpack.c.0.s8 %v5260
      %v5262 = vlaneseq
      %v5263 = vshrl.u32 %v5262, 7
      %v5264 = vsub.s32 %v5261, %v5263
      %v5265 = vrot.slane %v5251, %v5264
      %v5266 = vcombine.low %v5258, %v5265
      %v5267 = vcombine.low %v4181, %v4184
      %v5268 = vcombine.low %v4187, %v4190
      %v5270 = vunpack.c.l.s4 1983009808
      %v5271 = vunpack.c.0.s8 %v5270
      %v5272 = vlaneseq
      %v5273 = vshrl.u32 %v5272, 7
      %v5274 = vsub.s32 %v5271, %v5273
      %v5275 = vrot.slane %v5267, %v5274
      %v5277 = vunpack.c.l.s4 1983009808
      %v5278 = vunpack.c.0.s8 %v5277
      %v5279 = vlaneseq
      %v5280 = vshrl.u32 %v5279, 7
      %v5281 = vsub.s32 %v5278, %v5280
      %v5282 = vrot.slane %v5268, %v5281
      %v5283 = vcombine.low %v5275, %v5282
      %v5284 = vcombine.low %v4193, %v4196
      %v5285 = vcombine.low %v4199, %v4202
      %v5287 = vunpack.c.l.s4 1983009808
      %v5288 = vunpack.c.0.s8 %v5287
      %v5289 = vlaneseq
      %v5290 = vshrl.u32 %v5289, 7
      %v5291 = vsub.s32 %v5288, %v5290
      %v5292 = vrot.slane %v5284, %v5291
      %v5294 = vunpack.c.l.s4 1983009808
      %v5295 = vunpack.c.0.s8 %v5294
      %v5296 = vlaneseq
      %v5297 = vshrl.u32 %v5296, 7
      %v5298 = vsub.s32 %v5295, %v5297
      %v5299 = vrot.slane %v5285, %v5298
      %v5300 = vcombine.low %v5292, %v5299
      %v5301 = vcombine.low %v4206, %v4209
      %v5302 = vcombine.low %v4212, %v4215
      %v5304 = vunpack.c.l.s4 1983009808
      %v5305 = vunpack.c.0.s8 %v5304
      %v5306 = vlaneseq
      %v5307 = vshrl.u32 %v5306, 7
      %v5308 = vsub.s32 %v5305, %v5307
      %v5309 = vrot.slane %v5301, %v5308
      %v5311 = vunpack.c.l.s4 1983009808
      %v5312 = vunpack.c.0.s8 %v5311
      %v5313 = vlaneseq
      %v5314 = vshrl.u32 %v5313, 7
      %v5315 = vsub.s32 %v5312, %v5314
      %v5316 = vrot.slane %v5302, %v5315
      %v5317 = vcombine.low %v5309, %v5316
      %v5318 = vcombine.low %v4218, %v4221
      %v5319 = vcombine.low %v4224, %v4227
      %v5321 = vunpack.c.l.s4 1983009808
      %v5322 = vunpack.c.0.s8 %v5321
      %v5323 = vlaneseq
      %v5324 = vshrl.u32 %v5323, 7
      %v5325 = vsub.s32 %v5322, %v5324
      %v5326 = vrot.slane %v5318, %v5325
      %v5328 = vunpack.c.l.s4 1983009808
      %v5329 = vunpack.c.0.s8 %v5328
      %v5330 = vlaneseq
      %v5331 = vshrl.u32 %v5330, 7
      %v5332 = vsub.s32 %v5329, %v5331
      %v5333 = vrot.slane %v5319, %v5332
      %v5334 = vcombine.low %v5326, %v5333
      %v5335 = vcombine.low %v4231, %v4234
      %v5336 = vcombine.low %v4237, %v4240
      %v5338 = vunpack.c.l.s4 1983009808
      %v5339 = vunpack.c.0.s8 %v5338
      %v5340 = vlaneseq
      %v5341 = vshrl.u32 %v5340, 7
      %v5342 = vsub.s32 %v5339, %v5341
      %v5343 = vrot.slane %v5335, %v5342
      %v5345 = vunpack.c.l.s4 1983009808
      %v5346 = vunpack.c.0.s8 %v5345
      %v5347 = vlaneseq
      %v5348 = vshrl.u32 %v5347, 7
      %v5349 = vsub.s32 %v5346, %v5348
      %v5350 = vrot.slane %v5336, %v5349
      %v5351 = vcombine.low %v5343, %v5350
      %v5352 = vcombine.low %v4243, %v4246
      %v5353 = vcombine.low %v4249, %v4252
      %v5355 = vunpack.c.l.s4 1983009808
      %v5356 = vunpack.c.0.s8 %v5355
      %v5357 = vlaneseq
      %v5358 = vshrl.u32 %v5357, 7
      %v5359 = vsub.s32 %v5356, %v5358
      %v5360 = vrot.slane %v5352, %v5359
      %v5362 = vunpack.c.l.s4 1983009808
      %v5363 = vunpack.c.0.s8 %v5362
      %v5364 = vlaneseq
      %v5365 = vshrl.u32 %v5364, 7
      %v5366 = vsub.s32 %v5363, %v5365
      %v5367 = vrot.slane %v5353, %v5366
      %v5368 = vcombine.low %v5360, %v5367
      %v5369 = vcombine.low %v4256, %v4259
      %v5370 = vcombine.low %v4262, %v4265
      %v5372 = vunpack.c.l.s4 1983009808
      %v5373 = vunpack.c.0.s8 %v5372
      %v5374 = vlaneseq
      %v5375 = vshrl.u32 %v5374, 7
      %v5376 = vsub.s32 %v5373, %v5375
      %v5377 = vrot.slane %v5369, %v5376
      %v5379 = vunpack.c.l.s4 1983009808
      %v5380 = vunpack.c.0.s8 %v5379
      %v5381 = vlaneseq
      %v5382 = vshrl.u32 %v5381, 7
      %v5383 = vsub.s32 %v5380, %v5382
      %v5384 = vrot.slane %v5370, %v5383
      %v5385 = vcombine.low %v5377, %v5384
      %v5386 = vcombine.low %v4268, %v4271
      %v5387 = vcombine.low %v4274, %v4277
      %v5389 = vunpack.c.l.s4 1983009808
      %v5390 = vunpack.c.0.s8 %v5389
      %v5391 = vlaneseq
      %v5392 = vshrl.u32 %v5391, 7
      %v5393 = vsub.s32 %v5390, %v5392
      %v5394 = vrot.slane %v5386, %v5393
      %v5396 = vunpack.c.l.s4 1983009808
      %v5397 = vunpack.c.0.s8 %v5396
      %v5398 = vlaneseq
      %v5399 = vshrl.u32 %v5398, 7
      %v5400 = vsub.s32 %v5397, %v5399
      %v5401 = vrot.slane %v5387, %v5400
      %v5402 = vcombine.low %v5394, %v5401
      %v5403 = vcombine.low %v4281, %v4284
      %v5404 = vcombine.low %v4287, %v4290
      %v5406 = vunpack.c.l.s4 1983009808
      %v5407 = vunpack.c.0.s8 %v5406
      %v5408 = vlaneseq
      %v5409 = vshrl.u32 %v5408, 7
      %v5410 = vsub.s32 %v5407, %v5409
      %v5411 = vrot.slane %v5403, %v5410
      %v5413 = vunpack.c.l.s4 1983009808
      %v5414 = vunpack.c.0.s8 %v5413
      %v5415 = vlaneseq
      %v5416 = vshrl.u32 %v5415, 7
      %v5417 = vsub.s32 %v5414, %v5416
      %v5418 = vrot.slane %v5404, %v5417
      %v5419 = vcombine.low %v5411, %v5418
      %v5420 = vcombine.low %v4293, %v4296
      %v5421 = vcombine.low %v4299, %v4302
      %v5423 = vunpack.c.l.s4 1983009808
      %v5424 = vunpack.c.0.s8 %v5423
      %v5425 = vlaneseq
      %v5426 = vshrl.u32 %v5425, 7
      %v5427 = vsub.s32 %v5424, %v5426
      %v5428 = vrot.slane %v5420, %v5427
      %v5430 = vunpack.c.l.s4 1983009808
      %v5431 = vunpack.c.0.s8 %v5430
      %v5432 = vlaneseq
      %v5433 = vshrl.u32 %v5432, 7
      %v5434 = vsub.s32 %v5431, %v5433
      %v5435 = vrot.slane %v5421, %v5434
      %v5436 = vcombine.low %v5428, %v5435
      %v5437 = vcombine.low %v4306, %v4309
      %v5438 = vcombine.low %v4312, %v4315
      %v5440 = vunpack.c.l.s4 1983009808
      %v5441 = vunpack.c.0.s8 %v5440
      %v5442 = vlaneseq
      %v5443 = vshrl.u32 %v5442, 7
      %v5444 = vsub.s32 %v5441, %v5443
      %v5445 = vrot.slane %v5437, %v5444
      %v5447 = vunpack.c.l.s4 1983009808
      %v5448 = vunpack.c.0.s8 %v5447
      %v5449 = vlaneseq
      %v5450 = vshrl.u32 %v5449, 7
      %v5451 = vsub.s32 %v5448, %v5450
      %v5452 = vrot.slane %v5438, %v5451
      %v5453 = vcombine.low %v5445, %v5452
      %v5454 = vcombine.low %v4318, %v4321
      %v5455 = vcombine.low %v4324, %v4327
      %v5457 = vunpack.c.l.s4 1983009808
      %v5458 = vunpack.c.0.s8 %v5457
      %v5459 = vlaneseq
      %v5460 = vshrl.u32 %v5459, 7
      %v5461 = vsub.s32 %v5458, %v5460
      %v5462 = vrot.slane %v5454, %v5461
      %v5464 = vunpack.c.l.s4 1983009808
      %v5465 = vunpack.c.0.s8 %v5464
      %v5466 = vlaneseq
      %v5467 = vshrl.u32 %v5466, 7
      %v5468 = vsub.s32 %v5465, %v5467
      %v5469 = vrot.slane %v5455, %v5468
      %v5470 = vcombine.low %v5462, %v5469
      %v5471 = vcombine.low %v4331, %v4334
      %v5472 = vcombine.low %v4337, %v4340
      %v5474 = vunpack.c.l.s4 1983009808
      %v5475 = vunpack.c.0.s8 %v5474
      %v5476 = vlaneseq
      %v5477 = vshrl.u32 %v5476, 7
      %v5478 = vsub.s32 %v5475, %v5477
      %v5479 = vrot.slane %v5471, %v5478
      %v5481 = vunpack.c.l.s4 1983009808
      %v5482 = vunpack.c.0.s8 %v5481
      %v5483 = vlaneseq
      %v5484 = vshrl.u32 %v5483, 7
      %v5485 = vsub.s32 %v5482, %v5484
      %v5486 = vrot.slane %v5472, %v5485
      %v5487 = vcombine.low %v5479, %v5486
      %v5488 = vcombine.low %v4343, %v4346
      %v5489 = vcombine.low %v4349, %v4352
      %v5491 = vunpack.c.l.s4 1983009808
      %v5492 = vunpack.c.0.s8 %v5491
      %v5493 = vlaneseq
      %v5494 = vshrl.u32 %v5493, 7
      %v5495 = vsub.s32 %v5492, %v5494
      %v5496 = vrot.slane %v5488, %v5495
      %v5498 = vunpack.c.l.s4 1983009808
      %v5499 = vunpack.c.0.s8 %v5498
      %v5500 = vlaneseq
      %v5501 = vshrl.u32 %v5500, 7
      %v5502 = vsub.s32 %v5499, %v5501
      %v5503 = vrot.slane %v5489, %v5502
      %v5504 = vcombine.low %v5496, %v5503
      %v5505 = vcombine.low %v4356, %v4359
      %v5506 = vcombine.low %v4362, %v4365
      %v5508 = vunpack.c.l.s4 1983009808
      %v5509 = vunpack.c.0.s8 %v5508
      %v5510 = vlaneseq
      %v5511 = vshrl.u32 %v5510, 7
      %v5512 = vsub.s32 %v5509, %v5511
      %v5513 = vrot.slane %v5505, %v5512
      %v5515 = vunpack.c.l.s4 1983009808
      %v5516 = vunpack.c.0.s8 %v5515
      %v5517 = vlaneseq
      %v5518 = vshrl.u32 %v5517, 7
      %v5519 = vsub.s32 %v5516, %v5518
      %v5520 = vrot.slane %v5506, %v5519
      %v5521 = vcombine.low %v5513, %v5520
      %v5522 = vcombine.low %v4368, %v4371
      %v5523 = vcombine.low %v4374, %v4377
      %v5525 = vunpack.c.l.s4 1983009808
      %v5526 = vunpack.c.0.s8 %v5525
      %v5527 = vlaneseq
      %v5528 = vshrl.u32 %v5527, 7
      %v5529 = vsub.s32 %v5526, %v5528
      %v5530 = vrot.slane %v5522, %v5529
      %v5532 = vunpack.c.l.s4 1983009808
      %v5533 = vunpack.c.0.s8 %v5532
      %v5534 = vlaneseq
      %v5535 = vshrl.u32 %v5534, 7
      %v5536 = vsub.s32 %v5533, %v5535
      %v5537 = vrot.slane %v5523, %v5536
      %v5538 = vcombine.low %v5530, %v5537
      %v5539 = vcombine.low %v4381, %v4384
      %v5540 = vcombine.low %v4387, %v4390
      %v5542 = vunpack.c.l.s4 1983009808
      %v5543 = vunpack.c.0.s8 %v5542
      %v5544 = vlaneseq
      %v5545 = vshrl.u32 %v5544, 7
      %v5546 = vsub.s32 %v5543, %v5545
      %v5547 = vrot.slane %v5539, %v5546
      %v5549 = vunpack.c.l.s4 1983009808
      %v5550 = vunpack.c.0.s8 %v5549
      %v5551 = vlaneseq
      %v5552 = vshrl.u32 %v5551, 7
      %v5553 = vsub.s32 %v5550, %v5552
      %v5554 = vrot.slane %v5540, %v5553
      %v5555 = vcombine.low %v5547, %v5554
      %v5556 = vcombine.low %v4393, %v4396
      %v5557 = vcombine.low %v4399, %v4402
      %v5559 = vunpack.c.l.s4 1983009808
      %v5560 = vunpack.c.0.s8 %v5559
      %v5561 = vlaneseq
      %v5562 = vshrl.u32 %v5561, 7
      %v5563 = vsub.s32 %v5560, %v5562
      %v5564 = vrot.slane %v5556, %v5563
      %v5566 = vunpack.c.l.s4 1983009808
      %v5567 = vunpack.c.0.s8 %v5566
      %v5568 = vlaneseq
      %v5569 = vshrl.u32 %v5568, 7
      %v5570 = vsub.s32 %v5567, %v5569
      %v5571 = vrot.slane %v5557, %v5570
      %v5572 = vcombine.low %v5564, %v5571
      %v5573 = vcombine.low %v4406, %v4409
      %v5574 = vcombine.low %v4412, %v4415
      %v5576 = vunpack.c.l.s4 1983009808
      %v5577 = vunpack.c.0.s8 %v5576
      %v5578 = vlaneseq
      %v5579 = vshrl.u32 %v5578, 7
      %v5580 = vsub.s32 %v5577, %v5579
      %v5581 = vrot.slane %v5573, %v5580
      %v5583 = vunpack.c.l.s4 1983009808
      %v5584 = vunpack.c.0.s8 %v5583
      %v5585 = vlaneseq
      %v5586 = vshrl.u32 %v5585, 7
      %v5587 = vsub.s32 %v5584, %v5586
      %v5588 = vrot.slane %v5574, %v5587
      %v5589 = vcombine.low %v5581, %v5588
      %v5590 = vcombine.low %v4418, %v4421
      %v5591 = vcombine.low %v4424, %v4427
      %v5593 = vunpack.c.l.s4 1983009808
      %v5594 = vunpack.c.0.s8 %v5593
      %v5595 = vlaneseq
      %v5596 = vshrl.u32 %v5595, 7
      %v5597 = vsub.s32 %v5594, %v5596
      %v5598 = vrot.slane %v5590, %v5597
      %v5600 = vunpack.c.l.s4 1983009808
      %v5601 = vunpack.c.0.s8 %v5600
      %v5602 = vlaneseq
      %v5603 = vshrl.u32 %v5602, 7
      %v5604 = vsub.s32 %v5601, %v5603
      %v5605 = vrot.slane %v5591, %v5604
      %v5606 = vcombine.low %v5598, %v5605
      %v5607 = vcombine.low %v4431, %v4434
      %v5608 = vcombine.low %v4437, %v4440
      %v5610 = vunpack.c.l.s4 1983009808
      %v5611 = vunpack.c.0.s8 %v5610
      %v5612 = vlaneseq
      %v5613 = vshrl.u32 %v5612, 7
      %v5614 = vsub.s32 %v5611, %v5613
      %v5615 = vrot.slane %v5607, %v5614
      %v5617 = vunpack.c.l.s4 1983009808
      %v5618 = vunpack.c.0.s8 %v5617
      %v5619 = vlaneseq
      %v5620 = vshrl.u32 %v5619, 7
      %v5621 = vsub.s32 %v5618, %v5620
      %v5622 = vrot.slane %v5608, %v5621
      %v5623 = vcombine.low %v5615, %v5622
      %v5624 = vcombine.low %v4443, %v4446
      %v5625 = vcombine.low %v4449, %v4452
      %v5627 = vunpack.c.l.s4 1983009808
      %v5628 = vunpack.c.0.s8 %v5627
      %v5629 = vlaneseq
      %v5630 = vshrl.u32 %v5629, 7
      %v5631 = vsub.s32 %v5628, %v5630
      %v5632 = vrot.slane %v5624, %v5631
      %v5634 = vunpack.c.l.s4 1983009808
      %v5635 = vunpack.c.0.s8 %v5634
      %v5636 = vlaneseq
      %v5637 = vshrl.u32 %v5636, 7
      %v5638 = vsub.s32 %v5635, %v5637
      %v5639 = vrot.slane %v5625, %v5638
      %v5640 = vcombine.low %v5632, %v5639
      %5641 = vrot.lane.b32.xlu0 %v5113, 8
      %v5642 = vpop.permute.xlu0 %5641
      %5643 = vrot.lane.b32.xlu0 %v5130, 8
      %v5644 = vpop.permute.xlu0 %5643
      %5645 = vrot.lane.b32.xlu0 %v5147, 8
      %v5646 = vpop.permute.xlu0 %5645
      %5647 = vrot.lane.b32.xlu0 %v5164, 8
      %v5648 = vpop.permute.xlu0 %5647
      %5649 = vrot.lane.b32.xlu0 %v5181, 8
      %v5650 = vpop.permute.xlu0 %5649
      %5651 = vrot.lane.b32.xlu0 %v5198, 8
      %v5652 = vpop.permute.xlu0 %5651
      %5653 = vrot.lane.b32.xlu0 %v5215, 8
      %v5654 = vpop.permute.xlu0 %5653
      %5655 = vrot.lane.b32.xlu0 %v5232, 8
      %v5656 = vpop.permute.xlu0 %5655
      %5657 = vrot.lane.b32.xlu0 %v5249, 8
      %v5658 = vpop.permute.xlu0 %5657
      %5659 = vrot.lane.b32.xlu0 %v5266, 8
      %v5660 = vpop.permute.xlu0 %5659
      %5661 = vrot.lane.b32.xlu0 %v5283, 8
      %v5662 = vpop.permute.xlu0 %5661
      %5663 = vrot.lane.b32.xlu0 %v5300, 8
      %v5664 = vpop.permute.xlu0 %5663
      %5665 = vrot.lane.b32.xlu0 %v5317, 8
      %v5666 = vpop.permute.xlu0 %5665
      %5667 = vrot.lane.b32.xlu0 %v5334, 8
      %v5668 = vpop.permute.xlu0 %5667
      %5669 = vrot.lane.b32.xlu0 %v5351, 8
      %v5670 = vpop.permute.xlu0 %5669
      %5671 = vrot.lane.b32.xlu0 %v5368, 8
      %v5672 = vpop.permute.xlu0 %5671
      %5673 = vrot.lane.b32.xlu0 %v5385, 8
      %v5674 = vpop.permute.xlu0 %5673
      %5675 = vrot.lane.b32.xlu0 %v5402, 8
      %v5676 = vpop.permute.xlu0 %5675
      %5677 = vrot.lane.b32.xlu0 %v5419, 8
      %v5678 = vpop.permute.xlu0 %5677
      %5679 = vrot.lane.b32.xlu0 %v5436, 8
      %v5680 = vpop.permute.xlu0 %5679
      %5681 = vrot.lane.b32.xlu0 %v5453, 8
      %v5682 = vpop.permute.xlu0 %5681
      %5683 = vrot.lane.b32.xlu0 %v5470, 8
      %v5684 = vpop.permute.xlu0 %5683
      %5685 = vrot.lane.b32.xlu0 %v5487, 8
      %v5686 = vpop.permute.xlu0 %5685
      %5687 = vrot.lane.b32.xlu0 %v5504, 8
      %v5688 = vpop.permute.xlu0 %5687
      %5689 = vrot.lane.b32.xlu0 %v5521, 8
      %v5690 = vpop.permute.xlu0 %5689
      %5691 = vrot.lane.b32.xlu0 %v5538, 8
      %v5692 = vpop.permute.xlu0 %5691
      %5693 = vrot.lane.b32.xlu0 %v5555, 8
      %v5694 = vpop.permute.xlu0 %5693
      %5695 = vrot.lane.b32.xlu0 %v5572, 8
      %v5696 = vpop.permute.xlu0 %5695
      %5697 = vrot.lane.b32.xlu0 %v5589, 8
      %v5698 = vpop.permute.xlu0 %5697
      %5699 = vrot.lane.b32.xlu0 %v5606, 8
      %v5700 = vpop.permute.xlu0 %5699
      %5701 = vrot.lane.b32.xlu0 %v5623, 8
      %v5702 = vpop.permute.xlu0 %5701
      %5703 = vrot.lane.b32.xlu0 %v5640, 8
      %v5704 = vpop.permute.xlu0 %5703
      %v5737 = vcombine.low %v3741, %v3742
      %v5738 = vcombine.low %v3743, %v3744
      %v5740 = vunpack.c.l.s4 1983009808
      %v5741 = vunpack.c.0.s8 %v5740
      %v5742 = vlaneseq
      %v5743 = vshrl.u32 %v5742, 7
      %v5744 = vsub.s32 %v5741, %v5743
      %v5745 = vrot.slane %v5737, %v5744
      %v5747 = vunpack.c.l.s4 1983009808
      %v5748 = vunpack.c.0.s8 %v5747
      %v5749 = vlaneseq
      %v5750 = vshrl.u32 %v5749, 7
      %v5751 = vsub.s32 %v5748, %v5750
      %v5752 = vrot.slane %v5738, %v5751
      %v5753 = vcombine.low %v5745, %v5752
      %v5754 = vcombine.low %v3745, %v3746
      %v5755 = vcombine.low %v3747, %v3748
      %v5757 = vunpack.c.l.s4 1983009808
      %v5758 = vunpack.c.0.s8 %v5757
      %v5759 = vlaneseq
      %v5760 = vshrl.u32 %v5759, 7
      %v5761 = vsub.s32 %v5758, %v5760
      %v5762 = vrot.slane %v5754, %v5761
      %v5764 = vunpack.c.l.s4 1983009808
      %v5765 = vunpack.c.0.s8 %v5764
      %v5766 = vlaneseq
      %v5767 = vshrl.u32 %v5766, 7
      %v5768 = vsub.s32 %v5765, %v5767
      %v5769 = vrot.slane %v5755, %v5768
      %v5770 = vcombine.low %v5762, %v5769
      %v5771 = vcombine.low %v3750, %v3751
      %v5772 = vcombine.low %v3752, %v3753
      %v5774 = vunpack.c.l.s4 1983009808
      %v5775 = vunpack.c.0.s8 %v5774
      %v5776 = vlaneseq
      %v5777 = vshrl.u32 %v5776, 7
      %v5778 = vsub.s32 %v5775, %v5777
      %v5779 = vrot.slane %v5771, %v5778
      %v5781 = vunpack.c.l.s4 1983009808
      %v5782 = vunpack.c.0.s8 %v5781
      %v5783 = vlaneseq
      %v5784 = vshrl.u32 %v5783, 7
      %v5785 = vsub.s32 %v5782, %v5784
      %v5786 = vrot.slane %v5772, %v5785
      %v5787 = vcombine.low %v5779, %v5786
      %v5788 = vcombine.low %v3754, %v3755
      %v5789 = vcombine.low %v3756, %v3757
      %v5791 = vunpack.c.l.s4 1983009808
      %v5792 = vunpack.c.0.s8 %v5791
      %v5793 = vlaneseq
      %v5794 = vshrl.u32 %v5793, 7
      %v5795 = vsub.s32 %v5792, %v5794
      %v5796 = vrot.slane %v5788, %v5795
      %v5798 = vunpack.c.l.s4 1983009808
      %v5799 = vunpack.c.0.s8 %v5798
      %v5800 = vlaneseq
      %v5801 = vshrl.u32 %v5800, 7
      %v5802 = vsub.s32 %v5799, %v5801
      %v5803 = vrot.slane %v5789, %v5802
      %v5804 = vcombine.low %v5796, %v5803
      %v5805 = vcombine.low %v3759, %v3760
      %v5806 = vcombine.low %v3761, %v3762
      %v5808 = vunpack.c.l.s4 1983009808
      %v5809 = vunpack.c.0.s8 %v5808
      %v5810 = vlaneseq
      %v5811 = vshrl.u32 %v5810, 7
      %v5812 = vsub.s32 %v5809, %v5811
      %v5813 = vrot.slane %v5805, %v5812
      %v5815 = vunpack.c.l.s4 1983009808
      %v5816 = vunpack.c.0.s8 %v5815
      %v5817 = vlaneseq
      %v5818 = vshrl.u32 %v5817, 7
      %v5819 = vsub.s32 %v5816, %v5818
      %v5820 = vrot.slane %v5806, %v5819
      %v5821 = vcombine.low %v5813, %v5820
      %v5822 = vcombine.low %v3763, %v3764
      %v5823 = vcombine.low %v3765, %v3766
      %v5825 = vunpack.c.l.s4 1983009808
      %v5826 = vunpack.c.0.s8 %v5825
      %v5827 = vlaneseq
      %v5828 = vshrl.u32 %v5827, 7
      %v5829 = vsub.s32 %v5826, %v5828
      %v5830 = vrot.slane %v5822, %v5829
      %v5832 = vunpack.c.l.s4 1983009808
      %v5833 = vunpack.c.0.s8 %v5832
      %v5834 = vlaneseq
      %v5835 = vshrl.u32 %v5834, 7
      %v5836 = vsub.s32 %v5833, %v5835
      %v5837 = vrot.slane %v5823, %v5836
      %v5838 = vcombine.low %v5830, %v5837
      %v5839 = vcombine.low %v3768, %v3769
      %v5840 = vcombine.low %v3770, %v3771
      %v5842 = vunpack.c.l.s4 1983009808
      %v5843 = vunpack.c.0.s8 %v5842
      %v5844 = vlaneseq
      %v5845 = vshrl.u32 %v5844, 7
      %v5846 = vsub.s32 %v5843, %v5845
      %v5847 = vrot.slane %v5839, %v5846
      %v5849 = vunpack.c.l.s4 1983009808
      %v5850 = vunpack.c.0.s8 %v5849
      %v5851 = vlaneseq
      %v5852 = vshrl.u32 %v5851, 7
      %v5853 = vsub.s32 %v5850, %v5852
      %v5854 = vrot.slane %v5840, %v5853
      %v5855 = vcombine.low %v5847, %v5854
      %v5856 = vcombine.low %v3772, %v3773
      %v5857 = vcombine.low %v3774, %v3775
      %v5859 = vunpack.c.l.s4 1983009808
      %v5860 = vunpack.c.0.s8 %v5859
      %v5861 = vlaneseq
      %v5862 = vshrl.u32 %v5861, 7
      %v5863 = vsub.s32 %v5860, %v5862
      %v5864 = vrot.slane %v5856, %v5863
      %v5866 = vunpack.c.l.s4 1983009808
      %v5867 = vunpack.c.0.s8 %v5866
      %v5868 = vlaneseq
      %v5869 = vshrl.u32 %v5868, 7
      %v5870 = vsub.s32 %v5867, %v5869
      %v5871 = vrot.slane %v5857, %v5870
      %v5872 = vcombine.low %v5864, %v5871
      %v5873 = vcombine.low %v3777, %v3778
      %v5874 = vcombine.low %v3779, %v3780
      %v5876 = vunpack.c.l.s4 1983009808
      %v5877 = vunpack.c.0.s8 %v5876
      %v5878 = vlaneseq
      %v5879 = vshrl.u32 %v5878, 7
      %v5880 = vsub.s32 %v5877, %v5879
      %v5881 = vrot.slane %v5873, %v5880
      %v5883 = vunpack.c.l.s4 1983009808
      %v5884 = vunpack.c.0.s8 %v5883
      %v5885 = vlaneseq
      %v5886 = vshrl.u32 %v5885, 7
      %v5887 = vsub.s32 %v5884, %v5886
      %v5888 = vrot.slane %v5874, %v5887
      %v5889 = vcombine.low %v5881, %v5888
      %v5890 = vcombine.low %v3781, %v3782
      %v5891 = vcombine.low %v3783, %v3784
      %v5893 = vunpack.c.l.s4 1983009808
      %v5894 = vunpack.c.0.s8 %v5893
      %v5895 = vlaneseq
      %v5896 = vshrl.u32 %v5895, 7
      %v5897 = vsub.s32 %v5894, %v5896
      %v5898 = vrot.slane %v5890, %v5897
      %v5900 = vunpack.c.l.s4 1983009808
      %v5901 = vunpack.c.0.s8 %v5900
      %v5902 = vlaneseq
      %v5903 = vshrl.u32 %v5902, 7
      %v5904 = vsub.s32 %v5901, %v5903
      %v5905 = vrot.slane %v5891, %v5904
      %v5906 = vcombine.low %v5898, %v5905
      %v5907 = vcombine.low %v3786, %v3787
      %v5908 = vcombine.low %v3788, %v3789
      %v5910 = vunpack.c.l.s4 1983009808
      %v5911 = vunpack.c.0.s8 %v5910
      %v5912 = vlaneseq
      %v5913 = vshrl.u32 %v5912, 7
      %v5914 = vsub.s32 %v5911, %v5913
      %v5915 = vrot.slane %v5907, %v5914
      %v5917 = vunpack.c.l.s4 1983009808
      %v5918 = vunpack.c.0.s8 %v5917
      %v5919 = vlaneseq
      %v5920 = vshrl.u32 %v5919, 7
      %v5921 = vsub.s32 %v5918, %v5920
      %v5922 = vrot.slane %v5908, %v5921
      %v5923 = vcombine.low %v5915, %v5922
      %v5924 = vcombine.low %v3790, %v3791
      %v5925 = vcombine.low %v3792, %v3793
      %v5927 = vunpack.c.l.s4 1983009808
      %v5928 = vunpack.c.0.s8 %v5927
      %v5929 = vlaneseq
      %v5930 = vshrl.u32 %v5929, 7
      %v5931 = vsub.s32 %v5928, %v5930
      %v5932 = vrot.slane %v5924, %v5931
      %v5934 = vunpack.c.l.s4 1983009808
      %v5935 = vunpack.c.0.s8 %v5934
      %v5936 = vlaneseq
      %v5937 = vshrl.u32 %v5936, 7
      %v5938 = vsub.s32 %v5935, %v5937
      %v5939 = vrot.slane %v5925, %v5938
      %v5940 = vcombine.low %v5932, %v5939
      %v5941 = vcombine.low %v3795, %v3796
      %v5942 = vcombine.low %v3797, %v3798
      %v5944 = vunpack.c.l.s4 1983009808
      %v5945 = vunpack.c.0.s8 %v5944
      %v5946 = vlaneseq
      %v5947 = vshrl.u32 %v5946, 7
      %v5948 = vsub.s32 %v5945, %v5947
      %v5949 = vrot.slane %v5941, %v5948
      %v5951 = vunpack.c.l.s4 1983009808
      %v5952 = vunpack.c.0.s8 %v5951
      %v5953 = vlaneseq
      %v5954 = vshrl.u32 %v5953, 7
      %v5955 = vsub.s32 %v5952, %v5954
      %v5956 = vrot.slane %v5942, %v5955
      %v5957 = vcombine.low %v5949, %v5956
      %v5958 = vcombine.low %v3799, %v3800
      %v5959 = vcombine.low %v3801, %v3802
      %v5961 = vunpack.c.l.s4 1983009808
      %v5962 = vunpack.c.0.s8 %v5961
      %v5963 = vlaneseq
      %v5964 = vshrl.u32 %v5963, 7
      %v5965 = vsub.s32 %v5962, %v5964
      %v5966 = vrot.slane %v5958, %v5965
      %v5968 = vunpack.c.l.s4 1983009808
      %v5969 = vunpack.c.0.s8 %v5968
      %v5970 = vlaneseq
      %v5971 = vshrl.u32 %v5970, 7
      %v5972 = vsub.s32 %v5969, %v5971
      %v5973 = vrot.slane %v5959, %v5972
      %v5974 = vcombine.low %v5966, %v5973
      %v5975 = vcombine.low %v3804, %v3805
      %v5976 = vcombine.low %v3806, %v3807
      %v5978 = vunpack.c.l.s4 1983009808
      %v5979 = vunpack.c.0.s8 %v5978
      %v5980 = vlaneseq
      %v5981 = vshrl.u32 %v5980, 7
      %v5982 = vsub.s32 %v5979, %v5981
      %v5983 = vrot.slane %v5975, %v5982
      %v5985 = vunpack.c.l.s4 1983009808
      %v5986 = vunpack.c.0.s8 %v5985
      %v5987 = vlaneseq
      %v5988 = vshrl.u32 %v5987, 7
      %v5989 = vsub.s32 %v5986, %v5988
      %v5990 = vrot.slane %v5976, %v5989
      %v5991 = vcombine.low %v5983, %v5990
      %v5992 = vcombine.low %v3808, %v3809
      %v5993 = vcombine.low %v3810, %v3811
      %v5995 = vunpack.c.l.s4 1983009808
      %v5996 = vunpack.c.0.s8 %v5995
      %v5997 = vlaneseq
      %v5998 = vshrl.u32 %v5997, 7
      %v5999 = vsub.s32 %v5996, %v5998
      %v6000 = vrot.slane %v5992, %v5999
      %v6002 = vunpack.c.l.s4 1983009808
      %v6003 = vunpack.c.0.s8 %v6002
      %v6004 = vlaneseq
      %v6005 = vshrl.u32 %v6004, 7
      %v6006 = vsub.s32 %v6003, %v6005
      %v6007 = vrot.slane %v5993, %v6006
      %v6008 = vcombine.low %v6000, %v6007
      %v6009 = vcombine.low %v3813, %v3814
      %v6010 = vcombine.low %v3815, %v3816
      %v6012 = vunpack.c.l.s4 1983009808
      %v6013 = vunpack.c.0.s8 %v6012
      %v6014 = vlaneseq
      %v6015 = vshrl.u32 %v6014, 7
      %v6016 = vsub.s32 %v6013, %v6015
      %v6017 = vrot.slane %v6009, %v6016
      %v6019 = vunpack.c.l.s4 1983009808
      %v6020 = vunpack.c.0.s8 %v6019
      %v6021 = vlaneseq
      %v6022 = vshrl.u32 %v6021, 7
      %v6023 = vsub.s32 %v6020, %v6022
      %v6024 = vrot.slane %v6010, %v6023
      %v6025 = vcombine.low %v6017, %v6024
      %v6026 = vcombine.low %v3817, %v3818
      %v6027 = vcombine.low %v3819, %v3820
      %v6029 = vunpack.c.l.s4 1983009808
      %v6030 = vunpack.c.0.s8 %v6029
      %v6031 = vlaneseq
      %v6032 = vshrl.u32 %v6031, 7
      %v6033 = vsub.s32 %v6030, %v6032
      %v6034 = vrot.slane %v6026, %v6033
      %v6036 = vunpack.c.l.s4 1983009808
      %v6037 = vunpack.c.0.s8 %v6036
      %v6038 = vlaneseq
      %v6039 = vshrl.u32 %v6038, 7
      %v6040 = vsub.s32 %v6037, %v6039
      %v6041 = vrot.slane %v6027, %v6040
      %v6042 = vcombine.low %v6034, %v6041
      %v6043 = vcombine.low %v3822, %v3823
      %v6044 = vcombine.low %v3824, %v3825
      %v6046 = vunpack.c.l.s4 1983009808
      %v6047 = vunpack.c.0.s8 %v6046
      %v6048 = vlaneseq
      %v6049 = vshrl.u32 %v6048, 7
      %v6050 = vsub.s32 %v6047, %v6049
      %v6051 = vrot.slane %v6043, %v6050
      %v6053 = vunpack.c.l.s4 1983009808
      %v6054 = vunpack.c.0.s8 %v6053
      %v6055 = vlaneseq
      %v6056 = vshrl.u32 %v6055, 7
      %v6057 = vsub.s32 %v6054, %v6056
      %v6058 = vrot.slane %v6044, %v6057
      %v6059 = vcombine.low %v6051, %v6058
      %v6060 = vcombine.low %v3826, %v3827
      %v6061 = vcombine.low %v3828, %v3829
      %v6063 = vunpack.c.l.s4 1983009808
      %v6064 = vunpack.c.0.s8 %v6063
      %v6065 = vlaneseq
      %v6066 = vshrl.u32 %v6065, 7
      %v6067 = vsub.s32 %v6064, %v6066
      %v6068 = vrot.slane %v6060, %v6067
      %v6070 = vunpack.c.l.s4 1983009808
      %v6071 = vunpack.c.0.s8 %v6070
      %v6072 = vlaneseq
      %v6073 = vshrl.u32 %v6072, 7
      %v6074 = vsub.s32 %v6071, %v6073
      %v6075 = vrot.slane %v6061, %v6074
      %v6076 = vcombine.low %v6068, %v6075
      %v6077 = vcombine.low %v3831, %v3832
      %v6078 = vcombine.low %v3833, %v3834
      %v6080 = vunpack.c.l.s4 1983009808
      %v6081 = vunpack.c.0.s8 %v6080
      %v6082 = vlaneseq
      %v6083 = vshrl.u32 %v6082, 7
      %v6084 = vsub.s32 %v6081, %v6083
      %v6085 = vrot.slane %v6077, %v6084
      %v6087 = vunpack.c.l.s4 1983009808
      %v6088 = vunpack.c.0.s8 %v6087
      %v6089 = vlaneseq
      %v6090 = vshrl.u32 %v6089, 7
      %v6091 = vsub.s32 %v6088, %v6090
      %v6092 = vrot.slane %v6078, %v6091
      %v6093 = vcombine.low %v6085, %v6092
      %v6094 = vcombine.low %v3835, %v3836
      %v6095 = vcombine.low %v3837, %v3838
      %v6097 = vunpack.c.l.s4 1983009808
      %v6098 = vunpack.c.0.s8 %v6097
      %v6099 = vlaneseq
      %v6100 = vshrl.u32 %v6099, 7
      %v6101 = vsub.s32 %v6098, %v6100
      %v6102 = vrot.slane %v6094, %v6101
      %v6104 = vunpack.c.l.s4 1983009808
      %v6105 = vunpack.c.0.s8 %v6104
      %v6106 = vlaneseq
      %v6107 = vshrl.u32 %v6106, 7
      %v6108 = vsub.s32 %v6105, %v6107
      %v6109 = vrot.slane %v6095, %v6108
      %v6110 = vcombine.low %v6102, %v6109
      %v6111 = vcombine.low %v3840, %v3841
      %v6112 = vcombine.low %v3842, %v3843
      %v6114 = vunpack.c.l.s4 1983009808
      %v6115 = vunpack.c.0.s8 %v6114
      %v6116 = vlaneseq
      %v6117 = vshrl.u32 %v6116, 7
      %v6118 = vsub.s32 %v6115, %v6117
      %v6119 = vrot.slane %v6111, %v6118
      %v6121 = vunpack.c.l.s4 1983009808
      %v6122 = vunpack.c.0.s8 %v6121
      %v6123 = vlaneseq
      %v6124 = vshrl.u32 %v6123, 7
      %v6125 = vsub.s32 %v6122, %v6124
      %v6126 = vrot.slane %v6112, %v6125
      %v6127 = vcombine.low %v6119, %v6126
      %v6128 = vcombine.low %v3844, %v3845
      %v6129 = vcombine.low %v3846, %v3847
      %v6131 = vunpack.c.l.s4 1983009808
      %v6132 = vunpack.c.0.s8 %v6131
      %v6133 = vlaneseq
      %v6134 = vshrl.u32 %v6133, 7
      %v6135 = vsub.s32 %v6132, %v6134
      %v6136 = vrot.slane %v6128, %v6135
      %v6138 = vunpack.c.l.s4 1983009808
      %v6139 = vunpack.c.0.s8 %v6138
      %v6140 = vlaneseq
      %v6141 = vshrl.u32 %v6140, 7
      %v6142 = vsub.s32 %v6139, %v6141
      %v6143 = vrot.slane %v6129, %v6142
      %v6144 = vcombine.low %v6136, %v6143
      %v6145 = vcombine.low %v3849, %v3850
      %v6146 = vcombine.low %v3851, %v3852
      %v6148 = vunpack.c.l.s4 1983009808
      %v6149 = vunpack.c.0.s8 %v6148
      %v6150 = vlaneseq
      %v6151 = vshrl.u32 %v6150, 7
      %v6152 = vsub.s32 %v6149, %v6151
      %v6153 = vrot.slane %v6145, %v6152
      %v6155 = vunpack.c.l.s4 1983009808
      %v6156 = vunpack.c.0.s8 %v6155
      %v6157 = vlaneseq
      %v6158 = vshrl.u32 %v6157, 7
      %v6159 = vsub.s32 %v6156, %v6158
      %v6160 = vrot.slane %v6146, %v6159
      %v6161 = vcombine.low %v6153, %v6160
      %v6162 = vcombine.low %v3853, %v3854
      %v6163 = vcombine.low %v3855, %v3856
      %v6165 = vunpack.c.l.s4 1983009808
      %v6166 = vunpack.c.0.s8 %v6165
      %v6167 = vlaneseq
      %v6168 = vshrl.u32 %v6167, 7
      %v6169 = vsub.s32 %v6166, %v6168
      %v6170 = vrot.slane %v6162, %v6169
      %v6172 = vunpack.c.l.s4 1983009808
      %v6173 = vunpack.c.0.s8 %v6172
      %v6174 = vlaneseq
      %v6175 = vshrl.u32 %v6174, 7
      %v6176 = vsub.s32 %v6173, %v6175
      %v6177 = vrot.slane %v6163, %v6176
      %v6178 = vcombine.low %v6170, %v6177
      %v6179 = vcombine.low %v3858, %v3859
      %v6180 = vcombine.low %v3860, %v3861
      %v6182 = vunpack.c.l.s4 1983009808
      %v6183 = vunpack.c.0.s8 %v6182
      %v6184 = vlaneseq
      %v6185 = vshrl.u32 %v6184, 7
      %v6186 = vsub.s32 %v6183, %v6185
      %v6187 = vrot.slane %v6179, %v6186
      %v6189 = vunpack.c.l.s4 1983009808
      %v6190 = vunpack.c.0.s8 %v6189
      %v6191 = vlaneseq
      %v6192 = vshrl.u32 %v6191, 7
      %v6193 = vsub.s32 %v6190, %v6192
      %v6194 = vrot.slane %v6180, %v6193
      %v6195 = vcombine.low %v6187, %v6194
      %v6196 = vcombine.low %v3862, %v3863
      %v6197 = vcombine.low %v3864, %v3865
      %v6199 = vunpack.c.l.s4 1983009808
      %v6200 = vunpack.c.0.s8 %v6199
      %v6201 = vlaneseq
      %v6202 = vshrl.u32 %v6201, 7
      %v6203 = vsub.s32 %v6200, %v6202
      %v6204 = vrot.slane %v6196, %v6203
      %v6206 = vunpack.c.l.s4 1983009808
      %v6207 = vunpack.c.0.s8 %v6206
      %v6208 = vlaneseq
      %v6209 = vshrl.u32 %v6208, 7
      %v6210 = vsub.s32 %v6207, %v6209
      %v6211 = vrot.slane %v6197, %v6210
      %v6212 = vcombine.low %v6204, %v6211
      %v6213 = vcombine.low %v3867, %v3868
      %v6214 = vcombine.low %v3869, %v3870
      %v6216 = vunpack.c.l.s4 1983009808
      %v6217 = vunpack.c.0.s8 %v6216
      %v6218 = vlaneseq
      %v6219 = vshrl.u32 %v6218, 7
      %v6220 = vsub.s32 %v6217, %v6219
      %v6221 = vrot.slane %v6213, %v6220
      %v6223 = vunpack.c.l.s4 1983009808
      %v6224 = vunpack.c.0.s8 %v6223
      %v6225 = vlaneseq
      %v6226 = vshrl.u32 %v6225, 7
      %v6227 = vsub.s32 %v6224, %v6226
      %v6228 = vrot.slane %v6214, %v6227
      %v6229 = vcombine.low %v6221, %v6228
      %v6230 = vcombine.low %v3871, %v3872
      %v6231 = vcombine.low %v3873, %v3874
      %v6233 = vunpack.c.l.s4 1983009808
      %v6234 = vunpack.c.0.s8 %v6233
      %v6235 = vlaneseq
      %v6236 = vshrl.u32 %v6235, 7
      %v6237 = vsub.s32 %v6234, %v6236
      %v6238 = vrot.slane %v6230, %v6237
      %v6240 = vunpack.c.l.s4 1983009808
      %v6241 = vunpack.c.0.s8 %v6240
      %v6242 = vlaneseq
      %v6243 = vshrl.u32 %v6242, 7
      %v6244 = vsub.s32 %v6241, %v6243
      %v6245 = vrot.slane %v6231, %v6244
      %v6246 = vcombine.low %v6238, %v6245
      %v6247 = vcombine.low %v3876, %v3877
      %v6248 = vcombine.low %v3878, %v3879
      %v6250 = vunpack.c.l.s4 1983009808
      %v6251 = vunpack.c.0.s8 %v6250
      %v6252 = vlaneseq
      %v6253 = vshrl.u32 %v6252, 7
      %v6254 = vsub.s32 %v6251, %v6253
      %v6255 = vrot.slane %v6247, %v6254
      %v6257 = vunpack.c.l.s4 1983009808
      %v6258 = vunpack.c.0.s8 %v6257
      %v6259 = vlaneseq
      %v6260 = vshrl.u32 %v6259, 7
      %v6261 = vsub.s32 %v6258, %v6260
      %v6262 = vrot.slane %v6248, %v6261
      %v6263 = vcombine.low %v6255, %v6262
      %v6264 = vcombine.low %v3880, %v3881
      %v6265 = vcombine.low %v3882, %v3883
      %v6267 = vunpack.c.l.s4 1983009808
      %v6268 = vunpack.c.0.s8 %v6267
      %v6269 = vlaneseq
      %v6270 = vshrl.u32 %v6269, 7
      %v6271 = vsub.s32 %v6268, %v6270
      %v6272 = vrot.slane %v6264, %v6271
      %v6274 = vunpack.c.l.s4 1983009808
      %v6275 = vunpack.c.0.s8 %v6274
      %v6276 = vlaneseq
      %v6277 = vshrl.u32 %v6276, 7
      %v6278 = vsub.s32 %v6275, %v6277
      %v6279 = vrot.slane %v6265, %v6278
      %v6280 = vcombine.low %v6272, %v6279
      %6281 = vrot.lane.b32.xlu0 %v5753, 16
      %v6282 = vpop.permute.xlu0 %6281
      %6283 = vrot.lane.b32.xlu0 %v5770, 16
      %v6284 = vpop.permute.xlu0 %6283
      %6285 = vrot.lane.b32.xlu0 %v5787, 16
      %v6286 = vpop.permute.xlu0 %6285
      %6287 = vrot.lane.b32.xlu0 %v5804, 16
      %v6288 = vpop.permute.xlu0 %6287
      %6289 = vrot.lane.b32.xlu0 %v5821, 16
      %v6290 = vpop.permute.xlu0 %6289
      %6291 = vrot.lane.b32.xlu0 %v5838, 16
      %v6292 = vpop.permute.xlu0 %6291
      %6293 = vrot.lane.b32.xlu0 %v5855, 16
      %v6294 = vpop.permute.xlu0 %6293
      %6295 = vrot.lane.b32.xlu0 %v5872, 16
      %v6296 = vpop.permute.xlu0 %6295
      %6297 = vrot.lane.b32.xlu0 %v5889, 16
      %v6298 = vpop.permute.xlu0 %6297
      %6299 = vrot.lane.b32.xlu0 %v5906, 16
      %v6300 = vpop.permute.xlu0 %6299
      %6301 = vrot.lane.b32.xlu0 %v5923, 16
      %v6302 = vpop.permute.xlu0 %6301
      %6303 = vrot.lane.b32.xlu0 %v5940, 16
      %v6304 = vpop.permute.xlu0 %6303
      %6305 = vrot.lane.b32.xlu0 %v5957, 16
      %v6306 = vpop.permute.xlu0 %6305
      %6307 = vrot.lane.b32.xlu0 %v5974, 16
      %v6308 = vpop.permute.xlu0 %6307
      %6309 = vrot.lane.b32.xlu0 %v5991, 16
      %v6310 = vpop.permute.xlu0 %6309
      %6311 = vrot.lane.b32.xlu0 %v6008, 16
      %v6312 = vpop.permute.xlu0 %6311
      %6313 = vrot.lane.b32.xlu0 %v6025, 16
      %v6314 = vpop.permute.xlu0 %6313
      %6315 = vrot.lane.b32.xlu0 %v6042, 16
      %v6316 = vpop.permute.xlu0 %6315
      %6317 = vrot.lane.b32.xlu0 %v6059, 16
      %v6318 = vpop.permute.xlu0 %6317
      %6319 = vrot.lane.b32.xlu0 %v6076, 16
      %v6320 = vpop.permute.xlu0 %6319
      %6321 = vrot.lane.b32.xlu0 %v6093, 16
      %v6322 = vpop.permute.xlu0 %6321
      %6323 = vrot.lane.b32.xlu0 %v6110, 16
      %v6324 = vpop.permute.xlu0 %6323
      %6325 = vrot.lane.b32.xlu0 %v6127, 16
      %v6326 = vpop.permute.xlu0 %6325
      %6327 = vrot.lane.b32.xlu0 %v6144, 16
      %v6328 = vpop.permute.xlu0 %6327
      %6329 = vrot.lane.b32.xlu0 %v6161, 16
      %v6330 = vpop.permute.xlu0 %6329
      %6331 = vrot.lane.b32.xlu0 %v6178, 16
      %v6332 = vpop.permute.xlu0 %6331
      %6333 = vrot.lane.b32.xlu0 %v6195, 16
      %v6334 = vpop.permute.xlu0 %6333
      %6335 = vrot.lane.b32.xlu0 %v6212, 16
      %v6336 = vpop.permute.xlu0 %6335
      %6337 = vrot.lane.b32.xlu0 %v6229, 16
      %v6338 = vpop.permute.xlu0 %6337
      %6339 = vrot.lane.b32.xlu0 %v6246, 16
      %v6340 = vpop.permute.xlu0 %6339
      %6341 = vrot.lane.b32.xlu0 %v6263, 16
      %v6342 = vpop.permute.xlu0 %6341
      %6343 = vrot.lane.b32.xlu0 %v6280, 16
      %v6344 = vpop.permute.xlu0 %6343
      %v6377 = vcombine.low %v3884, %v3885
      %v6378 = vcombine.low %v3886, %v3887
      %v6380 = vunpack.c.l.s4 1983009808
      %v6381 = vunpack.c.0.s8 %v6380
      %v6382 = vlaneseq
      %v6383 = vshrl.u32 %v6382, 7
      %v6384 = vsub.s32 %v6381, %v6383
      %v6385 = vrot.slane %v6377, %v6384
      %v6387 = vunpack.c.l.s4 1983009808
      %v6388 = vunpack.c.0.s8 %v6387
      %v6389 = vlaneseq
      %v6390 = vshrl.u32 %v6389, 7
      %v6391 = vsub.s32 %v6388, %v6390
      %v6392 = vrot.slane %v6378, %v6391
      %v6393 = vcombine.low %v6385, %v6392
      %v6394 = vcombine.low %v3888, %v3889
      %v6395 = vcombine.low %v3890, %v3891
      %v6397 = vunpack.c.l.s4 1983009808
      %v6398 = vunpack.c.0.s8 %v6397
      %v6399 = vlaneseq
      %v6400 = vshrl.u32 %v6399, 7
      %v6401 = vsub.s32 %v6398, %v6400
      %v6402 = vrot.slane %v6394, %v6401
      %v6404 = vunpack.c.l.s4 1983009808
      %v6405 = vunpack.c.0.s8 %v6404
      %v6406 = vlaneseq
      %v6407 = vshrl.u32 %v6406, 7
      %v6408 = vsub.s32 %v6405, %v6407
      %v6409 = vrot.slane %v6395, %v6408
      %v6410 = vcombine.low %v6402, %v6409
      %6411 = vrot.lane.b32.xlu0 %v4571, 24
      %v6412 = vpop.permute.xlu0 %6411
      %6413 = vrot.lane.b32.xlu0 %v4588, 24
      %v6414 = vpop.permute.xlu0 %6413
      %6415 = vrot.lane.b32.xlu0 %v4605, 24
      %v6416 = vpop.permute.xlu0 %6415
      %6417 = vrot.lane.b32.xlu0 %v4622, 24
      %v6418 = vpop.permute.xlu0 %6417
      %6419 = vrot.lane.b32.xlu0 %v4639, 24
      %v6420 = vpop.permute.xlu0 %6419
      %6421 = vrot.lane.b32.xlu0 %v4656, 24
      %v6422 = vpop.permute.xlu0 %6421
      %6423 = vrot.lane.b32.xlu0 %v4673, 24
      %v6424 = vpop.permute.xlu0 %6423
      %6425 = vrot.lane.b32.xlu0 %v4690, 24
      %v6426 = vpop.permute.xlu0 %6425
      %6427 = vrot.lane.b32.xlu0 %v4707, 24
      %v6428 = vpop.permute.xlu0 %6427
      %6429 = vrot.lane.b32.xlu0 %v4724, 24
      %v6430 = vpop.permute.xlu0 %6429
      %6431 = vrot.lane.b32.xlu0 %v4741, 24
      %v6432 = vpop.permute.xlu0 %6431
      %6433 = vrot.lane.b32.xlu0 %v4758, 24
      %v6434 = vpop.permute.xlu0 %6433
      %6435 = vrot.lane.b32.xlu0 %v4775, 24
      %v6436 = vpop.permute.xlu0 %6435
      %6437 = vrot.lane.b32.xlu0 %v4792, 24
      %v6438 = vpop.permute.xlu0 %6437
      %6439 = vrot.lane.b32.xlu0 %v4809, 24
      %v6440 = vpop.permute.xlu0 %6439
      %6441 = vrot.lane.b32.xlu0 %v4826, 24
      %v6442 = vpop.permute.xlu0 %6441
      %6443 = vrot.lane.b32.xlu0 %v4843, 24
      %v6444 = vpop.permute.xlu0 %6443
      %6445 = vrot.lane.b32.xlu0 %v4860, 24
      %v6446 = vpop.permute.xlu0 %6445
      %6447 = vrot.lane.b32.xlu0 %v4877, 24
      %v6448 = vpop.permute.xlu0 %6447
      %6449 = vrot.lane.b32.xlu0 %v4894, 24
      %v6450 = vpop.permute.xlu0 %6449
      %6451 = vrot.lane.b32.xlu0 %v4911, 24
      %v6452 = vpop.permute.xlu0 %6451
      %6453 = vrot.lane.b32.xlu0 %v4928, 24
      %v6454 = vpop.permute.xlu0 %6453
      %6455 = vrot.lane.b32.xlu0 %v4945, 24
      %v6456 = vpop.permute.xlu0 %6455
      %6457 = vrot.lane.b32.xlu0 %v4962, 24
      %v6458 = vpop.permute.xlu0 %6457
      %6459 = vrot.lane.b32.xlu0 %v4979, 24
      %v6460 = vpop.permute.xlu0 %6459
      %6461 = vrot.lane.b32.xlu0 %v4996, 24
      %v6462 = vpop.permute.xlu0 %6461
      %6463 = vrot.lane.b32.xlu0 %v5013, 24
      %v6464 = vpop.permute.xlu0 %6463
      %6465 = vrot.lane.b32.xlu0 %v5030, 24
      %v6466 = vpop.permute.xlu0 %6465
      %6467 = vrot.lane.b32.xlu0 %v5047, 24
      %v6468 = vpop.permute.xlu0 %6467
      %6469 = vrot.lane.b32.xlu0 %v5064, 24
      %v6470 = vpop.permute.xlu0 %6469
      %6471 = vrot.lane.b32.xlu0 %v6393, 24
      %v6472 = vpop.permute.xlu0 %6471
      %6473 = vrot.lane.b32.xlu0 %v6410, 24
      %v6474 = vpop.permute.xlu0 %6473
      %v6507 = vcombine.low %v4465, %v4468
      %v6508 = vcombine.low %v4471, %v4474
      %v6510 = vunpack.c.l.s4 1983009808
      %v6511 = vunpack.c.0.s8 %v6510
      %v6512 = vlaneseq
      %v6513 = vshrl.u32 %v6512, 7
      %v6514 = vsub.s32 %v6511, %v6513
      %v6515 = vrot.slane %v6507, %v6514
      %v6517 = vunpack.c.l.s4 1983009808
      %v6518 = vunpack.c.0.s8 %v6517
      %v6519 = vlaneseq
      %v6520 = vshrl.u32 %v6519, 7
      %v6521 = vsub.s32 %v6518, %v6520
      %v6522 = vrot.slane %v6508, %v6521
      %v6523 = vcombine.low %v6515, %v6522
      %v6524 = vcombine.low %v4477, %v4480
      %v6525 = vcombine.low %v4483, %v4486
      %v6527 = vunpack.c.l.s4 1983009808
      %v6528 = vunpack.c.0.s8 %v6527
      %v6529 = vlaneseq
      %v6530 = vshrl.u32 %v6529, 7
      %v6531 = vsub.s32 %v6528, %v6530
      %v6532 = vrot.slane %v6524, %v6531
      %v6534 = vunpack.c.l.s4 1983009808
      %v6535 = vunpack.c.0.s8 %v6534
      %v6536 = vlaneseq
      %v6537 = vshrl.u32 %v6536, 7
      %v6538 = vsub.s32 %v6535, %v6537
      %v6539 = vrot.slane %v6525, %v6538
      %v6540 = vcombine.low %v6532, %v6539
      %6541 = vrot.lane.b32.xlu0 %v5147, 32
      %v6542 = vpop.permute.xlu0 %6541
      %6543 = vrot.lane.b32.xlu0 %v5164, 32
      %v6544 = vpop.permute.xlu0 %6543
      %6545 = vrot.lane.b32.xlu0 %v5181, 32
      %v6546 = vpop.permute.xlu0 %6545
      %6547 = vrot.lane.b32.xlu0 %v5198, 32
      %v6548 = vpop.permute.xlu0 %6547
      %6549 = vrot.lane.b32.xlu0 %v5215, 32
      %v6550 = vpop.permute.xlu0 %6549
      %6551 = vrot.lane.b32.xlu0 %v5232, 32
      %v6552 = vpop.permute.xlu0 %6551
      %6553 = vrot.lane.b32.xlu0 %v5249, 32
      %v6554 = vpop.permute.xlu0 %6553
      %6555 = vrot.lane.b32.xlu0 %v5266, 32
      %v6556 = vpop.permute.xlu0 %6555
      %6557 = vrot.lane.b32.xlu0 %v5283, 32
      %v6558 = vpop.permute.xlu0 %6557
      %6559 = vrot.lane.b32.xlu0 %v5300, 32
      %v6560 = vpop.permute.xlu0 %6559
      %6561 = vrot.lane.b32.xlu0 %v5317, 32
      %v6562 = vpop.permute.xlu0 %6561
      %6563 = vrot.lane.b32.xlu0 %v5334, 32
      %v6564 = vpop.permute.xlu0 %6563
      %6565 = vrot.lane.b32.xlu0 %v5351, 32
      %v6566 = vpop.permute.xlu0 %6565
      %6567 = vrot.lane.b32.xlu0 %v5368, 32
      %v6568 = vpop.permute.xlu0 %6567
      %6569 = vrot.lane.b32.xlu0 %v5385, 32
      %v6570 = vpop.permute.xlu0 %6569
      %6571 = vrot.lane.b32.xlu0 %v5402, 32
      %v6572 = vpop.permute.xlu0 %6571
      %6573 = vrot.lane.b32.xlu0 %v5419, 32
      %v6574 = vpop.permute.xlu0 %6573
      %6575 = vrot.lane.b32.xlu0 %v5436, 32
      %v6576 = vpop.permute.xlu0 %6575
      %6577 = vrot.lane.b32.xlu0 %v5453, 32
      %v6578 = vpop.permute.xlu0 %6577
      %6579 = vrot.lane.b32.xlu0 %v5470, 32
      %v6580 = vpop.permute.xlu0 %6579
      %6581 = vrot.lane.b32.xlu0 %v5487, 32
      %v6582 = vpop.permute.xlu0 %6581
      %6583 = vrot.lane.b32.xlu0 %v5504, 32
      %v6584 = vpop.permute.xlu0 %6583
      %6585 = vrot.lane.b32.xlu0 %v5521, 32
      %v6586 = vpop.permute.xlu0 %6585
      %6587 = vrot.lane.b32.xlu0 %v5538, 32
      %v6588 = vpop.permute.xlu0 %6587
      %6589 = vrot.lane.b32.xlu0 %v5555, 32
      %v6590 = vpop.permute.xlu0 %6589
      %6591 = vrot.lane.b32.xlu0 %v5572, 32
      %v6592 = vpop.permute.xlu0 %6591
      %6593 = vrot.lane.b32.xlu0 %v5589, 32
      %v6594 = vpop.permute.xlu0 %6593
      %6595 = vrot.lane.b32.xlu0 %v5606, 32
      %v6596 = vpop.permute.xlu0 %6595
      %6597 = vrot.lane.b32.xlu0 %v5623, 32
      %v6598 = vpop.permute.xlu0 %6597
      %6599 = vrot.lane.b32.xlu0 %v5640, 32
      %v6600 = vpop.permute.xlu0 %6599
      %6601 = vrot.lane.b32.xlu0 %v6523, 32
      %v6602 = vpop.permute.xlu0 %6601
      %6603 = vrot.lane.b32.xlu0 %v6540, 32
      %v6604 = vpop.permute.xlu0 %6603
      %v6637 = vcombine.low %v3885, %v3886
      %v6638 = vcombine.low %v3887, %v3888
      %v6640 = vunpack.c.l.s4 1983009808
      %v6641 = vunpack.c.0.s8 %v6640
      %v6642 = vlaneseq
      %v6643 = vshrl.u32 %v6642, 7
      %v6644 = vsub.s32 %v6641, %v6643
      %v6645 = vrot.slane %v6637, %v6644
      %v6647 = vunpack.c.l.s4 1983009808
      %v6648 = vunpack.c.0.s8 %v6647
      %v6649 = vlaneseq
      %v6650 = vshrl.u32 %v6649, 7
      %v6651 = vsub.s32 %v6648, %v6650
      %v6652 = vrot.slane %v6638, %v6651
      %v6653 = vcombine.low %v6645, %v6652
      %v6654 = vcombine.low %v3889, %v3890
      %v6655 = vcombine.low %v3891, %v3892
      %v6657 = vunpack.c.l.s4 1983009808
      %v6658 = vunpack.c.0.s8 %v6657
      %v6659 = vlaneseq
      %v6660 = vshrl.u32 %v6659, 7
      %v6661 = vsub.s32 %v6658, %v6660
      %v6662 = vrot.slane %v6654, %v6661
      %v6664 = vunpack.c.l.s4 1983009808
      %v6665 = vunpack.c.0.s8 %v6664
      %v6666 = vlaneseq
      %v6667 = vshrl.u32 %v6666, 7
      %v6668 = vsub.s32 %v6665, %v6667
      %v6669 = vrot.slane %v6655, %v6668
      %v6670 = vcombine.low %v6662, %v6669
      %6671 = vrot.lane.b32.xlu0 %v5787, 40
      %v6672 = vpop.permute.xlu0 %6671
      %6673 = vrot.lane.b32.xlu0 %v5804, 40
      %v6674 = vpop.permute.xlu0 %6673
      %6675 = vrot.lane.b32.xlu0 %v5821, 40
      %v6676 = vpop.permute.xlu0 %6675
      %6677 = vrot.lane.b32.xlu0 %v5838, 40
      %v6678 = vpop.permute.xlu0 %6677
      %6679 = vrot.lane.b32.xlu0 %v5855, 40
      %v6680 = vpop.permute.xlu0 %6679
      %6681 = vrot.lane.b32.xlu0 %v5872, 40
      %v6682 = vpop.permute.xlu0 %6681
      %6683 = vrot.lane.b32.xlu0 %v5889, 40
      %v6684 = vpop.permute.xlu0 %6683
      %6685 = vrot.lane.b32.xlu0 %v5906, 40
      %v6686 = vpop.permute.xlu0 %6685
      %6687 = vrot.lane.b32.xlu0 %v5923, 40
      %v6688 = vpop.permute.xlu0 %6687
      %6689 = vrot.lane.b32.xlu0 %v5940, 40
      %v6690 = vpop.permute.xlu0 %6689
      %6691 = vrot.lane.b32.xlu0 %v5957, 40
      %v6692 = vpop.permute.xlu0 %6691
      %6693 = vrot.lane.b32.xlu0 %v5974, 40
      %v6694 = vpop.permute.xlu0 %6693
      %6695 = vrot.lane.b32.xlu0 %v5991, 40
      %v6696 = vpop.permute.xlu0 %6695
      %6697 = vrot.lane.b32.xlu0 %v6008, 40
      %v6698 = vpop.permute.xlu0 %6697
      %6699 = vrot.lane.b32.xlu0 %v6025, 40
      %v6700 = vpop.permute.xlu0 %6699
      %6701 = vrot.lane.b32.xlu0 %v6042, 40
      %v6702 = vpop.permute.xlu0 %6701
      %6703 = vrot.lane.b32.xlu0 %v6059, 40
      %v6704 = vpop.permute.xlu0 %6703
      %6705 = vrot.lane.b32.xlu0 %v6076, 40
      %v6706 = vpop.permute.xlu0 %6705
      %6707 = vrot.lane.b32.xlu0 %v6093, 40
      %v6708 = vpop.permute.xlu0 %6707
      %6709 = vrot.lane.b32.xlu0 %v6110, 40
      %v6710 = vpop.permute.xlu0 %6709
      %6711 = vrot.lane.b32.xlu0 %v6127, 40
      %v6712 = vpop.permute.xlu0 %6711
      %6713 = vrot.lane.b32.xlu0 %v6144, 40
      %v6714 = vpop.permute.xlu0 %6713
      %6715 = vrot.lane.b32.xlu0 %v6161, 40
      %v6716 = vpop.permute.xlu0 %6715
      %6717 = vrot.lane.b32.xlu0 %v6178, 40
      %v6718 = vpop.permute.xlu0 %6717
      %6719 = vrot.lane.b32.xlu0 %v6195, 40
      %v6720 = vpop.permute.xlu0 %6719
      %6721 = vrot.lane.b32.xlu0 %v6212, 40
      %v6722 = vpop.permute.xlu0 %6721
      %6723 = vrot.lane.b32.xlu0 %v6229, 40
      %v6724 = vpop.permute.xlu0 %6723
      %6725 = vrot.lane.b32.xlu0 %v6246, 40
      %v6726 = vpop.permute.xlu0 %6725
      %6727 = vrot.lane.b32.xlu0 %v6263, 40
      %v6728 = vpop.permute.xlu0 %6727
      %6729 = vrot.lane.b32.xlu0 %v6280, 40
      %v6730 = vpop.permute.xlu0 %6729
      %6731 = vrot.lane.b32.xlu0 %v6653, 40
      %v6732 = vpop.permute.xlu0 %6731
      %6733 = vrot.lane.b32.xlu0 %v6670, 40
      %v6734 = vpop.permute.xlu0 %6733
      %v6767 = vcombine.low %v3893, %v3894
      %v6768 = vcombine.low %v3895, %v3896
      %v6770 = vunpack.c.l.s4 1983009808
      %v6771 = vunpack.c.0.s8 %v6770
      %v6772 = vlaneseq
      %v6773 = vshrl.u32 %v6772, 7
      %v6774 = vsub.s32 %v6771, %v6773
      %v6775 = vrot.slane %v6767, %v6774
      %v6777 = vunpack.c.l.s4 1983009808
      %v6778 = vunpack.c.0.s8 %v6777
      %v6779 = vlaneseq
      %v6780 = vshrl.u32 %v6779, 7
      %v6781 = vsub.s32 %v6778, %v6780
      %v6782 = vrot.slane %v6768, %v6781
      %v6783 = vcombine.low %v6775, %v6782
      %v6784 = vcombine.low %v3897, %v3898
      %v6785 = vcombine.low %v3899, %v3900
      %v6787 = vunpack.c.l.s4 1983009808
      %v6788 = vunpack.c.0.s8 %v6787
      %v6789 = vlaneseq
      %v6790 = vshrl.u32 %v6789, 7
      %v6791 = vsub.s32 %v6788, %v6790
      %v6792 = vrot.slane %v6784, %v6791
      %v6794 = vunpack.c.l.s4 1983009808
      %v6795 = vunpack.c.0.s8 %v6794
      %v6796 = vlaneseq
      %v6797 = vshrl.u32 %v6796, 7
      %v6798 = vsub.s32 %v6795, %v6797
      %v6799 = vrot.slane %v6785, %v6798
      %v6800 = vcombine.low %v6792, %v6799
      %6801 = vrot.lane.b32.xlu0 %v4605, 48
      %v6802 = vpop.permute.xlu0 %6801
      %6803 = vrot.lane.b32.xlu0 %v4622, 48
      %v6804 = vpop.permute.xlu0 %6803
      %6805 = vrot.lane.b32.xlu0 %v4639, 48
      %v6806 = vpop.permute.xlu0 %6805
      %6807 = vrot.lane.b32.xlu0 %v4656, 48
      %v6808 = vpop.permute.xlu0 %6807
      %6809 = vrot.lane.b32.xlu0 %v4673, 48
      %v6810 = vpop.permute.xlu0 %6809
      %6811 = vrot.lane.b32.xlu0 %v4690, 48
      %v6812 = vpop.permute.xlu0 %6811
      %6813 = vrot.lane.b32.xlu0 %v4707, 48
      %v6814 = vpop.permute.xlu0 %6813
      %6815 = vrot.lane.b32.xlu0 %v4724, 48
      %v6816 = vpop.permute.xlu0 %6815
      %6817 = vrot.lane.b32.xlu0 %v4741, 48
      %v6818 = vpop.permute.xlu0 %6817
      %6819 = vrot.lane.b32.xlu0 %v4758, 48
      %v6820 = vpop.permute.xlu0 %6819
      %6821 = vrot.lane.b32.xlu0 %v4775, 48
      %v6822 = vpop.permute.xlu0 %6821
      %6823 = vrot.lane.b32.xlu0 %v4792, 48
      %v6824 = vpop.permute.xlu0 %6823
      %6825 = vrot.lane.b32.xlu0 %v4809, 48
      %v6826 = vpop.permute.xlu0 %6825
      %6827 = vrot.lane.b32.xlu0 %v4826, 48
      %v6828 = vpop.permute.xlu0 %6827
      %6829 = vrot.lane.b32.xlu0 %v4843, 48
      %v6830 = vpop.permute.xlu0 %6829
      %6831 = vrot.lane.b32.xlu0 %v4860, 48
      %v6832 = vpop.permute.xlu0 %6831
      %6833 = vrot.lane.b32.xlu0 %v4877, 48
      %v6834 = vpop.permute.xlu0 %6833
      %6835 = vrot.lane.b32.xlu0 %v4894, 48
      %v6836 = vpop.permute.xlu0 %6835
      %6837 = vrot.lane.b32.xlu0 %v4911, 48
      %v6838 = vpop.permute.xlu0 %6837
      %6839 = vrot.lane.b32.xlu0 %v4928, 48
      %v6840 = vpop.permute.xlu0 %6839
      %6841 = vrot.lane.b32.xlu0 %v4945, 48
      %v6842 = vpop.permute.xlu0 %6841
      %6843 = vrot.lane.b32.xlu0 %v4962, 48
      %v6844 = vpop.permute.xlu0 %6843
      %6845 = vrot.lane.b32.xlu0 %v4979, 48
      %v6846 = vpop.permute.xlu0 %6845
      %6847 = vrot.lane.b32.xlu0 %v4996, 48
      %v6848 = vpop.permute.xlu0 %6847
      %6849 = vrot.lane.b32.xlu0 %v5013, 48
      %v6850 = vpop.permute.xlu0 %6849
      %6851 = vrot.lane.b32.xlu0 %v5030, 48
      %v6852 = vpop.permute.xlu0 %6851
      %6853 = vrot.lane.b32.xlu0 %v5047, 48
      %v6854 = vpop.permute.xlu0 %6853
      %6855 = vrot.lane.b32.xlu0 %v5064, 48
      %v6856 = vpop.permute.xlu0 %6855
      %6857 = vrot.lane.b32.xlu0 %v6393, 48
      %v6858 = vpop.permute.xlu0 %6857
      %6859 = vrot.lane.b32.xlu0 %v6410, 48
      %v6860 = vpop.permute.xlu0 %6859
      %6861 = vrot.lane.b32.xlu0 %v6783, 48
      %v6862 = vpop.permute.xlu0 %6861
      %6863 = vrot.lane.b32.xlu0 %v6800, 48
      %v6864 = vpop.permute.xlu0 %6863
      %v6897 = vcombine.low %v4499, %v4502
      %v6898 = vcombine.low %v4505, %v4508
      %v6900 = vunpack.c.l.s4 1983009808
      %v6901 = vunpack.c.0.s8 %v6900
      %v6902 = vlaneseq
      %v6903 = vshrl.u32 %v6902, 7
      %v6904 = vsub.s32 %v6901, %v6903
      %v6905 = vrot.slane %v6897, %v6904
      %v6907 = vunpack.c.l.s4 1983009808
      %v6908 = vunpack.c.0.s8 %v6907
      %v6909 = vlaneseq
      %v6910 = vshrl.u32 %v6909, 7
      %v6911 = vsub.s32 %v6908, %v6910
      %v6912 = vrot.slane %v6898, %v6911
      %v6913 = vcombine.low %v6905, %v6912
      %v6914 = vcombine.low %v4511, %v4514
      %v6915 = vcombine.low %v4517, %v4520
      %v6917 = vunpack.c.l.s4 1983009808
      %v6918 = vunpack.c.0.s8 %v6917
      %v6919 = vlaneseq
      %v6920 = vshrl.u32 %v6919, 7
      %v6921 = vsub.s32 %v6918, %v6920
      %v6922 = vrot.slane %v6914, %v6921
      %v6924 = vunpack.c.l.s4 1983009808
      %v6925 = vunpack.c.0.s8 %v6924
      %v6926 = vlaneseq
      %v6927 = vshrl.u32 %v6926, 7
      %v6928 = vsub.s32 %v6925, %v6927
      %v6929 = vrot.slane %v6915, %v6928
      %v6930 = vcombine.low %v6922, %v6929
      %6931 = vrot.lane.b32.xlu0 %v5181, 56
      %v6932 = vpop.permute.xlu0 %6931
      %6933 = vrot.lane.b32.xlu0 %v5198, 56
      %v6934 = vpop.permute.xlu0 %6933
      %6935 = vrot.lane.b32.xlu0 %v5215, 56
      %v6936 = vpop.permute.xlu0 %6935
      %6937 = vrot.lane.b32.xlu0 %v5232, 56
      %v6938 = vpop.permute.xlu0 %6937
      %6939 = vrot.lane.b32.xlu0 %v5249, 56
      %v6940 = vpop.permute.xlu0 %6939
      %6941 = vrot.lane.b32.xlu0 %v5266, 56
      %v6942 = vpop.permute.xlu0 %6941
      %6943 = vrot.lane.b32.xlu0 %v5283, 56
      %v6944 = vpop.permute.xlu0 %6943
      %6945 = vrot.lane.b32.xlu0 %v5300, 56
      %v6946 = vpop.permute.xlu0 %6945
      %6947 = vrot.lane.b32.xlu0 %v5317, 56
      %v6948 = vpop.permute.xlu0 %6947
      %6949 = vrot.lane.b32.xlu0 %v5334, 56
      %v6950 = vpop.permute.xlu0 %6949
      %6951 = vrot.lane.b32.xlu0 %v5351, 56
      %v6952 = vpop.permute.xlu0 %6951
      %6953 = vrot.lane.b32.xlu0 %v5368, 56
      %v6954 = vpop.permute.xlu0 %6953
      %6955 = vrot.lane.b32.xlu0 %v5385, 56
      %v6956 = vpop.permute.xlu0 %6955
      %6957 = vrot.lane.b32.xlu0 %v5402, 56
      %v6958 = vpop.permute.xlu0 %6957
      %6959 = vrot.lane.b32.xlu0 %v5419, 56
      %v6960 = vpop.permute.xlu0 %6959
      %6961 = vrot.lane.b32.xlu0 %v5436, 56
      %v6962 = vpop.permute.xlu0 %6961
      %6963 = vrot.lane.b32.xlu0 %v5453, 56
      %v6964 = vpop.permute.xlu0 %6963
      %6965 = vrot.lane.b32.xlu0 %v5470, 56
      %v6966 = vpop.permute.xlu0 %6965
      %6967 = vrot.lane.b32.xlu0 %v5487, 56
      %v6968 = vpop.permute.xlu0 %6967
      %6969 = vrot.lane.b32.xlu0 %v5504, 56
      %v6970 = vpop.permute.xlu0 %6969
      %6971 = vrot.lane.b32.xlu0 %v5521, 56
      %v6972 = vpop.permute.xlu0 %6971
      %6973 = vrot.lane.b32.xlu0 %v5538, 56
      %v6974 = vpop.permute.xlu0 %6973
      %6975 = vrot.lane.b32.xlu0 %v5555, 56
      %v6976 = vpop.permute.xlu0 %6975
      %6977 = vrot.lane.b32.xlu0 %v5572, 56
      %v6978 = vpop.permute.xlu0 %6977
      %6979 = vrot.lane.b32.xlu0 %v5589, 56
      %v6980 = vpop.permute.xlu0 %6979
      %6981 = vrot.lane.b32.xlu0 %v5606, 56
      %v6982 = vpop.permute.xlu0 %6981
      %6983 = vrot.lane.b32.xlu0 %v5623, 56
      %v6984 = vpop.permute.xlu0 %6983
      %6985 = vrot.lane.b32.xlu0 %v5640, 56
      %v6986 = vpop.permute.xlu0 %6985
      %6987 = vrot.lane.b32.xlu0 %v6523, 56
      %v6988 = vpop.permute.xlu0 %6987
      %6989 = vrot.lane.b32.xlu0 %v6540, 56
      %v6990 = vpop.permute.xlu0 %6989
      %6991 = vrot.lane.b32.xlu0 %v6913, 56
      %v6992 = vpop.permute.xlu0 %6991
      %6993 = vrot.lane.b32.xlu0 %v6930, 56
      %v6994 = vpop.permute.xlu0 %6993
      %v7027 = vcombine.low %v3894, %v3895
      %v7028 = vcombine.low %v3896, %v3897
      %v7030 = vunpack.c.l.s4 1983009808
      %v7031 = vunpack.c.0.s8 %v7030
      %v7032 = vlaneseq
      %v7033 = vshrl.u32 %v7032, 7
      %v7034 = vsub.s32 %v7031, %v7033
      %v7035 = vrot.slane %v7027, %v7034
      %v7037 = vunpack.c.l.s4 1983009808
      %v7038 = vunpack.c.0.s8 %v7037
      %v7039 = vlaneseq
      %v7040 = vshrl.u32 %v7039, 7
      %v7041 = vsub.s32 %v7038, %v7040
      %v7042 = vrot.slane %v7028, %v7041
      %v7043 = vcombine.low %v7035, %v7042
      %v7044 = vcombine.low %v3898, %v3899
      %v7045 = vcombine.low %v3900, %v3901
      %v7047 = vunpack.c.l.s4 1983009808
      %v7048 = vunpack.c.0.s8 %v7047
      %v7049 = vlaneseq
      %v7050 = vshrl.u32 %v7049, 7
      %v7051 = vsub.s32 %v7048, %v7050
      %v7052 = vrot.slane %v7044, %v7051
      %v7054 = vunpack.c.l.s4 1983009808
      %v7055 = vunpack.c.0.s8 %v7054
      %v7056 = vlaneseq
      %v7057 = vshrl.u32 %v7056, 7
      %v7058 = vsub.s32 %v7055, %v7057
      %v7059 = vrot.slane %v7045, %v7058
      %v7060 = vcombine.low %v7052, %v7059
      %7061 = vrot.lane.b32.xlu0 %v5821, 64
      %v7062 = vpop.permute.xlu0 %7061
      %7063 = vrot.lane.b32.xlu0 %v5838, 64
      %v7064 = vpop.permute.xlu0 %7063
      %7065 = vrot.lane.b32.xlu0 %v5855, 64
      %v7066 = vpop.permute.xlu0 %7065
      %7067 = vrot.lane.b32.xlu0 %v5872, 64
      %v7068 = vpop.permute.xlu0 %7067
      %7069 = vrot.lane.b32.xlu0 %v5889, 64
      %v7070 = vpop.permute.xlu0 %7069
      %7071 = vrot.lane.b32.xlu0 %v5906, 64
      %v7072 = vpop.permute.xlu0 %7071
      %7073 = vrot.lane.b32.xlu0 %v5923, 64
      %v7074 = vpop.permute.xlu0 %7073
      %7075 = vrot.lane.b32.xlu0 %v5940, 64
      %v7076 = vpop.permute.xlu0 %7075
      %7077 = vrot.lane.b32.xlu0 %v5957, 64
      %v7078 = vpop.permute.xlu0 %7077
      %7079 = vrot.lane.b32.xlu0 %v5974, 64
      %v7080 = vpop.permute.xlu0 %7079
      %7081 = vrot.lane.b32.xlu0 %v5991, 64
      %v7082 = vpop.permute.xlu0 %7081
      %7083 = vrot.lane.b32.xlu0 %v6008, 64
      %v7084 = vpop.permute.xlu0 %7083
      %7085 = vrot.lane.b32.xlu0 %v6025, 64
      %v7086 = vpop.permute.xlu0 %7085
      %7087 = vrot.lane.b32.xlu0 %v6042, 64
      %v7088 = vpop.permute.xlu0 %7087
      %7089 = vrot.lane.b32.xlu0 %v6059, 64
      %v7090 = vpop.permute.xlu0 %7089
      %7091 = vrot.lane.b32.xlu0 %v6076, 64
      %v7092 = vpop.permute.xlu0 %7091
      %7093 = vrot.lane.b32.xlu0 %v6093, 64
      %v7094 = vpop.permute.xlu0 %7093
      %7095 = vrot.lane.b32.xlu0 %v6110, 64
      %v7096 = vpop.permute.xlu0 %7095
      %7097 = vrot.lane.b32.xlu0 %v6127, 64
      %v7098 = vpop.permute.xlu0 %7097
      %7099 = vrot.lane.b32.xlu0 %v6144, 64
      %v7100 = vpop.permute.xlu0 %7099
      %7101 = vrot.lane.b32.xlu0 %v6161, 64
      %v7102 = vpop.permute.xlu0 %7101
      %7103 = vrot.lane.b32.xlu0 %v6178, 64
      %v7104 = vpop.permute.xlu0 %7103
      %7105 = vrot.lane.b32.xlu0 %v6195, 64
      %v7106 = vpop.permute.xlu0 %7105
      %7107 = vrot.lane.b32.xlu0 %v6212, 64
      %v7108 = vpop.permute.xlu0 %7107
      %7109 = vrot.lane.b32.xlu0 %v6229, 64
      %v7110 = vpop.permute.xlu0 %7109
      %7111 = vrot.lane.b32.xlu0 %v6246, 64
      %v7112 = vpop.permute.xlu0 %7111
      %7113 = vrot.lane.b32.xlu0 %v6263, 64
      %v7114 = vpop.permute.xlu0 %7113
      %7115 = vrot.lane.b32.xlu0 %v6280, 64
      %v7116 = vpop.permute.xlu0 %7115
      %7117 = vrot.lane.b32.xlu0 %v6653, 64
      %v7118 = vpop.permute.xlu0 %7117
      %7119 = vrot.lane.b32.xlu0 %v6670, 64
      %v7120 = vpop.permute.xlu0 %7119
      %7121 = vrot.lane.b32.xlu0 %v7043, 64
      %v7122 = vpop.permute.xlu0 %7121
      %7123 = vrot.lane.b32.xlu0 %v7060, 64
      %v7124 = vpop.permute.xlu0 %7123
      %vm7157 = vcmask 64512
      %v7158 = vsel %vm7157, %v4537, %v5642
      %v7159 = vsel %vm7157, %v4554, %v5644
      %v7160 = vsel %vm7157, %v4571, %v5646
      %v7161 = vsel %vm7157, %v4588, %v5648
      %v7162 = vsel %vm7157, %v4605, %v5650
      %v7163 = vsel %vm7157, %v4622, %v5652
      %v7164 = vsel %vm7157, %v4639, %v5654
      %v7165 = vsel %vm7157, %v4656, %v5656
      %v7166 = vsel %vm7157, %v4673, %v5658
      %v7167 = vsel %vm7157, %v4690, %v5660
      %v7168 = vsel %vm7157, %v4707, %v5662
      %v7169 = vsel %vm7157, %v4724, %v5664
      %v7170 = vsel %vm7157, %v4741, %v5666
      %v7171 = vsel %vm7157, %v4758, %v5668
      %v7172 = vsel %vm7157, %v4775, %v5670
      %v7173 = vsel %vm7157, %v4792, %v5672
      %v7174 = vsel %vm7157, %v4809, %v5674
      %v7175 = vsel %vm7157, %v4826, %v5676
      %v7176 = vsel %vm7157, %v4843, %v5678
      %v7177 = vsel %vm7157, %v4860, %v5680
      %v7178 = vsel %vm7157, %v4877, %v5682
      %v7179 = vsel %vm7157, %v4894, %v5684
      %v7180 = vsel %vm7157, %v4911, %v5686
      %v7181 = vsel %vm7157, %v4928, %v5688
      %v7182 = vsel %vm7157, %v4945, %v5690
      %v7183 = vsel %vm7157, %v4962, %v5692
      %v7184 = vsel %vm7157, %v4979, %v5694
      %v7185 = vsel %vm7157, %v4996, %v5696
      %v7186 = vsel %vm7157, %v5013, %v5698
      %v7187 = vsel %vm7157, %v5030, %v5700
      %v7188 = vsel %vm7157, %v5047, %v5702
      %v7189 = vsel %vm7157, %v5064, %v5704
      %vm7190 = vcmask 130048
      %v7191 = vsel %vm7190, %v7158, %v6282
      %v7192 = vsel %vm7190, %v7159, %v6284
      %v7193 = vsel %vm7190, %v7160, %v6286
      %v7194 = vsel %vm7190, %v7161, %v6288
      %v7195 = vsel %vm7190, %v7162, %v6290
      %v7196 = vsel %vm7190, %v7163, %v6292
      %v7197 = vsel %vm7190, %v7164, %v6294
      %v7198 = vsel %vm7190, %v7165, %v6296
      %v7199 = vsel %vm7190, %v7166, %v6298
      %v7200 = vsel %vm7190, %v7167, %v6300
      %v7201 = vsel %vm7190, %v7168, %v6302
      %v7202 = vsel %vm7190, %v7169, %v6304
      %v7203 = vsel %vm7190, %v7170, %v6306
      %v7204 = vsel %vm7190, %v7171, %v6308
      %v7205 = vsel %vm7190, %v7172, %v6310
      %v7206 = vsel %vm7190, %v7173, %v6312
      %v7207 = vsel %vm7190, %v7174, %v6314
      %v7208 = vsel %vm7190, %v7175, %v6316
      %v7209 = vsel %vm7190, %v7176, %v6318
      %v7210 = vsel %vm7190, %v7177, %v6320
      %v7211 = vsel %vm7190, %v7178, %v6322
      %v7212 = vsel %vm7190, %v7179, %v6324
      %v7213 = vsel %vm7190, %v7180, %v6326
      %v7214 = vsel %vm7190, %v7181, %v6328
      %v7215 = vsel %vm7190, %v7182, %v6330
      %v7216 = vsel %vm7190, %v7183, %v6332
      %v7217 = vsel %vm7190, %v7184, %v6334
      %v7218 = vsel %vm7190, %v7185, %v6336
      %v7219 = vsel %vm7190, %v7186, %v6338
      %v7220 = vsel %vm7190, %v7187, %v6340
      %v7221 = vsel %vm7190, %v7188, %v6342
      %v7222 = vsel %vm7190, %v7189, %v6344
      %vm7223 = vcmask 195584
      %v7224 = vsel %vm7223, %v7191, %v6412
      %v7225 = vsel %vm7223, %v7192, %v6414
      %v7226 = vsel %vm7223, %v7193, %v6416
      %v7227 = vsel %vm7223, %v7194, %v6418
      %v7228 = vsel %vm7223, %v7195, %v6420
      %v7229 = vsel %vm7223, %v7196, %v6422
      %v7230 = vsel %vm7223, %v7197, %v6424
      %v7231 = vsel %vm7223, %v7198, %v6426
      %v7232 = vsel %vm7223, %v7199, %v6428
      %v7233 = vsel %vm7223, %v7200, %v6430
      %v7234 = vsel %vm7223, %v7201, %v6432
      %v7235 = vsel %vm7223, %v7202, %v6434
      %v7236 = vsel %vm7223, %v7203, %v6436
      %v7237 = vsel %vm7223, %v7204, %v6438
      %v7238 = vsel %vm7223, %v7205, %v6440
      %v7239 = vsel %vm7223, %v7206, %v6442
      %v7240 = vsel %vm7223, %v7207, %v6444
      %v7241 = vsel %vm7223, %v7208, %v6446
      %v7242 = vsel %vm7223, %v7209, %v6448
      %v7243 = vsel %vm7223, %v7210, %v6450
      %v7244 = vsel %vm7223, %v7211, %v6452
      %v7245 = vsel %vm7223, %v7212, %v6454
      %v7246 = vsel %vm7223, %v7213, %v6456
      %v7247 = vsel %vm7223, %v7214, %v6458
      %v7248 = vsel %vm7223, %v7215, %v6460
      %v7249 = vsel %vm7223, %v7216, %v6462
      %v7250 = vsel %vm7223, %v7217, %v6464
      %v7251 = vsel %vm7223, %v7218, %v6466
      %v7252 = vsel %vm7223, %v7219, %v6468
      %v7253 = vsel %vm7223, %v7220, %v6470
      %v7254 = vsel %vm7223, %v7221, %v6472
      %v7255 = vsel %vm7223, %v7222, %v6474
      %vm7256 = vcmask 261120
      %v7257 = vsel %vm7256, %v7224, %v6542
      %v7258 = vsel %vm7256, %v7225, %v6544
      %v7259 = vsel %vm7256, %v7226, %v6546
      %v7260 = vsel %vm7256, %v7227, %v6548
      %v7261 = vsel %vm7256, %v7228, %v6550
      %v7262 = vsel %vm7256, %v7229, %v6552
      %v7263 = vsel %vm7256, %v7230, %v6554
      %v7264 = vsel %vm7256, %v7231, %v6556
      %v7265 = vsel %vm7256, %v7232, %v6558
      %v7266 = vsel %vm7256, %v7233, %v6560
      %v7267 = vsel %vm7256, %v7234, %v6562
      %v7268 = vsel %vm7256, %v7235, %v6564
      %v7269 = vsel %vm7256, %v7236, %v6566
      %v7270 = vsel %vm7256, %v7237, %v6568
      %v7271 = vsel %vm7256, %v7238, %v6570
      %v7272 = vsel %vm7256, %v7239, %v6572
      %v7273 = vsel %vm7256, %v7240, %v6574
      %v7274 = vsel %vm7256, %v7241, %v6576
      %v7275 = vsel %vm7256, %v7242, %v6578
      %v7276 = vsel %vm7256, %v7243, %v6580
      %v7277 = vsel %vm7256, %v7244, %v6582
      %v7278 = vsel %vm7256, %v7245, %v6584
      %v7279 = vsel %vm7256, %v7246, %v6586
      %v7280 = vsel %vm7256, %v7247, %v6588
      %v7281 = vsel %vm7256, %v7248, %v6590
      %v7282 = vsel %vm7256, %v7249, %v6592
      %v7283 = vsel %vm7256, %v7250, %v6594
      %v7284 = vsel %vm7256, %v7251, %v6596
      %v7285 = vsel %vm7256, %v7252, %v6598
      %v7286 = vsel %vm7256, %v7253, %v6600
      %v7287 = vsel %vm7256, %v7254, %v6602
      %v7288 = vsel %vm7256, %v7255, %v6604
      %vm7289 = vcmask 326656
      %v7290 = vsel %vm7289, %v7257, %v6672
      %v7291 = vsel %vm7289, %v7258, %v6674
      %v7292 = vsel %vm7289, %v7259, %v6676
      %v7293 = vsel %vm7289, %v7260, %v6678
      %v7294 = vsel %vm7289, %v7261, %v6680
      %v7295 = vsel %vm7289, %v7262, %v6682
      %v7296 = vsel %vm7289, %v7263, %v6684
      %v7297 = vsel %vm7289, %v7264, %v6686
      %v7298 = vsel %vm7289, %v7265, %v6688
      %v7299 = vsel %vm7289, %v7266, %v6690
      %v7300 = vsel %vm7289, %v7267, %v6692
      %v7301 = vsel %vm7289, %v7268, %v6694
      %v7302 = vsel %vm7289, %v7269, %v6696
      %v7303 = vsel %vm7289, %v7270, %v6698
      %v7304 = vsel %vm7289, %v7271, %v6700
      %v7305 = vsel %vm7289, %v7272, %v6702
      %v7306 = vsel %vm7289, %v7273, %v6704
      %v7307 = vsel %vm7289, %v7274, %v6706
      %v7308 = vsel %vm7289, %v7275, %v6708
      %v7309 = vsel %vm7289, %v7276, %v6710
      %v7310 = vsel %vm7289, %v7277, %v6712
      %v7311 = vsel %vm7289, %v7278, %v6714
      %v7312 = vsel %vm7289, %v7279, %v6716
      %v7313 = vsel %vm7289, %v7280, %v6718
      %v7314 = vsel %vm7289, %v7281, %v6720
      %v7315 = vsel %vm7289, %v7282, %v6722
      %v7316 = vsel %vm7289, %v7283, %v6724
      %v7317 = vsel %vm7289, %v7284, %v6726
      %v7318 = vsel %vm7289, %v7285, %v6728
      %v7319 = vsel %vm7289, %v7286, %v6730
      %v7320 = vsel %vm7289, %v7287, %v6732
      %v7321 = vsel %vm7289, %v7288, %v6734
      %vm7322 = vcmask 392192
      %v7323 = vsel %vm7322, %v7290, %v6802
      %v7324 = vsel %vm7322, %v7291, %v6804
      %v7325 = vsel %vm7322, %v7292, %v6806
      %v7326 = vsel %vm7322, %v7293, %v6808
      %v7327 = vsel %vm7322, %v7294, %v6810
      %v7328 = vsel %vm7322, %v7295, %v6812
      %v7329 = vsel %vm7322, %v7296, %v6814
      %v7330 = vsel %vm7322, %v7297, %v6816
      %v7331 = vsel %vm7322, %v7298, %v6818
      %v7332 = vsel %vm7322, %v7299, %v6820
      %v7333 = vsel %vm7322, %v7300, %v6822
      %v7334 = vsel %vm7322, %v7301, %v6824
      %v7335 = vsel %vm7322, %v7302, %v6826
      %v7336 = vsel %vm7322, %v7303, %v6828
      %v7337 = vsel %vm7322, %v7304, %v6830
      %v7338 = vsel %vm7322, %v7305, %v6832
      %v7339 = vsel %vm7322, %v7306, %v6834
      %v7340 = vsel %vm7322, %v7307, %v6836
      %v7341 = vsel %vm7322, %v7308, %v6838
      %v7342 = vsel %vm7322, %v7309, %v6840
      %v7343 = vsel %vm7322, %v7310, %v6842
      %v7344 = vsel %vm7322, %v7311, %v6844
      %v7345 = vsel %vm7322, %v7312, %v6846
      %v7346 = vsel %vm7322, %v7313, %v6848
      %v7347 = vsel %vm7322, %v7314, %v6850
      %v7348 = vsel %vm7322, %v7315, %v6852
      %v7349 = vsel %vm7322, %v7316, %v6854
      %v7350 = vsel %vm7322, %v7317, %v6856
      %v7351 = vsel %vm7322, %v7318, %v6858
      %v7352 = vsel %vm7322, %v7319, %v6860
      %v7353 = vsel %vm7322, %v7320, %v6862
      %v7354 = vsel %vm7322, %v7321, %v6864
      %vm7355 = vcmask 457728
      %v7356 = vsel %vm7355, %v7323, %v6932
      %v7357 = vsel %vm7355, %v7324, %v6934
      %v7358 = vsel %vm7355, %v7325, %v6936
      %v7359 = vsel %vm7355, %v7326, %v6938
      %v7360 = vsel %vm7355, %v7327, %v6940
      %v7361 = vsel %vm7355, %v7328, %v6942
      %v7362 = vsel %vm7355, %v7329, %v6944
      %v7363 = vsel %vm7355, %v7330, %v6946
      %v7364 = vsel %vm7355, %v7331, %v6948
      %v7365 = vsel %vm7355, %v7332, %v6950
      %v7366 = vsel %vm7355, %v7333, %v6952
      %v7367 = vsel %vm7355, %v7334, %v6954
      %v7368 = vsel %vm7355, %v7335, %v6956
      %v7369 = vsel %vm7355, %v7336, %v6958
      %v7370 = vsel %vm7355, %v7337, %v6960
      %v7371 = vsel %vm7355, %v7338, %v6962
      %v7372 = vsel %vm7355, %v7339, %v6964
      %v7373 = vsel %vm7355, %v7340, %v6966
      %v7374 = vsel %vm7355, %v7341, %v6968
      %v7375 = vsel %vm7355, %v7342, %v6970
      %v7376 = vsel %vm7355, %v7343, %v6972
      %v7377 = vsel %vm7355, %v7344, %v6974
      %v7378 = vsel %vm7355, %v7345, %v6976
      %v7379 = vsel %vm7355, %v7346, %v6978
      %v7380 = vsel %vm7355, %v7347, %v6980
      %v7381 = vsel %vm7355, %v7348, %v6982
      %v7382 = vsel %vm7355, %v7349, %v6984
      %v7383 = vsel %vm7355, %v7350, %v6986
      %v7384 = vsel %vm7355, %v7351, %v6988
      %v7385 = vsel %vm7355, %v7352, %v6990
      %v7386 = vsel %vm7355, %v7353, %v6992
      %v7387 = vsel %vm7355, %v7354, %v6994
      %vm7388 = vcmask 523264
      %v7389 = vsel %vm7388, %v7356, %v7062
      %v7390 = vsel %vm7388, %v7357, %v7064
      %v7391 = vsel %vm7388, %v7358, %v7066
      %v7392 = vsel %vm7388, %v7359, %v7068
      %v7393 = vsel %vm7388, %v7360, %v7070
      %v7394 = vsel %vm7388, %v7361, %v7072
      %v7395 = vsel %vm7388, %v7362, %v7074
      %v7396 = vsel %vm7388, %v7363, %v7076
      %v7397 = vsel %vm7388, %v7364, %v7078
      %v7398 = vsel %vm7388, %v7365, %v7080
      %v7399 = vsel %vm7388, %v7366, %v7082
      %v7400 = vsel %vm7388, %v7367, %v7084
      %v7401 = vsel %vm7388, %v7368, %v7086
      %v7402 = vsel %vm7388, %v7369, %v7088
      %v7403 = vsel %vm7388, %v7370, %v7090
      %v7404 = vsel %vm7388, %v7371, %v7092
      %v7405 = vsel %vm7388, %v7372, %v7094
      %v7406 = vsel %vm7388, %v7373, %v7096
      %v7407 = vsel %vm7388, %v7374, %v7098
      %v7408 = vsel %vm7388, %v7375, %v7100
      %v7409 = vsel %vm7388, %v7376, %v7102
      %v7410 = vsel %vm7388, %v7377, %v7104
      %v7411 = vsel %vm7388, %v7378, %v7106
      %v7412 = vsel %vm7388, %v7379, %v7108
      %v7413 = vsel %vm7388, %v7380, %v7110
      %v7414 = vsel %vm7388, %v7381, %v7112
      %v7415 = vsel %vm7388, %v7382, %v7114
      %v7416 = vsel %vm7388, %v7383, %v7116
      %v7417 = vsel %vm7388, %v7384, %v7118
      %v7418 = vsel %vm7388, %v7385, %v7120
      %v7419 = vsel %vm7388, %v7386, %v7122
      %v7420 = vsel %vm7388, %v7387, %v7124
      %v7421 = vpack.c.bf16 %v7390, %v7389
      %v7422 = vpack.c.bf16 %v7392, %v7391
      %v7423 = vpack.c.bf16 %v7394, %v7393
      %v7424 = vpack.c.bf16 %v7396, %v7395
      %v7425 = vpack.c.bf16 %v7398, %v7397
      %v7426 = vpack.c.bf16 %v7400, %v7399
      %v7427 = vpack.c.bf16 %v7402, %v7401
      %v7428 = vpack.c.bf16 %v7404, %v7403
      %v7429 = vpack.c.bf16 %v7406, %v7405
      %v7430 = vpack.c.bf16 %v7408, %v7407
      %v7431 = vpack.c.bf16 %v7410, %v7409
      %v7432 = vpack.c.bf16 %v7412, %v7411
      %v7433 = vpack.c.bf16 %v7414, %v7413
      %v7434 = vpack.c.bf16 %v7416, %v7415
      %v7435 = vpack.c.bf16 %v7418, %v7417
      %v7436 = vpack.c.bf16 %v7420, %v7419
      %v7437 = vld [vmem:[%s4] sm:$0xf]
      %v7438 = vld [vmem:[%s4 + $0x4] sm:$0xf]
      %v7439 = vld [vmem:[%s4 + $0x8] sm:$0xf]
      %v7440 = vld [vmem:[%s4 + $0xc] sm:$0xf]
      %v7441 = vld [vmem:[%s4 + $0x10] sm:$0xf]
      %v7442 = vld [vmem:[%s4 + $0x14] sm:$0xf]
      %v7443 = vld [vmem:[%s4 + $0x18] sm:$0xf]
      %v7444 = vld [vmem:[%s4 + $0x1c] sm:$0xf]
      %v7445 = vld [vmem:[%s4 + $0x20] sm:$0xf]
      %v7446 = vld [vmem:[%s5] sm:$0x1]
      %v7448 = vlaneseq
      %v7449 = vshrl.u32 %v7448, 7
      %v7450 = vsub.s32 0, %v7449
      %v7451 = vrot.slane %v7446, %v7450
      %v7462 = vunpack.c.l.b16 %v7437
      %v7463 = vunpack.c.l.b16 %v7438
      %v7464 = vunpack.c.l.b16 %v7439
      %v7465 = vunpack.c.l.b16 %v7440
      %v7466 = vunpack.c.l.b16 %v7441
      %v7467 = vunpack.c.l.b16 %v7442
      %v7468 = vunpack.c.l.b16 %v7443
      %v7469 = vunpack.c.l.b16 %v7444
      %v7470 = vunpack.c.l.b16 %v7445
      %v7471 = vpack.c.b16 %v7463, %v7462
      %v7472 = vpack.c.b16 %v7465, %v7464
      %v7473 = vpack.c.b16 %v7467, %v7466
      %v7474 = vpack.c.b16 %v7469, %v7468
      %v7475 = vpack.c.b16 %v7470, %v7470
      %vm7480 = vcmask 588800
      %v7482 = vsel %vm7480, %v7421, 0
      %v7485 = vsel %vm7480, %v7422, 0
      %v7488 = vsel %vm7480, %v7423, 0
      %v7491 = vsel %vm7480, %v7424, 0
      %v7494 = vsel %vm7480, %v7425, 0
      %v7497 = vsel %vm7480, %v7426, 0
      %v7500 = vsel %vm7480, %v7427, 0
      %v7503 = vsel %vm7480, %v7428, 0
      %v7506 = vsel %vm7480, %v7429, 0
      %v7509 = vsel %vm7480, %v7430, 0
      %v7512 = vsel %vm7480, %v7431, 0
      %v7515 = vsel %vm7480, %v7432, 0
      %v7518 = vsel %vm7480, %v7433, 0
      %v7521 = vsel %vm7480, %v7434, 0
      %v7524 = vsel %vm7480, %v7435, 0
      %v7527 = vsel %vm7480, %v7436, 0
      %vm7529 = vcmask 1043456
      %v7531 = vsel %vm7529, %v7475, 0
      %7533 = vmatprep.subr.bf16.mxu0 0
      %7534 = vmatpush1.bf16.msra.mxu0 %v7471
      %7535 = vmatprep.subr.bf16.mxu0 0
      %7536 = vmatpush1.bf16.msra.mxu0 %v7472
      %7537 = vmatprep.subr.bf16.mxu0 0
      %7538 = vmatpush1.bf16.msra.mxu0 %v7473
      %7539 = vmatprep.subr.bf16.mxu0 0
      %7540 = vmatpush1.bf16.msra.mxu0 %v7474
      %7541 = vmatprep.subr.bf16.mxu0 0
      %7542 = vmatpush1.bf16.msra.mxu0 %v7531
      %7543 = vmatprep.subr.bf16.mxu0 0
      %7544 = vmatpush1.bf16.msra.mxu0 0
      %7545 = vmatprep.subr.bf16.mxu0 0
      %7546 = vmatpush1.bf16.msra.mxu0 0
      %7547 = vmatprep.subr.bf16.mxu0 0
      %7548 = vmatpush1.bf16.msra.mxu0 0
      %7549 = vmatprep.subr.bf16.mxu0 0
      %7550 = vmatpush1.bf16.msra.mxu0 0
      %7551 = vmatprep.subr.bf16.mxu0 0
      %7552 = vmatpush1.bf16.msra.mxu0 0
      %7553 = vmatprep.subr.bf16.mxu0 0
      %7554 = vmatpush1.bf16.msra.mxu0 0
      %7555 = vmatprep.subr.bf16.mxu0 0
      %7556 = vmatpush1.bf16.msra.mxu0 0
      %7557 = vmatprep.subr.bf16.mxu0 0
      %7558 = vmatpush1.bf16.msra.mxu0 0
      %7559 = vmatprep.subr.bf16.mxu0 0
      %7560 = vmatpush1.bf16.msra.mxu0 0
      %7561 = vmatprep.subr.bf16.mxu0 0
      %7562 = vmatpush1.bf16.msra.mxu0 0
      %7563 = vmatprep.subr.bf16.mxu0 0
      %7564 = vmatpush1.bf16.msra.mxu0 0
      %7565 = vmatprep.mubr.bf16.mxu0 0
      %7566 = vmatmul.mubr.bf16.gmra.mrb[0].mxu0 %v7482
      %v7567 = vpop.f32.mrb[0].mxu0
      %v7568 = vadd.f32 %v7451, %v7567
      %v7569 = vpop.f32.mrb[0].mxu0
      %v7570 = vpop.f32.mrb[0].mxu0
      %v7571 = vadd.f32 %v7451, %v7570
      %v7572 = vpop.f32.mrb[0].mxu0
      %7573 = vmatprep.mubr.bf16.mxu0 0
      %7574 = vmatmul.mubr.bf16.gmra.mrb[0].mxu0 %v7485
      %v7575 = vpop.f32.mrb[0].mxu0
      %v7576 = vadd.f32 %v7451, %v7575
      %v7577 = vpop.f32.mrb[0].mxu0
      %v7578 = vpop.f32.mrb[0].mxu0
      %v7579 = vadd.f32 %v7451, %v7578
      %v7580 = vpop.f32.mrb[0].mxu0
      %7581 = vmatprep.mubr.bf16.mxu0 0
      %7582 = vmatmul.mubr.bf16.gmra.mrb[0].mxu0 %v7488
      %v7583 = vpop.f32.mrb[0].mxu0
      %v7584 = vadd.f32 %v7451, %v7583
      %v7585 = vpop.f32.mrb[0].mxu0
      %v7586 = vpop.f32.mrb[0].mxu0
      %v7587 = vadd.f32 %v7451, %v7586
      %v7588 = vpop.f32.mrb[0].mxu0
      %7589 = vmatprep.mubr.bf16.mxu0 0
      %7590 = vmatmul.mubr.bf16.gmra.mrb[0].mxu0 %v7491
      %v7591 = vpop.f32.mrb[0].mxu0
      %v7592 = vadd.f32 %v7451, %v7591
      %v7593 = vpop.f32.mrb[0].mxu0
      %v7594 = vpop.f32.mrb[0].mxu0
      %v7595 = vadd.f32 %v7451, %v7594
      %v7596 = vpop.f32.mrb[0].mxu0
      %7597 = vmatprep.mubr.bf16.mxu0 0
      %7598 = vmatmul.mubr.bf16.gmra.mrb[0].mxu0 %v7494
      %v7599 = vpop.f32.mrb[0].mxu0
      %v7600 = vadd.f32 %v7451, %v7599
      %v7601 = vpop.f32.mrb[0].mxu0
      %v7602 = vpop.f32.mrb[0].mxu0
      %v7603 = vadd.f32 %v7451, %v7602
      %v7604 = vpop.f32.mrb[0].mxu0
      %7605 = vmatprep.mubr.bf16.mxu0 0
      %7606 = vmatmul.mubr.bf16.gmra.mrb[0].mxu0 %v7497
      %v7607 = vpop.f32.mrb[0].mxu0
      %v7608 = vadd.f32 %v7451, %v7607
      %v7609 = vpop.f32.mrb[0].mxu0
      %v7610 = vpop.f32.mrb[0].mxu0
      %v7611 = vadd.f32 %v7451, %v7610
      %v7612 = vpop.f32.mrb[0].mxu0
      %7613 = vmatprep.mubr.bf16.mxu0 0
      %7614 = vmatmul.mubr.bf16.gmra.mrb[0].mxu0 %v7500
      %v7615 = vpop.f32.mrb[0].mxu0
      %v7616 = vadd.f32 %v7451, %v7615
      %v7617 = vpop.f32.mrb[0].mxu0
      %v7618 = vpop.f32.mrb[0].mxu0
      %v7619 = vadd.f32 %v7451, %v7618
      %v7620 = vpop.f32.mrb[0].mxu0
      %7621 = vmatprep.mubr.bf16.mxu0 0
      %7622 = vmatmul.mubr.bf16.gmra.mrb[0].mxu0 %v7503
      %v7623 = vpop.f32.mrb[0].mxu0
      %v7624 = vadd.f32 %v7451, %v7623
      %v7625 = vpop.f32.mrb[0].mxu0
      %v7626 = vpop.f32.mrb[0].mxu0
      %v7627 = vadd.f32 %v7451, %v7626
      %v7628 = vpop.f32.mrb[0].mxu0
      %7629 = vmatprep.mubr.bf16.mxu0 0
      %7630 = vmatmul.mubr.bf16.gmra.mrb[0].mxu0 %v7506
      %v7631 = vpop.f32.mrb[0].mxu0
      %v7632 = vadd.f32 %v7451, %v7631
      %v7633 = vpop.f32.mrb[0].mxu0
      %v7634 = vpop.f32.mrb[0].mxu0
      %v7635 = vadd.f32 %v7451, %v7634
      %v7636 = vpop.f32.mrb[0].mxu0
      %7637 = vmatprep.mubr.bf16.mxu0 0
      %7638 = vmatmul.mubr.bf16.gmra.mrb[0].mxu0 %v7509
      %v7639 = vpop.f32.mrb[0].mxu0
      %v7640 = vadd.f32 %v7451, %v7639
      %v7641 = vpop.f32.mrb[0].mxu0
      %v7642 = vpop.f32.mrb[0].mxu0
      %v7643 = vadd.f32 %v7451, %v7642
      %v7644 = vpop.f32.mrb[0].mxu0
      %7645 = vmatprep.mubr.bf16.mxu0 0
      %7646 = vmatmul.mubr.bf16.gmra.mrb[0].mxu0 %v7512
      %v7647 = vpop.f32.mrb[0].mxu0
      %v7648 = vadd.f32 %v7451, %v7647
      %v7649 = vpop.f32.mrb[0].mxu0
      %v7650 = vpop.f32.mrb[0].mxu0
      %v7651 = vadd.f32 %v7451, %v7650
      %v7652 = vpop.f32.mrb[0].mxu0
      %7653 = vmatprep.mubr.bf16.mxu0 0
      %7654 = vmatmul.mubr.bf16.gmra.mrb[0].mxu0 %v7515
      %v7655 = vpop.f32.mrb[0].mxu0
      %v7656 = vadd.f32 %v7451, %v7655
      %v7657 = vpop.f32.mrb[0].mxu0
      %v7658 = vpop.f32.mrb[0].mxu0
      %v7659 = vadd.f32 %v7451, %v7658
      %v7660 = vpop.f32.mrb[0].mxu0
      %7661 = vmatprep.mubr.bf16.mxu0 0
      %7662 = vmatmul.mubr.bf16.gmra.mrb[0].mxu0 %v7518
      %v7663 = vpop.f32.mrb[0].mxu0
      %v7664 = vadd.f32 %v7451, %v7663
      %v7665 = vpop.f32.mrb[0].mxu0
      %v7666 = vpop.f32.mrb[0].mxu0
      %v7667 = vadd.f32 %v7451, %v7666
      %v7668 = vpop.f32.mrb[0].mxu0
      %7669 = vmatprep.mubr.bf16.mxu0 0
      %7670 = vmatmul.mubr.bf16.gmra.mrb[0].mxu0 %v7521
      %v7671 = vpop.f32.mrb[0].mxu0
      %v7672 = vadd.f32 %v7451, %v7671
      %v7673 = vpop.f32.mrb[0].mxu0
      %v7674 = vpop.f32.mrb[0].mxu0
      %v7675 = vadd.f32 %v7451, %v7674
      %v7676 = vpop.f32.mrb[0].mxu0
      %7677 = vmatprep.mubr.bf16.mxu0 0
      %7678 = vmatmul.mubr.bf16.gmra.mrb[0].mxu0 %v7524
      %v7679 = vpop.f32.mrb[0].mxu0
      %v7680 = vadd.f32 %v7451, %v7679
      %v7681 = vpop.f32.mrb[0].mxu0
      %v7682 = vpop.f32.mrb[0].mxu0
      %v7683 = vadd.f32 %v7451, %v7682
      %v7684 = vpop.f32.mrb[0].mxu0
      %7685 = vmatprep.mubr.bf16.mxu0 0
      %7686 = vmatmul.mubr.bf16.gmra.mrb[0].mxu0 %v7527
      %v7687 = vpop.f32.mrb[0].mxu0
      %v7688 = vadd.f32 %v7451, %v7687
      %v7689 = vpop.f32.mrb[0].mxu0
      %v7690 = vpop.f32.mrb[0].mxu0
      %v7691 = vadd.f32 %v7451, %v7690
      %v7692 = vpop.f32.mrb[0].mxu0
      %7693 = vdwg.mxu0
      %p7694 = scmp.eq.s32.totalorder %s20, 0
      // Predicated region
      $region45: #{conv_block_forward.4} parent=43 // pred_check
        %p7695 = pneg %p7694
      $region46: #{conv_block_forward.4} parent=43 // pred_check_branch
        %7697 = sbr.rel (%p7695) target = $region48
      $region47: #{conv_block_forward.4} parent=43 // pred_region
        %vm7698 = vcmask 57344
        %7699 = vst.msk [vmem:[%s7] sm:$0x1] %vm7698, 0.0
        %7700 = vst.msk [vmem:[%s8] sm:$0x1] %vm7698, 0.0
      $region48: #{conv_block_forward.4} parent=43 // pred_fallthru
        _
      %v7701 = vld [vmem:[%s7] sm:$0x1]
      %v7702 = vsel %vm7157, %v7568, 0.0
      %v7703 = vsel %vm7157, %v7571, 0.0
      %v7704 = vadd.f32 %v7702, %v7703
      %v7705 = vsel %vm7157, %v7576, 0.0
      %v7706 = vadd.f32 %v7704, %v7705
      %v7707 = vsel %vm7157, %v7579, 0.0
      %v7708 = vadd.f32 %v7706, %v7707
      %v7709 = vsel %vm7157, %v7584, 0.0
      %v7710 = vadd.f32 %v7708, %v7709
      %v7711 = vsel %vm7157, %v7587, 0.0
      %v7712 = vadd.f32 %v7710, %v7711
      %v7713 = vsel %vm7157, %v7592, 0.0
      %v7714 = vadd.f32 %v7712, %v7713
      %v7715 = vsel %vm7157, %v7595, 0.0
      %v7716 = vadd.f32 %v7714, %v7715
      %v7717 = vsel %vm7157, %v7600, 0.0
      %v7718 = vadd.f32 %v7716, %v7717
      %v7719 = vsel %vm7157, %v7603, 0.0
      %v7720 = vadd.f32 %v7718, %v7719
      %v7721 = vsel %vm7157, %v7608, 0.0
      %v7722 = vadd.f32 %v7720, %v7721
      %v7723 = vsel %vm7157, %v7611, 0.0
      %v7724 = vadd.f32 %v7722, %v7723
      %v7725 = vsel %vm7157, %v7616, 0.0
      %v7726 = vadd.f32 %v7724, %v7725
      %v7727 = vsel %vm7157, %v7619, 0.0
      %v7728 = vadd.f32 %v7726, %v7727
      %v7729 = vsel %vm7157, %v7624, 0.0
      %v7730 = vadd.f32 %v7728, %v7729
      %v7731 = vsel %vm7157, %v7627, 0.0
      %v7732 = vadd.f32 %v7730, %v7731
      %v7733 = vsel %vm7157, %v7632, 0.0
      %v7734 = vadd.f32 %v7732, %v7733
      %v7735 = vsel %vm7157, %v7635, 0.0
      %v7736 = vadd.f32 %v7734, %v7735
      %v7737 = vsel %vm7157, %v7640, 0.0
      %v7738 = vadd.f32 %v7736, %v7737
      %v7739 = vsel %vm7157, %v7643, 0.0
      %v7740 = vadd.f32 %v7738, %v7739
      %v7741 = vsel %vm7157, %v7648, 0.0
      %v7742 = vadd.f32 %v7740, %v7741
      %v7743 = vsel %vm7157, %v7651, 0.0
      %v7744 = vadd.f32 %v7742, %v7743
      %v7745 = vsel %vm7157, %v7656, 0.0
      %v7746 = vadd.f32 %v7744, %v7745
      %v7747 = vsel %vm7157, %v7659, 0.0
      %v7748 = vadd.f32 %v7746, %v7747
      %v7749 = vsel %vm7157, %v7664, 0.0
      %v7750 = vadd.f32 %v7748, %v7749
      %v7751 = vsel %vm7157, %v7667, 0.0
      %v7752 = vadd.f32 %v7750, %v7751
      %v7753 = vsel %vm7157, %v7672, 0.0
      %v7754 = vadd.f32 %v7752, %v7753
      %v7755 = vsel %vm7157, %v7675, 0.0
      %v7756 = vadd.f32 %v7754, %v7755
      %v7757 = vsel %vm7157, %v7680, 0.0
      %v7758 = vadd.f32 %v7756, %v7757
      %v7759 = vsel %vm7157, %v7683, 0.0
      %v7760 = vadd.f32 %v7758, %v7759
      %v7761 = vsel %vm7157, %v7688, 0.0
      %v7762 = vadd.f32 %v7760, %v7761
      %v7763 = vsel %vm7157, %v7691, 0.0
      %v7764 = vadd.f32 %v7762, %v7763
      %v7765 = vrot.slane %v7764, 4
      %v7766 = vadd.f32 %v7764, %v7765
      %v7767 = vrot.slane %v7766, 2
      %v7768 = vadd.f32 %v7766, %v7767
      %v7769 = vrot.slane %v7768, 1
      %v7770 = vadd.f32 %v7768, %v7769
      %v7771 = vadd.f32 %v7701, %v7770
      %vm7772 = vcmask 57344
      %7773 = vst.msk [vmem:[%s7] sm:$0x1] %vm7772, %v7771
      %v7774 = vld [vmem:[%s8] sm:$0x1]
      %v7775 = vmul.f32 %v7568, %v7568
      %v7776 = vmul.f32 %v7571, %v7571
      %v7777 = vmul.f32 %v7576, %v7576
      %v7778 = vmul.f32 %v7579, %v7579
      %v7779 = vmul.f32 %v7584, %v7584
      %v7780 = vmul.f32 %v7587, %v7587
      %v7781 = vmul.f32 %v7592, %v7592
      %v7782 = vmul.f32 %v7595, %v7595
      %v7783 = vmul.f32 %v7600, %v7600
      %v7784 = vmul.f32 %v7603, %v7603
      %v7785 = vmul.f32 %v7608, %v7608
      %v7786 = vmul.f32 %v7611, %v7611
      %v7787 = vmul.f32 %v7616, %v7616
      %v7788 = vmul.f32 %v7619, %v7619
      %v7789 = vmul.f32 %v7624, %v7624
      %v7790 = vmul.f32 %v7627, %v7627
      %v7791 = vmul.f32 %v7632, %v7632
      %v7792 = vmul.f32 %v7635, %v7635
      %v7793 = vmul.f32 %v7640, %v7640
      %v7794 = vmul.f32 %v7643, %v7643
      %v7795 = vmul.f32 %v7648, %v7648
      %v7796 = vmul.f32 %v7651, %v7651
      %v7797 = vmul.f32 %v7656, %v7656
      %v7798 = vmul.f32 %v7659, %v7659
      %v7799 = vmul.f32 %v7664, %v7664
      %v7800 = vmul.f32 %v7667, %v7667
      %v7801 = vmul.f32 %v7672, %v7672
      %v7802 = vmul.f32 %v7675, %v7675
      %v7803 = vmul.f32 %v7680, %v7680
      %v7804 = vmul.f32 %v7683, %v7683
      %v7805 = vmul.f32 %v7688, %v7688
      %v7806 = vmul.f32 %v7691, %v7691
      %v7807 = vsel %vm7157, %v7775, 0.0
      %v7808 = vsel %vm7157, %v7776, 0.0
      %v7809 = vadd.f32 %v7807, %v7808
      %v7810 = vsel %vm7157, %v7777, 0.0
      %v7811 = vadd.f32 %v7809, %v7810
      %v7812 = vsel %vm7157, %v7778, 0.0
      %v7813 = vadd.f32 %v7811, %v7812
      %v7814 = vsel %vm7157, %v7779, 0.0
      %v7815 = vadd.f32 %v7813, %v7814
      %v7816 = vsel %vm7157, %v7780, 0.0
      %v7817 = vadd.f32 %v7815, %v7816
      %v7818 = vsel %vm7157, %v7781, 0.0
      %v7819 = vadd.f32 %v7817, %v7818
      %v7820 = vsel %vm7157, %v7782, 0.0
      %v7821 = vadd.f32 %v7819, %v7820
      %v7822 = vsel %vm7157, %v7783, 0.0
      %v7823 = vadd.f32 %v7821, %v7822
      %v7824 = vsel %vm7157, %v7784, 0.0
      %v7825 = vadd.f32 %v7823, %v7824
      %v7826 = vsel %vm7157, %v7785, 0.0
      %v7827 = vadd.f32 %v7825, %v7826
      %v7828 = vsel %vm7157, %v7786, 0.0
      %v7829 = vadd.f32 %v7827, %v7828
      %v7830 = vsel %vm7157, %v7787, 0.0
      %v7831 = vadd.f32 %v7829, %v7830
      %v7832 = vsel %vm7157, %v7788, 0.0
      %v7833 = vadd.f32 %v7831, %v7832
      %v7834 = vsel %vm7157, %v7789, 0.0
      %v7835 = vadd.f32 %v7833, %v7834
      %v7836 = vsel %vm7157, %v7790, 0.0
      %v7837 = vadd.f32 %v7835, %v7836
      %v7838 = vsel %vm7157, %v7791, 0.0
      %v7839 = vadd.f32 %v7837, %v7838
      %v7840 = vsel %vm7157, %v7792, 0.0
      %v7841 = vadd.f32 %v7839, %v7840
      %v7842 = vsel %vm7157, %v7793, 0.0
      %v7843 = vadd.f32 %v7841, %v7842
      %v7844 = vsel %vm7157, %v7794, 0.0
      %v7845 = vadd.f32 %v7843, %v7844
      %v7846 = vsel %vm7157, %v7795, 0.0
      %v7847 = vadd.f32 %v7845, %v7846
      %v7848 = vsel %vm7157, %v7796, 0.0
      %v7849 = vadd.f32 %v7847, %v7848
      %v7850 = vsel %vm7157, %v7797, 0.0
      %v7851 = vadd.f32 %v7849, %v7850
      %v7852 = vsel %vm7157, %v7798, 0.0
      %v7853 = vadd.f32 %v7851, %v7852
      %v7854 = vsel %vm7157, %v7799, 0.0
      %v7855 = vadd.f32 %v7853, %v7854
      %v7856 = vsel %vm7157, %v7800, 0.0
      %v7857 = vadd.f32 %v7855, %v7856
      %v7858 = vsel %vm7157, %v7801, 0.0
      %v7859 = vadd.f32 %v7857, %v7858
      %v7860 = vsel %vm7157, %v7802, 0.0
      %v7861 = vadd.f32 %v7859, %v7860
      %v7862 = vsel %vm7157, %v7803, 0.0
      %v7863 = vadd.f32 %v7861, %v7862
      %v7864 = vsel %vm7157, %v7804, 0.0
      %v7865 = vadd.f32 %v7863, %v7864
      %v7866 = vsel %vm7157, %v7805, 0.0
      %v7867 = vadd.f32 %v7865, %v7866
      %v7868 = vsel %vm7157, %v7806, 0.0
      %v7869 = vadd.f32 %v7867, %v7868
      %v7870 = vrot.slane %v7869, 4
      %v7871 = vadd.f32 %v7869, %v7870
      %v7872 = vrot.slane %v7871, 2
      %v7873 = vadd.f32 %v7871, %v7872
      %v7874 = vrot.slane %v7873, 1
      %v7875 = vadd.f32 %v7873, %v7874
      %v7876 = vadd.f32 %v7774, %v7875
      %7877 = vst.msk [vmem:[%s8] sm:$0x1] %vm7772, %v7876
      %7878 = vst.msk [vmem:[%s300] sm:$0xff] %vm7157, %v7568
      %7879 = vst.msk [vmem:[%s300 + $0x8] sm:$0xff] %vm7157, %v7571
      %7880 = vst.msk [vmem:[%s300 + $0x10] sm:$0xff] %vm7157, %v7576
      %7881 = vst.msk [vmem:[%s300 + $0x18] sm:$0xff] %vm7157, %v7579
      %7882 = vst.msk [vmem:[%s300 + $0x20] sm:$0xff] %vm7157, %v7584
      %7883 = vst.msk [vmem:[%s300 + $0x28] sm:$0xff] %vm7157, %v7587
      %7884 = vst.msk [vmem:[%s300 + $0x30] sm:$0xff] %vm7157, %v7592
      %7885 = vst.msk [vmem:[%s300 + $0x38] sm:$0xff] %vm7157, %v7595
      %7886 = vst.msk [vmem:[%s300 + $0x40] sm:$0xff] %vm7157, %v7600
      %7887 = vst.msk [vmem:[%s300 + $0x48] sm:$0xff] %vm7157, %v7603
      %7888 = vst.msk [vmem:[%s300 + $0x50] sm:$0xff] %vm7157, %v7608
      %7889 = vst.msk [vmem:[%s300 + $0x58] sm:$0xff] %vm7157, %v7611
      %7890 = vst.msk [vmem:[%s300 + $0x60] sm:$0xff] %vm7157, %v7616
      %7891 = vst.msk [vmem:[%s300 + $0x68] sm:$0xff] %vm7157, %v7619
      %7892 = vst.msk [vmem:[%s300 + $0x70] sm:$0xff] %vm7157, %v7624
      %7893 = vst.msk [vmem:[%s300 + $0x78] sm:$0xff] %vm7157, %v7627
      %7894 = vst.msk [vmem:[%s300 + $0x80] sm:$0xff] %vm7157, %v7632
      %7895 = vst.msk [vmem:[%s300 + $0x88] sm:$0xff] %vm7157, %v7635
      %7896 = vst.msk [vmem:[%s300 + $0x90] sm:$0xff] %vm7157, %v7640
      %7897 = vst.msk [vmem:[%s300 + $0x98] sm:$0xff] %vm7157, %v7643
      %7898 = vst.msk [vmem:[%s300 + $0xa0] sm:$0xff] %vm7157, %v7648
      %7899 = vst.msk [vmem:[%s300 + $0xa8] sm:$0xff] %vm7157, %v7651
      %7900 = vst.msk [vmem:[%s300 + $0xb0] sm:$0xff] %vm7157, %v7656
      %7901 = vst.msk [vmem:[%s300 + $0xb8] sm:$0xff] %vm7157, %v7659
      %7902 = vst.msk [vmem:[%s300 + $0xc0] sm:$0xff] %vm7157, %v7664
      %7903 = vst.msk [vmem:[%s300 + $0xc8] sm:$0xff] %vm7157, %v7667
      %7904 = vst.msk [vmem:[%s300 + $0xd0] sm:$0xff] %vm7157, %v7672
      %7905 = vst.msk [vmem:[%s300 + $0xd8] sm:$0xff] %vm7157, %v7675
      %7906 = vst.msk [vmem:[%s300 + $0xe0] sm:$0xff] %vm7157, %v7680
      %7907 = vst.msk [vmem:[%s300 + $0xe8] sm:$0xff] %vm7157, %v7683
      %7908 = vst.msk [vmem:[%s300 + $0xf0] sm:$0xff] %vm7157, %v7688
      %7909 = vst.msk [vmem:[%s300 + $0xf8] sm:$0xff] %vm7157, %v7691
      %p7910 = scmp.lt.s32.totalorder %s20, 1
      %s7911 = scalar_select %p7910, %s20, 1
      %s7912 = smul.addr %s7911, 32
      %s7913 = smul.addr %s7912, 8
      %s7914 = scalar_lea.vmem %s6, %s7913
      // Predicated region
      $region49: #{conv_block_forward.4} parent=43 // pred_check
        %p7915 = pneg %p169
      $region50: #{conv_block_forward.4} parent=43 // pred_check_branch
        %7917 = sbr.rel (%p7915) target = $region52
      $region51: #{conv_block_forward.4} parent=43 // pred_region
        _
      $region52: #{conv_block_forward.4} parent=43 // pred_fallthru
        _
      // Predicated region
      $region53: #{conv_block_forward.4} parent=43 // pred_check
        %p7918 = pneg %p190
      $region54: #{conv_block_forward.4} parent=43 // pred_check_branch
        %7920 = sbr.rel (%p7918) target = $region56
      $region55: #{conv_block_forward.4} parent=43 // pred_region
        _
      $region56: #{conv_block_forward.4} parent=43 // pred_fallthru
        _
      // Predicated region
      $region57: #{conv_block_forward.4} parent=43 // pred_check
        %p7921 = pneg %p211
      $region58: #{conv_block_forward.4} parent=43 // pred_check_branch
        %7923 = sbr.rel (%p7921) target = $region60
      $region59: #{conv_block_forward.4} parent=43 // pred_region
        _
      $region60: #{conv_block_forward.4} parent=43 // pred_fallthru
        _
      // Predicated region
      $region61: #{conv_block_forward.4} parent=43 // pred_check
        %p7924 = pneg %p190
      $region62: #{conv_block_forward.4} parent=43 // pred_check_branch
        %7926 = sbr.rel (%p7924) target = $region64
      $region63: #{conv_block_forward.4} parent=43 // pred_region
        _
      $region64: #{conv_block_forward.4} parent=43 // pred_fallthru
        _
      // Predicated region
      $region65: #{conv_block_forward.4} parent=43 // pred_check
        %p7927 = pneg %p211
      $region66: #{conv_block_forward.4} parent=43 // pred_check_branch
        %7929 = sbr.rel (%p7927) target = $region68
      $region67: #{conv_block_forward.4} parent=43 // pred_region
        _
      $region68: #{conv_block_forward.4} parent=43 // pred_fallthru
        _
    $region44: #{conv_block_forward.4} parent=5 // pred_fallthru
      _
    %p7930 = scmp.le.s32.totalorder 2, %s15
    // Predicated region
    $region69: #{conv_block_forward.4} parent=5 // pred_check
      %p7931 = pneg %p7930
    $region70: #{conv_block_forward.4} parent=5 // pred_check_branch
      %7933 = sbr.rel (%p7931) target = $region72
    $region71: #{conv_block_forward.4} parent=5 // pred_region
      %s7934 = ssub.s32 %s15, 2
      // Predicated region
      $region73: #{conv_block_forward.4} parent=71 // pred_check
        %p7935 = pneg %p175
      $region74: #{conv_block_forward.4} parent=71 // pred_check_branch
        %7937 = sbr.rel (%p7935) target = $region76
      $region75: #{conv_block_forward.4} parent=71 // pred_region
        %p7938 = scmp.lt.s32.totalorder %s21, 1
        %s7939 = scalar_select %p7938, %s21, 1
        %s7940 = smul.addr %s7939, 32
        %s7941 = smul.addr %s7940, 8
        %s7942 = scalar_lea.vmem %s6, %s7941
      $region76: #{conv_block_forward.4} parent=71 // pred_fallthru
        _
    $region72: #{conv_block_forward.4} parent=5 // pred_fallthru
      _
  $region6: #{conv_block_forward.4} parent=0 // loop_footer
    %s19 = sadd.s32 1, %s15
  $region7: #{conv_block_forward.4} parent=0 // loop_footer_branch
    %14 = sbr.rel target = $region3
  $region8: #{conv_block_forward.4} parent=0 // loop_exit
    _

</llo_original>
